<compile_context>
chip_gen: v5e
topology: v5e:2x2
jax: 0.10.0
libtpu: 0.0.40
codegen_flags: <defaults>
</compile_context>

<pallas_src>
import jax
import jax.numpy as jnp
from jax.experimental import pallas as pl
from jax.experimental.pallas import tpu as pltpu

COMPUTE_DTYPE = jnp.bfloat16          # MXU input / intermediate storage dtype.
_LANE = 128
_VMEM_LIMIT = 64 * 1024 * 1024        # raised per review (<= v7x physical VMEM).


def _round_up(v, m):
    return (v + m - 1) // m * m


def _choose_ctile(cp, other_blocks):
    """Largest 128-multiple channel tile dividing cp, preferring >= 2 total
    grid blocks so both TensorCores get work on v7x."""
    for t in (512, 384, 256, 128):
        if cp % t == 0 and (cp // t) * other_blocks >= 2:
            return t
    for t in (512, 384, 256, 128):
        if cp % t == 0:
            return t
    return cp


# ---------------------------------------------------------------------------
# Pallas kernels
# ---------------------------------------------------------------------------
def _down_conv_kernel(xc_ref, w_ref, h_ref):
    """Conv2d(k4,s2,p1,no bias) on LeakyReLU'd input, ReLU fused in epilogue.

    xc_ref: (4, Ho+2, Wo+2, Cinp)  parity components of LeakyReLU(x), padded.
    w_ref:  (4, 4, Cinp, tn)       per-(component, tap) weight matrices.
    h_ref:  (R, tn)                ReLU(conv) output tile (bf16), R = Ho*Wo.
    """
    hp2, wp2 = xc_ref.shape[1], xc_ref.shape[2]
    ho, wo = hp2 - 2, wp2 - 2
    acc = jnp.zeros(h_ref.shape, jnp.float32)
    for comp in range(4):
        a, b = comp // 2, comp % 2
        roffs = (1, 2) if a == 0 else (0, 1)
        coffs = (1, 2) if b == 0 else (0, 1)
        ti = 0
        for ro in roffs:
            for co in coffs:
                win = xc_ref[comp, ro:ro + ho, co:co + wo, :]
                acc += jnp.dot(win.reshape(ho * wo, win.shape[-1]),
                               w_ref[comp, ti],
                               preferred_element_type=jnp.float32)
                ti += 1
    # up-path ReLU fused here (h is only consumed through ReLU).
    h_ref[...] = jnp.maximum(acc, 0.0).astype(h_ref.dtype)


def _up_conv_kernel(hp_ref, w_ref, y_ref, s_ref):
    """Phase-decomposed ConvTranspose2d(k4,s2,p1,no bias) + BN partial stats.

    hp_ref: (Ho+2, Wo+2, Cip)   spatially padded ReLU(h) for one batch element.
    w_ref:  (4, 4, Cip, tn)     per-(phase, tap) weight matrices.
    y_ref:  (4, R, tn)          per-phase conv output (bf16), R = Ho*Wo.
    s_ref:  (2, tn)             row0 = sum, row1 = sum of squares (f32).
    """
    ho, wo = hp_ref.shape[0] - 2, hp_ref.shape[1] - 2
    tn = s_ref.shape[-1]
    ssum = jnp.zeros((1, tn), jnp.float32)
    ssq = jnp.zeros((1, tn), jnp.float32)
    for p in range(4):
        pi, pj = p // 2, p % 2
        acc = jnp.zeros((ho * wo, tn), jnp.float32)
        for t in range(4):
            a, b = t // 2, t % 2
            win = hp_ref[pi + a:pi + a + ho, pj + b:pj + b + wo, :]
            acc += jnp.dot(win.reshape(ho * wo, win.shape[-1]),
                           w_ref[p, t],
                           preferred_element_type=jnp.float32)
        y_ref[p] = acc.astype(y_ref.dtype)
        ssum = ssum + jnp.sum(acc, axis=0, keepdims=True)
        ssq = ssq + jnp.sum(acc * acc, axis=0, keepdims=True)
    s_ref[...] = jnp.concatenate([ssum, ssq], axis=0)


def _bn_interleave_kernel(y_ref, sc_ref, sh_ref, o_ref):
    """BatchNorm apply fused with the width-parity interleave.

    y_ref:  (2, R, Cp)           the two pj phases of one pi / batch element.
    sc/sh:  (1, Cp)              per-channel scale / shift (f32).
    o_ref:  (Ho, Wo, 2, Cout)    o[i, j, pj, :] = normalized y[pj, i*Wo+j, :].
    """
    ho, wo, _, cout = o_ref.shape
    y = y_ref[...].astype(jnp.float32) * sc_ref[...] + sh_ref[...]
    o_ref[:, :, 0, :] = y[0, :, :cout].reshape(ho, wo, cout)
    o_ref[:, :, 1, :] = y[1, :, :cout].reshape(ho, wo, cout)


# ---------------------------------------------------------------------------
# Pallas wrappers
# ---------------------------------------------------------------------------
def _down_conv(xc, wdk):
    _, n, hp2, wp2, cinp = xc.shape
    innerp = wdk.shape[-1]
    r = (hp2 - 2) * (wp2 - 2)
    tn = _choose_ctile(innerp, n)
    grid = (innerp // tn, n)                      # weights constant over inner axis
    return pl.pallas_call(
        _down_conv_kernel,
        out_shape=jax.ShapeDtypeStruct((n, r, innerp), xc.dtype),
        grid=grid,
        in_specs=[
            pl.BlockSpec((4, None, hp2, wp2, cinp), lambda j, b: (0, b, 0, 0, 0)),
            pl.BlockSpec((4, 4, cinp, tn), lambda j, b: (0, 0, 0, j)),
        ],
        out_specs=pl.BlockSpec((None, r, tn), lambda j, b: (b, 0, j)),
        compiler_params=pltpu.CompilerParams(
            dimension_semantics=("parallel", "parallel"),
            vmem_limit_bytes=_VMEM_LIMIT),
    )(xc, wdk)


def _up_conv(hp, wuk):
    n, hp2, wp2, cip = hp.shape
    outerp = wuk.shape[-1]
    r = (hp2 - 2) * (wp2 - 2)
    tn = _choose_ctile(outerp, n)
    grid = (outerp // tn, n)
    return pl.pallas_call(
        _up_conv_kernel,
        out_shape=(jax.ShapeDtypeStruct((4, n, r, outerp), hp.dtype),
                   jax.ShapeDtypeStruct((n, 2, outerp), jnp.float32)),
        grid=grid,
        in_specs=[
            pl.BlockSpec((None, hp2, wp2, cip), lambda j, b: (b, 0, 0, 0)),
            pl.BlockSpec((4, 4, cip, tn), lambda j, b: (0, 0, 0, j)),
        ],
        out_specs=(pl.BlockSpec((4, None, r, tn), lambda j, b: (0, b, 0, j)),
                   pl.BlockSpec((None, 2, tn), lambda j, b: (b, 0, j))),
        compiler_params=pltpu.CompilerParams(
            dimension_semantics=("parallel", "parallel"),
            vmem_limit_bytes=_VMEM_LIMIT),
    )(hp, wuk)


def _bn_apply_interleave(y, scale, shift, ho, wo, c_out):
    _, n, r, cp = y.shape
    return pl.pallas_call(
        _bn_interleave_kernel,
        out_shape=jax.ShapeDtypeStruct((n, ho, 2, wo, 2, c_out), jnp.float32),
        grid=(n, 2),                              # (batch, H-parity), both parallel
        in_specs=[
            pl.BlockSpec((2, None, r, cp), lambda b, pi: (pi, b, 0, 0)),
            pl.BlockSpec((1, cp), lambda b, pi: (0, 0)),
            pl.BlockSpec((1, cp), lambda b, pi: (0, 0)),
        ],
        out_specs=pl.BlockSpec((None, ho, None, wo, 2, c_out),
                               lambda b, pi: (b, 0, pi, 0, 0, 0)),
        compiler_params=pltpu.CompilerParams(
            dimension_semantics=("parallel", "parallel"),
            vmem_limit_bytes=_VMEM_LIMIT),
    )(y, scale, shift)


# ---------------------------------------------------------------------------
# Forward pass of the innermost UnetSkipConnectionBlock
# ---------------------------------------------------------------------------
def unet_innermost_forward(x_nchw, params, *, eps=1e-5,
                           compute_dtype=COMPUTE_DTYPE):
    w_down = params["down_w"]      # (inner_nc, input_nc, 4, 4)  Conv2d (O,I,kH,kW)
    w_up = params["up_w"]          # (inner_nc, outer_nc, 4, 4)  ConvTranspose2d (I,O,kH,kW)
    gamma = params["bn_gamma"].astype(jnp.float32)
    beta = params["bn_beta"].astype(jnp.float32)

    n, c_in, h_in, w_in = x_nchw.shape
    inner_nc = w_down.shape[0]
    outer_nc = w_up.shape[1]
    assert h_in % 2 == 0 and w_in % 2 == 0, "skip concat needs even H, W"
    ho, wo = h_in // 2, w_in // 2
    r = ho * wo

    cinp = _round_up(c_in, _LANE)
    innerp = _round_up(inner_nc, _LANE)
    outerp = _round_up(outer_nc, _LANE)

    # --- LeakyReLU(0.2) applied ONCE to x (commutes with zero padding) -----
    x_nhwc = jnp.transpose(x_nchw, (0, 2, 3, 1))
    xa = jnp.where(x_nhwc >= 0, x_nhwc, 0.2 * x_nhwc).astype(compute_dtype)
    # Parity components xc[a*2+b][n,i,j,:] = xa[n, 2i+a, 2j+b, :], spatial pad 1.
    xc = xa.reshape(n, ho, 2, wo, 2, c_in)
    xc = jnp.transpose(xc, (2, 4, 0, 1, 3, 5)).reshape(4, n, ho, wo, c_in)
    xc = jnp.pad(xc, ((0, 0), (0, 0), (1, 1), (1, 1), (0, cinp - c_in)))

    # Down weights -> (4 components, 4 taps, cinp, innerp).
    wt = jnp.transpose(w_down, (2, 3, 1, 0))      # (ky, kx, cin, inner)
    ky_for = {0: (1, 3), 1: (0, 2)}               # component parity -> kernel rows
    blocks = []
    for a in (0, 1):
        for b in (0, 1):
            blocks.append(jnp.stack(
                [wt[ky, kx] for ky in ky_for[a] for kx in ky_for[b]], axis=0))
    wdk = jnp.stack(blocks, axis=0)               # (4, 4, cin, inner)
    wdk = jnp.pad(wdk, ((0, 0), (0, 0), (0, cinp - c_in),
                        (0, innerp - inner_nc))).astype(compute_dtype)

    # --- down conv (ReLU for the up path fused in its epilogue) ------------
    h = _down_conv(xc, wdk)                       # (N, R, innerp) bf16
    hp = jnp.pad(h.reshape(n, ho, wo, innerp), ((0, 0), (1, 1), (1, 1), (0, 0)))

    # Up weights: per (output phase, 2x2 tap) sub-kernels of the ConvTranspose.
    mats = []
    for pi in (0, 1):
        for pj in (0, 1):
            mats.append(jnp.stack(
                [w_up[:, :, 3 - pi - 2 * a, 3 - pj - 2 * b]
                 for a in (0, 1) for b in (0, 1)], axis=0))
    wuk = jnp.stack(mats, axis=0)                 # (4, 4, inner, outer)
    wuk = jnp.pad(wuk, ((0, 0), (0, 0), (0, innerp - inner_nc),
                        (0, outerp - outer_nc))).astype(compute_dtype)

    # --- up conv + BN partial stats in the epilogue -------------------------
    y, stats = _up_conv(hp, wuk)                  # y: (4, N, R, outerp) bf16

    # --- BatchNorm2d, training-mode batch statistics (biased variance) ------
    cnt = jnp.float32(n * 4 * r)                  # padded channels are exact zeros
    tot = jnp.sum(stats, axis=0)                  # (2, outerp)
    mean = tot[0] / cnt
    var = jnp.maximum(tot[1] / cnt - mean * mean, 0.0)
    inv = jax.lax.rsqrt(var + eps)
    gamma_p = jnp.pad(gamma, (0, outerp - outer_nc))
    beta_p = jnp.pad(beta, (0, outerp - outer_nc))
    scale = (gamma_p * inv)[None, :]              # (1, outerp)
    shift = (beta_p - mean * gamma_p * inv)[None, :]

    # --- BN apply fused with the W-parity interleave ------------------------
    y5 = _bn_apply_interleave(y, scale, shift, ho, wo, outer_nc)
    y_nhwc = y5.reshape(n, 2 * ho, 2 * wo, outer_nc)     # free reshape

    # Skip concat + NCHW layout (one fused XLA transpose/concat pass).
    out = jnp.concatenate(
        [x_nchw.astype(jnp.float32), jnp.transpose(y_nhwc, (0, 3, 1, 2))],
        axis=1)
    return out


# ---------------------------------------------------------------------------
if __name__ == "__main__":
    key = jax.random.PRNGKey(0)
    N, outer_nc, inner_nc, H, W = 2, 4, 8, 16, 16   # input_nc = outer_nc (default)
    k1, k2, k3, k4, k5 = jax.random.split(key, 5)

    x = jax.random.normal(k1, (N, outer_nc, H, W), jnp.float32)
    params = {
        "down_w": 0.1 * jax.random.normal(k2, (inner_nc, outer_nc, 4, 4), jnp.float32),
        "up_w": 0.1 * jax.random.normal(k3, (inner_nc, outer_nc, 4, 4), jnp.float32),
        "bn_gamma": 1.0 + 0.1 * jax.random.normal(k4, (outer_nc,), jnp.float32),
        "bn_beta": 0.1 * jax.random.normal(k5, (outer_nc,), jnp.float32),
    }

    out = jax.jit(unet_innermost_forward)(x, params)
    out = jax.block_until_ready(out)

    assert out.shape == (N, 2 * outer_nc, H, W), out.shape
    assert bool(jnp.all(jnp.isfinite(out)))
    print("KERNEL_OK")
</pallas_src>

<mosaic_0001>
module attributes {stable_mosaic.version = 11 : i64} {
  func.func @_down_conv_kernel(%arg0: i32, %arg1: i32, %arg2: memref<4x1x10x10x128xbf16, #tpu.memory_space<vmem>>, %arg3: memref<4x4x128x128xbf16, #tpu.memory_space<vmem>>, %arg4: memref<1x64x128xbf16, #tpu.memory_space<vmem>>) attributes {dimension_semantics = [#tpu.dimension_semantics<parallel>, #tpu.dimension_semantics<parallel>], iteration_bounds = array<i64: 1, 2>, scalar_prefetch = 0 : i64, scratch_operands = 0 : i64, tpu.core_type = #tpu.core_type<tc>, window_params = [{transform_indices = @transform_0, window_bounds = array<i64: 4, 1, 10, 10, 128>}, {transform_indices = @transform_1, window_bounds = array<i64: 4, 4, 128, 128>}, {transform_indices = @transform_2, window_bounds = array<i64: 1, 64, 128>}]} {
    %cst = arith.constant 0.000000e+00 : f32
    %0 = vector.broadcast %cst : f32 to vector<64x128xf32>
    %c0 = arith.constant 0 : index
    %c0_0 = arith.constant 0 : index
    %c1 = arith.constant 1 : index
    %c1_1 = arith.constant 1 : index
    %c0_2 = arith.constant 0 : index
    %1 = vector.load %arg2[%c0, %c0_0, %c1, %c1_1, %c0_2] : memref<4x1x10x10x128xbf16, #tpu.memory_space<vmem>>, vector<1x1x8x8x128xbf16>
    %2 = vector.shape_cast %1 : vector<1x1x8x8x128xbf16> to vector<8x8x128xbf16>
    %3 = vector.shape_cast %2 : vector<8x8x128xbf16> to vector<64x128xbf16>
    %c0_3 = arith.constant 0 : index
    %c0_4 = arith.constant 0 : index
    %c0_5 = arith.constant 0 : index
    %c0_6 = arith.constant 0 : index
    %4 = vector.load %arg3[%c0_3, %c0_4, %c0_5, %c0_6] : memref<4x4x128x128xbf16, #tpu.memory_space<vmem>>, vector<1x1x128x128xbf16>
    %5 = vector.shape_cast %4 : vector<1x1x128x128xbf16> to vector<128x128xbf16>
    %cst_7 = arith.constant dense<0.000000e+00> : vector<64x128xf32>
    %6 = tpu.matmul %3, %5, %cst_7 {dimension_numbers = #tpu.dot_dimension_numbers<[1], [0], [0], [1], [0, 0, 1, 1], [], []>} : vector<64x128xbf16>, vector<128x128xbf16>, vector<64x128xf32> -> vector<64x128xf32>
    %7 = arith.addf %0, %6 : vector<64x128xf32>
    %c0_8 = arith.constant 0 : index
    %c0_9 = arith.constant 0 : index
    %c1_10 = arith.constant 1 : index
    %c2 = arith.constant 2 : index
    %c0_11 = arith.constant 0 : index
    %8 = vector.load %arg2[%c0_8, %c0_9, %c1_10, %c2, %c0_11] : memref<4x1x10x10x128xbf16, #tpu.memory_space<vmem>>, vector<1x1x8x8x128xbf16>
    %9 = vector.shape_cast %8 : vector<1x1x8x8x128xbf16> to vector<8x8x128xbf16>
    %10 = vector.shape_cast %9 : vector<8x8x128xbf16> to vector<64x128xbf16>
    %c0_12 = arith.constant 0 : index
    %c1_13 = arith.constant 1 : index
    %c0_14 = arith.constant 0 : index
    %c0_15 = arith.constant 0 : index
    %11 = vector.load %arg3[%c0_12, %c1_13, %c0_14, %c0_15] : memref<4x4x128x128xbf16, #tpu.memory_space<vmem>>, vector<1x1x128x128xbf16>
    %12 = vector.shape_cast %11 : vector<1x1x128x128xbf16> to vector<128x128xbf16>
    %cst_16 = arith.constant dense<0.000000e+00> : vector<64x128xf32>
    %13 = tpu.matmul %10, %12, %cst_16 {dimension_numbers = #tpu.dot_dimension_numbers<[1], [0], [0], [1], [0, 0, 1, 1], [], []>} : vector<64x128xbf16>, vector<128x128xbf16>, vector<64x128xf32> -> vector<64x128xf32>
    %14 = arith.addf %7, %13 : vector<64x128xf32>
    %c0_17 = arith.constant 0 : index
    %c0_18 = arith.constant 0 : index
    %c2_19 = arith.constant 2 : index
    %c1_20 = arith.constant 1 : index
    %c0_21 = arith.constant 0 : index
    %15 = vector.load %arg2[%c0_17, %c0_18, %c2_19, %c1_20, %c0_21] : memref<4x1x10x10x128xbf16, #tpu.memory_space<vmem>>, vector<1x1x8x8x128xbf16>
    %16 = vector.shape_cast %15 : vector<1x1x8x8x128xbf16> to vector<8x8x128xbf16>
    %17 = vector.shape_cast %16 : vector<8x8x128xbf16> to vector<64x128xbf16>
    %c0_22 = arith.constant 0 : index
    %c2_23 = arith.constant 2 : index
    %c0_24 = arith.constant 0 : index
    %c0_25 = arith.constant 0 : index
    %18 = vector.load %arg3[%c0_22, %c2_23, %c0_24, %c0_25] : memref<4x4x128x128xbf16, #tpu.memory_space<vmem>>, vector<1x1x128x128xbf16>
    %19 = vector.shape_cast %18 : vector<1x1x128x128xbf16> to vector<128x128xbf16>
    %cst_26 = arith.constant dense<0.000000e+00> : vector<64x128xf32>
    %20 = tpu.matmul %17, %19, %cst_26 {dimension_numbers = #tpu.dot_dimension_numbers<[1], [0], [0], [1], [0, 0, 1, 1], [], []>} : vector<64x128xbf16>, vector<128x128xbf16>, vector<64x128xf32> -> vector<64x128xf32>
    %21 = arith.addf %14, %20 : vector<64x128xf32>
    %c0_27 = arith.constant 0 : index
    %c0_28 = arith.constant 0 : index
    %c2_29 = arith.constant 2 : index
    %c2_30 = arith.constant 2 : index
    %c0_31 = arith.constant 0 : index
    %22 = vector.load %arg2[%c0_27, %c0_28, %c2_29, %c2_30, %c0_31] : memref<4x1x10x10x128xbf16, #tpu.memory_space<vmem>>, vector<1x1x8x8x128xbf16>
    %23 = vector.shape_cast %22 : vector<1x1x8x8x128xbf16> to vector<8x8x128xbf16>
    %24 = vector.shape_cast %23 : vector<8x8x128xbf16> to vector<64x128xbf16>
    %c0_32 = arith.constant 0 : index
    %c3 = arith.constant 3 : index
    %c0_33 = arith.constant 0 : index
    %c0_34 = arith.constant 0 : index
    %25 = vector.load %arg3[%c0_32, %c3, %c0_33, %c0_34] : memref<4x4x128x128xbf16, #tpu.memory_space<vmem>>, vector<1x1x128x128xbf16>
    %26 = vector.shape_cast %25 : vector<1x1x128x128xbf16> to vector<128x128xbf16>
    %cst_35 = arith.constant dense<0.000000e+00> : vector<64x128xf32>
    %27 = tpu.matmul %24, %26, %cst_35 {dimension_numbers = #tpu.dot_dimension_numbers<[1], [0], [0], [1], [0, 0, 1, 1], [], []>} : vector<64x128xbf16>, vector<128x128xbf16>, vector<64x128xf32> -> vector<64x128xf32>
    %28 = arith.addf %21, %27 : vector<64x128xf32>
    %c1_36 = arith.constant 1 : index
    %c0_37 = arith.constant 0 : index
    %c1_38 = arith.constant 1 : index
    %c0_39 = arith.constant 0 : index
    %c0_40 = arith.constant 0 : index
    %29 = vector.load %arg2[%c1_36, %c0_37, %c1_38, %c0_39, %c0_40] : memref<4x1x10x10x128xbf16, #tpu.memory_space<vmem>>, vector<1x1x8x8x128xbf16>
    %30 = vector.shape_cast %29 : vector<1x1x8x8x128xbf16> to vector<8x8x128xbf16>
    %31 = vector.shape_cast %30 : vector<8x8x128xbf16> to vector<64x128xbf16>
    %c1_41 = arith.constant 1 : index
    %c0_42 = arith.constant 0 : index
    %c0_43 = arith.constant 0 : index
    %c0_44 = arith.constant 0 : index
    %32 = vector.load %arg3[%c1_41, %c0_42, %c0_43, %c0_44] : memref<4x4x128x128xbf16, #tpu.memory_space<vmem>>, vector<1x1x128x128xbf16>
    %33 = vector.shape_cast %32 : vector<1x1x128x128xbf16> to vector<128x128xbf16>
    %cst_45 = arith.constant dense<0.000000e+00> : vector<64x128xf32>
    %34 = tpu.matmul %31, %33, %cst_45 {dimension_numbers = #tpu.dot_dimension_numbers<[1], [0], [0], [1], [0, 0, 1, 1], [], []>} : vector<64x128xbf16>, vector<128x128xbf16>, vector<64x128xf32> -> vector<64x128xf32>
    %35 = arith.addf %28, %34 : vector<64x128xf32>
    %c1_46 = arith.constant 1 : index
    %c0_47 = arith.constant 0 : index
    %c1_48 = arith.constant 1 : index
    %c1_49 = arith.constant 1 : index
    %c0_50 = arith.constant 0 : index
    %36 = vector.load %arg2[%c1_46, %c0_47, %c1_48, %c1_49, %c0_50] : memref<4x1x10x10x128xbf16, #tpu.memory_space<vmem>>, vector<1x1x8x8x128xbf16>
    %37 = vector.shape_cast %36 : vector<1x1x8x8x128xbf16> to vector<8x8x128xbf16>
    %38 = vector.shape_cast %37 : vector<8x8x128xbf16> to vector<64x128xbf16>
    %c1_51 = arith.constant 1 : index
    %c1_52 = arith.constant 1 : index
    %c0_53 = arith.constant 0 : index
    %c0_54 = arith.constant 0 : index
    %39 = vector.load %arg3[%c1_51, %c1_52, %c0_53, %c0_54] : memref<4x4x128x128xbf16, #tpu.memory_space<vmem>>, vector<1x1x128x128xbf16>
    %40 = vector.shape_cast %39 : vector<1x1x128x128xbf16> to vector<128x128xbf16>
    %cst_55 = arith.constant dense<0.000000e+00> : vector<64x128xf32>
    %41 = tpu.matmul %38, %40, %cst_55 {dimension_numbers = #tpu.dot_dimension_numbers<[1], [0], [0], [1], [0, 0, 1, 1], [], []>} : vector<64x128xbf16>, vector<128x128xbf16>, vector<64x128xf32> -> vector<64x128xf32>
    %42 = arith.addf %35, %41 : vector<64x128xf32>
    %c1_56 = arith.constant 1 : index
    %c0_57 = arith.constant 0 : index
    %c2_58 = arith.constant 2 : index
    %c0_59 = arith.constant 0 : index
    %c0_60 = arith.constant 0 : index
    %43 = vector.load %arg2[%c1_56, %c0_57, %c2_58, %c0_59, %c0_60] : memref<4x1x10x10x128xbf16, #tpu.memory_space<vmem>>, vector<1x1x8x8x128xbf16>
    %44 = vector.shape_cast %43 : vector<1x1x8x8x128xbf16> to vector<8x8x128xbf16>
    %45 = vector.shape_cast %44 : vector<8x8x128xbf16> to vector<64x128xbf16>
    %c1_61 = arith.constant 1 : index
    %c2_62 = arith.constant 2 : index
    %c0_63 = arith.constant 0 : index
    %c0_64 = arith.constant 0 : index
    %46 = vector.load %arg3[%c1_61, %c2_62, %c0_63, %c0_64] : memref<4x4x128x128xbf16, #tpu.memory_space<vmem>>, vector<1x1x128x128xbf16>
    %47 = vector.shape_cast %46 : vector<1x1x128x128xbf16> to vector<128x128xbf16>
    %cst_65 = arith.constant dense<0.000000e+00> : vector<64x128xf32>
    %48 = tpu.matmul %45, %47, %cst_65 {dimension_numbers = #tpu.dot_dimension_numbers<[1], [0], [0], [1], [0, 0, 1, 1], [], []>} : vector<64x128xbf16>, vector<128x128xbf16>, vector<64x128xf32> -> vector<64x128xf32>
    %49 = arith.addf %42, %48 : vector<64x128xf32>
    %c1_66 = arith.constant 1 : index
    %c0_67 = arith.constant 0 : index
    %c2_68 = arith.constant 2 : index
    %c1_69 = arith.constant 1 : index
    %c0_70 = arith.constant 0 : index
    %50 = vector.load %arg2[%c1_66, %c0_67, %c2_68, %c1_69, %c0_70] : memref<4x1x10x10x128xbf16, #tpu.memory_space<vmem>>, vector<1x1x8x8x128xbf16>
    %51 = vector.shape_cast %50 : vector<1x1x8x8x128xbf16> to vector<8x8x128xbf16>
    %52 = vector.shape_cast %51 : vector<8x8x128xbf16> to vector<64x128xbf16>
    %c1_71 = arith.constant 1 : index
    %c3_72 = arith.constant 3 : index
    %c0_73 = arith.constant 0 : index
    %c0_74 = arith.constant 0 : index
    %53 = vector.load %arg3[%c1_71, %c3_72, %c0_73, %c0_74] : memref<4x4x128x128xbf16, #tpu.memory_space<vmem>>, vector<1x1x128x128xbf16>
    %54 = vector.shape_cast %53 : vector<1x1x128x128xbf16> to vector<128x128xbf16>
    %cst_75 = arith.constant dense<0.000000e+00> : vector<64x128xf32>
    %55 = tpu.matmul %52, %54, %cst_75 {dimension_numbers = #tpu.dot_dimension_numbers<[1], [0], [0], [1], [0, 0, 1, 1], [], []>} : vector<64x128xbf16>, vector<128x128xbf16>, vector<64x128xf32> -> vector<64x128xf32>
    %56 = arith.addf %49, %55 : vector<64x128xf32>
    %c2_76 = arith.constant 2 : index
    %c0_77 = arith.constant 0 : index
    %c0_78 = arith.constant 0 : index
    %c1_79 = arith.constant 1 : index
    %c0_80 = arith.constant 0 : index
    %57 = vector.load %arg2[%c2_76, %c0_77, %c0_78, %c1_79, %c0_80] : memref<4x1x10x10x128xbf16, #tpu.memory_space<vmem>>, vector<1x1x8x8x128xbf16>
    %58 = vector.shape_cast %57 : vector<1x1x8x8x128xbf16> to vector<8x8x128xbf16>
    %59 = vector.shape_cast %58 : vector<8x8x128xbf16> to vector<64x128xbf16>
    %c2_81 = arith.constant 2 : index
    %c0_82 = arith.constant 0 : index
    %c0_83 = arith.constant 0 : index
    %c0_84 = arith.constant 0 : index
    %60 = vector.load %arg3[%c2_81, %c0_82, %c0_83, %c0_84] : memref<4x4x128x128xbf16, #tpu.memory_space<vmem>>, vector<1x1x128x128xbf16>
    %61 = vector.shape_cast %60 : vector<1x1x128x128xbf16> to vector<128x128xbf16>
    %cst_85 = arith.constant dense<0.000000e+00> : vector<64x128xf32>
    %62 = tpu.matmul %59, %61, %cst_85 {dimension_numbers = #tpu.dot_dimension_numbers<[1], [0], [0], [1], [0, 0, 1, 1], [], []>} : vector<64x128xbf16>, vector<128x128xbf16>, vector<64x128xf32> -> vector<64x128xf32>
    %63 = arith.addf %56, %62 : vector<64x128xf32>
    %c2_86 = arith.constant 2 : index
    %c0_87 = arith.constant 0 : index
    %c0_88 = arith.constant 0 : index
    %c2_89 = arith.constant 2 : index
    %c0_90 = arith.constant 0 : index
    %64 = vector.load %arg2[%c2_86, %c0_87, %c0_88, %c2_89, %c0_90] : memref<4x1x10x10x128xbf16, #tpu.memory_space<vmem>>, vector<1x1x8x8x128xbf16>
    %65 = vector.shape_cast %64 : vector<1x1x8x8x128xbf16> to vector<8x8x128xbf16>
    %66 = vector.shape_cast %65 : vector<8x8x128xbf16> to vector<64x128xbf16>
    %c2_91 = arith.constant 2 : index
    %c1_92 = arith.constant 1 : index
    %c0_93 = arith.constant 0 : index
    %c0_94 = arith.constant 0 : index
    %67 = vector.load %arg3[%c2_91, %c1_92, %c0_93, %c0_94] : memref<4x4x128x128xbf16, #tpu.memory_space<vmem>>, vector<1x1x128x128xbf16>
    %68 = vector.shape_cast %67 : vector<1x1x128x128xbf16> to vector<128x128xbf16>
    %cst_95 = arith.constant dense<0.000000e+00> : vector<64x128xf32>
    %69 = tpu.matmul %66, %68, %cst_95 {dimension_numbers = #tpu.dot_dimension_numbers<[1], [0], [0], [1], [0, 0, 1, 1], [], []>} : vector<64x128xbf16>, vector<128x128xbf16>, vector<64x128xf32> -> vector<64x128xf32>
    %70 = arith.addf %63, %69 : vector<64x128xf32>
    %c2_96 = arith.constant 2 : index
    %c0_97 = arith.constant 0 : index
    %c1_98 = arith.constant 1 : index
    %c1_99 = arith.constant 1 : index
    %c0_100 = arith.constant 0 : index
    %71 = vector.load %arg2[%c2_96, %c0_97, %c1_98, %c1_99, %c0_100] : memref<4x1x10x10x128xbf16, #tpu.memory_space<vmem>>, vector<1x1x8x8x128xbf16>
    %72 = vector.shape_cast %71 : vector<1x1x8x8x128xbf16> to vector<8x8x128xbf16>
    %73 = vector.shape_cast %72 : vector<8x8x128xbf16> to vector<64x128xbf16>
    %c2_101 = arith.constant 2 : index
    %c2_102 = arith.constant 2 : index
    %c0_103 = arith.constant 0 : index
    %c0_104 = arith.constant 0 : index
    %74 = vector.load %arg3[%c2_101, %c2_102, %c0_103, %c0_104] : memref<4x4x128x128xbf16, #tpu.memory_space<vmem>>, vector<1x1x128x128xbf16>
    %75 = vector.shape_cast %74 : vector<1x1x128x128xbf16> to vector<128x128xbf16>
    %cst_105 = arith.constant dense<0.000000e+00> : vector<64x128xf32>
    %76 = tpu.matmul %73, %75, %cst_105 {dimension_numbers = #tpu.dot_dimension_numbers<[1], [0], [0], [1], [0, 0, 1, 1], [], []>} : vector<64x128xbf16>, vector<128x128xbf16>, vector<64x128xf32> -> vector<64x128xf32>
    %77 = arith.addf %70, %76 : vector<64x128xf32>
    %c2_106 = arith.constant 2 : index
    %c0_107 = arith.constant 0 : index
    %c1_108 = arith.constant 1 : index
    %c2_109 = arith.constant 2 : index
    %c0_110 = arith.constant 0 : index
    %78 = vector.load %arg2[%c2_106, %c0_107, %c1_108, %c2_109, %c0_110] : memref<4x1x10x10x128xbf16, #tpu.memory_space<vmem>>, vector<1x1x8x8x128xbf16>
    %79 = vector.shape_cast %78 : vector<1x1x8x8x128xbf16> to vector<8x8x128xbf16>
    %80 = vector.shape_cast %79 : vector<8x8x128xbf16> to vector<64x128xbf16>
    %c2_111 = arith.constant 2 : index
    %c3_112 = arith.constant 3 : index
    %c0_113 = arith.constant 0 : index
    %c0_114 = arith.constant 0 : index
    %81 = vector.load %arg3[%c2_111, %c3_112, %c0_113, %c0_114] : memref<4x4x128x128xbf16, #tpu.memory_space<vmem>>, vector<1x1x128x128xbf16>
    %82 = vector.shape_cast %81 : vector<1x1x128x128xbf16> to vector<128x128xbf16>
    %cst_115 = arith.constant dense<0.000000e+00> : vector<64x128xf32>
    %83 = tpu.matmul %80, %82, %cst_115 {dimension_numbers = #tpu.dot_dimension_numbers<[1], [0], [0], [1], [0, 0, 1, 1], [], []>} : vector<64x128xbf16>, vector<128x128xbf16>, vector<64x128xf32> -> vector<64x128xf32>
    %84 = arith.addf %77, %83 : vector<64x128xf32>
    %c3_116 = arith.constant 3 : index
    %c0_117 = arith.constant 0 : index
    %c0_118 = arith.constant 0 : index
    %c0_119 = arith.constant 0 : index
    %c0_120 = arith.constant 0 : index
    %85 = vector.load %arg2[%c3_116, %c0_117, %c0_118, %c0_119, %c0_120] : memref<4x1x10x10x128xbf16, #tpu.memory_space<vmem>>, vector<1x1x8x8x128xbf16>
    %86 = vector.shape_cast %85 : vector<1x1x8x8x128xbf16> to vector<8x8x128xbf16>
    %87 = vector.shape_cast %86 : vector<8x8x128xbf16> to vector<64x128xbf16>
    %c3_121 = arith.constant 3 : index
    %c0_122 = arith.constant 0 : index
    %c0_123 = arith.constant 0 : index
    %c0_124 = arith.constant 0 : index
    %88 = vector.load %arg3[%c3_121, %c0_122, %c0_123, %c0_124] : memref<4x4x128x128xbf16, #tpu.memory_space<vmem>>, vector<1x1x128x128xbf16>
    %89 = vector.shape_cast %88 : vector<1x1x128x128xbf16> to vector<128x128xbf16>
    %cst_125 = arith.constant dense<0.000000e+00> : vector<64x128xf32>
    %90 = tpu.matmul %87, %89, %cst_125 {dimension_numbers = #tpu.dot_dimension_numbers<[1], [0], [0], [1], [0, 0, 1, 1], [], []>} : vector<64x128xbf16>, vector<128x128xbf16>, vector<64x128xf32> -> vector<64x128xf32>
    %91 = arith.addf %84, %90 : vector<64x128xf32>
    %c3_126 = arith.constant 3 : index
    %c0_127 = arith.constant 0 : index
    %c0_128 = arith.constant 0 : index
    %c1_129 = arith.constant 1 : index
    %c0_130 = arith.constant 0 : index
    %92 = vector.load %arg2[%c3_126, %c0_127, %c0_128, %c1_129, %c0_130] : memref<4x1x10x10x128xbf16, #tpu.memory_space<vmem>>, vector<1x1x8x8x128xbf16>
    %93 = vector.shape_cast %92 : vector<1x1x8x8x128xbf16> to vector<8x8x128xbf16>
    %94 = vector.shape_cast %93 : vector<8x8x128xbf16> to vector<64x128xbf16>
    %c3_131 = arith.constant 3 : index
    %c1_132 = arith.constant 1 : index
    %c0_133 = arith.constant 0 : index
    %c0_134 = arith.constant 0 : index
    %95 = vector.load %arg3[%c3_131, %c1_132, %c0_133, %c0_134] : memref<4x4x128x128xbf16, #tpu.memory_space<vmem>>, vector<1x1x128x128xbf16>
    %96 = vector.shape_cast %95 : vector<1x1x128x128xbf16> to vector<128x128xbf16>
    %cst_135 = arith.constant dense<0.000000e+00> : vector<64x128xf32>
    %97 = tpu.matmul %94, %96, %cst_135 {dimension_numbers = #tpu.dot_dimension_numbers<[1], [0], [0], [1], [0, 0, 1, 1], [], []>} : vector<64x128xbf16>, vector<128x128xbf16>, vector<64x128xf32> -> vector<64x128xf32>
    %98 = arith.addf %91, %97 : vector<64x128xf32>
    %c3_136 = arith.constant 3 : index
    %c0_137 = arith.constant 0 : index
    %c1_138 = arith.constant 1 : index
    %c0_139 = arith.constant 0 : index
    %c0_140 = arith.constant 0 : index
    %99 = vector.load %arg2[%c3_136, %c0_137, %c1_138, %c0_139, %c0_140] : memref<4x1x10x10x128xbf16, #tpu.memory_space<vmem>>, vector<1x1x8x8x128xbf16>
    %100 = vector.shape_cast %99 : vector<1x1x8x8x128xbf16> to vector<8x8x128xbf16>
    %101 = vector.shape_cast %100 : vector<8x8x128xbf16> to vector<64x128xbf16>
    %c3_141 = arith.constant 3 : index
    %c2_142 = arith.constant 2 : index
    %c0_143 = arith.constant 0 : index
    %c0_144 = arith.constant 0 : index
    %102 = vector.load %arg3[%c3_141, %c2_142, %c0_143, %c0_144] : memref<4x4x128x128xbf16, #tpu.memory_space<vmem>>, vector<1x1x128x128xbf16>
    %103 = vector.shape_cast %102 : vector<1x1x128x128xbf16> to vector<128x128xbf16>
    %cst_145 = arith.constant dense<0.000000e+00> : vector<64x128xf32>
    %104 = tpu.matmul %101, %103, %cst_145 {dimension_numbers = #tpu.dot_dimension_numbers<[1], [0], [0], [1], [0, 0, 1, 1], [], []>} : vector<64x128xbf16>, vector<128x128xbf16>, vector<64x128xf32> -> vector<64x128xf32>
    %105 = arith.addf %98, %104 : vector<64x128xf32>
    %c3_146 = arith.constant 3 : index
    %c0_147 = arith.constant 0 : index
    %c1_148 = arith.constant 1 : index
    %c1_149 = arith.constant 1 : index
    %c0_150 = arith.constant 0 : index
    %106 = vector.load %arg2[%c3_146, %c0_147, %c1_148, %c1_149, %c0_150] : memref<4x1x10x10x128xbf16, #tpu.memory_space<vmem>>, vector<1x1x8x8x128xbf16>
    %107 = vector.shape_cast %106 : vector<1x1x8x8x128xbf16> to vector<8x8x128xbf16>
    %108 = vector.shape_cast %107 : vector<8x8x128xbf16> to vector<64x128xbf16>
    %c3_151 = arith.constant 3 : index
    %c3_152 = arith.constant 3 : index
    %c0_153 = arith.constant 0 : index
    %c0_154 = arith.constant 0 : index
    %109 = vector.load %arg3[%c3_151, %c3_152, %c0_153, %c0_154] : memref<4x4x128x128xbf16, #tpu.memory_space<vmem>>, vector<1x1x128x128xbf16>
    %110 = vector.shape_cast %109 : vector<1x1x128x128xbf16> to vector<128x128xbf16>
    %cst_155 = arith.constant dense<0.000000e+00> : vector<64x128xf32>
    %111 = tpu.matmul %108, %110, %cst_155 {dimension_numbers = #tpu.dot_dimension_numbers<[1], [0], [0], [1], [0, 0, 1, 1], [], []>} : vector<64x128xbf16>, vector<128x128xbf16>, vector<64x128xf32> -> vector<64x128xf32>
    %112 = arith.addf %105, %111 : vector<64x128xf32>
    %cst_156 = arith.constant 0.000000e+00 : f32
    %113 = vector.broadcast %cst_156 : f32 to vector<64x128xf32>
    %114 = arith.maximumf %112, %113 : vector<64x128xf32>
    %115 = arith.truncf %114 : vector<64x128xf32> to vector<64x128xbf16>
    %c0_157 = arith.constant 0 : index
    %c0_158 = arith.constant 0 : index
    %c0_159 = arith.constant 0 : index
    %116 = vector.load %arg4[%c0_157, %c0_158, %c0_159] : memref<1x64x128xbf16, #tpu.memory_space<vmem>>, vector<1x64x128xbf16>
    %117 = vector.shape_cast %116 : vector<1x64x128xbf16> to vector<64x128xbf16>
    %118 = vector.shape_cast %115 : vector<64x128xbf16> to vector<1x64x128xbf16>
    tpu.vector_store %arg4[%c0_157, %c0_158, %c0_159], %118 {strides = array<i32>} : memref<1x64x128xbf16, #tpu.memory_space<vmem>>, vector<1x64x128xbf16>,
    return
  }
  func.func @transform_0(%arg0: i32, %arg1: i32) -> (i32, i32, i32, i32, i32) {
    %c0_i32 = arith.constant 0 : i32
    %c0_i32_0 = arith.constant 0 : i32
    %c0_i32_1 = arith.constant 0 : i32
    %c0_i32_2 = arith.constant 0 : i32
    %c0_i32_3 = arith.constant 0 : i32
    return %c0_i32, %arg1, %c0_i32_0, %c0_i32_1, %c0_i32_2 : i32, i32, i32, i32, i32
  }
  func.func @transform_1(%arg0: i32, %arg1: i32) -> (i32, i32, i32, i32) {
    %c0_i32 = arith.constant 0 : i32
    %c0_i32_0 = arith.constant 0 : i32
    %c0_i32_1 = arith.constant 0 : i32
    %c0_i32_2 = arith.constant 0 : i32
    return %c0_i32, %c0_i32_0, %c0_i32_1, %arg0 : i32, i32, i32, i32
  }
  func.func @transform_2(%arg0: i32, %arg1: i32) -> (i32, i32, i32) {
    %c0_i32 = arith.constant 0 : i32
    %c0_i32_0 = arith.constant 0 : i32
    return %arg1, %c0_i32, %arg0 : i32, i32, i32
  }
}

module attributes {stable_mosaic.version = 11 : i64} {
  func.func @_up_conv_kernel(%arg0: i32, %arg1: i32, %arg2: memref<1x10x10x128xbf16, #tpu.memory_space<vmem>>, %arg3: memref<4x4x128x128xbf16, #tpu.memory_space<vmem>>, %arg4: memref<4x1x64x128xbf16, #tpu.memory_space<vmem>>, %arg5: memref<1x2x128xf32, #tpu.memory_space<vmem>>) attributes {dimension_semantics = [#tpu.dimension_semantics<parallel>, #tpu.dimension_semantics<parallel>], iteration_bounds = array<i64: 1, 2>, scalar_prefetch = 0 : i64, scratch_operands = 0 : i64, tpu.core_type = #tpu.core_type<tc>, window_params = [{transform_indices = @transform_0, window_bounds = array<i64: 1, 10, 10, 128>}, {transform_indices = @transform_1, window_bounds = array<i64: 4, 4, 128, 128>}, {transform_indices = @transform_2, window_bounds = array<i64: 4, 1, 64, 128>}, {transform_indices = @transform_3, window_bounds = array<i64: 1, 2, 128>}]} {
    %cst = arith.constant 0.000000e+00 : f32
    %0 = vector.broadcast %cst : f32 to vector<1x128xf32>
    %cst_0 = arith.constant 0.000000e+00 : f32
    %1 = vector.broadcast %cst_0 : f32 to vector<1x128xf32>
    %cst_1 = arith.constant 0.000000e+00 : f32
    %2 = vector.broadcast %cst_1 : f32 to vector<64x128xf32>
    %c0 = arith.constant 0 : index
    %c0_2 = arith.constant 0 : index
    %c0_3 = arith.constant 0 : index
    %c0_4 = arith.constant 0 : index
    %3 = vector.load %arg2[%c0, %c0_2, %c0_3, %c0_4] : memref<1x10x10x128xbf16, #tpu.memory_space<vmem>>, vector<1x8x8x128xbf16>
    %4 = vector.shape_cast %3 : vector<1x8x8x128xbf16> to vector<8x8x128xbf16>
    %5 = vector.shape_cast %4 : vector<8x8x128xbf16> to vector<64x128xbf16>
    %c0_5 = arith.constant 0 : index
    %c0_6 = arith.constant 0 : index
    %c0_7 = arith.constant 0 : index
    %c0_8 = arith.constant 0 : index
    %6 = vector.load %arg3[%c0_5, %c0_6, %c0_7, %c0_8] : memref<4x4x128x128xbf16, #tpu.memory_space<vmem>>, vector<1x1x128x128xbf16>
    %7 = vector.shape_cast %6 : vector<1x1x128x128xbf16> to vector<128x128xbf16>
    %cst_9 = arith.constant dense<0.000000e+00> : vector<64x128xf32>
    %8 = tpu.matmul %5, %7, %cst_9 {dimension_numbers = #tpu.dot_dimension_numbers<[1], [0], [0], [1], [0, 0, 1, 1], [], []>} : vector<64x128xbf16>, vector<128x128xbf16>, vector<64x128xf32> -> vector<64x128xf32>
    %9 = arith.addf %2, %8 : vector<64x128xf32>
    %c0_10 = arith.constant 0 : index
    %c0_11 = arith.constant 0 : index
    %c1 = arith.constant 1 : index
    %c0_12 = arith.constant 0 : index
    %10 = vector.load %arg2[%c0_10, %c0_11, %c1, %c0_12] : memref<1x10x10x128xbf16, #tpu.memory_space<vmem>>, vector<1x8x8x128xbf16>
    %11 = vector.shape_cast %10 : vector<1x8x8x128xbf16> to vector<8x8x128xbf16>
    %12 = vector.shape_cast %11 : vector<8x8x128xbf16> to vector<64x128xbf16>
    %c0_13 = arith.constant 0 : index
    %c1_14 = arith.constant 1 : index
    %c0_15 = arith.constant 0 : index
    %c0_16 = arith.constant 0 : index
    %13 = vector.load %arg3[%c0_13, %c1_14, %c0_15, %c0_16] : memref<4x4x128x128xbf16, #tpu.memory_space<vmem>>, vector<1x1x128x128xbf16>
    %14 = vector.shape_cast %13 : vector<1x1x128x128xbf16> to vector<128x128xbf16>
    %cst_17 = arith.constant dense<0.000000e+00> : vector<64x128xf32>
    %15 = tpu.matmul %12, %14, %cst_17 {dimension_numbers = #tpu.dot_dimension_numbers<[1], [0], [0], [1], [0, 0, 1, 1], [], []>} : vector<64x128xbf16>, vector<128x128xbf16>, vector<64x128xf32> -> vector<64x128xf32>
    %16 = arith.addf %9, %15 : vector<64x128xf32>
    %c0_18 = arith.constant 0 : index
    %c1_19 = arith.constant 1 : index
    %c0_20 = arith.constant 0 : index
    %c0_21 = arith.constant 0 : index
    %17 = vector.load %arg2[%c0_18, %c1_19, %c0_20, %c0_21] : memref<1x10x10x128xbf16, #tpu.memory_space<vmem>>, vector<1x8x8x128xbf16>
    %18 = vector.shape_cast %17 : vector<1x8x8x128xbf16> to vector<8x8x128xbf16>
    %19 = vector.shape_cast %18 : vector<8x8x128xbf16> to vector<64x128xbf16>
    %c0_22 = arith.constant 0 : index
    %c2 = arith.constant 2 : index
    %c0_23 = arith.constant 0 : index
    %c0_24 = arith.constant 0 : index
    %20 = vector.load %arg3[%c0_22, %c2, %c0_23, %c0_24] : memref<4x4x128x128xbf16, #tpu.memory_space<vmem>>, vector<1x1x128x128xbf16>
    %21 = vector.shape_cast %20 : vector<1x1x128x128xbf16> to vector<128x128xbf16>
    %cst_25 = arith.constant dense<0.000000e+00> : vector<64x128xf32>
    %22 = tpu.matmul %19, %21, %cst_25 {dimension_numbers = #tpu.dot_dimension_numbers<[1], [0], [0], [1], [0, 0, 1, 1], [], []>} : vector<64x128xbf16>, vector<128x128xbf16>, vector<64x128xf32> -> vector<64x128xf32>
    %23 = arith.addf %16, %22 : vector<64x128xf32>
    %c0_26 = arith.constant 0 : index
    %c1_27 = arith.constant 1 : index
    %c1_28 = arith.constant 1 : index
    %c0_29 = arith.constant 0 : index
    %24 = vector.load %arg2[%c0_26, %c1_27, %c1_28, %c0_29] : memref<1x10x10x128xbf16, #tpu.memory_space<vmem>>, vector<1x8x8x128xbf16>
    %25 = vector.shape_cast %24 : vector<1x8x8x128xbf16> to vector<8x8x128xbf16>
    %26 = vector.shape_cast %25 : vector<8x8x128xbf16> to vector<64x128xbf16>
    %c0_30 = arith.constant 0 : index
    %c3 = arith.constant 3 : index
    %c0_31 = arith.constant 0 : index
    %c0_32 = arith.constant 0 : index
    %27 = vector.load %arg3[%c0_30, %c3, %c0_31, %c0_32] : memref<4x4x128x128xbf16, #tpu.memory_space<vmem>>, vector<1x1x128x128xbf16>
    %28 = vector.shape_cast %27 : vector<1x1x128x128xbf16> to vector<128x128xbf16>
    %cst_33 = arith.constant dense<0.000000e+00> : vector<64x128xf32>
    %29 = tpu.matmul %26, %28, %cst_33 {dimension_numbers = #tpu.dot_dimension_numbers<[1], [0], [0], [1], [0, 0, 1, 1], [], []>} : vector<64x128xbf16>, vector<128x128xbf16>, vector<64x128xf32> -> vector<64x128xf32>
    %30 = arith.addf %23, %29 : vector<64x128xf32>
    %31 = arith.truncf %30 : vector<64x128xf32> to vector<64x128xbf16>
    %c0_34 = arith.constant 0 : index
    %c0_35 = arith.constant 0 : index
    %c0_36 = arith.constant 0 : index
    %c0_37 = arith.constant 0 : index
    %32 = vector.load %arg4[%c0_34, %c0_35, %c0_36, %c0_37] : memref<4x1x64x128xbf16, #tpu.memory_space<vmem>>, vector<1x1x64x128xbf16>
    %33 = vector.shape_cast %32 : vector<1x1x64x128xbf16> to vector<64x128xbf16>
    %34 = vector.shape_cast %31 : vector<64x128xbf16> to vector<1x1x64x128xbf16>
    tpu.vector_store %arg4[%c0_34, %c0_35, %c0_36, %c0_37], %34 {strides = array<i32>} : memref<4x1x64x128xbf16, #tpu.memory_space<vmem>>, vector<1x1x64x128xbf16>,
    %cst_38 = arith.constant dense<0.000000e+00> : vector<128xf32>
    %35 = vector.multi_reduction <add>, %30, %cst_38 [0] : vector<64x128xf32> to vector<128xf32>
    %36 = vector.shape_cast %35 : vector<128xf32> to vector<1x128xf32>
    %37 = arith.addf %0, %36 : vector<1x128xf32>
    %38 = arith.mulf %30, %30 : vector<64x128xf32>
    %cst_39 = arith.constant dense<0.000000e+00> : vector<128xf32>
    %39 = vector.multi_reduction <add>, %38, %cst_39 [0] : vector<64x128xf32> to vector<128xf32>
    %40 = vector.shape_cast %39 : vector<128xf32> to vector<1x128xf32>
    %41 = arith.addf %1, %40 : vector<1x128xf32>
    %cst_40 = arith.constant 0.000000e+00 : f32
    %42 = vector.broadcast %cst_40 : f32 to vector<64x128xf32>
    %c0_41 = arith.constant 0 : index
    %c0_42 = arith.constant 0 : index
    %c1_43 = arith.constant 1 : index
    %c0_44 = arith.constant 0 : index
    %43 = vector.load %arg2[%c0_41, %c0_42, %c1_43, %c0_44] : memref<1x10x10x128xbf16, #tpu.memory_space<vmem>>, vector<1x8x8x128xbf16>
    %44 = vector.shape_cast %43 : vector<1x8x8x128xbf16> to vector<8x8x128xbf16>
    %45 = vector.shape_cast %44 : vector<8x8x128xbf16> to vector<64x128xbf16>
    %c1_45 = arith.constant 1 : index
    %c0_46 = arith.constant 0 : index
    %c0_47 = arith.constant 0 : index
    %c0_48 = arith.constant 0 : index
    %46 = vector.load %arg3[%c1_45, %c0_46, %c0_47, %c0_48] : memref<4x4x128x128xbf16, #tpu.memory_space<vmem>>, vector<1x1x128x128xbf16>
    %47 = vector.shape_cast %46 : vector<1x1x128x128xbf16> to vector<128x128xbf16>
    %cst_49 = arith.constant dense<0.000000e+00> : vector<64x128xf32>
    %48 = tpu.matmul %45, %47, %cst_49 {dimension_numbers = #tpu.dot_dimension_numbers<[1], [0], [0], [1], [0, 0, 1, 1], [], []>} : vector<64x128xbf16>, vector<128x128xbf16>, vector<64x128xf32> -> vector<64x128xf32>
    %49 = arith.addf %42, %48 : vector<64x128xf32>
    %c0_50 = arith.constant 0 : index
    %c0_51 = arith.constant 0 : index
    %c2_52 = arith.constant 2 : index
    %c0_53 = arith.constant 0 : index
    %50 = vector.load %arg2[%c0_50, %c0_51, %c2_52, %c0_53] : memref<1x10x10x128xbf16, #tpu.memory_space<vmem>>, vector<1x8x8x128xbf16>
    %51 = vector.shape_cast %50 : vector<1x8x8x128xbf16> to vector<8x8x128xbf16>
    %52 = vector.shape_cast %51 : vector<8x8x128xbf16> to vector<64x128xbf16>
    %c1_54 = arith.constant 1 : index
    %c1_55 = arith.constant 1 : index
    %c0_56 = arith.constant 0 : index
    %c0_57 = arith.constant 0 : index
    %53 = vector.load %arg3[%c1_54, %c1_55, %c0_56, %c0_57] : memref<4x4x128x128xbf16, #tpu.memory_space<vmem>>, vector<1x1x128x128xbf16>
    %54 = vector.shape_cast %53 : vector<1x1x128x128xbf16> to vector<128x128xbf16>
    %cst_58 = arith.constant dense<0.000000e+00> : vector<64x128xf32>
    %55 = tpu.matmul %52, %54, %cst_58 {dimension_numbers = #tpu.dot_dimension_numbers<[1], [0], [0], [1], [0, 0, 1, 1], [], []>} : vector<64x128xbf16>, vector<128x128xbf16>, vector<64x128xf32> -> vector<64x128xf32>
    %56 = arith.addf %49, %55 : vector<64x128xf32>
    %c0_59 = arith.constant 0 : index
    %c1_60 = arith.constant 1 : index
    %c1_61 = arith.constant 1 : index
    %c0_62 = arith.constant 0 : index
    %57 = vector.load %arg2[%c0_59, %c1_60, %c1_61, %c0_62] : memref<1x10x10x128xbf16, #tpu.memory_space<vmem>>, vector<1x8x8x128xbf16>
    %58 = vector.shape_cast %57 : vector<1x8x8x128xbf16> to vector<8x8x128xbf16>
    %59 = vector.shape_cast %58 : vector<8x8x128xbf16> to vector<64x128xbf16>
    %c1_63 = arith.constant 1 : index
    %c2_64 = arith.constant 2 : index
    %c0_65 = arith.constant 0 : index
    %c0_66 = arith.constant 0 : index
    %60 = vector.load %arg3[%c1_63, %c2_64, %c0_65, %c0_66] : memref<4x4x128x128xbf16, #tpu.memory_space<vmem>>, vector<1x1x128x128xbf16>
    %61 = vector.shape_cast %60 : vector<1x1x128x128xbf16> to vector<128x128xbf16>
    %cst_67 = arith.constant dense<0.000000e+00> : vector<64x128xf32>
    %62 = tpu.matmul %59, %61, %cst_67 {dimension_numbers = #tpu.dot_dimension_numbers<[1], [0], [0], [1], [0, 0, 1, 1], [], []>} : vector<64x128xbf16>, vector<128x128xbf16>, vector<64x128xf32> -> vector<64x128xf32>
    %63 = arith.addf %56, %62 : vector<64x128xf32>
    %c0_68 = arith.constant 0 : index
    %c1_69 = arith.constant 1 : index
    %c2_70 = arith.constant 2 : index
    %c0_71 = arith.constant 0 : index
    %64 = vector.load %arg2[%c0_68, %c1_69, %c2_70, %c0_71] : memref<1x10x10x128xbf16, #tpu.memory_space<vmem>>, vector<1x8x8x128xbf16>
    %65 = vector.shape_cast %64 : vector<1x8x8x128xbf16> to vector<8x8x128xbf16>
    %66 = vector.shape_cast %65 : vector<8x8x128xbf16> to vector<64x128xbf16>
    %c1_72 = arith.constant 1 : index
    %c3_73 = arith.constant 3 : index
    %c0_74 = arith.constant 0 : index
    %c0_75 = arith.constant 0 : index
    %67 = vector.load %arg3[%c1_72, %c3_73, %c0_74, %c0_75] : memref<4x4x128x128xbf16, #tpu.memory_space<vmem>>, vector<1x1x128x128xbf16>
    %68 = vector.shape_cast %67 : vector<1x1x128x128xbf16> to vector<128x128xbf16>
    %cst_76 = arith.constant dense<0.000000e+00> : vector<64x128xf32>
    %69 = tpu.matmul %66, %68, %cst_76 {dimension_numbers = #tpu.dot_dimension_numbers<[1], [0], [0], [1], [0, 0, 1, 1], [], []>} : vector<64x128xbf16>, vector<128x128xbf16>, vector<64x128xf32> -> vector<64x128xf32>
    %70 = arith.addf %63, %69 : vector<64x128xf32>
    %71 = arith.truncf %70 : vector<64x128xf32> to vector<64x128xbf16>
    %c1_77 = arith.constant 1 : index
    %c0_78 = arith.constant 0 : index
    %c0_79 = arith.constant 0 : index
    %c0_80 = arith.constant 0 : index
    %72 = vector.load %arg4[%c1_77, %c0_78, %c0_79, %c0_80] : memref<4x1x64x128xbf16, #tpu.memory_space<vmem>>, vector<1x1x64x128xbf16>
    %73 = vector.shape_cast %72 : vector<1x1x64x128xbf16> to vector<64x128xbf16>
    %74 = vector.shape_cast %71 : vector<64x128xbf16> to vector<1x1x64x128xbf16>
    tpu.vector_store %arg4[%c1_77, %c0_78, %c0_79, %c0_80], %74 {strides = array<i32>} : memref<4x1x64x128xbf16, #tpu.memory_space<vmem>>, vector<1x1x64x128xbf16>,
    %cst_81 = arith.constant dense<0.000000e+00> : vector<128xf32>
    %75 = vector.multi_reduction <add>, %70, %cst_81 [0] : vector<64x128xf32> to vector<128xf32>
    %76 = vector.shape_cast %75 : vector<128xf32> to vector<1x128xf32>
    %77 = arith.addf %37, %76 : vector<1x128xf32>
    %78 = arith.mulf %70, %70 : vector<64x128xf32>
    %cst_82 = arith.constant dense<0.000000e+00> : vector<128xf32>
    %79 = vector.multi_reduction <add>, %78, %cst_82 [0] : vector<64x128xf32> to vector<128xf32>
    %80 = vector.shape_cast %79 : vector<128xf32> to vector<1x128xf32>
    %81 = arith.addf %41, %80 : vector<1x128xf32>
    %cst_83 = arith.constant 0.000000e+00 : f32
    %82 = vector.broadcast %cst_83 : f32 to vector<64x128xf32>
    %c0_84 = arith.constant 0 : index
    %c1_85 = arith.constant 1 : index
    %c0_86 = arith.constant 0 : index
    %c0_87 = arith.constant 0 : index
    %83 = vector.load %arg2[%c0_84, %c1_85, %c0_86, %c0_87] : memref<1x10x10x128xbf16, #tpu.memory_space<vmem>>, vector<1x8x8x128xbf16>
    %84 = vector.shape_cast %83 : vector<1x8x8x128xbf16> to vector<8x8x128xbf16>
    %85 = vector.shape_cast %84 : vector<8x8x128xbf16> to vector<64x128xbf16>
    %c2_88 = arith.constant 2 : index
    %c0_89 = arith.constant 0 : index
    %c0_90 = arith.constant 0 : index
    %c0_91 = arith.constant 0 : index
    %86 = vector.load %arg3[%c2_88, %c0_89, %c0_90, %c0_91] : memref<4x4x128x128xbf16, #tpu.memory_space<vmem>>, vector<1x1x128x128xbf16>
    %87 = vector.shape_cast %86 : vector<1x1x128x128xbf16> to vector<128x128xbf16>
    %cst_92 = arith.constant dense<0.000000e+00> : vector<64x128xf32>
    %88 = tpu.matmul %85, %87, %cst_92 {dimension_numbers = #tpu.dot_dimension_numbers<[1], [0], [0], [1], [0, 0, 1, 1], [], []>} : vector<64x128xbf16>, vector<128x128xbf16>, vector<64x128xf32> -> vector<64x128xf32>
    %89 = arith.addf %82, %88 : vector<64x128xf32>
    %c0_93 = arith.constant 0 : index
    %c1_94 = arith.constant 1 : index
    %c1_95 = arith.constant 1 : index
    %c0_96 = arith.constant 0 : index
    %90 = vector.load %arg2[%c0_93, %c1_94, %c1_95, %c0_96] : memref<1x10x10x128xbf16, #tpu.memory_space<vmem>>, vector<1x8x8x128xbf16>
    %91 = vector.shape_cast %90 : vector<1x8x8x128xbf16> to vector<8x8x128xbf16>
    %92 = vector.shape_cast %91 : vector<8x8x128xbf16> to vector<64x128xbf16>
    %c2_97 = arith.constant 2 : index
    %c1_98 = arith.constant 1 : index
    %c0_99 = arith.constant 0 : index
    %c0_100 = arith.constant 0 : index
    %93 = vector.load %arg3[%c2_97, %c1_98, %c0_99, %c0_100] : memref<4x4x128x128xbf16, #tpu.memory_space<vmem>>, vector<1x1x128x128xbf16>
    %94 = vector.shape_cast %93 : vector<1x1x128x128xbf16> to vector<128x128xbf16>
    %cst_101 = arith.constant dense<0.000000e+00> : vector<64x128xf32>
    %95 = tpu.matmul %92, %94, %cst_101 {dimension_numbers = #tpu.dot_dimension_numbers<[1], [0], [0], [1], [0, 0, 1, 1], [], []>} : vector<64x128xbf16>, vector<128x128xbf16>, vector<64x128xf32> -> vector<64x128xf32>
    %96 = arith.addf %89, %95 : vector<64x128xf32>
    %c0_102 = arith.constant 0 : index
    %c2_103 = arith.constant 2 : index
    %c0_104 = arith.constant 0 : index
    %c0_105 = arith.constant 0 : index
    %97 = vector.load %arg2[%c0_102, %c2_103, %c0_104, %c0_105] : memref<1x10x10x128xbf16, #tpu.memory_space<vmem>>, vector<1x8x8x128xbf16>
    %98 = vector.shape_cast %97 : vector<1x8x8x128xbf16> to vector<8x8x128xbf16>
    %99 = vector.shape_cast %98 : vector<8x8x128xbf16> to vector<64x128xbf16>
    %c2_106 = arith.constant 2 : index
    %c2_107 = arith.constant 2 : index
    %c0_108 = arith.constant 0 : index
    %c0_109 = arith.constant 0 : index
    %100 = vector.load %arg3[%c2_106, %c2_107, %c0_108, %c0_109] : memref<4x4x128x128xbf16, #tpu.memory_space<vmem>>, vector<1x1x128x128xbf16>
    %101 = vector.shape_cast %100 : vector<1x1x128x128xbf16> to vector<128x128xbf16>
    %cst_110 = arith.constant dense<0.000000e+00> : vector<64x128xf32>
    %102 = tpu.matmul %99, %101, %cst_110 {dimension_numbers = #tpu.dot_dimension_numbers<[1], [0], [0], [1], [0, 0, 1, 1], [], []>} : vector<64x128xbf16>, vector<128x128xbf16>, vector<64x128xf32> -> vector<64x128xf32>
    %103 = arith.addf %96, %102 : vector<64x128xf32>
    %c0_111 = arith.constant 0 : index
    %c2_112 = arith.constant 2 : index
    %c1_113 = arith.constant 1 : index
    %c0_114 = arith.constant 0 : index
    %104 = vector.load %arg2[%c0_111, %c2_112, %c1_113, %c0_114] : memref<1x10x10x128xbf16, #tpu.memory_space<vmem>>, vector<1x8x8x128xbf16>
    %105 = vector.shape_cast %104 : vector<1x8x8x128xbf16> to vector<8x8x128xbf16>
    %106 = vector.shape_cast %105 : vector<8x8x128xbf16> to vector<64x128xbf16>
    %c2_115 = arith.constant 2 : index
    %c3_116 = arith.constant 3 : index
    %c0_117 = arith.constant 0 : index
    %c0_118 = arith.constant 0 : index
    %107 = vector.load %arg3[%c2_115, %c3_116, %c0_117, %c0_118] : memref<4x4x128x128xbf16, #tpu.memory_space<vmem>>, vector<1x1x128x128xbf16>
    %108 = vector.shape_cast %107 : vector<1x1x128x128xbf16> to vector<128x128xbf16>
    %cst_119 = arith.constant dense<0.000000e+00> : vector<64x128xf32>
    %109 = tpu.matmul %106, %108, %cst_119 {dimension_numbers = #tpu.dot_dimension_numbers<[1], [0], [0], [1], [0, 0, 1, 1], [], []>} : vector<64x128xbf16>, vector<128x128xbf16>, vector<64x128xf32> -> vector<64x128xf32>
    %110 = arith.addf %103, %109 : vector<64x128xf32>
    %111 = arith.truncf %110 : vector<64x128xf32> to vector<64x128xbf16>
    %c2_120 = arith.constant 2 : index
    %c0_121 = arith.constant 0 : index
    %c0_122 = arith.constant 0 : index
    %c0_123 = arith.constant 0 : index
    %112 = vector.load %arg4[%c2_120, %c0_121, %c0_122, %c0_123] : memref<4x1x64x128xbf16, #tpu.memory_space<vmem>>, vector<1x1x64x128xbf16>
    %113 = vector.shape_cast %112 : vector<1x1x64x128xbf16> to vector<64x128xbf16>
    %114 = vector.shape_cast %111 : vector<64x128xbf16> to vector<1x1x64x128xbf16>
    tpu.vector_store %arg4[%c2_120, %c0_121, %c0_122, %c0_123], %114 {strides = array<i32>} : memref<4x1x64x128xbf16, #tpu.memory_space<vmem>>, vector<1x1x64x128xbf16>,
    %cst_124 = arith.constant dense<0.000000e+00> : vector<128xf32>
    %115 = vector.multi_reduction <add>, %110, %cst_124 [0] : vector<64x128xf32> to vector<128xf32>
    %116 = vector.shape_cast %115 : vector<128xf32> to vector<1x128xf32>
    %117 = arith.addf %77, %116 : vector<1x128xf32>
    %118 = arith.mulf %110, %110 : vector<64x128xf32>
    %cst_125 = arith.constant dense<0.000000e+00> : vector<128xf32>
    %119 = vector.multi_reduction <add>, %118, %cst_125 [0] : vector<64x128xf32> to vector<128xf32>
    %120 = vector.shape_cast %119 : vector<128xf32> to vector<1x128xf32>
    %121 = arith.addf %81, %120 : vector<1x128xf32>
    %cst_126 = arith.constant 0.000000e+00 : f32
    %122 = vector.broadcast %cst_126 : f32 to vector<64x128xf32>
    %c0_127 = arith.constant 0 : index
    %c1_128 = arith.constant 1 : index
    %c1_129 = arith.constant 1 : index
    %c0_130 = arith.constant 0 : index
    %123 = vector.load %arg2[%c0_127, %c1_128, %c1_129, %c0_130] : memref<1x10x10x128xbf16, #tpu.memory_space<vmem>>, vector<1x8x8x128xbf16>
    %124 = vector.shape_cast %123 : vector<1x8x8x128xbf16> to vector<8x8x128xbf16>
    %125 = vector.shape_cast %124 : vector<8x8x128xbf16> to vector<64x128xbf16>
    %c3_131 = arith.constant 3 : index
    %c0_132 = arith.constant 0 : index
    %c0_133 = arith.constant 0 : index
    %c0_134 = arith.constant 0 : index
    %126 = vector.load %arg3[%c3_131, %c0_132, %c0_133, %c0_134] : memref<4x4x128x128xbf16, #tpu.memory_space<vmem>>, vector<1x1x128x128xbf16>
    %127 = vector.shape_cast %126 : vector<1x1x128x128xbf16> to vector<128x128xbf16>
    %cst_135 = arith.constant dense<0.000000e+00> : vector<64x128xf32>
    %128 = tpu.matmul %125, %127, %cst_135 {dimension_numbers = #tpu.dot_dimension_numbers<[1], [0], [0], [1], [0, 0, 1, 1], [], []>} : vector<64x128xbf16>, vector<128x128xbf16>, vector<64x128xf32> -> vector<64x128xf32>
    %129 = arith.addf %122, %128 : vector<64x128xf32>
    %c0_136 = arith.constant 0 : index
    %c1_137 = arith.constant 1 : index
    %c2_138 = arith.constant 2 : index
    %c0_139 = arith.constant 0 : index
    %130 = vector.load %arg2[%c0_136, %c1_137, %c2_138, %c0_139] : memref<1x10x10x128xbf16, #tpu.memory_space<vmem>>, vector<1x8x8x128xbf16>
    %131 = vector.shape_cast %130 : vector<1x8x8x128xbf16> to vector<8x8x128xbf16>
    %132 = vector.shape_cast %131 : vector<8x8x128xbf16> to vector<64x128xbf16>
    %c3_140 = arith.constant 3 : index
    %c1_141 = arith.constant 1 : index
    %c0_142 = arith.constant 0 : index
    %c0_143 = arith.constant 0 : index
    %133 = vector.load %arg3[%c3_140, %c1_141, %c0_142, %c0_143] : memref<4x4x128x128xbf16, #tpu.memory_space<vmem>>, vector<1x1x128x128xbf16>
    %134 = vector.shape_cast %133 : vector<1x1x128x128xbf16> to vector<128x128xbf16>
    %cst_144 = arith.constant dense<0.000000e+00> : vector<64x128xf32>
    %135 = tpu.matmul %132, %134, %cst_144 {dimension_numbers = #tpu.dot_dimension_numbers<[1], [0], [0], [1], [0, 0, 1, 1], [], []>} : vector<64x128xbf16>, vector<128x128xbf16>, vector<64x128xf32> -> vector<64x128xf32>
    %136 = arith.addf %129, %135 : vector<64x128xf32>
    %c0_145 = arith.constant 0 : index
    %c2_146 = arith.constant 2 : index
    %c1_147 = arith.constant 1 : index
    %c0_148 = arith.constant 0 : index
    %137 = vector.load %arg2[%c0_145, %c2_146, %c1_147, %c0_148] : memref<1x10x10x128xbf16, #tpu.memory_space<vmem>>, vector<1x8x8x128xbf16>
    %138 = vector.shape_cast %137 : vector<1x8x8x128xbf16> to vector<8x8x128xbf16>
    %139 = vector.shape_cast %138 : vector<8x8x128xbf16> to vector<64x128xbf16>
    %c3_149 = arith.constant 3 : index
    %c2_150 = arith.constant 2 : index
    %c0_151 = arith.constant 0 : index
    %c0_152 = arith.constant 0 : index
    %140 = vector.load %arg3[%c3_149, %c2_150, %c0_151, %c0_152] : memref<4x4x128x128xbf16, #tpu.memory_space<vmem>>, vector<1x1x128x128xbf16>
    %141 = vector.shape_cast %140 : vector<1x1x128x128xbf16> to vector<128x128xbf16>
    %cst_153 = arith.constant dense<0.000000e+00> : vector<64x128xf32>
    %142 = tpu.matmul %139, %141, %cst_153 {dimension_numbers = #tpu.dot_dimension_numbers<[1], [0], [0], [1], [0, 0, 1, 1], [], []>} : vector<64x128xbf16>, vector<128x128xbf16>, vector<64x128xf32> -> vector<64x128xf32>
    %143 = arith.addf %136, %142 : vector<64x128xf32>
    %c0_154 = arith.constant 0 : index
    %c2_155 = arith.constant 2 : index
    %c2_156 = arith.constant 2 : index
    %c0_157 = arith.constant 0 : index
    %144 = vector.load %arg2[%c0_154, %c2_155, %c2_156, %c0_157] : memref<1x10x10x128xbf16, #tpu.memory_space<vmem>>, vector<1x8x8x128xbf16>
    %145 = vector.shape_cast %144 : vector<1x8x8x128xbf16> to vector<8x8x128xbf16>
    %146 = vector.shape_cast %145 : vector<8x8x128xbf16> to vector<64x128xbf16>
    %c3_158 = arith.constant 3 : index
    %c3_159 = arith.constant 3 : index
    %c0_160 = arith.constant 0 : index
    %c0_161 = arith.constant 0 : index
    %147 = vector.load %arg3[%c3_158, %c3_159, %c0_160, %c0_161] : memref<4x4x128x128xbf16, #tpu.memory_space<vmem>>, vector<1x1x128x128xbf16>
    %148 = vector.shape_cast %147 : vector<1x1x128x128xbf16> to vector<128x128xbf16>
    %cst_162 = arith.constant dense<0.000000e+00> : vector<64x128xf32>
    %149 = tpu.matmul %146, %148, %cst_162 {dimension_numbers = #tpu.dot_dimension_numbers<[1], [0], [0], [1], [0, 0, 1, 1], [], []>} : vector<64x128xbf16>, vector<128x128xbf16>, vector<64x128xf32> -> vector<64x128xf32>
    %150 = arith.addf %143, %149 : vector<64x128xf32>
    %151 = arith.truncf %150 : vector<64x128xf32> to vector<64x128xbf16>
    %c3_163 = arith.constant 3 : index
    %c0_164 = arith.constant 0 : index
    %c0_165 = arith.constant 0 : index
    %c0_166 = arith.constant 0 : index
    %152 = vector.load %arg4[%c3_163, %c0_164, %c0_165, %c0_166] : memref<4x1x64x128xbf16, #tpu.memory_space<vmem>>, vector<1x1x64x128xbf16>
    %153 = vector.shape_cast %152 : vector<1x1x64x128xbf16> to vector<64x128xbf16>
    %154 = vector.shape_cast %151 : vector<64x128xbf16> to vector<1x1x64x128xbf16>
    tpu.vector_store %arg4[%c3_163, %c0_164, %c0_165, %c0_166], %154 {strides = array<i32>} : memref<4x1x64x128xbf16, #tpu.memory_space<vmem>>, vector<1x1x64x128xbf16>,
    %cst_167 = arith.constant dense<0.000000e+00> : vector<128xf32>
    %155 = vector.multi_reduction <add>, %150, %cst_167 [0] : vector<64x128xf32> to vector<128xf32>
    %156 = vector.shape_cast %155 : vector<128xf32> to vector<1x128xf32>
    %157 = arith.addf %117, %156 : vector<1x128xf32>
    %158 = arith.mulf %150, %150 : vector<64x128xf32>
    %cst_168 = arith.constant dense<0.000000e+00> : vector<128xf32>
    %159 = vector.multi_reduction <add>, %158, %cst_168 [0] : vector<64x128xf32> to vector<128xf32>
    %160 = vector.shape_cast %159 : vector<128xf32> to vector<1x128xf32>
    %161 = arith.addf %121, %160 : vector<1x128xf32>
    %162 = tpu.concatenate %157, %161 in 0 : vector<1x128xf32>, vector<1x128xf32> -> vector<2x128xf32>
    %c0_169 = arith.constant 0 : index
    %c0_170 = arith.constant 0 : index
    %c0_171 = arith.constant 0 : index
    %163 = vector.load %arg5[%c0_169, %c0_170, %c0_171] : memref<1x2x128xf32, #tpu.memory_space<vmem>>, vector<1x2x128xf32>
    %164 = vector.shape_cast %163 : vector<1x2x128xf32> to vector<2x128xf32>
    %165 = vector.shape_cast %162 : vector<2x128xf32> to vector<1x2x128xf32>
    tpu.vector_store %arg5[%c0_169, %c0_170, %c0_171], %165 {strides = array<i32>} : memref<1x2x128xf32, #tpu.memory_space<vmem>>, vector<1x2x128xf32>,
    return
  }
  func.func @transform_0(%arg0: i32, %arg1: i32) -> (i32, i32, i32, i32) {
    %c0_i32 = arith.constant 0 : i32
    %c0_i32_0 = arith.constant 0 : i32
    %c0_i32_1 = arith.constant 0 : i32
    %c0_i32_2 = arith.constant 0 : i32
    return %arg1, %c0_i32, %c0_i32_0, %c0_i32_1 : i32, i32, i32, i32
  }
  func.func @transform_1(%arg0: i32, %arg1: i32) -> (i32, i32, i32, i32) {
    %c0_i32 = arith.constant 0 : i32
    %c0_i32_0 = arith.constant 0 : i32
    %c0_i32_1 = arith.constant 0 : i32
    %c0_i32_2 = arith.constant 0 : i32
    return %c0_i32, %c0_i32_0, %c0_i32_1, %arg0 : i32, i32, i32, i32
  }
  func.func @transform_2(%arg0: i32, %arg1: i32) -> (i32, i32, i32, i32) {
    %c0_i32 = arith.constant 0 : i32
    %c0_i32_0 = arith.constant 0 : i32
    %c0_i32_1 = arith.constant 0 : i32
    return %c0_i32, %arg1, %c0_i32_0, %arg0 : i32, i32, i32, i32
  }
  func.func @transform_3(%arg0: i32, %arg1: i32) -> (i32, i32, i32) {
    %c0_i32 = arith.constant 0 : i32
    %c0_i32_0 = arith.constant 0 : i32
    return %arg1, %c0_i32, %arg0 : i32, i32, i32
  }
}

module attributes {stable_mosaic.version = 11 : i64} {
  func.func @_bn_interleave_kernel(%arg0: i32, %arg1: i32, %arg2: memref<2x1x64x128xbf16, #tpu.memory_space<vmem>>, %arg3: memref<1x128xf32, #tpu.memory_space<vmem>>, %arg4: memref<1x128xf32, #tpu.memory_space<vmem>>, %arg5: memref<1x8x1x8x2x4xf32, #tpu.memory_space<vmem>>) attributes {dimension_semantics = [#tpu.dimension_semantics<parallel>, #tpu.dimension_semantics<parallel>], iteration_bounds = array<i64: 2, 2>, scalar_prefetch = 0 : i64, scratch_operands = 0 : i64, tpu.core_type = #tpu.core_type<tc>, window_params = [{transform_indices = @transform_0, window_bounds = array<i64: 2, 1, 64, 128>}, {pipeline_mode = #tpu.pipeline_mode<synchronous>, transform_indices = @transform_1, window_bounds = array<i64: 1, 128>}, {pipeline_mode = #tpu.pipeline_mode<synchronous>, transform_indices = @transform_2, window_bounds = array<i64: 1, 128>}, {transform_indices = @transform_3, window_bounds = array<i64: 1, 8, 1, 8, 2, 4>}]} {
    %c0 = arith.constant 0 : index
    %c0_0 = arith.constant 0 : index
    %c0_1 = arith.constant 0 : index
    %c0_2 = arith.constant 0 : index
    %0 = vector.load %arg2[%c0, %c0_0, %c0_1, %c0_2] : memref<2x1x64x128xbf16, #tpu.memory_space<vmem>>, vector<2x1x64x128xbf16>
    %1 = vector.shape_cast %0 : vector<2x1x64x128xbf16> to vector<2x64x128xbf16>
    %2 = arith.extf %1 : vector<2x64x128xbf16> to vector<2x64x128xf32>
    %c0_3 = arith.constant 0 : index
    %c0_4 = arith.constant 0 : index
    %3 = vector.load %arg3[%c0_3, %c0_4] : memref<1x128xf32, #tpu.memory_space<vmem>>, vector<1x128xf32>
    %4 = vector.shape_cast %3 : vector<1x128xf32> to vector<1x1x128xf32>
    %5 = vector.broadcast %4 : vector<1x1x128xf32> to vector<2x64x128xf32>
    %6 = arith.mulf %2, %5 : vector<2x64x128xf32>
    %c0_5 = arith.constant 0 : index
    %c0_6 = arith.constant 0 : index
    %7 = vector.load %arg4[%c0_5, %c0_6] : memref<1x128xf32, #tpu.memory_space<vmem>>, vector<1x128xf32>
    %8 = vector.shape_cast %7 : vector<1x128xf32> to vector<1x1x128xf32>
    %9 = vector.broadcast %8 : vector<1x1x128xf32> to vector<2x64x128xf32>
    %10 = arith.addf %6, %9 : vector<2x64x128xf32>
    %11 = vector.extract_strided_slice %10 {offsets = [0, 0, 0], sizes = [1, 64, 4], strides = [1, 1, 1]} : vector<2x64x128xf32> to vector<1x64x4xf32>
    %12 = vector.shape_cast %11 : vector<1x64x4xf32> to vector<64x4xf32>
    %13 = vector.shape_cast %12 : vector<64x4xf32> to vector<8x8x4xf32>
    %c0_7 = arith.constant 0 : index
    %c0_8 = arith.constant 0 : index
    %c0_9 = arith.constant 0 : index
    %c0_10 = arith.constant 0 : index
    %c0_11 = arith.constant 0 : index
    %c0_12 = arith.constant 0 : index
    %14 = vector.load %arg5[%c0_7, %c0_8, %c0_9, %c0_10, %c0_11, %c0_12] : memref<1x8x1x8x2x4xf32, #tpu.memory_space<vmem>>, vector<1x8x1x8x1x4xf32>
    %15 = vector.shape_cast %14 : vector<1x8x1x8x1x4xf32> to vector<8x8x4xf32>
    %16 = vector.shape_cast %13 : vector<8x8x4xf32> to vector<1x8x1x8x1x4xf32>
    tpu.vector_store %arg5[%c0_7, %c0_8, %c0_9, %c0_10, %c0_11, %c0_12], %16 {strides = array<i32>} : memref<1x8x1x8x2x4xf32, #tpu.memory_space<vmem>>, vector<1x8x1x8x1x4xf32>,
    %17 = vector.extract_strided_slice %10 {offsets = [1, 0, 0], sizes = [1, 64, 4], strides = [1, 1, 1]} : vector<2x64x128xf32> to vector<1x64x4xf32>
    %18 = vector.shape_cast %17 : vector<1x64x4xf32> to vector<64x4xf32>
    %19 = vector.shape_cast %18 : vector<64x4xf32> to vector<8x8x4xf32>
    %c0_13 = arith.constant 0 : index
    %c0_14 = arith.constant 0 : index
    %c0_15 = arith.constant 0 : index
    %c0_16 = arith.constant 0 : index
    %c1 = arith.constant 1 : index
    %c0_17 = arith.constant 0 : index
    %20 = vector.load %arg5[%c0_13, %c0_14, %c0_15, %c0_16, %c1, %c0_17] : memref<1x8x1x8x2x4xf32, #tpu.memory_space<vmem>>, vector<1x8x1x8x1x4xf32>
    %21 = vector.shape_cast %20 : vector<1x8x1x8x1x4xf32> to vector<8x8x4xf32>
    %22 = vector.shape_cast %19 : vector<8x8x4xf32> to vector<1x8x1x8x1x4xf32>
    tpu.vector_store %arg5[%c0_13, %c0_14, %c0_15, %c0_16, %c1, %c0_17], %22 {strides = array<i32>} : memref<1x8x1x8x2x4xf32, #tpu.memory_space<vmem>>, vector<1x8x1x8x1x4xf32>,
    return
  }
  func.func @transform_0(%arg0: i32, %arg1: i32) -> (i32, i32, i32, i32) {
    %c0_i32 = arith.constant 0 : i32
    %c0_i32_0 = arith.constant 0 : i32
    %c0_i32_1 = arith.constant 0 : i32
    return %arg1, %arg0, %c0_i32, %c0_i32_0 : i32, i32, i32, i32
  }
  func.func @transform_1(%arg0: i32, %arg1: i32) -> (i32, i32) {
    %c0_i32 = arith.constant 0 : i32
    %c0_i32_0 = arith.constant 0 : i32
    %c0_i32_1 = arith.constant 0 : i32
    return %c0_i32, %c0_i32_0 : i32, i32
  }
  func.func @transform_2(%arg0: i32, %arg1: i32) -> (i32, i32) {
    %c0_i32 = arith.constant 0 : i32
    %c0_i32_0 = arith.constant 0 : i32
    %c0_i32_1 = arith.constant 0 : i32
    return %c0_i32, %c0_i32_0 : i32, i32
  }
  func.func @transform_3(%arg0: i32, %arg1: i32) -> (i32, i32, i32, i32, i32, i32) {
    %c0_i32 = arith.constant 0 : i32
    %c0_i32_0 = arith.constant 0 : i32
    %c0_i32_1 = arith.constant 0 : i32
    %c0_i32_2 = arith.constant 0 : i32
    %c0_i32_3 = arith.constant 0 : i32
    return %arg0, %c0_i32, %arg1, %c0_i32_0, %c0_i32_1, %c0_i32_2 : i32, i32, i32, i32, i32, i32
  }
}

</mosaic_0001>

<llo_original>
// kernel: unet_innermost_forward.5
$region0: #{unet_innermost_forward.5}
  #allocation0 [shape = 'u32[]', space=smem, size = 0x4, offset = 0x4, fixed_abs, tag = 'smem constant byte address 0x4 - core index']
  #allocation1 [shape = 'u32[72,128]{1,0:T(1,128)}', space=vmem, size = 0x9000, scoped, tag = 'internal scratch']
  %s0 = inlined_call_operand.vmem [shape: bf16[4,2,64,128], index: 0, kind: input, shape index: {}]
  %s1 = inlined_call_operand.vmem [shape: f32[1,128], index: 1, kind: input, shape index: {}]
  %s2 = inlined_call_operand.vmem [shape: f32[1,128], index: 2, kind: input, shape index: {}]
  %s3 = inlined_call_operand.vmem [shape: f32[2,8,2,8,2,4], index: 3, kind: output, shape index: {}]
  %s4 = sld [smem:[#allocation0]]
  $region123: #{unet_innermost_forward.5} parent=0
    _
  %s6 = ssub.s32 1, %s4
  %s7 = scalar_select 0, %s6, %s4
  $region1: #{unet_innermost_forward.5} parent=0
    #allocation2 [shape = 'u8[65536]{0}', space=vmem, size = 0x10000, scoped, tag = 'input window, operand 0']
    #allocation3 [shape = 'u8[131072]{0}', space=vmem, size = 0x20000, scoped, tag = 'output window, operand 0']
    loop: start=0, step=1, limit=6
    $region2: #{unet_innermost_forward.5} parent=1 // loop_pre_header
      _
    $region3: #{unet_innermost_forward.5} parent=1 // loop_header
      %s9 = sphi 0, %s13
      %p10 = scmp.ge.s32.totalorder %s9, 6
      %s16 = sphi 0, %s28
      %s17 = sphi 0, %s24
      %s18 = sphi 0, %s16
      %s19 = sphi 0, %s17
      %s20 = sphi 0, %s18
      %s21 = sphi 0, %s19
      %s33 = sphi 0, %s35
      %s36 = sphi 0, %s33
      %s37 = sphi 0, %s36
      %s53 = sphi 0, %s37
      %s57 = sphi 0, %s57
      %s59 = sphi 0, %s57
      %s60 = sphi 0, %s59
      %s74 = sphi 0, %s60
      %s78 = sphi 0, %s78
      %s80 = sphi 0, %s78
      %s81 = sphi 0, %s80
      %s95 = sphi 0, %s81
      %s103 = sphi 0, %s105
      %s106 = sphi 0, %s103
      %s107 = sphi 0, %s106
      %s123 = sphi 0, %s107
    $region4: #{unet_innermost_forward.5} parent=1 // loop_header_branch
      %12 = sbr.rel (%p10) target = $region8
    $region5: #{unet_innermost_forward.5} parent=1 // loop_body
      %s14 = ssub.s32 %s9, 1
      %s15 = ssub.s32 %s9, 2
      %s22 = sadd.s32 1, %s17
      %p23 = scmp.ge.s32.totalorder %s22, 2
      %s24 = scalar_select %p23, 0, %s22
      %s25 = sadd.s32 1, %s16
      %s26 = scalar_select %p23, %s25, %s16
      %p27 = scmp.ge.s32.totalorder %s26, 2
      %s28 = scalar_select %p27, 0, %s26
      %s29 = ssub.s32 %s17, %s24
      %s30 = ssub.s32 %s16, %s28
      %s31 = sor.u32 %s29, %s30
      %p32 = scmp.eq.s32.totalorder %s31, 0
      %s34 = sadd.s32 %s33, 1
      %s35 = scalar_select %p32, %s33, %s34
      %p38 = pneg %p32
      %p39 = scmp.eq.s32.totalorder %s9, 3
      %p40 = por %p38, %p39
      %p41 = scmp.ne.s32.totalorder %s33, %s36
      %p42 = scmp.eq.s32.totalorder %s9, 0
      %p43 = por %p41, %p42
      %p44 = scmp.ne.s32.totalorder %s33, %s36
      %p45 = scmp.eq.s32.totalorder %s14, 3
      %p46 = por %p44, %p45
      %p47 = scmp.ne.s32.totalorder %s36, %s37
      %p48 = scmp.eq.s32.totalorder %s14, 0
      %p49 = por %p47, %p48
      %p50 = scmp.ne.s32.totalorder %s36, %s37
      %p51 = scmp.eq.s32.totalorder %s15, 3
      %p52 = por %p50, %p51
      %p54 = scmp.ne.s32.totalorder %s37, %s53
      %p55 = scmp.eq.s32.totalorder %s15, 0
      %p56 = por %p54, %p55
      %s58 = sadd.s32 %s57, 1
      %p61 = scmp.eq.s32.totalorder %s9, 3
      %p62 = scmp.ne.s32.totalorder %s57, %s59
      %p63 = scmp.eq.s32.totalorder %s9, 0
      %p64 = por %p62, %p63
      %p65 = scmp.ne.s32.totalorder %s57, %s59
      %p66 = scmp.eq.s32.totalorder %s14, 3
      %p67 = por %p65, %p66
      %p68 = scmp.ne.s32.totalorder %s59, %s60
      %p69 = scmp.eq.s32.totalorder %s14, 0
      %p70 = por %p68, %p69
      %p71 = scmp.ne.s32.totalorder %s59, %s60
      %p72 = scmp.eq.s32.totalorder %s15, 3
      %p73 = por %p71, %p72
      %p75 = scmp.ne.s32.totalorder %s60, %s74
      %p76 = scmp.eq.s32.totalorder %s15, 0
      %p77 = por %p75, %p76
      %s79 = sadd.s32 %s78, 1
      %p82 = scmp.eq.s32.totalorder %s9, 3
      %p83 = scmp.ne.s32.totalorder %s78, %s80
      %p84 = scmp.eq.s32.totalorder %s9, 0
      %p85 = por %p83, %p84
      %p86 = scmp.ne.s32.totalorder %s78, %s80
      %p87 = scmp.eq.s32.totalorder %s14, 3
      %p88 = por %p86, %p87
      %p89 = scmp.ne.s32.totalorder %s80, %s81
      %p90 = scmp.eq.s32.totalorder %s14, 0
      %p91 = por %p89, %p90
      %p92 = scmp.ne.s32.totalorder %s80, %s81
      %p93 = scmp.eq.s32.totalorder %s15, 3
      %p94 = por %p92, %p93
      %p96 = scmp.ne.s32.totalorder %s81, %s95
      %p97 = scmp.eq.s32.totalorder %s15, 0
      %p98 = por %p96, %p97
      %s99 = ssub.s32 %s16, %s28
      %s100 = ssub.s32 %s17, %s24
      %s101 = sor.u32 %s99, %s100
      %p102 = scmp.eq.s32.totalorder %s101, 0
      %s104 = sadd.s32 %s103, 1
      %s105 = scalar_select %p102, %s103, %s104
      %p108 = pneg %p102
      %p109 = scmp.eq.s32.totalorder %s9, 3
      %p110 = por %p108, %p109
      %p111 = scmp.ne.s32.totalorder %s103, %s106
      %p112 = scmp.eq.s32.totalorder %s9, 0
      %p113 = por %p111, %p112
      %p114 = scmp.ne.s32.totalorder %s103, %s106
      %p115 = scmp.eq.s32.totalorder %s14, 3
      %p116 = por %p114, %p115
      %p117 = scmp.ne.s32.totalorder %s106, %s107
      %p118 = scmp.eq.s32.totalorder %s14, 0
      %p119 = por %p117, %p118
      %p120 = scmp.ne.s32.totalorder %s106, %s107
      %p121 = scmp.eq.s32.totalorder %s15, 3
      %p122 = por %p120, %p121
      %p124 = scmp.ne.s32.totalorder %s107, %s123
      %p125 = scmp.eq.s32.totalorder %s15, 0
      %p126 = por %p124, %p125
      %p127 = scmp.le.s32.totalorder 1, %s9
      %p128 = scmp.lt.s32.totalorder %s9, 5
      %p129 = pnand %p127, %p128
      %p130 = pneg %p129
      // Predicated region
      $region9: #{unet_innermost_forward.5} parent=5 // pred_check
        _
      $region10: #{unet_innermost_forward.5} parent=5 // pred_check_branch
        %132 = sbr.rel (%p129) target = $region12
      $region11: #{unet_innermost_forward.5} parent=5 // pred_region
        %s133 = ssub.s32 %s9, 1
        // Predicated region
        $region13: #{unet_innermost_forward.5} parent=11 // pred_check
          %p134 = pneg %p70
        $region14: #{unet_innermost_forward.5} parent=11 // pred_check_branch
          %136 = sbr.rel (%p134) target = $region16
        $region15: #{unet_innermost_forward.5} parent=11 // pred_region
          _
        $region16: #{unet_innermost_forward.5} parent=11 // pred_fallthru
          _
        // Predicated region
        $region17: #{unet_innermost_forward.5} parent=11 // pred_check
          %p137 = pneg %p91
        $region18: #{unet_innermost_forward.5} parent=11 // pred_check_branch
          %139 = sbr.rel (%p137) target = $region20
        $region19: #{unet_innermost_forward.5} parent=11 // pred_region
          _
        $region20: #{unet_innermost_forward.5} parent=11 // pred_fallthru
          _
      $region12: #{unet_innermost_forward.5} parent=5 // pred_fallthru
        _
      %p140 = scmp.lt.s32.totalorder %s9, 4
      // Predicated region
      $region21: #{unet_innermost_forward.5} parent=5 // pred_check
        %p141 = pneg %p140
      $region22: #{unet_innermost_forward.5} parent=5 // pred_check_branch
        %143 = sbr.rel (%p141) target = $region24
      $region23: #{unet_innermost_forward.5} parent=5 // pred_region
        // Predicated region
        $region25: #{unet_innermost_forward.5} parent=23 // pred_check
          %p144 = pneg %p43
        $region26: #{unet_innermost_forward.5} parent=23 // pred_check_branch
          %146 = sbr.rel (%p144) target = $region28
        $region27: #{unet_innermost_forward.5} parent=23 // pred_region
          %s147 = sand.u32 %s33, 1
          %s148 = sand.u32 %s33, 1
          %s149 = smul.addr %s148, 64
          %s150 = scalar_lea.vmem [#allocation2], %s149
          %s151 = smul.u32 2, %s17
          %s152 = smul.addr %s16, 8
          %s153 = smul.addr %s151, 16
          %s154 = sadd.s32 %s152, %s153
          %s155 = smul.addr %s154, 4
          %s156 = scalar_lea.vmem %s0, %s155
          // Predicated region
          $region29: #{unet_innermost_forward.5} parent=27 // pred_check
            _
          $region30: #{unet_innermost_forward.5} parent=27 // pred_check_branch
            %158 = sbr.rel (0) target = $region32
          $region31: #{unet_innermost_forward.5} parent=27 // pred_region
            // Predicated region
            $region33: #{unet_innermost_forward.5} parent=31 // pred_check
              _
            $region34: #{unet_innermost_forward.5} parent=31 // pred_check_branch
              %160 = sbr.rel target = $region36
            $region35: #{unet_innermost_forward.5} parent=31 // pred_region
              // Predicated region
              $region48: #{unet_innermost_forward.5} parent=35 // pred_check
                _
              $region49: #{unet_innermost_forward.5} parent=35 // pred_check_branch
                %206 = sbr.rel (0) target = $region51
              $region50: #{unet_innermost_forward.5} parent=35 // pred_region
                loop: start=0, step=1, limit=1
                $region52: #{unet_innermost_forward.5} parent=50 // loop_pre_header
                  _
                $region53: #{unet_innermost_forward.5} parent=50 // loop_header
                  %s208 = sphi 0, %s212
                  %p209 = scmp.ge.s32.totalorder %s208, 1
                  %s213 = sphi %s156, %s156
                  %s214 = sphi %s150, %s150
                $region54: #{unet_innermost_forward.5} parent=50 // loop_header_branch
                  %211 = sbr.rel (%p209) target = $region58
                $region55: #{unet_innermost_forward.5} parent=50 // loop_body
                  _
                $region56: #{unet_innermost_forward.5} parent=50 // loop_footer
                  %s212 = sadd.s32 1, %s208
                $region57: #{unet_innermost_forward.5} parent=50 // loop_footer_branch
                  %207 = sbr.rel target = $region53
                $region58: #{unet_innermost_forward.5} parent=50 // loop_exit
                  _
                %s216 = ssub.s32 16, 1
                loop: start=0, step=1, limit=1
                $region59: #{unet_innermost_forward.5} parent=50 // loop_pre_header
                  _
                $region60: #{unet_innermost_forward.5} parent=50 // loop_header
                  %s218 = sphi 0, %s222
                  %p219 = scmp.ge.s32.totalorder %s218, 1
                  %s223 = sphi %s156, %s156
                  %s224 = sphi %s150, %s150
                $region61: #{unet_innermost_forward.5} parent=50 // loop_header_branch
                  %221 = sbr.rel (%p219) target = $region65
                $region62: #{unet_innermost_forward.5} parent=50 // loop_body
                  %v225 = vld [vmem:[%s223] sm:%s216]
                  %226 = vst [vmem:[%s224] sm:%s216] %v225
                  %v227 = vld [vmem:[%s223 + $0x4] sm:%s216]
                  %228 = vst [vmem:[%s224 + $0x4] sm:%s216] %v227
                  %v229 = vld [vmem:[%s223 + $0x8] sm:%s216]
                  %230 = vst [vmem:[%s224 + $0x8] sm:%s216] %v229
                  %v231 = vld [vmem:[%s223 + $0xc] sm:%s216]
                  %232 = vst [vmem:[%s224 + $0xc] sm:%s216] %v231
                  %v233 = vld [vmem:[%s223 + $0x10] sm:%s216]
                  %234 = vst [vmem:[%s224 + $0x10] sm:%s216] %v233
                  %v235 = vld [vmem:[%s223 + $0x14] sm:%s216]
                  %236 = vst [vmem:[%s224 + $0x14] sm:%s216] %v235
                  %v237 = vld [vmem:[%s223 + $0x18] sm:%s216]
                  %238 = vst [vmem:[%s224 + $0x18] sm:%s216] %v237
                  %v239 = vld [vmem:[%s223 + $0x1c] sm:%s216]
                  %240 = vst [vmem:[%s224 + $0x1c] sm:%s216] %v239
                  %v241 = vld [vmem:[%s223 + $0x40] sm:%s216]
                  %242 = vst [vmem:[%s224 + $0x20] sm:%s216] %v241
                  %v243 = vld [vmem:[%s223 + $0x44] sm:%s216]
                  %244 = vst [vmem:[%s224 + $0x24] sm:%s216] %v243
                  %v245 = vld [vmem:[%s223 + $0x48] sm:%s216]
                  %246 = vst [vmem:[%s224 + $0x28] sm:%s216] %v245
                  %v247 = vld [vmem:[%s223 + $0x4c] sm:%s216]
                  %248 = vst [vmem:[%s224 + $0x2c] sm:%s216] %v247
                  %v249 = vld [vmem:[%s223 + $0x50] sm:%s216]
                  %250 = vst [vmem:[%s224 + $0x30] sm:%s216] %v249
                  %v251 = vld [vmem:[%s223 + $0x54] sm:%s216]
                  %252 = vst [vmem:[%s224 + $0x34] sm:%s216] %v251
                  %v253 = vld [vmem:[%s223 + $0x58] sm:%s216]
                  %254 = vst [vmem:[%s224 + $0x38] sm:%s216] %v253
                  %v255 = vld [vmem:[%s223 + $0x5c] sm:%s216]
                  %256 = vst [vmem:[%s224 + $0x3c] sm:%s216] %v255
                $region63: #{unet_innermost_forward.5} parent=50 // loop_footer
                  %s222 = sadd.s32 1, %s218
                $region64: #{unet_innermost_forward.5} parent=50 // loop_footer_branch
                  %217 = sbr.rel target = $region60
                $region65: #{unet_innermost_forward.5} parent=50 // loop_exit
                  _
              $region51: #{unet_innermost_forward.5} parent=35 // pred_fallthru
                _
            $region36: #{unet_innermost_forward.5} parent=31 // pred_fallthru
              _
            // Predicated region
            $region37: #{unet_innermost_forward.5} parent=31 // pred_check
              _
            $region38: #{unet_innermost_forward.5} parent=31 // pred_check_branch
              %162 = sbr.rel (0) target = $region40
            $region39: #{unet_innermost_forward.5} parent=31 // pred_region
              %s164 = ssub.s32 16, 1
              loop: start=0, step=1, limit=1
              $region41: #{unet_innermost_forward.5} parent=39 // loop_pre_header
                _
              $region42: #{unet_innermost_forward.5} parent=39 // loop_header
                %s166 = sphi 0, %s170
                %p167 = scmp.ge.s32.totalorder %s166, 1
                %s171 = sphi %s156, %s156
                %s172 = sphi %s150, %s150
              $region43: #{unet_innermost_forward.5} parent=39 // loop_header_branch
                %169 = sbr.rel (%p167) target = $region47
              $region44: #{unet_innermost_forward.5} parent=39 // loop_body
                %v173 = vld [vmem:[%s171] sm:%s164]
                %174 = vst [vmem:[%s172] sm:%s164] %v173
                %v175 = vld [vmem:[%s171 + $0x4] sm:%s164]
                %176 = vst [vmem:[%s172 + $0x4] sm:%s164] %v175
                %v177 = vld [vmem:[%s171 + $0x8] sm:%s164]
                %178 = vst [vmem:[%s172 + $0x8] sm:%s164] %v177
                %v179 = vld [vmem:[%s171 + $0xc] sm:%s164]
                %180 = vst [vmem:[%s172 + $0xc] sm:%s164] %v179
                %v181 = vld [vmem:[%s171 + $0x10] sm:%s164]
                %182 = vst [vmem:[%s172 + $0x10] sm:%s164] %v181
                %v183 = vld [vmem:[%s171 + $0x14] sm:%s164]
                %184 = vst [vmem:[%s172 + $0x14] sm:%s164] %v183
                %v185 = vld [vmem:[%s171 + $0x18] sm:%s164]
                %186 = vst [vmem:[%s172 + $0x18] sm:%s164] %v185
                %v187 = vld [vmem:[%s171 + $0x1c] sm:%s164]
                %188 = vst [vmem:[%s172 + $0x1c] sm:%s164] %v187
                %v189 = vld [vmem:[%s171 + $0x40] sm:%s164]
                %190 = vst [vmem:[%s172 + $0x20] sm:%s164] %v189
                %v191 = vld [vmem:[%s171 + $0x44] sm:%s164]
                %192 = vst [vmem:[%s172 + $0x24] sm:%s164] %v191
                %v193 = vld [vmem:[%s171 + $0x48] sm:%s164]
                %194 = vst [vmem:[%s172 + $0x28] sm:%s164] %v193
                %v195 = vld [vmem:[%s171 + $0x4c] sm:%s164]
                %196 = vst [vmem:[%s172 + $0x2c] sm:%s164] %v195
                %v197 = vld [vmem:[%s171 + $0x50] sm:%s164]
                %198 = vst [vmem:[%s172 + $0x30] sm:%s164] %v197
                %v199 = vld [vmem:[%s171 + $0x54] sm:%s164]
                %200 = vst [vmem:[%s172 + $0x34] sm:%s164] %v199
                %v201 = vld [vmem:[%s171 + $0x58] sm:%s164]
                %202 = vst [vmem:[%s172 + $0x38] sm:%s164] %v201
                %v203 = vld [vmem:[%s171 + $0x5c] sm:%s164]
                %204 = vst [vmem:[%s172 + $0x3c] sm:%s164] %v203
              $region45: #{unet_innermost_forward.5} parent=39 // loop_footer
                %s170 = sadd.s32 1, %s166
              $region46: #{unet_innermost_forward.5} parent=39 // loop_footer_branch
                %165 = sbr.rel target = $region42
              $region47: #{unet_innermost_forward.5} parent=39 // loop_exit
                _
            $region40: #{unet_innermost_forward.5} parent=31 // pred_fallthru
              _
          $region32: #{unet_innermost_forward.5} parent=27 // pred_fallthru
            _
          %257 = vnop
        $region28: #{unet_innermost_forward.5} parent=23 // pred_fallthru
          _
      $region24: #{unet_innermost_forward.5} parent=5 // pred_fallthru
        _
      %p258 = scmp.le.s32.totalorder 1, %s9
      %p259 = scmp.lt.s32.totalorder %s9, 5
      %p260 = pnand %p258, %p259
      %p261 = pneg %p260
      // Predicated region
      $region66: #{unet_innermost_forward.5} parent=5 // pred_check
        _
      $region67: #{unet_innermost_forward.5} parent=5 // pred_check_branch
        %263 = sbr.rel (%p260) target = $region69
      $region68: #{unet_innermost_forward.5} parent=5 // pred_region
        %s264 = ssub.s32 %s9, 1
        %s265 = sand.u32 %s36, 1
        %s266 = sand.u32 %s36, 1
        %s267 = smul.addr %s266, 64
        %s268 = scalar_lea.vmem [#allocation2], %s267
        // Predicated region
        $region70: #{unet_innermost_forward.5} parent=68 // pred_check
          %p269 = pneg %p49
        $region71: #{unet_innermost_forward.5} parent=68 // pred_check_branch
          %271 = sbr.rel (%p269) target = $region73
        $region72: #{unet_innermost_forward.5} parent=68 // pred_region
          _
        $region73: #{unet_innermost_forward.5} parent=68 // pred_fallthru
          _
        %s272 = sand.u32 %s36, 1
        %s273 = sand.u32 %s36, 1
        %s274 = smul.addr %s273, 64
        %s275 = scalar_lea.vmem [#allocation2], %s274
        %p276 = pneg %p49
        %p277 = pneg %p46
        %p278 = pneg %p70
        %p279 = pneg %p67
        %p280 = pneg %p91
        %p281 = pneg %p88
        %p282 = pneg %p119
        %p283 = pneg %p116
        %s284 = sand.u32 %s106, 1
        %s285 = sand.u32 %s106, 1
        %s286 = smul.addr %s285, 128
        %s287 = scalar_lea.vmem [#allocation3], %s286
        %s288 = smul.u32 2, %s19
        %v289 = vld [vmem:[%s268] sm:$0xf]
        %v290 = vld [vmem:[%s268 + $0x4] sm:$0xf]
        %v291 = vld [vmem:[%s268 + $0x8] sm:$0xf]
        %v292 = vld [vmem:[%s268 + $0xc] sm:$0xf]
        %v293 = vld [vmem:[%s268 + $0x10] sm:$0xf]
        %v294 = vld [vmem:[%s268 + $0x14] sm:$0xf]
        %v295 = vld [vmem:[%s268 + $0x18] sm:$0xf]
        %v296 = vld [vmem:[%s268 + $0x1c] sm:$0xf]
        %v297 = vld [vmem:[%s268 + $0x20] sm:$0xf]
        %v298 = vld [vmem:[%s268 + $0x24] sm:$0xf]
        %v299 = vld [vmem:[%s268 + $0x28] sm:$0xf]
        %v300 = vld [vmem:[%s268 + $0x2c] sm:$0xf]
        %v301 = vld [vmem:[%s268 + $0x30] sm:$0xf]
        %v302 = vld [vmem:[%s268 + $0x34] sm:$0xf]
        %v303 = vld [vmem:[%s268 + $0x38] sm:$0xf]
        %v304 = vld [vmem:[%s268 + $0x3c] sm:$0xf]
        %v305 = vunpack.c.l.bf16 %v289
        %v306 = vunpack.c.l.bf16 %v290
        %v307 = vunpack.c.l.bf16 %v291
        %v308 = vunpack.c.l.bf16 %v292
        %v309 = vunpack.c.l.bf16 %v293
        %v310 = vunpack.c.l.bf16 %v294
        %v311 = vunpack.c.l.bf16 %v295
        %v312 = vunpack.c.l.bf16 %v296
        %v313 = vunpack.c.l.bf16 %v297
        %v314 = vunpack.c.l.bf16 %v298
        %v315 = vunpack.c.l.bf16 %v299
        %v316 = vunpack.c.l.bf16 %v300
        %v317 = vunpack.c.l.bf16 %v301
        %v318 = vunpack.c.l.bf16 %v302
        %v319 = vunpack.c.l.bf16 %v303
        %v320 = vunpack.c.l.bf16 %v304
        %v321 = vld [vmem:[%s1] sm:$0x1]
        %v323 = vperm.slane %v321, 0
        %v325 = vmul.f32 %v305, %v323
        %v326 = vmul.f32 %v306, %v323
        %v327 = vmul.f32 %v307, %v323
        %v328 = vmul.f32 %v308, %v323
        %v329 = vmul.f32 %v309, %v323
        %v330 = vmul.f32 %v310, %v323
        %v331 = vmul.f32 %v311, %v323
        %v332 = vmul.f32 %v312, %v323
        %v333 = vmul.f32 %v313, %v323
        %v334 = vmul.f32 %v314, %v323
        %v335 = vmul.f32 %v315, %v323
        %v336 = vmul.f32 %v316, %v323
        %v337 = vmul.f32 %v317, %v323
        %v338 = vmul.f32 %v318, %v323
        %v339 = vmul.f32 %v319, %v323
        %v340 = vmul.f32 %v320, %v323
        %v341 = vld [vmem:[%s2] sm:$0x1]
        %v343 = vperm.slane %v341, 0
        %v345 = vadd.f32 %v325, %v343
        %v346 = vadd.f32 %v326, %v343
        %v347 = vadd.f32 %v327, %v343
        %v348 = vadd.f32 %v328, %v343
        %v349 = vadd.f32 %v329, %v343
        %v350 = vadd.f32 %v330, %v343
        %v351 = vadd.f32 %v331, %v343
        %v352 = vadd.f32 %v332, %v343
        %v353 = vadd.f32 %v333, %v343
        %v354 = vadd.f32 %v334, %v343
        %v355 = vadd.f32 %v335, %v343
        %v356 = vadd.f32 %v336, %v343
        %v357 = vadd.f32 %v337, %v343
        %v358 = vadd.f32 %v338, %v343
        %v359 = vadd.f32 %v339, %v343
        %v360 = vadd.f32 %v340, %v343
        %v369 = vrot.slane %v345, 1
        %v370 = vrot.slane %v345, 2
        %v371 = vrot.slane %v345, 3
        %v372 = vrot.slane %v345, 4
        %v373 = vrot.slane %v345, 5
        %v374 = vrot.slane %v345, 6
        %v375 = vrot.slane %v345, 7
        %v376 = vrot.slane %v346, 1
        %v377 = vrot.slane %v346, 2
        %v378 = vrot.slane %v346, 3
        %v379 = vrot.slane %v346, 4
        %v380 = vrot.slane %v346, 5
        %v381 = vrot.slane %v346, 6
        %v382 = vrot.slane %v346, 7
        %v383 = vrot.slane %v347, 1
        %v384 = vrot.slane %v347, 2
        %v385 = vrot.slane %v347, 3
        %v386 = vrot.slane %v347, 4
        %v387 = vrot.slane %v347, 5
        %v388 = vrot.slane %v347, 6
        %v389 = vrot.slane %v347, 7
        %v390 = vrot.slane %v348, 1
        %v391 = vrot.slane %v348, 2
        %v392 = vrot.slane %v348, 3
        %v393 = vrot.slane %v348, 4
        %v394 = vrot.slane %v348, 5
        %v395 = vrot.slane %v348, 6
        %v396 = vrot.slane %v348, 7
        %v397 = vrot.slane %v349, 1
        %v398 = vrot.slane %v349, 2
        %v399 = vrot.slane %v349, 3
        %v400 = vrot.slane %v349, 4
        %v401 = vrot.slane %v349, 5
        %v402 = vrot.slane %v349, 6
        %v403 = vrot.slane %v349, 7
        %v404 = vrot.slane %v350, 1
        %v405 = vrot.slane %v350, 2
        %v406 = vrot.slane %v350, 3
        %v407 = vrot.slane %v350, 4
        %v408 = vrot.slane %v350, 5
        %v409 = vrot.slane %v350, 6
        %v410 = vrot.slane %v350, 7
        %v411 = vrot.slane %v351, 1
        %v412 = vrot.slane %v351, 2
        %v413 = vrot.slane %v351, 3
        %v414 = vrot.slane %v351, 4
        %v415 = vrot.slane %v351, 5
        %v416 = vrot.slane %v351, 6
        %v417 = vrot.slane %v351, 7
        %v418 = vrot.slane %v352, 1
        %v419 = vrot.slane %v352, 2
        %v420 = vrot.slane %v352, 3
        %v421 = vrot.slane %v352, 4
        %v422 = vrot.slane %v352, 5
        %v423 = vrot.slane %v352, 6
        %v424 = vrot.slane %v352, 7
        %vm481 = vcmask 24576
        %482 = vst.msk [vmem:[%s287] sm:$0x1] %vm481, %v345
        %483 = vst.msk [vmem:[%s287 + $0x2] sm:$0x1] %vm481, %v369
        %484 = vst.msk [vmem:[%s287 + $0x4] sm:$0x1] %vm481, %v370
        %485 = vst.msk [vmem:[%s287 + $0x6] sm:$0x1] %vm481, %v371
        %486 = vst.msk [vmem:[%s287 + $0x8] sm:$0x1] %vm481, %v372
        %487 = vst.msk [vmem:[%s287 + $0xa] sm:$0x1] %vm481, %v373
        %488 = vst.msk [vmem:[%s287 + $0xc] sm:$0x1] %vm481, %v374
        %489 = vst.msk [vmem:[%s287 + $0xe] sm:$0x1] %vm481, %v375
        %490 = vst.msk [vmem:[%s287 + $0x10] sm:$0x1] %vm481, %v346
        %491 = vst.msk [vmem:[%s287 + $0x12] sm:$0x1] %vm481, %v376
        %492 = vst.msk [vmem:[%s287 + $0x14] sm:$0x1] %vm481, %v377
        %493 = vst.msk [vmem:[%s287 + $0x16] sm:$0x1] %vm481, %v378
        %494 = vst.msk [vmem:[%s287 + $0x18] sm:$0x1] %vm481, %v379
        %495 = vst.msk [vmem:[%s287 + $0x1a] sm:$0x1] %vm481, %v380
        %496 = vst.msk [vmem:[%s287 + $0x1c] sm:$0x1] %vm481, %v381
        %497 = vst.msk [vmem:[%s287 + $0x1e] sm:$0x1] %vm481, %v382
        %498 = vst.msk [vmem:[%s287 + $0x20] sm:$0x1] %vm481, %v347
        %499 = vst.msk [vmem:[%s287 + $0x22] sm:$0x1] %vm481, %v383
        %500 = vst.msk [vmem:[%s287 + $0x24] sm:$0x1] %vm481, %v384
        %501 = vst.msk [vmem:[%s287 + $0x26] sm:$0x1] %vm481, %v385
        %502 = vst.msk [vmem:[%s287 + $0x28] sm:$0x1] %vm481, %v386
        %503 = vst.msk [vmem:[%s287 + $0x2a] sm:$0x1] %vm481, %v387
        %504 = vst.msk [vmem:[%s287 + $0x2c] sm:$0x1] %vm481, %v388
        %505 = vst.msk [vmem:[%s287 + $0x2e] sm:$0x1] %vm481, %v389
        %506 = vst.msk [vmem:[%s287 + $0x30] sm:$0x1] %vm481, %v348
        %507 = vst.msk [vmem:[%s287 + $0x32] sm:$0x1] %vm481, %v390
        %508 = vst.msk [vmem:[%s287 + $0x34] sm:$0x1] %vm481, %v391
        %509 = vst.msk [vmem:[%s287 + $0x36] sm:$0x1] %vm481, %v392
        %510 = vst.msk [vmem:[%s287 + $0x38] sm:$0x1] %vm481, %v393
        %511 = vst.msk [vmem:[%s287 + $0x3a] sm:$0x1] %vm481, %v394
        %512 = vst.msk [vmem:[%s287 + $0x3c] sm:$0x1] %vm481, %v395
        %513 = vst.msk [vmem:[%s287 + $0x3e] sm:$0x1] %vm481, %v396
        %514 = vst.msk [vmem:[%s287 + $0x40] sm:$0x1] %vm481, %v349
        %515 = vst.msk [vmem:[%s287 + $0x42] sm:$0x1] %vm481, %v397
        %516 = vst.msk [vmem:[%s287 + $0x44] sm:$0x1] %vm481, %v398
        %517 = vst.msk [vmem:[%s287 + $0x46] sm:$0x1] %vm481, %v399
        %518 = vst.msk [vmem:[%s287 + $0x48] sm:$0x1] %vm481, %v400
        %519 = vst.msk [vmem:[%s287 + $0x4a] sm:$0x1] %vm481, %v401
        %520 = vst.msk [vmem:[%s287 + $0x4c] sm:$0x1] %vm481, %v402
        %521 = vst.msk [vmem:[%s287 + $0x4e] sm:$0x1] %vm481, %v403
        %522 = vst.msk [vmem:[%s287 + $0x50] sm:$0x1] %vm481, %v350
        %523 = vst.msk [vmem:[%s287 + $0x52] sm:$0x1] %vm481, %v404
        %524 = vst.msk [vmem:[%s287 + $0x54] sm:$0x1] %vm481, %v405
        %525 = vst.msk [vmem:[%s287 + $0x56] sm:$0x1] %vm481, %v406
        %526 = vst.msk [vmem:[%s287 + $0x58] sm:$0x1] %vm481, %v407
        %527 = vst.msk [vmem:[%s287 + $0x5a] sm:$0x1] %vm481, %v408
        %528 = vst.msk [vmem:[%s287 + $0x5c] sm:$0x1] %vm481, %v409
        %529 = vst.msk [vmem:[%s287 + $0x5e] sm:$0x1] %vm481, %v410
        %530 = vst.msk [vmem:[%s287 + $0x60] sm:$0x1] %vm481, %v351
        %531 = vst.msk [vmem:[%s287 + $0x62] sm:$0x1] %vm481, %v411
        %532 = vst.msk [vmem:[%s287 + $0x64] sm:$0x1] %vm481, %v412
        %533 = vst.msk [vmem:[%s287 + $0x66] sm:$0x1] %vm481, %v413
        %534 = vst.msk [vmem:[%s287 + $0x68] sm:$0x1] %vm481, %v414
        %535 = vst.msk [vmem:[%s287 + $0x6a] sm:$0x1] %vm481, %v415
        %536 = vst.msk [vmem:[%s287 + $0x6c] sm:$0x1] %vm481, %v416
        %537 = vst.msk [vmem:[%s287 + $0x6e] sm:$0x1] %vm481, %v417
        %538 = vst.msk [vmem:[%s287 + $0x70] sm:$0x1] %vm481, %v352
        %539 = vst.msk [vmem:[%s287 + $0x72] sm:$0x1] %vm481, %v418
        %540 = vst.msk [vmem:[%s287 + $0x74] sm:$0x1] %vm481, %v419
        %541 = vst.msk [vmem:[%s287 + $0x76] sm:$0x1] %vm481, %v420
        %542 = vst.msk [vmem:[%s287 + $0x78] sm:$0x1] %vm481, %v421
        %543 = vst.msk [vmem:[%s287 + $0x7a] sm:$0x1] %vm481, %v422
        %544 = vst.msk [vmem:[%s287 + $0x7c] sm:$0x1] %vm481, %v423
        %545 = vst.msk [vmem:[%s287 + $0x7e] sm:$0x1] %vm481, %v424
        %v554 = vrot.slane %v353, 1
        %v555 = vrot.slane %v353, 2
        %v556 = vrot.slane %v353, 3
        %v557 = vrot.slane %v353, 4
        %v558 = vrot.slane %v353, 5
        %v559 = vrot.slane %v353, 6
        %v560 = vrot.slane %v353, 7
        %v561 = vrot.slane %v354, 1
        %v562 = vrot.slane %v354, 2
        %v563 = vrot.slane %v354, 3
        %v564 = vrot.slane %v354, 4
        %v565 = vrot.slane %v354, 5
        %v566 = vrot.slane %v354, 6
        %v567 = vrot.slane %v354, 7
        %v568 = vrot.slane %v355, 1
        %v569 = vrot.slane %v355, 2
        %v570 = vrot.slane %v355, 3
        %v571 = vrot.slane %v355, 4
        %v572 = vrot.slane %v355, 5
        %v573 = vrot.slane %v355, 6
        %v574 = vrot.slane %v355, 7
        %v575 = vrot.slane %v356, 1
        %v576 = vrot.slane %v356, 2
        %v577 = vrot.slane %v356, 3
        %v578 = vrot.slane %v356, 4
        %v579 = vrot.slane %v356, 5
        %v580 = vrot.slane %v356, 6
        %v581 = vrot.slane %v356, 7
        %v582 = vrot.slane %v357, 1
        %v583 = vrot.slane %v357, 2
        %v584 = vrot.slane %v357, 3
        %v585 = vrot.slane %v357, 4
        %v586 = vrot.slane %v357, 5
        %v587 = vrot.slane %v357, 6
        %v588 = vrot.slane %v357, 7
        %v589 = vrot.slane %v358, 1
        %v590 = vrot.slane %v358, 2
        %v591 = vrot.slane %v358, 3
        %v592 = vrot.slane %v358, 4
        %v593 = vrot.slane %v358, 5
        %v594 = vrot.slane %v358, 6
        %v595 = vrot.slane %v358, 7
        %v596 = vrot.slane %v359, 1
        %v597 = vrot.slane %v359, 2
        %v598 = vrot.slane %v359, 3
        %v599 = vrot.slane %v359, 4
        %v600 = vrot.slane %v359, 5
        %v601 = vrot.slane %v359, 6
        %v602 = vrot.slane %v359, 7
        %v603 = vrot.slane %v360, 1
        %v604 = vrot.slane %v360, 2
        %v605 = vrot.slane %v360, 3
        %v606 = vrot.slane %v360, 4
        %v607 = vrot.slane %v360, 5
        %v608 = vrot.slane %v360, 6
        %v609 = vrot.slane %v360, 7
        %666 = vst.msk [vmem:[%s287 + $0x1] sm:$0x1] %vm481, %v353
        %667 = vst.msk [vmem:[%s287 + $0x3] sm:$0x1] %vm481, %v554
        %668 = vst.msk [vmem:[%s287 + $0x5] sm:$0x1] %vm481, %v555
        %669 = vst.msk [vmem:[%s287 + $0x7] sm:$0x1] %vm481, %v556
        %670 = vst.msk [vmem:[%s287 + $0x9] sm:$0x1] %vm481, %v557
        %671 = vst.msk [vmem:[%s287 + $0xb] sm:$0x1] %vm481, %v558
        %672 = vst.msk [vmem:[%s287 + $0xd] sm:$0x1] %vm481, %v559
        %673 = vst.msk [vmem:[%s287 + $0xf] sm:$0x1] %vm481, %v560
        %674 = vst.msk [vmem:[%s287 + $0x11] sm:$0x1] %vm481, %v354
        %675 = vst.msk [vmem:[%s287 + $0x13] sm:$0x1] %vm481, %v561
        %676 = vst.msk [vmem:[%s287 + $0x15] sm:$0x1] %vm481, %v562
        %677 = vst.msk [vmem:[%s287 + $0x17] sm:$0x1] %vm481, %v563
        %678 = vst.msk [vmem:[%s287 + $0x19] sm:$0x1] %vm481, %v564
        %679 = vst.msk [vmem:[%s287 + $0x1b] sm:$0x1] %vm481, %v565
        %680 = vst.msk [vmem:[%s287 + $0x1d] sm:$0x1] %vm481, %v566
        %681 = vst.msk [vmem:[%s287 + $0x1f] sm:$0x1] %vm481, %v567
        %682 = vst.msk [vmem:[%s287 + $0x21] sm:$0x1] %vm481, %v355
        %683 = vst.msk [vmem:[%s287 + $0x23] sm:$0x1] %vm481, %v568
        %684 = vst.msk [vmem:[%s287 + $0x25] sm:$0x1] %vm481, %v569
        %685 = vst.msk [vmem:[%s287 + $0x27] sm:$0x1] %vm481, %v570
        %686 = vst.msk [vmem:[%s287 + $0x29] sm:$0x1] %vm481, %v571
        %687 = vst.msk [vmem:[%s287 + $0x2b] sm:$0x1] %vm481, %v572
        %688 = vst.msk [vmem:[%s287 + $0x2d] sm:$0x1] %vm481, %v573
        %689 = vst.msk [vmem:[%s287 + $0x2f] sm:$0x1] %vm481, %v574
        %690 = vst.msk [vmem:[%s287 + $0x31] sm:$0x1] %vm481, %v356
        %691 = vst.msk [vmem:[%s287 + $0x33] sm:$0x1] %vm481, %v575
        %692 = vst.msk [vmem:[%s287 + $0x35] sm:$0x1] %vm481, %v576
        %693 = vst.msk [vmem:[%s287 + $0x37] sm:$0x1] %vm481, %v577
        %694 = vst.msk [vmem:[%s287 + $0x39] sm:$0x1] %vm481, %v578
        %695 = vst.msk [vmem:[%s287 + $0x3b] sm:$0x1] %vm481, %v579
        %696 = vst.msk [vmem:[%s287 + $0x3d] sm:$0x1] %vm481, %v580
        %697 = vst.msk [vmem:[%s287 + $0x3f] sm:$0x1] %vm481, %v581
        %698 = vst.msk [vmem:[%s287 + $0x41] sm:$0x1] %vm481, %v357
        %699 = vst.msk [vmem:[%s287 + $0x43] sm:$0x1] %vm481, %v582
        %700 = vst.msk [vmem:[%s287 + $0x45] sm:$0x1] %vm481, %v583
        %701 = vst.msk [vmem:[%s287 + $0x47] sm:$0x1] %vm481, %v584
        %702 = vst.msk [vmem:[%s287 + $0x49] sm:$0x1] %vm481, %v585
        %703 = vst.msk [vmem:[%s287 + $0x4b] sm:$0x1] %vm481, %v586
        %704 = vst.msk [vmem:[%s287 + $0x4d] sm:$0x1] %vm481, %v587
        %705 = vst.msk [vmem:[%s287 + $0x4f] sm:$0x1] %vm481, %v588
        %706 = vst.msk [vmem:[%s287 + $0x51] sm:$0x1] %vm481, %v358
        %707 = vst.msk [vmem:[%s287 + $0x53] sm:$0x1] %vm481, %v589
        %708 = vst.msk [vmem:[%s287 + $0x55] sm:$0x1] %vm481, %v590
        %709 = vst.msk [vmem:[%s287 + $0x57] sm:$0x1] %vm481, %v591
        %710 = vst.msk [vmem:[%s287 + $0x59] sm:$0x1] %vm481, %v592
        %711 = vst.msk [vmem:[%s287 + $0x5b] sm:$0x1] %vm481, %v593
        %712 = vst.msk [vmem:[%s287 + $0x5d] sm:$0x1] %vm481, %v594
        %713 = vst.msk [vmem:[%s287 + $0x5f] sm:$0x1] %vm481, %v595
        %714 = vst.msk [vmem:[%s287 + $0x61] sm:$0x1] %vm481, %v359
        %715 = vst.msk [vmem:[%s287 + $0x63] sm:$0x1] %vm481, %v596
        %716 = vst.msk [vmem:[%s287 + $0x65] sm:$0x1] %vm481, %v597
        %717 = vst.msk [vmem:[%s287 + $0x67] sm:$0x1] %vm481, %v598
        %718 = vst.msk [vmem:[%s287 + $0x69] sm:$0x1] %vm481, %v599
        %719 = vst.msk [vmem:[%s287 + $0x6b] sm:$0x1] %vm481, %v600
        %720 = vst.msk [vmem:[%s287 + $0x6d] sm:$0x1] %vm481, %v601
        %721 = vst.msk [vmem:[%s287 + $0x6f] sm:$0x1] %vm481, %v602
        %722 = vst.msk [vmem:[%s287 + $0x71] sm:$0x1] %vm481, %v360
        %723 = vst.msk [vmem:[%s287 + $0x73] sm:$0x1] %vm481, %v603
        %724 = vst.msk [vmem:[%s287 + $0x75] sm:$0x1] %vm481, %v604
        %725 = vst.msk [vmem:[%s287 + $0x77] sm:$0x1] %vm481, %v605
        %726 = vst.msk [vmem:[%s287 + $0x79] sm:$0x1] %vm481, %v606
        %727 = vst.msk [vmem:[%s287 + $0x7b] sm:$0x1] %vm481, %v607
        %728 = vst.msk [vmem:[%s287 + $0x7d] sm:$0x1] %vm481, %v608
        %729 = vst.msk [vmem:[%s287 + $0x7f] sm:$0x1] %vm481, %v609
        %s730 = sand.u32 %s106, 1
        %s731 = sand.u32 %s106, 1
        %s732 = smul.addr %s731, 128
        %s733 = scalar_lea.vmem [#allocation3], %s732
        // Predicated region
        $region74: #{unet_innermost_forward.5} parent=68 // pred_check
          %p734 = pneg %p116
        $region75: #{unet_innermost_forward.5} parent=68 // pred_check_branch
          %736 = sbr.rel (%p734) target = $region77
        $region76: #{unet_innermost_forward.5} parent=68 // pred_region
          %s737 = smul.addr %s19, 8
          %s738 = smul.addr %s18, 128
          %s739 = sadd.s32 %s737, %s738
          %s740 = smul.addr %s739, 2
          %s741 = scalar_lea.vmem %s3, %s740
          // Predicated region
          $region78: #{unet_innermost_forward.5} parent=76 // pred_check
            _
          $region79: #{unet_innermost_forward.5} parent=76 // pred_check_branch
            %743 = sbr.rel (0) target = $region81
          $region80: #{unet_innermost_forward.5} parent=76 // pred_region
            // Predicated region
            $region82: #{unet_innermost_forward.5} parent=80 // pred_check
              _
            $region83: #{unet_innermost_forward.5} parent=80 // pred_check_branch
              %745 = sbr.rel target = $region85
            $region84: #{unet_innermost_forward.5} parent=80 // pred_region
              // Predicated region
              $region97: #{unet_innermost_forward.5} parent=84 // pred_check
                _
              $region98: #{unet_innermost_forward.5} parent=84 // pred_check_branch
                %887 = sbr.rel (0) target = $region100
              $region99: #{unet_innermost_forward.5} parent=84 // pred_region
                loop: start=0, step=1, limit=1
                $region101: #{unet_innermost_forward.5} parent=99 // loop_pre_header
                  _
                $region102: #{unet_innermost_forward.5} parent=99 // loop_header
                  %s889 = sphi 0, %s893
                  %p890 = scmp.ge.s32.totalorder %s889, 1
                  %s894 = sphi %s733, %s733
                  %s895 = sphi %s741, %s741
                $region103: #{unet_innermost_forward.5} parent=99 // loop_header_branch
                  %892 = sbr.rel (%p890) target = $region107
                $region104: #{unet_innermost_forward.5} parent=99 // loop_body
                  _
                $region105: #{unet_innermost_forward.5} parent=99 // loop_footer
                  %s893 = sadd.s32 1, %s889
                $region106: #{unet_innermost_forward.5} parent=99 // loop_footer_branch
                  %888 = sbr.rel target = $region102
                $region107: #{unet_innermost_forward.5} parent=99 // loop_exit
                  _
                %s897 = ssub.s32 4, 1
                loop: start=0, step=1, limit=1
                $region108: #{unet_innermost_forward.5} parent=99 // loop_pre_header
                  _
                $region109: #{unet_innermost_forward.5} parent=99 // loop_header
                  %s899 = sphi 0, %s903
                  %p900 = scmp.ge.s32.totalorder %s899, 1
                  %s904 = sphi %s733, %s733
                  %s905 = sphi %s741, %s741
                $region110: #{unet_innermost_forward.5} parent=99 // loop_header_branch
                  %902 = sbr.rel (%p900) target = $region114
                $region111: #{unet_innermost_forward.5} parent=99 // loop_body
                  %v906 = vld [vmem:[%s904] sm:%s897]
                  %907 = vst [vmem:[%s905] sm:%s897] %v906
                  %v908 = vld [vmem:[%s904 + $0x2] sm:%s897]
                  %909 = vst [vmem:[%s905 + $0x2] sm:%s897] %v908
                  %v910 = vld [vmem:[%s904 + $0x4] sm:%s897]
                  %911 = vst [vmem:[%s905 + $0x4] sm:%s897] %v910
                  %v912 = vld [vmem:[%s904 + $0x6] sm:%s897]
                  %913 = vst [vmem:[%s905 + $0x6] sm:%s897] %v912
                  %v914 = vld [vmem:[%s904 + $0x8] sm:%s897]
                  %915 = vst [vmem:[%s905 + $0x8] sm:%s897] %v914
                  %v916 = vld [vmem:[%s904 + $0xa] sm:%s897]
                  %917 = vst [vmem:[%s905 + $0xa] sm:%s897] %v916
                  %v918 = vld [vmem:[%s904 + $0xc] sm:%s897]
                  %919 = vst [vmem:[%s905 + $0xc] sm:%s897] %v918
                  %v920 = vld [vmem:[%s904 + $0xe] sm:%s897]
                  %921 = vst [vmem:[%s905 + $0xe] sm:%s897] %v920
                  %v922 = vld [vmem:[%s904 + $0x10] sm:%s897]
                  %923 = vst [vmem:[%s905 + $0x20] sm:%s897] %v922
                  %v924 = vld [vmem:[%s904 + $0x12] sm:%s897]
                  %925 = vst [vmem:[%s905 + $0x22] sm:%s897] %v924
                  %v926 = vld [vmem:[%s904 + $0x14] sm:%s897]
                  %927 = vst [vmem:[%s905 + $0x24] sm:%s897] %v926
                  %v928 = vld [vmem:[%s904 + $0x16] sm:%s897]
                  %929 = vst [vmem:[%s905 + $0x26] sm:%s897] %v928
                  %v930 = vld [vmem:[%s904 + $0x18] sm:%s897]
                  %931 = vst [vmem:[%s905 + $0x28] sm:%s897] %v930
                  %v932 = vld [vmem:[%s904 + $0x1a] sm:%s897]
                  %933 = vst [vmem:[%s905 + $0x2a] sm:%s897] %v932
                  %v934 = vld [vmem:[%s904 + $0x1c] sm:%s897]
                  %935 = vst [vmem:[%s905 + $0x2c] sm:%s897] %v934
                  %v936 = vld [vmem:[%s904 + $0x1e] sm:%s897]
                  %937 = vst [vmem:[%s905 + $0x2e] sm:%s897] %v936
                  %v938 = vld [vmem:[%s904 + $0x20] sm:%s897]
                  %939 = vst [vmem:[%s905 + $0x40] sm:%s897] %v938
                  %v940 = vld [vmem:[%s904 + $0x22] sm:%s897]
                  %941 = vst [vmem:[%s905 + $0x42] sm:%s897] %v940
                  %v942 = vld [vmem:[%s904 + $0x24] sm:%s897]
                  %943 = vst [vmem:[%s905 + $0x44] sm:%s897] %v942
                  %v944 = vld [vmem:[%s904 + $0x26] sm:%s897]
                  %945 = vst [vmem:[%s905 + $0x46] sm:%s897] %v944
                  %v946 = vld [vmem:[%s904 + $0x28] sm:%s897]
                  %947 = vst [vmem:[%s905 + $0x48] sm:%s897] %v946
                  %v948 = vld [vmem:[%s904 + $0x2a] sm:%s897]
                  %949 = vst [vmem:[%s905 + $0x4a] sm:%s897] %v948
                  %v950 = vld [vmem:[%s904 + $0x2c] sm:%s897]
                  %951 = vst [vmem:[%s905 + $0x4c] sm:%s897] %v950
                  %v952 = vld [vmem:[%s904 + $0x2e] sm:%s897]
                  %953 = vst [vmem:[%s905 + $0x4e] sm:%s897] %v952
                  %v954 = vld [vmem:[%s904 + $0x30] sm:%s897]
                  %955 = vst [vmem:[%s905 + $0x60] sm:%s897] %v954
                  %v956 = vld [vmem:[%s904 + $0x32] sm:%s897]
                  %957 = vst [vmem:[%s905 + $0x62] sm:%s897] %v956
                  %v958 = vld [vmem:[%s904 + $0x34] sm:%s897]
                  %959 = vst [vmem:[%s905 + $0x64] sm:%s897] %v958
                  %v960 = vld [vmem:[%s904 + $0x36] sm:%s897]
                  %961 = vst [vmem:[%s905 + $0x66] sm:%s897] %v960
                  %v962 = vld [vmem:[%s904 + $0x38] sm:%s897]
                  %963 = vst [vmem:[%s905 + $0x68] sm:%s897] %v962
                  %v964 = vld [vmem:[%s904 + $0x3a] sm:%s897]
                  %965 = vst [vmem:[%s905 + $0x6a] sm:%s897] %v964
                  %v966 = vld [vmem:[%s904 + $0x3c] sm:%s897]
                  %967 = vst [vmem:[%s905 + $0x6c] sm:%s897] %v966
                  %v968 = vld [vmem:[%s904 + $0x3e] sm:%s897]
                  %969 = vst [vmem:[%s905 + $0x6e] sm:%s897] %v968
                  %v970 = vld [vmem:[%s904 + $0x40] sm:%s897]
                  %971 = vst [vmem:[%s905 + $0x80] sm:%s897] %v970
                  %v972 = vld [vmem:[%s904 + $0x42] sm:%s897]
                  %973 = vst [vmem:[%s905 + $0x82] sm:%s897] %v972
                  %v974 = vld [vmem:[%s904 + $0x44] sm:%s897]
                  %975 = vst [vmem:[%s905 + $0x84] sm:%s897] %v974
                  %v976 = vld [vmem:[%s904 + $0x46] sm:%s897]
                  %977 = vst [vmem:[%s905 + $0x86] sm:%s897] %v976
                  %v978 = vld [vmem:[%s904 + $0x48] sm:%s897]
                  %979 = vst [vmem:[%s905 + $0x88] sm:%s897] %v978
                  %v980 = vld [vmem:[%s904 + $0x4a] sm:%s897]
                  %981 = vst [vmem:[%s905 + $0x8a] sm:%s897] %v980
                  %v982 = vld [vmem:[%s904 + $0x4c] sm:%s897]
                  %983 = vst [vmem:[%s905 + $0x8c] sm:%s897] %v982
                  %v984 = vld [vmem:[%s904 + $0x4e] sm:%s897]
                  %985 = vst [vmem:[%s905 + $0x8e] sm:%s897] %v984
                  %v986 = vld [vmem:[%s904 + $0x50] sm:%s897]
                  %987 = vst [vmem:[%s905 + $0xa0] sm:%s897] %v986
                  %v988 = vld [vmem:[%s904 + $0x52] sm:%s897]
                  %989 = vst [vmem:[%s905 + $0xa2] sm:%s897] %v988
                  %v990 = vld [vmem:[%s904 + $0x54] sm:%s897]
                  %991 = vst [vmem:[%s905 + $0xa4] sm:%s897] %v990
                  %v992 = vld [vmem:[%s904 + $0x56] sm:%s897]
                  %993 = vst [vmem:[%s905 + $0xa6] sm:%s897] %v992
                  %v994 = vld [vmem:[%s904 + $0x58] sm:%s897]
                  %995 = vst [vmem:[%s905 + $0xa8] sm:%s897] %v994
                  %v996 = vld [vmem:[%s904 + $0x5a] sm:%s897]
                  %997 = vst [vmem:[%s905 + $0xaa] sm:%s897] %v996
                  %v998 = vld [vmem:[%s904 + $0x5c] sm:%s897]
                  %999 = vst [vmem:[%s905 + $0xac] sm:%s897] %v998
                  %v1000 = vld [vmem:[%s904 + $0x5e] sm:%s897]
                  %1001 = vst [vmem:[%s905 + $0xae] sm:%s897] %v1000
                  %v1002 = vld [vmem:[%s904 + $0x60] sm:%s897]
                  %1003 = vst [vmem:[%s905 + $0xc0] sm:%s897] %v1002
                  %v1004 = vld [vmem:[%s904 + $0x62] sm:%s897]
                  %1005 = vst [vmem:[%s905 + $0xc2] sm:%s897] %v1004
                  %v1006 = vld [vmem:[%s904 + $0x64] sm:%s897]
                  %1007 = vst [vmem:[%s905 + $0xc4] sm:%s897] %v1006
                  %v1008 = vld [vmem:[%s904 + $0x66] sm:%s897]
                  %1009 = vst [vmem:[%s905 + $0xc6] sm:%s897] %v1008
                  %v1010 = vld [vmem:[%s904 + $0x68] sm:%s897]
                  %1011 = vst [vmem:[%s905 + $0xc8] sm:%s897] %v1010
                  %v1012 = vld [vmem:[%s904 + $0x6a] sm:%s897]
                  %1013 = vst [vmem:[%s905 + $0xca] sm:%s897] %v1012
                  %v1014 = vld [vmem:[%s904 + $0x6c] sm:%s897]
                  %1015 = vst [vmem:[%s905 + $0xcc] sm:%s897] %v1014
                  %v1016 = vld [vmem:[%s904 + $0x6e] sm:%s897]
                  %1017 = vst [vmem:[%s905 + $0xce] sm:%s897] %v1016
                  %v1018 = vld [vmem:[%s904 + $0x70] sm:%s897]
                  %1019 = vst [vmem:[%s905 + $0xe0] sm:%s897] %v1018
                  %v1020 = vld [vmem:[%s904 + $0x72] sm:%s897]
                  %1021 = vst [vmem:[%s905 + $0xe2] sm:%s897] %v1020
                  %v1022 = vld [vmem:[%s904 + $0x74] sm:%s897]
                  %1023 = vst [vmem:[%s905 + $0xe4] sm:%s897] %v1022
                  %v1024 = vld [vmem:[%s904 + $0x76] sm:%s897]
                  %1025 = vst [vmem:[%s905 + $0xe6] sm:%s897] %v1024
                  %v1026 = vld [vmem:[%s904 + $0x78] sm:%s897]
                  %1027 = vst [vmem:[%s905 + $0xe8] sm:%s897] %v1026
                  %v1028 = vld [vmem:[%s904 + $0x7a] sm:%s897]
                  %1029 = vst [vmem:[%s905 + $0xea] sm:%s897] %v1028
                  %v1030 = vld [vmem:[%s904 + $0x7c] sm:%s897]
                  %1031 = vst [vmem:[%s905 + $0xec] sm:%s897] %v1030
                  %v1032 = vld [vmem:[%s904 + $0x7e] sm:%s897]
                  %1033 = vst [vmem:[%s905 + $0xee] sm:%s897] %v1032
                $region112: #{unet_innermost_forward.5} parent=99 // loop_footer
                  %s903 = sadd.s32 1, %s899
                $region113: #{unet_innermost_forward.5} parent=99 // loop_footer_branch
                  %898 = sbr.rel target = $region109
                $region114: #{unet_innermost_forward.5} parent=99 // loop_exit
                  _
              $region100: #{unet_innermost_forward.5} parent=84 // pred_fallthru
                _
            $region85: #{unet_innermost_forward.5} parent=80 // pred_fallthru
              _
            // Predicated region
            $region86: #{unet_innermost_forward.5} parent=80 // pred_check
              _
            $region87: #{unet_innermost_forward.5} parent=80 // pred_check_branch
              %747 = sbr.rel (0) target = $region89
            $region88: #{unet_innermost_forward.5} parent=80 // pred_region
              %s749 = ssub.s32 4, 1
              loop: start=0, step=1, limit=1
              $region90: #{unet_innermost_forward.5} parent=88 // loop_pre_header
                _
              $region91: #{unet_innermost_forward.5} parent=88 // loop_header
                %s751 = sphi 0, %s755
                %p752 = scmp.ge.s32.totalorder %s751, 1
                %s756 = sphi %s733, %s733
                %s757 = sphi %s741, %s741
              $region92: #{unet_innermost_forward.5} parent=88 // loop_header_branch
                %754 = sbr.rel (%p752) target = $region96
              $region93: #{unet_innermost_forward.5} parent=88 // loop_body
                %v758 = vld [vmem:[%s756] sm:%s749]
                %759 = vst [vmem:[%s757] sm:%s749] %v758
                %v760 = vld [vmem:[%s756 + $0x2] sm:%s749]
                %761 = vst [vmem:[%s757 + $0x2] sm:%s749] %v760
                %v762 = vld [vmem:[%s756 + $0x4] sm:%s749]
                %763 = vst [vmem:[%s757 + $0x4] sm:%s749] %v762
                %v764 = vld [vmem:[%s756 + $0x6] sm:%s749]
                %765 = vst [vmem:[%s757 + $0x6] sm:%s749] %v764
                %v766 = vld [vmem:[%s756 + $0x8] sm:%s749]
                %767 = vst [vmem:[%s757 + $0x8] sm:%s749] %v766
                %v768 = vld [vmem:[%s756 + $0xa] sm:%s749]
                %769 = vst [vmem:[%s757 + $0xa] sm:%s749] %v768
                %v770 = vld [vmem:[%s756 + $0xc] sm:%s749]
                %771 = vst [vmem:[%s757 + $0xc] sm:%s749] %v770
                %v772 = vld [vmem:[%s756 + $0xe] sm:%s749]
                %773 = vst [vmem:[%s757 + $0xe] sm:%s749] %v772
                %v774 = vld [vmem:[%s756 + $0x10] sm:%s749]
                %775 = vst [vmem:[%s757 + $0x20] sm:%s749] %v774
                %v776 = vld [vmem:[%s756 + $0x12] sm:%s749]
                %777 = vst [vmem:[%s757 + $0x22] sm:%s749] %v776
                %v778 = vld [vmem:[%s756 + $0x14] sm:%s749]
                %779 = vst [vmem:[%s757 + $0x24] sm:%s749] %v778
                %v780 = vld [vmem:[%s756 + $0x16] sm:%s749]
                %781 = vst [vmem:[%s757 + $0x26] sm:%s749] %v780
                %v782 = vld [vmem:[%s756 + $0x18] sm:%s749]
                %783 = vst [vmem:[%s757 + $0x28] sm:%s749] %v782
                %v784 = vld [vmem:[%s756 + $0x1a] sm:%s749]
                %785 = vst [vmem:[%s757 + $0x2a] sm:%s749] %v784
                %v786 = vld [vmem:[%s756 + $0x1c] sm:%s749]
                %787 = vst [vmem:[%s757 + $0x2c] sm:%s749] %v786
                %v788 = vld [vmem:[%s756 + $0x1e] sm:%s749]
                %789 = vst [vmem:[%s757 + $0x2e] sm:%s749] %v788
                %v790 = vld [vmem:[%s756 + $0x20] sm:%s749]
                %791 = vst [vmem:[%s757 + $0x40] sm:%s749] %v790
                %v792 = vld [vmem:[%s756 + $0x22] sm:%s749]
                %793 = vst [vmem:[%s757 + $0x42] sm:%s749] %v792
                %v794 = vld [vmem:[%s756 + $0x24] sm:%s749]
                %795 = vst [vmem:[%s757 + $0x44] sm:%s749] %v794
                %v796 = vld [vmem:[%s756 + $0x26] sm:%s749]
                %797 = vst [vmem:[%s757 + $0x46] sm:%s749] %v796
                %v798 = vld [vmem:[%s756 + $0x28] sm:%s749]
                %799 = vst [vmem:[%s757 + $0x48] sm:%s749] %v798
                %v800 = vld [vmem:[%s756 + $0x2a] sm:%s749]
                %801 = vst [vmem:[%s757 + $0x4a] sm:%s749] %v800
                %v802 = vld [vmem:[%s756 + $0x2c] sm:%s749]
                %803 = vst [vmem:[%s757 + $0x4c] sm:%s749] %v802
                %v804 = vld [vmem:[%s756 + $0x2e] sm:%s749]
                %805 = vst [vmem:[%s757 + $0x4e] sm:%s749] %v804
                %v806 = vld [vmem:[%s756 + $0x30] sm:%s749]
                %807 = vst [vmem:[%s757 + $0x60] sm:%s749] %v806
                %v808 = vld [vmem:[%s756 + $0x32] sm:%s749]
                %809 = vst [vmem:[%s757 + $0x62] sm:%s749] %v808
                %v810 = vld [vmem:[%s756 + $0x34] sm:%s749]
                %811 = vst [vmem:[%s757 + $0x64] sm:%s749] %v810
                %v812 = vld [vmem:[%s756 + $0x36] sm:%s749]
                %813 = vst [vmem:[%s757 + $0x66] sm:%s749] %v812
                %v814 = vld [vmem:[%s756 + $0x38] sm:%s749]
                %815 = vst [vmem:[%s757 + $0x68] sm:%s749] %v814
                %v816 = vld [vmem:[%s756 + $0x3a] sm:%s749]
                %817 = vst [vmem:[%s757 + $0x6a] sm:%s749] %v816
                %v818 = vld [vmem:[%s756 + $0x3c] sm:%s749]
                %819 = vst [vmem:[%s757 + $0x6c] sm:%s749] %v818
                %v820 = vld [vmem:[%s756 + $0x3e] sm:%s749]
                %821 = vst [vmem:[%s757 + $0x6e] sm:%s749] %v820
                %v822 = vld [vmem:[%s756 + $0x40] sm:%s749]
                %823 = vst [vmem:[%s757 + $0x80] sm:%s749] %v822
                %v824 = vld [vmem:[%s756 + $0x42] sm:%s749]
                %825 = vst [vmem:[%s757 + $0x82] sm:%s749] %v824
                %v826 = vld [vmem:[%s756 + $0x44] sm:%s749]
                %827 = vst [vmem:[%s757 + $0x84] sm:%s749] %v826
                %v828 = vld [vmem:[%s756 + $0x46] sm:%s749]
                %829 = vst [vmem:[%s757 + $0x86] sm:%s749] %v828
                %v830 = vld [vmem:[%s756 + $0x48] sm:%s749]
                %831 = vst [vmem:[%s757 + $0x88] sm:%s749] %v830
                %v832 = vld [vmem:[%s756 + $0x4a] sm:%s749]
                %833 = vst [vmem:[%s757 + $0x8a] sm:%s749] %v832
                %v834 = vld [vmem:[%s756 + $0x4c] sm:%s749]
                %835 = vst [vmem:[%s757 + $0x8c] sm:%s749] %v834
                %v836 = vld [vmem:[%s756 + $0x4e] sm:%s749]
                %837 = vst [vmem:[%s757 + $0x8e] sm:%s749] %v836
                %v838 = vld [vmem:[%s756 + $0x50] sm:%s749]
                %839 = vst [vmem:[%s757 + $0xa0] sm:%s749] %v838
                %v840 = vld [vmem:[%s756 + $0x52] sm:%s749]
                %841 = vst [vmem:[%s757 + $0xa2] sm:%s749] %v840
                %v842 = vld [vmem:[%s756 + $0x54] sm:%s749]
                %843 = vst [vmem:[%s757 + $0xa4] sm:%s749] %v842
                %v844 = vld [vmem:[%s756 + $0x56] sm:%s749]
                %845 = vst [vmem:[%s757 + $0xa6] sm:%s749] %v844
                %v846 = vld [vmem:[%s756 + $0x58] sm:%s749]
                %847 = vst [vmem:[%s757 + $0xa8] sm:%s749] %v846
                %v848 = vld [vmem:[%s756 + $0x5a] sm:%s749]
                %849 = vst [vmem:[%s757 + $0xaa] sm:%s749] %v848
                %v850 = vld [vmem:[%s756 + $0x5c] sm:%s749]
                %851 = vst [vmem:[%s757 + $0xac] sm:%s749] %v850
                %v852 = vld [vmem:[%s756 + $0x5e] sm:%s749]
                %853 = vst [vmem:[%s757 + $0xae] sm:%s749] %v852
                %v854 = vld [vmem:[%s756 + $0x60] sm:%s749]
                %855 = vst [vmem:[%s757 + $0xc0] sm:%s749] %v854
                %v856 = vld [vmem:[%s756 + $0x62] sm:%s749]
                %857 = vst [vmem:[%s757 + $0xc2] sm:%s749] %v856
                %v858 = vld [vmem:[%s756 + $0x64] sm:%s749]
                %859 = vst [vmem:[%s757 + $0xc4] sm:%s749] %v858
                %v860 = vld [vmem:[%s756 + $0x66] sm:%s749]
                %861 = vst [vmem:[%s757 + $0xc6] sm:%s749] %v860
                %v862 = vld [vmem:[%s756 + $0x68] sm:%s749]
                %863 = vst [vmem:[%s757 + $0xc8] sm:%s749] %v862
                %v864 = vld [vmem:[%s756 + $0x6a] sm:%s749]
                %865 = vst [vmem:[%s757 + $0xca] sm:%s749] %v864
                %v866 = vld [vmem:[%s756 + $0x6c] sm:%s749]
                %867 = vst [vmem:[%s757 + $0xcc] sm:%s749] %v866
                %v868 = vld [vmem:[%s756 + $0x6e] sm:%s749]
                %869 = vst [vmem:[%s757 + $0xce] sm:%s749] %v868
                %v870 = vld [vmem:[%s756 + $0x70] sm:%s749]
                %871 = vst [vmem:[%s757 + $0xe0] sm:%s749] %v870
                %v872 = vld [vmem:[%s756 + $0x72] sm:%s749]
                %873 = vst [vmem:[%s757 + $0xe2] sm:%s749] %v872
                %v874 = vld [vmem:[%s756 + $0x74] sm:%s749]
                %875 = vst [vmem:[%s757 + $0xe4] sm:%s749] %v874
                %v876 = vld [vmem:[%s756 + $0x76] sm:%s749]
                %877 = vst [vmem:[%s757 + $0xe6] sm:%s749] %v876
                %v878 = vld [vmem:[%s756 + $0x78] sm:%s749]
                %879 = vst [vmem:[%s757 + $0xe8] sm:%s749] %v878
                %v880 = vld [vmem:[%s756 + $0x7a] sm:%s749]
                %881 = vst [vmem:[%s757 + $0xea] sm:%s749] %v880
                %v882 = vld [vmem:[%s756 + $0x7c] sm:%s749]
                %883 = vst [vmem:[%s757 + $0xec] sm:%s749] %v882
                %v884 = vld [vmem:[%s756 + $0x7e] sm:%s749]
                %885 = vst [vmem:[%s757 + $0xee] sm:%s749] %v884
              $region94: #{unet_innermost_forward.5} parent=88 // loop_footer
                %s755 = sadd.s32 1, %s751
              $region95: #{unet_innermost_forward.5} parent=88 // loop_footer_branch
                %750 = sbr.rel target = $region91
              $region96: #{unet_innermost_forward.5} parent=88 // loop_exit
                _
            $region89: #{unet_innermost_forward.5} parent=80 // pred_fallthru
              _
          $region81: #{unet_innermost_forward.5} parent=76 // pred_fallthru
            _
          %1034 = vnop
        $region77: #{unet_innermost_forward.5} parent=68 // pred_fallthru
          _
      $region69: #{unet_innermost_forward.5} parent=5 // pred_fallthru
        _
      %p1035 = scmp.le.s32.totalorder 2, %s9
      // Predicated region
      $region115: #{unet_innermost_forward.5} parent=5 // pred_check
        %p1036 = pneg %p1035
      $region116: #{unet_innermost_forward.5} parent=5 // pred_check_branch
        %1038 = sbr.rel (%p1036) target = $region118
      $region117: #{unet_innermost_forward.5} parent=5 // pred_region
        %s1039 = ssub.s32 %s9, 2
        // Predicated region
        $region119: #{unet_innermost_forward.5} parent=117 // pred_check
          %p1040 = pneg %p122
        $region120: #{unet_innermost_forward.5} parent=117 // pred_check_branch
          %1042 = sbr.rel (%p1040) target = $region122
        $region121: #{unet_innermost_forward.5} parent=117 // pred_region
          %s1043 = sand.u32 %s107, 1
          %s1044 = sand.u32 %s107, 1
          %s1045 = smul.addr %s1044, 128
          %s1046 = scalar_lea.vmem [#allocation3], %s1045
        $region122: #{unet_innermost_forward.5} parent=117 // pred_fallthru
          _
      $region118: #{unet_innermost_forward.5} parent=5 // pred_fallthru
        _
    $region6: #{unet_innermost_forward.5} parent=1 // loop_footer
      %s13 = sadd.s32 1, %s9
    $region7: #{unet_innermost_forward.5} parent=1 // loop_footer_branch
      %8 = sbr.rel target = $region3
    $region8: #{unet_innermost_forward.5} parent=1 // loop_exit
      _

// kernel: unet_innermost_forward.3
$region0: #{unet_innermost_forward.3}
  #allocation0 [shape = 'u32[]', space=smem, size = 0x4, offset = 0x4, fixed_abs, tag = 'smem constant byte address 0x4 - core index']
  #allocation1 [shape = 'u32[72,128]{1,0:T(1,128)}', space=vmem, size = 0x9000, scoped, tag = 'internal scratch']
  %s0 = inlined_call_operand.vmem [shape: bf16[4,2,10,10,128], index: 0, kind: input, shape index: {}]
  %s1 = inlined_call_operand.vmem [shape: bf16[4,4,128,128], index: 1, kind: input, shape index: {}]
  %s2 = inlined_call_operand.vmem [shape: bf16[2,64,128], index: 2, kind: output, shape index: {}]
  %s3 = sld [smem:[#allocation0]]
  $region82: #{unet_innermost_forward.3} parent=0
    _
  %s5 = ssub.s32 1, %s3
  %s6 = scalar_select 0, %s5, %s3
  $region1: #{unet_innermost_forward.3} parent=0
    #allocation2 [shape = 'u8[327680]{0}', space=vmem, size = 0x50000, scoped, tag = 'input window, operand 0']
    loop: start=0, step=1, limit=4
    $region2: #{unet_innermost_forward.3} parent=1 // loop_pre_header
      _
    $region3: #{unet_innermost_forward.3} parent=1 // loop_header
      %s8 = sphi 0, %s12
      %p9 = scmp.ge.s32.totalorder %s8, 4
      %s15 = sphi 0, %s27
      %s16 = sphi 0, %s23
      %s17 = sphi 0, %s15
      %s18 = sphi 0, %s16
      %s19 = sphi 0, %s17
      %s20 = sphi 0, %s18
      %s30 = sphi 0, %s32
      %s33 = sphi 0, %s30
      %s34 = sphi 0, %s33
      %s50 = sphi 0, %s34
      %s56 = sphi 0, %s58
      %s59 = sphi 0, %s56
      %s60 = sphi 0, %s59
      %s76 = sphi 0, %s60
      %s84 = sphi 0, %s86
      %s87 = sphi 0, %s84
      %s88 = sphi 0, %s87
      %s104 = sphi 0, %s88
    $region4: #{unet_innermost_forward.3} parent=1 // loop_header_branch
      %11 = sbr.rel (%p9) target = $region8
    $region5: #{unet_innermost_forward.3} parent=1 // loop_body
      %s13 = ssub.s32 %s8, 1
      %s14 = ssub.s32 %s8, 2
      %s21 = sadd.s32 1, %s16
      %p22 = scmp.ge.s32.totalorder %s21, 2
      %s23 = scalar_select %p22, 0, %s21
      %s24 = sadd.s32 1, %s15
      %s25 = scalar_select %p22, %s24, %s15
      %p26 = scmp.ge.s32.totalorder %s25, 1
      %s27 = scalar_select %p26, 0, %s25
      %s28 = ssub.s32 %s16, %s23
      %p29 = scmp.eq.s32.totalorder %s28, 0
      %s31 = sadd.s32 %s30, 1
      %s32 = scalar_select %p29, %s30, %s31
      %p35 = pneg %p29
      %p36 = scmp.eq.s32.totalorder %s8, 1
      %p37 = por %p35, %p36
      %p38 = scmp.ne.s32.totalorder %s30, %s33
      %p39 = scmp.eq.s32.totalorder %s8, 0
      %p40 = por %p38, %p39
      %p41 = scmp.ne.s32.totalorder %s30, %s33
      %p42 = scmp.eq.s32.totalorder %s13, 1
      %p43 = por %p41, %p42
      %p44 = scmp.ne.s32.totalorder %s33, %s34
      %p45 = scmp.eq.s32.totalorder %s13, 0
      %p46 = por %p44, %p45
      %p47 = scmp.ne.s32.totalorder %s33, %s34
      %p48 = scmp.eq.s32.totalorder %s14, 1
      %p49 = por %p47, %p48
      %p51 = scmp.ne.s32.totalorder %s34, %s50
      %p52 = scmp.eq.s32.totalorder %s14, 0
      %p53 = por %p51, %p52
      %s54 = ssub.s32 %s15, %s27
      %p55 = scmp.eq.s32.totalorder %s54, 0
      %s57 = sadd.s32 %s56, 1
      %s58 = scalar_select %p55, %s56, %s57
      %p61 = pneg %p55
      %p62 = scmp.eq.s32.totalorder %s8, 1
      %p63 = por %p61, %p62
      %p64 = scmp.ne.s32.totalorder %s56, %s59
      %p65 = scmp.eq.s32.totalorder %s8, 0
      %p66 = por %p64, %p65
      %p67 = scmp.ne.s32.totalorder %s56, %s59
      %p68 = scmp.eq.s32.totalorder %s13, 1
      %p69 = por %p67, %p68
      %p70 = scmp.ne.s32.totalorder %s59, %s60
      %p71 = scmp.eq.s32.totalorder %s13, 0
      %p72 = por %p70, %p71
      %p73 = scmp.ne.s32.totalorder %s59, %s60
      %p74 = scmp.eq.s32.totalorder %s14, 1
      %p75 = por %p73, %p74
      %p77 = scmp.ne.s32.totalorder %s60, %s76
      %p78 = scmp.eq.s32.totalorder %s14, 0
      %p79 = por %p77, %p78
      %s80 = ssub.s32 %s16, %s23
      %s81 = ssub.s32 %s15, %s27
      %s82 = sor.u32 %s80, %s81
      %p83 = scmp.eq.s32.totalorder %s82, 0
      %s85 = sadd.s32 %s84, 1
      %s86 = scalar_select %p83, %s84, %s85
      %p89 = pneg %p83
      %p90 = scmp.eq.s32.totalorder %s8, 1
      %p91 = por %p89, %p90
      %p92 = scmp.ne.s32.totalorder %s84, %s87
      %p93 = scmp.eq.s32.totalorder %s8, 0
      %p94 = por %p92, %p93
      %p95 = scmp.ne.s32.totalorder %s84, %s87
      %p96 = scmp.eq.s32.totalorder %s13, 1
      %p97 = por %p95, %p96
      %p98 = scmp.ne.s32.totalorder %s87, %s88
      %p99 = scmp.eq.s32.totalorder %s13, 0
      %p100 = por %p98, %p99
      %p101 = scmp.ne.s32.totalorder %s87, %s88
      %p102 = scmp.eq.s32.totalorder %s14, 1
      %p103 = por %p101, %p102
      %p105 = scmp.ne.s32.totalorder %s88, %s104
      %p106 = scmp.eq.s32.totalorder %s14, 0
      %p107 = por %p105, %p106
      %p108 = scmp.le.s32.totalorder 1, %s8
      %p109 = scmp.lt.s32.totalorder %s8, 3
      %p110 = pnand %p108, %p109
      %p111 = pneg %p110
      // Predicated region
      $region9: #{unet_innermost_forward.3} parent=5 // pred_check
        _
      $region10: #{unet_innermost_forward.3} parent=5 // pred_check_branch
        %113 = sbr.rel (%p110) target = $region12
      $region11: #{unet_innermost_forward.3} parent=5 // pred_region
        %s114 = ssub.s32 %s8, 1
        // Predicated region
        $region13: #{unet_innermost_forward.3} parent=11 // pred_check
          %p115 = pneg %p72
        $region14: #{unet_innermost_forward.3} parent=11 // pred_check_branch
          %117 = sbr.rel (%p115) target = $region16
        $region15: #{unet_innermost_forward.3} parent=11 // pred_region
          %p118 = scmp.lt.s32.totalorder %s17, 0
          %s119 = scalar_select %p118, %s17, 0
          %s120 = smul.addr %s119, 4
          %s121 = scalar_lea.vmem %s1, %s120
        $region16: #{unet_innermost_forward.3} parent=11 // pred_fallthru
          _
      $region12: #{unet_innermost_forward.3} parent=5 // pred_fallthru
        _
      %p122 = scmp.lt.s32.totalorder %s8, 2
      // Predicated region
      $region17: #{unet_innermost_forward.3} parent=5 // pred_check
        %p123 = pneg %p122
      $region18: #{unet_innermost_forward.3} parent=5 // pred_check_branch
        %125 = sbr.rel (%p123) target = $region20
      $region19: #{unet_innermost_forward.3} parent=5 // pred_region
        // Predicated region
        $region21: #{unet_innermost_forward.3} parent=19 // pred_check
          %p126 = pneg %p40
        $region22: #{unet_innermost_forward.3} parent=19 // pred_check_branch
          %128 = sbr.rel (%p126) target = $region24
        $region23: #{unet_innermost_forward.3} parent=19 // pred_region
          %s129 = sand.u32 %s30, 1
          %s130 = sand.u32 %s30, 1
          %s131 = smul.addr %s130, 320
          %s132 = scalar_lea.vmem [#allocation2], %s131
          %s133 = smul.addr %s16, 20
          %s134 = smul.addr %s133, 4
          %s135 = scalar_lea.vmem %s0, %s134
          // Predicated region
          $region25: #{unet_innermost_forward.3} parent=23 // pred_check
            _
          $region26: #{unet_innermost_forward.3} parent=23 // pred_check_branch
            %137 = sbr.rel (0) target = $region28
          $region27: #{unet_innermost_forward.3} parent=23 // pred_region
            // Predicated region
            $region29: #{unet_innermost_forward.3} parent=27 // pred_check
              _
            $region30: #{unet_innermost_forward.3} parent=27 // pred_check_branch
              %139 = sbr.rel target = $region32
            $region31: #{unet_innermost_forward.3} parent=27 // pred_region
              // Predicated region
              $region44: #{unet_innermost_forward.3} parent=31 // pred_check
                _
              $region45: #{unet_innermost_forward.3} parent=31 // pred_check_branch
                %313 = sbr.rel (0) target = $region47
              $region46: #{unet_innermost_forward.3} parent=31 // pred_region
                loop: start=0, step=1, limit=1
                $region48: #{unet_innermost_forward.3} parent=46 // loop_pre_header
                  _
                $region49: #{unet_innermost_forward.3} parent=46 // loop_header
                  %s315 = sphi 0, %s319
                  %p316 = scmp.ge.s32.totalorder %s315, 1
                  %s320 = sphi %s135, %s135
                  %s321 = sphi %s132, %s132
                $region50: #{unet_innermost_forward.3} parent=46 // loop_header_branch
                  %318 = sbr.rel (%p316) target = $region54
                $region51: #{unet_innermost_forward.3} parent=46 // loop_body
                  _
                $region52: #{unet_innermost_forward.3} parent=46 // loop_footer
                  %s319 = sadd.s32 1, %s315
                $region53: #{unet_innermost_forward.3} parent=46 // loop_footer_branch
                  %314 = sbr.rel target = $region49
                $region54: #{unet_innermost_forward.3} parent=46 // loop_exit
                  _
                %s323 = ssub.s32 16, 1
                loop: start=0, step=1, limit=1
                $region55: #{unet_innermost_forward.3} parent=46 // loop_pre_header
                  _
                $region56: #{unet_innermost_forward.3} parent=46 // loop_header
                  %s325 = sphi 0, %s329
                  %p326 = scmp.ge.s32.totalorder %s325, 1
                  %s330 = sphi %s135, %s135
                  %s331 = sphi %s132, %s132
                $region57: #{unet_innermost_forward.3} parent=46 // loop_header_branch
                  %328 = sbr.rel (%p326) target = $region61
                $region58: #{unet_innermost_forward.3} parent=46 // loop_body
                  %v332 = vld [vmem:[%s330] sm:%s323]
                  %333 = vst [vmem:[%s331] sm:%s323] %v332
                  %v334 = vld [vmem:[%s330 + $0x4] sm:%s323]
                  %335 = vst [vmem:[%s331 + $0x4] sm:%s323] %v334
                  %v336 = vld [vmem:[%s330 + $0x8] sm:%s323]
                  %337 = vst [vmem:[%s331 + $0x8] sm:%s323] %v336
                  %v338 = vld [vmem:[%s330 + $0xc] sm:%s323]
                  %339 = vst [vmem:[%s331 + $0xc] sm:%s323] %v338
                  %v340 = vld [vmem:[%s330 + $0x10] sm:%s323]
                  %341 = vst [vmem:[%s331 + $0x10] sm:%s323] %v340
                  %v342 = vld [vmem:[%s330 + $0x14] sm:%s323]
                  %343 = vst [vmem:[%s331 + $0x14] sm:%s323] %v342
                  %v344 = vld [vmem:[%s330 + $0x18] sm:%s323]
                  %345 = vst [vmem:[%s331 + $0x18] sm:%s323] %v344
                  %v346 = vld [vmem:[%s330 + $0x1c] sm:%s323]
                  %347 = vst [vmem:[%s331 + $0x1c] sm:%s323] %v346
                  %v348 = vld [vmem:[%s330 + $0x20] sm:%s323]
                  %349 = vst [vmem:[%s331 + $0x20] sm:%s323] %v348
                  %v350 = vld [vmem:[%s330 + $0x24] sm:%s323]
                  %351 = vst [vmem:[%s331 + $0x24] sm:%s323] %v350
                  %v352 = vld [vmem:[%s330 + $0x28] sm:%s323]
                  %353 = vst [vmem:[%s331 + $0x28] sm:%s323] %v352
                  %v354 = vld [vmem:[%s330 + $0x2c] sm:%s323]
                  %355 = vst [vmem:[%s331 + $0x2c] sm:%s323] %v354
                  %v356 = vld [vmem:[%s330 + $0x30] sm:%s323]
                  %357 = vst [vmem:[%s331 + $0x30] sm:%s323] %v356
                  %v358 = vld [vmem:[%s330 + $0x34] sm:%s323]
                  %359 = vst [vmem:[%s331 + $0x34] sm:%s323] %v358
                  %v360 = vld [vmem:[%s330 + $0x38] sm:%s323]
                  %361 = vst [vmem:[%s331 + $0x38] sm:%s323] %v360
                  %v362 = vld [vmem:[%s330 + $0x3c] sm:%s323]
                  %363 = vst [vmem:[%s331 + $0x3c] sm:%s323] %v362
                  %v364 = vld [vmem:[%s330 + $0x40] sm:%s323]
                  %365 = vst [vmem:[%s331 + $0x40] sm:%s323] %v364
                  %v366 = vld [vmem:[%s330 + $0x44] sm:%s323]
                  %367 = vst [vmem:[%s331 + $0x44] sm:%s323] %v366
                  %v368 = vld [vmem:[%s330 + $0x48] sm:%s323]
                  %369 = vst [vmem:[%s331 + $0x48] sm:%s323] %v368
                  %v370 = vld [vmem:[%s330 + $0x4c] sm:%s323]
                  %371 = vst [vmem:[%s331 + $0x4c] sm:%s323] %v370
                  %v372 = vld [vmem:[%s330 + $0xa0] sm:%s323]
                  %373 = vst [vmem:[%s331 + $0x50] sm:%s323] %v372
                  %v374 = vld [vmem:[%s330 + $0xa4] sm:%s323]
                  %375 = vst [vmem:[%s331 + $0x54] sm:%s323] %v374
                  %v376 = vld [vmem:[%s330 + $0xa8] sm:%s323]
                  %377 = vst [vmem:[%s331 + $0x58] sm:%s323] %v376
                  %v378 = vld [vmem:[%s330 + $0xac] sm:%s323]
                  %379 = vst [vmem:[%s331 + $0x5c] sm:%s323] %v378
                  %v380 = vld [vmem:[%s330 + $0xb0] sm:%s323]
                  %381 = vst [vmem:[%s331 + $0x60] sm:%s323] %v380
                  %v382 = vld [vmem:[%s330 + $0xb4] sm:%s323]
                  %383 = vst [vmem:[%s331 + $0x64] sm:%s323] %v382
                  %v384 = vld [vmem:[%s330 + $0xb8] sm:%s323]
                  %385 = vst [vmem:[%s331 + $0x68] sm:%s323] %v384
                  %v386 = vld [vmem:[%s330 + $0xbc] sm:%s323]
                  %387 = vst [vmem:[%s331 + $0x6c] sm:%s323] %v386
                  %v388 = vld [vmem:[%s330 + $0xc0] sm:%s323]
                  %389 = vst [vmem:[%s331 + $0x70] sm:%s323] %v388
                  %v390 = vld [vmem:[%s330 + $0xc4] sm:%s323]
                  %391 = vst [vmem:[%s331 + $0x74] sm:%s323] %v390
                  %v392 = vld [vmem:[%s330 + $0xc8] sm:%s323]
                  %393 = vst [vmem:[%s331 + $0x78] sm:%s323] %v392
                  %v394 = vld [vmem:[%s330 + $0xcc] sm:%s323]
                  %395 = vst [vmem:[%s331 + $0x7c] sm:%s323] %v394
                  %v396 = vld [vmem:[%s330 + $0xd0] sm:%s323]
                  %397 = vst [vmem:[%s331 + $0x80] sm:%s323] %v396
                  %v398 = vld [vmem:[%s330 + $0xd4] sm:%s323]
                  %399 = vst [vmem:[%s331 + $0x84] sm:%s323] %v398
                  %v400 = vld [vmem:[%s330 + $0xd8] sm:%s323]
                  %401 = vst [vmem:[%s331 + $0x88] sm:%s323] %v400
                  %v402 = vld [vmem:[%s330 + $0xdc] sm:%s323]
                  %403 = vst [vmem:[%s331 + $0x8c] sm:%s323] %v402
                  %v404 = vld [vmem:[%s330 + $0xe0] sm:%s323]
                  %405 = vst [vmem:[%s331 + $0x90] sm:%s323] %v404
                  %v406 = vld [vmem:[%s330 + $0xe4] sm:%s323]
                  %407 = vst [vmem:[%s331 + $0x94] sm:%s323] %v406
                  %v408 = vld [vmem:[%s330 + $0xe8] sm:%s323]
                  %409 = vst [vmem:[%s331 + $0x98] sm:%s323] %v408
                  %v410 = vld [vmem:[%s330 + $0xec] sm:%s323]
                  %411 = vst [vmem:[%s331 + $0x9c] sm:%s323] %v410
                  %v412 = vld [vmem:[%s330 + $0x140] sm:%s323]
                  %413 = vst [vmem:[%s331 + $0xa0] sm:%s323] %v412
                  %v414 = vld [vmem:[%s330 + $0x144] sm:%s323]
                  %415 = vst [vmem:[%s331 + $0xa4] sm:%s323] %v414
                  %v416 = vld [vmem:[%s330 + $0x148] sm:%s323]
                  %417 = vst [vmem:[%s331 + $0xa8] sm:%s323] %v416
                  %v418 = vld [vmem:[%s330 + $0x14c] sm:%s323]
                  %419 = vst [vmem:[%s331 + $0xac] sm:%s323] %v418
                  %v420 = vld [vmem:[%s330 + $0x150] sm:%s323]
                  %421 = vst [vmem:[%s331 + $0xb0] sm:%s323] %v420
                  %v422 = vld [vmem:[%s330 + $0x154] sm:%s323]
                  %423 = vst [vmem:[%s331 + $0xb4] sm:%s323] %v422
                  %v424 = vld [vmem:[%s330 + $0x158] sm:%s323]
                  %425 = vst [vmem:[%s331 + $0xb8] sm:%s323] %v424
                  %v426 = vld [vmem:[%s330 + $0x15c] sm:%s323]
                  %427 = vst [vmem:[%s331 + $0xbc] sm:%s323] %v426
                  %v428 = vld [vmem:[%s330 + $0x160] sm:%s323]
                  %429 = vst [vmem:[%s331 + $0xc0] sm:%s323] %v428
                  %v430 = vld [vmem:[%s330 + $0x164] sm:%s323]
                  %431 = vst [vmem:[%s331 + $0xc4] sm:%s323] %v430
                  %v432 = vld [vmem:[%s330 + $0x168] sm:%s323]
                  %433 = vst [vmem:[%s331 + $0xc8] sm:%s323] %v432
                  %v434 = vld [vmem:[%s330 + $0x16c] sm:%s323]
                  %435 = vst [vmem:[%s331 + $0xcc] sm:%s323] %v434
                  %v436 = vld [vmem:[%s330 + $0x170] sm:%s323]
                  %437 = vst [vmem:[%s331 + $0xd0] sm:%s323] %v436
                  %v438 = vld [vmem:[%s330 + $0x174] sm:%s323]
                  %439 = vst [vmem:[%s331 + $0xd4] sm:%s323] %v438
                  %v440 = vld [vmem:[%s330 + $0x178] sm:%s323]
                  %441 = vst [vmem:[%s331 + $0xd8] sm:%s323] %v440
                  %v442 = vld [vmem:[%s330 + $0x17c] sm:%s323]
                  %443 = vst [vmem:[%s331 + $0xdc] sm:%s323] %v442
                  %v444 = vld [vmem:[%s330 + $0x180] sm:%s323]
                  %445 = vst [vmem:[%s331 + $0xe0] sm:%s323] %v444
                  %v446 = vld [vmem:[%s330 + $0x184] sm:%s323]
                  %447 = vst [vmem:[%s331 + $0xe4] sm:%s323] %v446
                  %v448 = vld [vmem:[%s330 + $0x188] sm:%s323]
                  %449 = vst [vmem:[%s331 + $0xe8] sm:%s323] %v448
                  %v450 = vld [vmem:[%s330 + $0x18c] sm:%s323]
                  %451 = vst [vmem:[%s331 + $0xec] sm:%s323] %v450
                  %v452 = vld [vmem:[%s330 + $0x1e0] sm:%s323]
                  %453 = vst [vmem:[%s331 + $0xf0] sm:%s323] %v452
                  %v454 = vld [vmem:[%s330 + $0x1e4] sm:%s323]
                  %455 = vst [vmem:[%s331 + $0xf4] sm:%s323] %v454
                  %v456 = vld [vmem:[%s330 + $0x1e8] sm:%s323]
                  %457 = vst [vmem:[%s331 + $0xf8] sm:%s323] %v456
                  %v458 = vld [vmem:[%s330 + $0x1ec] sm:%s323]
                  %459 = vst [vmem:[%s331 + $0xfc] sm:%s323] %v458
                  %v460 = vld [vmem:[%s330 + $0x1f0] sm:%s323]
                  %461 = vst [vmem:[%s331 + $0x100] sm:%s323] %v460
                  %v462 = vld [vmem:[%s330 + $0x1f4] sm:%s323]
                  %463 = vst [vmem:[%s331 + $0x104] sm:%s323] %v462
                  %v464 = vld [vmem:[%s330 + $0x1f8] sm:%s323]
                  %465 = vst [vmem:[%s331 + $0x108] sm:%s323] %v464
                  %v466 = vld [vmem:[%s330 + $0x1fc] sm:%s323]
                  %467 = vst [vmem:[%s331 + $0x10c] sm:%s323] %v466
                  %v468 = vld [vmem:[%s330 + $0x200] sm:%s323]
                  %469 = vst [vmem:[%s331 + $0x110] sm:%s323] %v468
                  %v470 = vld [vmem:[%s330 + $0x204] sm:%s323]
                  %471 = vst [vmem:[%s331 + $0x114] sm:%s323] %v470
                  %v472 = vld [vmem:[%s330 + $0x208] sm:%s323]
                  %473 = vst [vmem:[%s331 + $0x118] sm:%s323] %v472
                  %v474 = vld [vmem:[%s330 + $0x20c] sm:%s323]
                  %475 = vst [vmem:[%s331 + $0x11c] sm:%s323] %v474
                  %v476 = vld [vmem:[%s330 + $0x210] sm:%s323]
                  %477 = vst [vmem:[%s331 + $0x120] sm:%s323] %v476
                  %v478 = vld [vmem:[%s330 + $0x214] sm:%s323]
                  %479 = vst [vmem:[%s331 + $0x124] sm:%s323] %v478
                  %v480 = vld [vmem:[%s330 + $0x218] sm:%s323]
                  %481 = vst [vmem:[%s331 + $0x128] sm:%s323] %v480
                  %v482 = vld [vmem:[%s330 + $0x21c] sm:%s323]
                  %483 = vst [vmem:[%s331 + $0x12c] sm:%s323] %v482
                  %v484 = vld [vmem:[%s330 + $0x220] sm:%s323]
                  %485 = vst [vmem:[%s331 + $0x130] sm:%s323] %v484
                  %v486 = vld [vmem:[%s330 + $0x224] sm:%s323]
                  %487 = vst [vmem:[%s331 + $0x134] sm:%s323] %v486
                  %v488 = vld [vmem:[%s330 + $0x228] sm:%s323]
                  %489 = vst [vmem:[%s331 + $0x138] sm:%s323] %v488
                  %v490 = vld [vmem:[%s330 + $0x22c] sm:%s323]
                  %491 = vst [vmem:[%s331 + $0x13c] sm:%s323] %v490
                $region59: #{unet_innermost_forward.3} parent=46 // loop_footer
                  %s329 = sadd.s32 1, %s325
                $region60: #{unet_innermost_forward.3} parent=46 // loop_footer_branch
                  %324 = sbr.rel target = $region56
                $region61: #{unet_innermost_forward.3} parent=46 // loop_exit
                  _
              $region47: #{unet_innermost_forward.3} parent=31 // pred_fallthru
                _
            $region32: #{unet_innermost_forward.3} parent=27 // pred_fallthru
              _
            // Predicated region
            $region33: #{unet_innermost_forward.3} parent=27 // pred_check
              _
            $region34: #{unet_innermost_forward.3} parent=27 // pred_check_branch
              %141 = sbr.rel (0) target = $region36
            $region35: #{unet_innermost_forward.3} parent=27 // pred_region
              %s143 = ssub.s32 16, 1
              loop: start=0, step=1, limit=1
              $region37: #{unet_innermost_forward.3} parent=35 // loop_pre_header
                _
              $region38: #{unet_innermost_forward.3} parent=35 // loop_header
                %s145 = sphi 0, %s149
                %p146 = scmp.ge.s32.totalorder %s145, 1
                %s150 = sphi %s135, %s135
                %s151 = sphi %s132, %s132
              $region39: #{unet_innermost_forward.3} parent=35 // loop_header_branch
                %148 = sbr.rel (%p146) target = $region43
              $region40: #{unet_innermost_forward.3} parent=35 // loop_body
                %v152 = vld [vmem:[%s150] sm:%s143]
                %153 = vst [vmem:[%s151] sm:%s143] %v152
                %v154 = vld [vmem:[%s150 + $0x4] sm:%s143]
                %155 = vst [vmem:[%s151 + $0x4] sm:%s143] %v154
                %v156 = vld [vmem:[%s150 + $0x8] sm:%s143]
                %157 = vst [vmem:[%s151 + $0x8] sm:%s143] %v156
                %v158 = vld [vmem:[%s150 + $0xc] sm:%s143]
                %159 = vst [vmem:[%s151 + $0xc] sm:%s143] %v158
                %v160 = vld [vmem:[%s150 + $0x10] sm:%s143]
                %161 = vst [vmem:[%s151 + $0x10] sm:%s143] %v160
                %v162 = vld [vmem:[%s150 + $0x14] sm:%s143]
                %163 = vst [vmem:[%s151 + $0x14] sm:%s143] %v162
                %v164 = vld [vmem:[%s150 + $0x18] sm:%s143]
                %165 = vst [vmem:[%s151 + $0x18] sm:%s143] %v164
                %v166 = vld [vmem:[%s150 + $0x1c] sm:%s143]
                %167 = vst [vmem:[%s151 + $0x1c] sm:%s143] %v166
                %v168 = vld [vmem:[%s150 + $0x20] sm:%s143]
                %169 = vst [vmem:[%s151 + $0x20] sm:%s143] %v168
                %v170 = vld [vmem:[%s150 + $0x24] sm:%s143]
                %171 = vst [vmem:[%s151 + $0x24] sm:%s143] %v170
                %v172 = vld [vmem:[%s150 + $0x28] sm:%s143]
                %173 = vst [vmem:[%s151 + $0x28] sm:%s143] %v172
                %v174 = vld [vmem:[%s150 + $0x2c] sm:%s143]
                %175 = vst [vmem:[%s151 + $0x2c] sm:%s143] %v174
                %v176 = vld [vmem:[%s150 + $0x30] sm:%s143]
                %177 = vst [vmem:[%s151 + $0x30] sm:%s143] %v176
                %v178 = vld [vmem:[%s150 + $0x34] sm:%s143]
                %179 = vst [vmem:[%s151 + $0x34] sm:%s143] %v178
                %v180 = vld [vmem:[%s150 + $0x38] sm:%s143]
                %181 = vst [vmem:[%s151 + $0x38] sm:%s143] %v180
                %v182 = vld [vmem:[%s150 + $0x3c] sm:%s143]
                %183 = vst [vmem:[%s151 + $0x3c] sm:%s143] %v182
                %v184 = vld [vmem:[%s150 + $0x40] sm:%s143]
                %185 = vst [vmem:[%s151 + $0x40] sm:%s143] %v184
                %v186 = vld [vmem:[%s150 + $0x44] sm:%s143]
                %187 = vst [vmem:[%s151 + $0x44] sm:%s143] %v186
                %v188 = vld [vmem:[%s150 + $0x48] sm:%s143]
                %189 = vst [vmem:[%s151 + $0x48] sm:%s143] %v188
                %v190 = vld [vmem:[%s150 + $0x4c] sm:%s143]
                %191 = vst [vmem:[%s151 + $0x4c] sm:%s143] %v190
                %v192 = vld [vmem:[%s150 + $0xa0] sm:%s143]
                %193 = vst [vmem:[%s151 + $0x50] sm:%s143] %v192
                %v194 = vld [vmem:[%s150 + $0xa4] sm:%s143]
                %195 = vst [vmem:[%s151 + $0x54] sm:%s143] %v194
                %v196 = vld [vmem:[%s150 + $0xa8] sm:%s143]
                %197 = vst [vmem:[%s151 + $0x58] sm:%s143] %v196
                %v198 = vld [vmem:[%s150 + $0xac] sm:%s143]
                %199 = vst [vmem:[%s151 + $0x5c] sm:%s143] %v198
                %v200 = vld [vmem:[%s150 + $0xb0] sm:%s143]
                %201 = vst [vmem:[%s151 + $0x60] sm:%s143] %v200
                %v202 = vld [vmem:[%s150 + $0xb4] sm:%s143]
                %203 = vst [vmem:[%s151 + $0x64] sm:%s143] %v202
                %v204 = vld [vmem:[%s150 + $0xb8] sm:%s143]
                %205 = vst [vmem:[%s151 + $0x68] sm:%s143] %v204
                %v206 = vld [vmem:[%s150 + $0xbc] sm:%s143]
                %207 = vst [vmem:[%s151 + $0x6c] sm:%s143] %v206
                %v208 = vld [vmem:[%s150 + $0xc0] sm:%s143]
                %209 = vst [vmem:[%s151 + $0x70] sm:%s143] %v208
                %v210 = vld [vmem:[%s150 + $0xc4] sm:%s143]
                %211 = vst [vmem:[%s151 + $0x74] sm:%s143] %v210
                %v212 = vld [vmem:[%s150 + $0xc8] sm:%s143]
                %213 = vst [vmem:[%s151 + $0x78] sm:%s143] %v212
                %v214 = vld [vmem:[%s150 + $0xcc] sm:%s143]
                %215 = vst [vmem:[%s151 + $0x7c] sm:%s143] %v214
                %v216 = vld [vmem:[%s150 + $0xd0] sm:%s143]
                %217 = vst [vmem:[%s151 + $0x80] sm:%s143] %v216
                %v218 = vld [vmem:[%s150 + $0xd4] sm:%s143]
                %219 = vst [vmem:[%s151 + $0x84] sm:%s143] %v218
                %v220 = vld [vmem:[%s150 + $0xd8] sm:%s143]
                %221 = vst [vmem:[%s151 + $0x88] sm:%s143] %v220
                %v222 = vld [vmem:[%s150 + $0xdc] sm:%s143]
                %223 = vst [vmem:[%s151 + $0x8c] sm:%s143] %v222
                %v224 = vld [vmem:[%s150 + $0xe0] sm:%s143]
                %225 = vst [vmem:[%s151 + $0x90] sm:%s143] %v224
                %v226 = vld [vmem:[%s150 + $0xe4] sm:%s143]
                %227 = vst [vmem:[%s151 + $0x94] sm:%s143] %v226
                %v228 = vld [vmem:[%s150 + $0xe8] sm:%s143]
                %229 = vst [vmem:[%s151 + $0x98] sm:%s143] %v228
                %v230 = vld [vmem:[%s150 + $0xec] sm:%s143]
                %231 = vst [vmem:[%s151 + $0x9c] sm:%s143] %v230
                %v232 = vld [vmem:[%s150 + $0x140] sm:%s143]
                %233 = vst [vmem:[%s151 + $0xa0] sm:%s143] %v232
                %v234 = vld [vmem:[%s150 + $0x144] sm:%s143]
                %235 = vst [vmem:[%s151 + $0xa4] sm:%s143] %v234
                %v236 = vld [vmem:[%s150 + $0x148] sm:%s143]
                %237 = vst [vmem:[%s151 + $0xa8] sm:%s143] %v236
                %v238 = vld [vmem:[%s150 + $0x14c] sm:%s143]
                %239 = vst [vmem:[%s151 + $0xac] sm:%s143] %v238
                %v240 = vld [vmem:[%s150 + $0x150] sm:%s143]
                %241 = vst [vmem:[%s151 + $0xb0] sm:%s143] %v240
                %v242 = vld [vmem:[%s150 + $0x154] sm:%s143]
                %243 = vst [vmem:[%s151 + $0xb4] sm:%s143] %v242
                %v244 = vld [vmem:[%s150 + $0x158] sm:%s143]
                %245 = vst [vmem:[%s151 + $0xb8] sm:%s143] %v244
                %v246 = vld [vmem:[%s150 + $0x15c] sm:%s143]
                %247 = vst [vmem:[%s151 + $0xbc] sm:%s143] %v246
                %v248 = vld [vmem:[%s150 + $0x160] sm:%s143]
                %249 = vst [vmem:[%s151 + $0xc0] sm:%s143] %v248
                %v250 = vld [vmem:[%s150 + $0x164] sm:%s143]
                %251 = vst [vmem:[%s151 + $0xc4] sm:%s143] %v250
                %v252 = vld [vmem:[%s150 + $0x168] sm:%s143]
                %253 = vst [vmem:[%s151 + $0xc8] sm:%s143] %v252
                %v254 = vld [vmem:[%s150 + $0x16c] sm:%s143]
                %255 = vst [vmem:[%s151 + $0xcc] sm:%s143] %v254
                %v256 = vld [vmem:[%s150 + $0x170] sm:%s143]
                %257 = vst [vmem:[%s151 + $0xd0] sm:%s143] %v256
                %v258 = vld [vmem:[%s150 + $0x174] sm:%s143]
                %259 = vst [vmem:[%s151 + $0xd4] sm:%s143] %v258
                %v260 = vld [vmem:[%s150 + $0x178] sm:%s143]
                %261 = vst [vmem:[%s151 + $0xd8] sm:%s143] %v260
                %v262 = vld [vmem:[%s150 + $0x17c] sm:%s143]
                %263 = vst [vmem:[%s151 + $0xdc] sm:%s143] %v262
                %v264 = vld [vmem:[%s150 + $0x180] sm:%s143]
                %265 = vst [vmem:[%s151 + $0xe0] sm:%s143] %v264
                %v266 = vld [vmem:[%s150 + $0x184] sm:%s143]
                %267 = vst [vmem:[%s151 + $0xe4] sm:%s143] %v266
                %v268 = vld [vmem:[%s150 + $0x188] sm:%s143]
                %269 = vst [vmem:[%s151 + $0xe8] sm:%s143] %v268
                %v270 = vld [vmem:[%s150 + $0x18c] sm:%s143]
                %271 = vst [vmem:[%s151 + $0xec] sm:%s143] %v270
                %v272 = vld [vmem:[%s150 + $0x1e0] sm:%s143]
                %273 = vst [vmem:[%s151 + $0xf0] sm:%s143] %v272
                %v274 = vld [vmem:[%s150 + $0x1e4] sm:%s143]
                %275 = vst [vmem:[%s151 + $0xf4] sm:%s143] %v274
                %v276 = vld [vmem:[%s150 + $0x1e8] sm:%s143]
                %277 = vst [vmem:[%s151 + $0xf8] sm:%s143] %v276
                %v278 = vld [vmem:[%s150 + $0x1ec] sm:%s143]
                %279 = vst [vmem:[%s151 + $0xfc] sm:%s143] %v278
                %v280 = vld [vmem:[%s150 + $0x1f0] sm:%s143]
                %281 = vst [vmem:[%s151 + $0x100] sm:%s143] %v280
                %v282 = vld [vmem:[%s150 + $0x1f4] sm:%s143]
                %283 = vst [vmem:[%s151 + $0x104] sm:%s143] %v282
                %v284 = vld [vmem:[%s150 + $0x1f8] sm:%s143]
                %285 = vst [vmem:[%s151 + $0x108] sm:%s143] %v284
                %v286 = vld [vmem:[%s150 + $0x1fc] sm:%s143]
                %287 = vst [vmem:[%s151 + $0x10c] sm:%s143] %v286
                %v288 = vld [vmem:[%s150 + $0x200] sm:%s143]
                %289 = vst [vmem:[%s151 + $0x110] sm:%s143] %v288
                %v290 = vld [vmem:[%s150 + $0x204] sm:%s143]
                %291 = vst [vmem:[%s151 + $0x114] sm:%s143] %v290
                %v292 = vld [vmem:[%s150 + $0x208] sm:%s143]
                %293 = vst [vmem:[%s151 + $0x118] sm:%s143] %v292
                %v294 = vld [vmem:[%s150 + $0x20c] sm:%s143]
                %295 = vst [vmem:[%s151 + $0x11c] sm:%s143] %v294
                %v296 = vld [vmem:[%s150 + $0x210] sm:%s143]
                %297 = vst [vmem:[%s151 + $0x120] sm:%s143] %v296
                %v298 = vld [vmem:[%s150 + $0x214] sm:%s143]
                %299 = vst [vmem:[%s151 + $0x124] sm:%s143] %v298
                %v300 = vld [vmem:[%s150 + $0x218] sm:%s143]
                %301 = vst [vmem:[%s151 + $0x128] sm:%s143] %v300
                %v302 = vld [vmem:[%s150 + $0x21c] sm:%s143]
                %303 = vst [vmem:[%s151 + $0x12c] sm:%s143] %v302
                %v304 = vld [vmem:[%s150 + $0x220] sm:%s143]
                %305 = vst [vmem:[%s151 + $0x130] sm:%s143] %v304
                %v306 = vld [vmem:[%s150 + $0x224] sm:%s143]
                %307 = vst [vmem:[%s151 + $0x134] sm:%s143] %v306
                %v308 = vld [vmem:[%s150 + $0x228] sm:%s143]
                %309 = vst [vmem:[%s151 + $0x138] sm:%s143] %v308
                %v310 = vld [vmem:[%s150 + $0x22c] sm:%s143]
                %311 = vst [vmem:[%s151 + $0x13c] sm:%s143] %v310
              $region41: #{unet_innermost_forward.3} parent=35 // loop_footer
                %s149 = sadd.s32 1, %s145
              $region42: #{unet_innermost_forward.3} parent=35 // loop_footer_branch
                %144 = sbr.rel target = $region38
              $region43: #{unet_innermost_forward.3} parent=35 // loop_exit
                _
            $region36: #{unet_innermost_forward.3} parent=27 // pred_fallthru
              _
          $region28: #{unet_innermost_forward.3} parent=23 // pred_fallthru
            _
          %492 = vnop
        $region24: #{unet_innermost_forward.3} parent=19 // pred_fallthru
          _
      $region20: #{unet_innermost_forward.3} parent=5 // pred_fallthru
        _
      %p493 = scmp.le.s32.totalorder 1, %s8
      %p494 = scmp.lt.s32.totalorder %s8, 3
      %p495 = pnand %p493, %p494
      %p496 = pneg %p495
      // Predicated region
      $region62: #{unet_innermost_forward.3} parent=5 // pred_check
        _
      $region63: #{unet_innermost_forward.3} parent=5 // pred_check_branch
        %498 = sbr.rel (%p495) target = $region65
      $region64: #{unet_innermost_forward.3} parent=5 // pred_region
        %s499 = ssub.s32 %s8, 1
        %s500 = sand.u32 %s33, 1
        %s501 = sand.u32 %s33, 1
        %s502 = smul.addr %s501, 320
        %s503 = scalar_lea.vmem [#allocation2], %s502
        // Predicated region
        $region66: #{unet_innermost_forward.3} parent=64 // pred_check
          %p504 = pneg %p46
        $region67: #{unet_innermost_forward.3} parent=64 // pred_check_branch
          %506 = sbr.rel (%p504) target = $region69
        $region68: #{unet_innermost_forward.3} parent=64 // pred_region
          _
        $region69: #{unet_innermost_forward.3} parent=64 // pred_fallthru
          _
        %s507 = sand.u32 %s33, 1
        %s508 = sand.u32 %s33, 1
        %s509 = smul.addr %s508, 320
        %s510 = scalar_lea.vmem [#allocation2], %s509
        %p511 = pneg %p46
        %p512 = pneg %p43
        %p513 = scmp.lt.s32.totalorder %s17, 0
        %s514 = scalar_select %p513, %s17, 0
        %s515 = smul.addr %s514, 4
        %s516 = scalar_lea.vmem %s1, %s515
        %p517 = pneg %p72
        %p518 = pneg %p69
        %p519 = pneg %p100
        %p520 = pneg %p97
        %p521 = scmp.lt.s32.totalorder %s18, 1
        %s522 = scalar_select %p521, %s18, 1
        %p523 = scmp.lt.s32.totalorder %s17, 0
        %s524 = scalar_select %p523, %s17, 0
        %s525 = smul.addr %s522, 8
        %s526 = sadd.s32 %s524, %s525
        %s527 = smul.addr %s526, 4
        %s528 = scalar_lea.vmem %s2, %s527
        %p529 = scmp.lt.s32.totalorder %s17, 0
        %s530 = scalar_select %p529, %s17, 0
        %s531 = smul.addr %s530, 4
        %s532 = scalar_lea.vmem %s1, %s531
        %p533 = scmp.lt.s32.totalorder %s18, 1
        %s534 = scalar_select %p533, %s18, 1
        %p535 = scmp.lt.s32.totalorder %s17, 0
        %s536 = scalar_select %p535, %s17, 0
        %s537 = smul.addr %s534, 8
        %s538 = sadd.s32 %s536, %s537
        %s539 = smul.addr %s538, 4
        %s540 = scalar_lea.vmem %s2, %s539
        %s541 = scalar_lea.vmem %s503, 8 [#allocation2]
        %v542 = vld [vmem:[%s541] sm:$0xf]
        %v543 = vld [vmem:[%s541 + $0x4] sm:$0x1]
        %v544 = vld [vmem:[%s541 + $0x8] sm:$0xf]
        %v545 = vld [vmem:[%s541 + $0xc] sm:$0x1]
        %v546 = vld [vmem:[%s541 + $0x10] sm:$0xf]
        %v547 = vld [vmem:[%s541 + $0x14] sm:$0x1]
        %v548 = vld [vmem:[%s541 + $0x18] sm:$0xf]
        %v549 = vld [vmem:[%s541 + $0x1c] sm:$0x1]
        %v550 = vld [vmem:[%s541 + $0x20] sm:$0xf]
        %v551 = vld [vmem:[%s541 + $0x24] sm:$0x1]
        %v552 = vld [vmem:[%s541 + $0x28] sm:$0xf]
        %v553 = vld [vmem:[%s541 + $0x2c] sm:$0x1]
        %v554 = vld [vmem:[%s541 + $0x30] sm:$0xf]
        %v555 = vld [vmem:[%s541 + $0x34] sm:$0x1]
        %v556 = vld [vmem:[%s541 + $0x38] sm:$0xf]
        %v557 = vld [vmem:[%s541 + $0x3c] sm:$0x1]
        %vm558 = vsmask.f32 3328
        %vm559 = vsmask.f32 7440
        %vm560 = vmor %vm558, %vm559
        %v562 = vshrl.u32 %v542, 16
        %v564 = vrot.slane %v562, 4
        %v565 = vshll.u32 %v542, 16
        %v567 = vrot.slane %v565, 5
        %v568 = vor.u32 %v564, %v567
        %v569 = vrot.slane %v568, 4
        %v571 = vshll.u32 %v543, 16
        %v573 = vrot.slane %v571, 5
        %v574 = vsel %vm560, %v569, %v573
        %v576 = vshrl.u32 %v544, 16
        %v578 = vrot.slane %v576, 4
        %v579 = vshll.u32 %v544, 16
        %v581 = vrot.slane %v579, 5
        %v582 = vor.u32 %v578, %v581
        %v583 = vrot.slane %v582, 4
        %v585 = vshll.u32 %v545, 16
        %v587 = vrot.slane %v585, 5
        %v588 = vsel %vm560, %v583, %v587
        %v590 = vshrl.u32 %v546, 16
        %v592 = vrot.slane %v590, 4
        %v593 = vshll.u32 %v546, 16
        %v595 = vrot.slane %v593, 5
        %v596 = vor.u32 %v592, %v595
        %v597 = vrot.slane %v596, 4
        %v599 = vshll.u32 %v547, 16
        %v601 = vrot.slane %v599, 5
        %v602 = vsel %vm560, %v597, %v601
        %v604 = vshrl.u32 %v548, 16
        %v606 = vrot.slane %v604, 4
        %v607 = vshll.u32 %v548, 16
        %v609 = vrot.slane %v607, 5
        %v610 = vor.u32 %v606, %v609
        %v611 = vrot.slane %v610, 4
        %v613 = vshll.u32 %v549, 16
        %v615 = vrot.slane %v613, 5
        %v616 = vsel %vm560, %v611, %v615
        %v618 = vshrl.u32 %v550, 16
        %v620 = vrot.slane %v618, 4
        %v621 = vshll.u32 %v550, 16
        %v623 = vrot.slane %v621, 5
        %v624 = vor.u32 %v620, %v623
        %v625 = vrot.slane %v624, 4
        %v627 = vshll.u32 %v551, 16
        %v629 = vrot.slane %v627, 5
        %v630 = vsel %vm560, %v625, %v629
        %v632 = vshrl.u32 %v552, 16
        %v634 = vrot.slane %v632, 4
        %v635 = vshll.u32 %v552, 16
        %v637 = vrot.slane %v635, 5
        %v638 = vor.u32 %v634, %v637
        %v639 = vrot.slane %v638, 4
        %v641 = vshll.u32 %v553, 16
        %v643 = vrot.slane %v641, 5
        %v644 = vsel %vm560, %v639, %v643
        %v646 = vshrl.u32 %v554, 16
        %v648 = vrot.slane %v646, 4
        %v649 = vshll.u32 %v554, 16
        %v651 = vrot.slane %v649, 5
        %v652 = vor.u32 %v648, %v651
        %v653 = vrot.slane %v652, 4
        %v655 = vshll.u32 %v555, 16
        %v657 = vrot.slane %v655, 5
        %v658 = vsel %vm560, %v653, %v657
        %v660 = vshrl.u32 %v556, 16
        %v662 = vrot.slane %v660, 4
        %v663 = vshll.u32 %v556, 16
        %v665 = vrot.slane %v663, 5
        %v666 = vor.u32 %v662, %v665
        %v667 = vrot.slane %v666, 4
        %v669 = vshll.u32 %v557, 16
        %v671 = vrot.slane %v669, 5
        %v672 = vsel %vm560, %v667, %v671
        %v673 = vld [vmem:[%s532] sm:$0xf]
        %v674 = vld [vmem:[%s532 + $0x4] sm:$0xf]
        %v675 = vld [vmem:[%s532 + $0x8] sm:$0xf]
        %v676 = vld [vmem:[%s532 + $0xc] sm:$0xf]
        %v677 = vld [vmem:[%s532 + $0x10] sm:$0xf]
        %v678 = vld [vmem:[%s532 + $0x14] sm:$0xf]
        %v679 = vld [vmem:[%s532 + $0x18] sm:$0xf]
        %v680 = vld [vmem:[%s532 + $0x1c] sm:$0xf]
        %v681 = vld [vmem:[%s532 + $0x20] sm:$0xf]
        %v682 = vld [vmem:[%s532 + $0x24] sm:$0xf]
        %v683 = vld [vmem:[%s532 + $0x28] sm:$0xf]
        %v684 = vld [vmem:[%s532 + $0x2c] sm:$0xf]
        %v685 = vld [vmem:[%s532 + $0x30] sm:$0xf]
        %v686 = vld [vmem:[%s532 + $0x34] sm:$0xf]
        %v687 = vld [vmem:[%s532 + $0x38] sm:$0xf]
        %v688 = vld [vmem:[%s532 + $0x3c] sm:$0xf]
        %v689 = vld [vmem:[%s541] sm:$0xe]
        %v690 = vld [vmem:[%s541 + $0x8] sm:$0xe]
        %v691 = vld [vmem:[%s541 + $0x10] sm:$0xe]
        %v692 = vld [vmem:[%s541 + $0x18] sm:$0xe]
        %v693 = vld [vmem:[%s541 + $0x20] sm:$0xe]
        %v694 = vld [vmem:[%s541 + $0x28] sm:$0xe]
        %v695 = vld [vmem:[%s541 + $0x30] sm:$0xe]
        %v696 = vld [vmem:[%s541 + $0x38] sm:$0xe]
        %vm713 = vcmask 1042432
        %vm714 = vcmask 1046532
        %vm715 = vmor %vm713, %vm714
        %v716 = vrot.slane %v689, 5
        %v717 = vrot.slane %v716, 4
        %v718 = vrot.slane %v543, 5
        %v719 = vsel %vm715, %v717, %v718
        %v720 = vrot.slane %v690, 5
        %v721 = vrot.slane %v720, 4
        %v722 = vrot.slane %v545, 5
        %v723 = vsel %vm715, %v721, %v722
        %v724 = vrot.slane %v691, 5
        %v725 = vrot.slane %v724, 4
        %v726 = vrot.slane %v547, 5
        %v727 = vsel %vm715, %v725, %v726
        %v728 = vrot.slane %v692, 5
        %v729 = vrot.slane %v728, 4
        %v730 = vrot.slane %v549, 5
        %v731 = vsel %vm715, %v729, %v730
        %v732 = vrot.slane %v693, 5
        %v733 = vrot.slane %v732, 4
        %v734 = vrot.slane %v551, 5
        %v735 = vsel %vm715, %v733, %v734
        %v736 = vrot.slane %v694, 5
        %v737 = vrot.slane %v736, 4
        %v738 = vrot.slane %v553, 5
        %v739 = vsel %vm715, %v737, %v738
        %v740 = vrot.slane %v695, 5
        %v741 = vrot.slane %v740, 4
        %v742 = vrot.slane %v555, 5
        %v743 = vsel %vm715, %v741, %v742
        %v744 = vrot.slane %v696, 5
        %v745 = vrot.slane %v744, 4
        %v746 = vrot.slane %v557, 5
        %v747 = vsel %vm715, %v745, %v746
        %s748 = scalar_lea.vmem %s532, 64
        %v749 = vld [vmem:[%s748] sm:$0xf]
        %v750 = vld [vmem:[%s748 + $0x4] sm:$0xf]
        %v751 = vld [vmem:[%s748 + $0x8] sm:$0xf]
        %v752 = vld [vmem:[%s748 + $0xc] sm:$0xf]
        %v753 = vld [vmem:[%s748 + $0x10] sm:$0xf]
        %v754 = vld [vmem:[%s748 + $0x14] sm:$0xf]
        %v755 = vld [vmem:[%s748 + $0x18] sm:$0xf]
        %v756 = vld [vmem:[%s748 + $0x1c] sm:$0xf]
        %v757 = vld [vmem:[%s748 + $0x20] sm:$0xf]
        %v758 = vld [vmem:[%s748 + $0x24] sm:$0xf]
        %v759 = vld [vmem:[%s748 + $0x28] sm:$0xf]
        %v760 = vld [vmem:[%s748 + $0x2c] sm:$0xf]
        %v761 = vld [vmem:[%s748 + $0x30] sm:$0xf]
        %v762 = vld [vmem:[%s748 + $0x34] sm:$0xf]
        %v763 = vld [vmem:[%s748 + $0x38] sm:$0xf]
        %v764 = vld [vmem:[%s748 + $0x3c] sm:$0xf]
        %v765 = vunpack.c.l.b16 %v719
        %v766 = vunpack.c.l.b16 %v723
        %v767 = vunpack.c.l.b16 %v727
        %v768 = vunpack.c.l.b16 %v731
        %v769 = vunpack.c.l.b16 %v735
        %v770 = vunpack.c.l.b16 %v739
        %v771 = vunpack.c.l.b16 %v743
        %v772 = vunpack.c.l.b16 %v747
        %v773 = vpack.c.b16 %v766, %v765
        %v774 = vpack.c.b16 %v768, %v767
        %v775 = vpack.c.b16 %v770, %v769
        %v776 = vpack.c.b16 %v772, %v771
        %v797 = vunpack.c.l.b16 %v749
        %v798 = vunpack.c.l.b16 %v750
        %v799 = vunpack.c.l.b16 %v751
        %v800 = vunpack.c.l.b16 %v752
        %v801 = vunpack.c.l.b16 %v753
        %v802 = vunpack.c.l.b16 %v754
        %v803 = vunpack.c.l.b16 %v755
        %v804 = vunpack.c.l.b16 %v756
        %v805 = vunpack.c.l.b16 %v757
        %v806 = vunpack.c.l.b16 %v758
        %v807 = vunpack.c.l.b16 %v759
        %v808 = vunpack.c.l.b16 %v760
        %v809 = vunpack.c.l.b16 %v761
        %v810 = vunpack.c.l.b16 %v762
        %v811 = vunpack.c.l.b16 %v763
        %v812 = vunpack.c.l.b16 %v764
        %v813 = vpack.c.b16 %v798, %v797
        %v814 = vpack.c.b16 %v800, %v799
        %v815 = vpack.c.b16 %v802, %v801
        %v816 = vpack.c.b16 %v804, %v803
        %v817 = vpack.c.b16 %v806, %v805
        %v818 = vpack.c.b16 %v808, %v807
        %v819 = vpack.c.b16 %v810, %v809
        %v820 = vpack.c.b16 %v812, %v811
        %829 = vmatpush.bf16.msra.mxu0 %v820
        %830 = vmatpush.bf16.msra.mxu0 %v819
        %831 = vmatpush.bf16.msra.mxu0 %v818
        %832 = vmatpush.bf16.msra.mxu0 %v817
        %833 = vmatpush.bf16.msra.mxu0 %v816
        %834 = vmatpush.bf16.msra.mxu0 %v815
        %835 = vmatpush.bf16.msra.mxu0 %v814
        %836 = vmatpush.bf16.msra.mxu0 %v813
        %837 = vmatmul.bf16.gmra.mxu0 %v773
        %v838 = vpop.f32.mrf.mxu0
        %v839 = vadd.f32 0.0, %v838
        %v840 = vpop.f32.mrf.mxu0
        %v841 = vadd.f32 0.0, %v840
        %842 = vmatmul.bf16.gmra.mxu0 %v774
        %v843 = vpop.f32.mrf.mxu0
        %v844 = vadd.f32 0.0, %v843
        %v845 = vpop.f32.mrf.mxu0
        %v846 = vadd.f32 0.0, %v845
        %847 = vmatmul.bf16.gmra.mxu0 %v775
        %v848 = vpop.f32.mrf.mxu0
        %v849 = vadd.f32 0.0, %v848
        %v850 = vpop.f32.mrf.mxu0
        %v851 = vadd.f32 0.0, %v850
        %852 = vmatmul.bf16.gmra.mxu0 %v776
        %v853 = vpop.f32.mrf.mxu0
        %v854 = vadd.f32 0.0, %v853
        %v855 = vpop.f32.mrf.mxu0
        %v856 = vadd.f32 0.0, %v855
        %857 = vdwg.mxu0
        %v858 = vunpack.c.l.b16 %v574
        %v859 = vunpack.c.l.b16 %v588
        %v860 = vunpack.c.l.b16 %v602
        %v861 = vunpack.c.l.b16 %v616
        %v862 = vunpack.c.l.b16 %v630
        %v863 = vunpack.c.l.b16 %v644
        %v864 = vunpack.c.l.b16 %v658
        %v865 = vunpack.c.l.b16 %v672
        %v866 = vpack.c.b16 %v859, %v858
        %v867 = vpack.c.b16 %v861, %v860
        %v868 = vpack.c.b16 %v863, %v862
        %v869 = vpack.c.b16 %v865, %v864
        %v890 = vunpack.c.l.b16 %v673
        %v891 = vunpack.c.l.b16 %v674
        %v892 = vunpack.c.l.b16 %v675
        %v893 = vunpack.c.l.b16 %v676
        %v894 = vunpack.c.l.b16 %v677
        %v895 = vunpack.c.l.b16 %v678
        %v896 = vunpack.c.l.b16 %v679
        %v897 = vunpack.c.l.b16 %v680
        %v898 = vunpack.c.l.b16 %v681
        %v899 = vunpack.c.l.b16 %v682
        %v900 = vunpack.c.l.b16 %v683
        %v901 = vunpack.c.l.b16 %v684
        %v902 = vunpack.c.l.b16 %v685
        %v903 = vunpack.c.l.b16 %v686
        %v904 = vunpack.c.l.b16 %v687
        %v905 = vunpack.c.l.b16 %v688
        %v906 = vpack.c.b16 %v891, %v890
        %v907 = vpack.c.b16 %v893, %v892
        %v908 = vpack.c.b16 %v895, %v894
        %v909 = vpack.c.b16 %v897, %v896
        %v910 = vpack.c.b16 %v899, %v898
        %v911 = vpack.c.b16 %v901, %v900
        %v912 = vpack.c.b16 %v903, %v902
        %v913 = vpack.c.b16 %v905, %v904
        %922 = vmatpush.bf16.msra.mxu0 %v913
        %923 = vmatpush.bf16.msra.mxu0 %v912
        %924 = vmatpush.bf16.msra.mxu0 %v911
        %925 = vmatpush.bf16.msra.mxu0 %v910
        %926 = vmatpush.bf16.msra.mxu0 %v909
        %927 = vmatpush.bf16.msra.mxu0 %v908
        %928 = vmatpush.bf16.msra.mxu0 %v907
        %929 = vmatpush.bf16.msra.mxu0 %v906
        %930 = vmatmul.bf16.gmra.mxu0 %v866
        %v931 = vpop.f32.mrf.mxu0
        %v932 = vadd.f32 %v839, %v931
        %v933 = vpop.f32.mrf.mxu0
        %v934 = vadd.f32 %v841, %v933
        %935 = vmatmul.bf16.gmra.mxu0 %v867
        %v936 = vpop.f32.mrf.mxu0
        %v937 = vadd.f32 %v844, %v936
        %v938 = vpop.f32.mrf.mxu0
        %v939 = vadd.f32 %v846, %v938
        %940 = vmatmul.bf16.gmra.mxu0 %v868
        %v941 = vpop.f32.mrf.mxu0
        %v942 = vadd.f32 %v849, %v941
        %v943 = vpop.f32.mrf.mxu0
        %v944 = vadd.f32 %v851, %v943
        %945 = vmatmul.bf16.gmra.mxu0 %v869
        %v946 = vpop.f32.mrf.mxu0
        %v947 = vadd.f32 %v854, %v946
        %v948 = vpop.f32.mrf.mxu0
        %v949 = vadd.f32 %v856, %v948
        %950 = vdwg.mxu0
        %s951 = scalar_lea.vmem %s503, 16 [#allocation2]
        %v952 = vld [vmem:[%s951] sm:$0xf]
        %v953 = vld [vmem:[%s951 + $0x4] sm:$0x1]
        %v954 = vld [vmem:[%s951 + $0x8] sm:$0xf]
        %v955 = vld [vmem:[%s951 + $0xc] sm:$0x1]
        %v956 = vld [vmem:[%s951 + $0x10] sm:$0xf]
        %v957 = vld [vmem:[%s951 + $0x14] sm:$0x1]
        %v958 = vld [vmem:[%s951 + $0x18] sm:$0xf]
        %v959 = vld [vmem:[%s951 + $0x1c] sm:$0x1]
        %v960 = vld [vmem:[%s951 + $0x20] sm:$0xf]
        %v961 = vld [vmem:[%s951 + $0x24] sm:$0x1]
        %v962 = vld [vmem:[%s951 + $0x28] sm:$0xf]
        %v963 = vld [vmem:[%s951 + $0x2c] sm:$0x1]
        %v964 = vld [vmem:[%s951 + $0x30] sm:$0xf]
        %v965 = vld [vmem:[%s951 + $0x34] sm:$0x1]
        %v966 = vld [vmem:[%s951 + $0x38] sm:$0xf]
        %v967 = vld [vmem:[%s951 + $0x3c] sm:$0x1]
        %v969 = vshrl.u32 %v952, 16
        %v971 = vrot.slane %v969, 4
        %v972 = vshll.u32 %v952, 16
        %v974 = vrot.slane %v972, 5
        %v975 = vor.u32 %v971, %v974
        %v976 = vrot.slane %v975, 4
        %v978 = vshll.u32 %v953, 16
        %v980 = vrot.slane %v978, 5
        %v981 = vsel %vm560, %v976, %v980
        %v983 = vshrl.u32 %v954, 16
        %v985 = vrot.slane %v983, 4
        %v986 = vshll.u32 %v954, 16
        %v988 = vrot.slane %v986, 5
        %v989 = vor.u32 %v985, %v988
        %v990 = vrot.slane %v989, 4
        %v992 = vshll.u32 %v955, 16
        %v994 = vrot.slane %v992, 5
        %v995 = vsel %vm560, %v990, %v994
        %v997 = vshrl.u32 %v956, 16
        %v999 = vrot.slane %v997, 4
        %v1000 = vshll.u32 %v956, 16
        %v1002 = vrot.slane %v1000, 5
        %v1003 = vor.u32 %v999, %v1002
        %v1004 = vrot.slane %v1003, 4
        %v1006 = vshll.u32 %v957, 16
        %v1008 = vrot.slane %v1006, 5
        %v1009 = vsel %vm560, %v1004, %v1008
        %v1011 = vshrl.u32 %v958, 16
        %v1013 = vrot.slane %v1011, 4
        %v1014 = vshll.u32 %v958, 16
        %v1016 = vrot.slane %v1014, 5
        %v1017 = vor.u32 %v1013, %v1016
        %v1018 = vrot.slane %v1017, 4
        %v1020 = vshll.u32 %v959, 16
        %v1022 = vrot.slane %v1020, 5
        %v1023 = vsel %vm560, %v1018, %v1022
        %v1025 = vshrl.u32 %v960, 16
        %v1027 = vrot.slane %v1025, 4
        %v1028 = vshll.u32 %v960, 16
        %v1030 = vrot.slane %v1028, 5
        %v1031 = vor.u32 %v1027, %v1030
        %v1032 = vrot.slane %v1031, 4
        %v1034 = vshll.u32 %v961, 16
        %v1036 = vrot.slane %v1034, 5
        %v1037 = vsel %vm560, %v1032, %v1036
        %v1039 = vshrl.u32 %v962, 16
        %v1041 = vrot.slane %v1039, 4
        %v1042 = vshll.u32 %v962, 16
        %v1044 = vrot.slane %v1042, 5
        %v1045 = vor.u32 %v1041, %v1044
        %v1046 = vrot.slane %v1045, 4
        %v1048 = vshll.u32 %v963, 16
        %v1050 = vrot.slane %v1048, 5
        %v1051 = vsel %vm560, %v1046, %v1050
        %v1053 = vshrl.u32 %v964, 16
        %v1055 = vrot.slane %v1053, 4
        %v1056 = vshll.u32 %v964, 16
        %v1058 = vrot.slane %v1056, 5
        %v1059 = vor.u32 %v1055, %v1058
        %v1060 = vrot.slane %v1059, 4
        %v1062 = vshll.u32 %v965, 16
        %v1064 = vrot.slane %v1062, 5
        %v1065 = vsel %vm560, %v1060, %v1064
        %v1067 = vshrl.u32 %v966, 16
        %v1069 = vrot.slane %v1067, 4
        %v1070 = vshll.u32 %v966, 16
        %v1072 = vrot.slane %v1070, 5
        %v1073 = vor.u32 %v1069, %v1072
        %v1074 = vrot.slane %v1073, 4
        %v1076 = vshll.u32 %v967, 16
        %v1078 = vrot.slane %v1076, 5
        %v1079 = vsel %vm560, %v1074, %v1078
        %s1080 = scalar_lea.vmem %s532, 128
        %v1081 = vld [vmem:[%s1080] sm:$0xf]
        %v1082 = vld [vmem:[%s1080 + $0x4] sm:$0xf]
        %v1083 = vld [vmem:[%s1080 + $0x8] sm:$0xf]
        %v1084 = vld [vmem:[%s1080 + $0xc] sm:$0xf]
        %v1085 = vld [vmem:[%s1080 + $0x10] sm:$0xf]
        %v1086 = vld [vmem:[%s1080 + $0x14] sm:$0xf]
        %v1087 = vld [vmem:[%s1080 + $0x18] sm:$0xf]
        %v1088 = vld [vmem:[%s1080 + $0x1c] sm:$0xf]
        %v1089 = vld [vmem:[%s1080 + $0x20] sm:$0xf]
        %v1090 = vld [vmem:[%s1080 + $0x24] sm:$0xf]
        %v1091 = vld [vmem:[%s1080 + $0x28] sm:$0xf]
        %v1092 = vld [vmem:[%s1080 + $0x2c] sm:$0xf]
        %v1093 = vld [vmem:[%s1080 + $0x30] sm:$0xf]
        %v1094 = vld [vmem:[%s1080 + $0x34] sm:$0xf]
        %v1095 = vld [vmem:[%s1080 + $0x38] sm:$0xf]
        %v1096 = vld [vmem:[%s1080 + $0x3c] sm:$0xf]
        %v1097 = vunpack.c.l.b16 %v981
        %v1098 = vunpack.c.l.b16 %v995
        %v1099 = vunpack.c.l.b16 %v1009
        %v1100 = vunpack.c.l.b16 %v1023
        %v1101 = vunpack.c.l.b16 %v1037
        %v1102 = vunpack.c.l.b16 %v1051
        %v1103 = vunpack.c.l.b16 %v1065
        %v1104 = vunpack.c.l.b16 %v1079
        %v1105 = vpack.c.b16 %v1098, %v1097
        %v1106 = vpack.c.b16 %v1100, %v1099
        %v1107 = vpack.c.b16 %v1102, %v1101
        %v1108 = vpack.c.b16 %v1104, %v1103
        %v1129 = vunpack.c.l.b16 %v1081
        %v1130 = vunpack.c.l.b16 %v1082
        %v1131 = vunpack.c.l.b16 %v1083
        %v1132 = vunpack.c.l.b16 %v1084
        %v1133 = vunpack.c.l.b16 %v1085
        %v1134 = vunpack.c.l.b16 %v1086
        %v1135 = vunpack.c.l.b16 %v1087
        %v1136 = vunpack.c.l.b16 %v1088
        %v1137 = vunpack.c.l.b16 %v1089
        %v1138 = vunpack.c.l.b16 %v1090
        %v1139 = vunpack.c.l.b16 %v1091
        %v1140 = vunpack.c.l.b16 %v1092
        %v1141 = vunpack.c.l.b16 %v1093
        %v1142 = vunpack.c.l.b16 %v1094
        %v1143 = vunpack.c.l.b16 %v1095
        %v1144 = vunpack.c.l.b16 %v1096
        %v1145 = vpack.c.b16 %v1130, %v1129
        %v1146 = vpack.c.b16 %v1132, %v1131
        %v1147 = vpack.c.b16 %v1134, %v1133
        %v1148 = vpack.c.b16 %v1136, %v1135
        %v1149 = vpack.c.b16 %v1138, %v1137
        %v1150 = vpack.c.b16 %v1140, %v1139
        %v1151 = vpack.c.b16 %v1142, %v1141
        %v1152 = vpack.c.b16 %v1144, %v1143
        %1161 = vmatpush.bf16.msra.mxu0 %v1152
        %1162 = vmatpush.bf16.msra.mxu0 %v1151
        %1163 = vmatpush.bf16.msra.mxu0 %v1150
        %1164 = vmatpush.bf16.msra.mxu0 %v1149
        %1165 = vmatpush.bf16.msra.mxu0 %v1148
        %1166 = vmatpush.bf16.msra.mxu0 %v1147
        %1167 = vmatpush.bf16.msra.mxu0 %v1146
        %1168 = vmatpush.bf16.msra.mxu0 %v1145
        %1169 = vmatmul.bf16.gmra.mxu0 %v1105
        %v1170 = vpop.f32.mrf.mxu0
        %v1171 = vadd.f32 0.0, %v1170
        %v1172 = vpop.f32.mrf.mxu0
        %v1173 = vadd.f32 0.0, %v1172
        %1174 = vmatmul.bf16.gmra.mxu0 %v1106
        %v1175 = vpop.f32.mrf.mxu0
        %v1176 = vadd.f32 0.0, %v1175
        %v1177 = vpop.f32.mrf.mxu0
        %v1178 = vadd.f32 0.0, %v1177
        %1179 = vmatmul.bf16.gmra.mxu0 %v1107
        %v1180 = vpop.f32.mrf.mxu0
        %v1181 = vadd.f32 0.0, %v1180
        %v1182 = vpop.f32.mrf.mxu0
        %v1183 = vadd.f32 0.0, %v1182
        %1184 = vmatmul.bf16.gmra.mxu0 %v1108
        %v1185 = vpop.f32.mrf.mxu0
        %v1186 = vadd.f32 0.0, %v1185
        %v1187 = vpop.f32.mrf.mxu0
        %v1188 = vadd.f32 0.0, %v1187
        %1189 = vdwg.mxu0
        %v1190 = vadd.f32 %v932, %v1171
        %v1191 = vadd.f32 %v934, %v1173
        %v1192 = vadd.f32 %v937, %v1176
        %v1193 = vadd.f32 %v939, %v1178
        %v1194 = vadd.f32 %v942, %v1181
        %v1195 = vadd.f32 %v944, %v1183
        %v1196 = vadd.f32 %v947, %v1186
        %v1197 = vadd.f32 %v949, %v1188
        %v1198 = vld [vmem:[%s951] sm:$0xe]
        %v1199 = vld [vmem:[%s951 + $0x8] sm:$0xe]
        %v1200 = vld [vmem:[%s951 + $0x10] sm:$0xe]
        %v1201 = vld [vmem:[%s951 + $0x18] sm:$0xe]
        %v1202 = vld [vmem:[%s951 + $0x20] sm:$0xe]
        %v1203 = vld [vmem:[%s951 + $0x28] sm:$0xe]
        %v1204 = vld [vmem:[%s951 + $0x30] sm:$0xe]
        %v1205 = vld [vmem:[%s951 + $0x38] sm:$0xe]
        %v1222 = vrot.slane %v1198, 5
        %v1223 = vrot.slane %v1222, 4
        %v1224 = vrot.slane %v953, 5
        %v1225 = vsel %vm715, %v1223, %v1224
        %v1226 = vrot.slane %v1199, 5
        %v1227 = vrot.slane %v1226, 4
        %v1228 = vrot.slane %v955, 5
        %v1229 = vsel %vm715, %v1227, %v1228
        %v1230 = vrot.slane %v1200, 5
        %v1231 = vrot.slane %v1230, 4
        %v1232 = vrot.slane %v957, 5
        %v1233 = vsel %vm715, %v1231, %v1232
        %v1234 = vrot.slane %v1201, 5
        %v1235 = vrot.slane %v1234, 4
        %v1236 = vrot.slane %v959, 5
        %v1237 = vsel %vm715, %v1235, %v1236
        %v1238 = vrot.slane %v1202, 5
        %v1239 = vrot.slane %v1238, 4
        %v1240 = vrot.slane %v961, 5
        %v1241 = vsel %vm715, %v1239, %v1240
        %v1242 = vrot.slane %v1203, 5
        %v1243 = vrot.slane %v1242, 4
        %v1244 = vrot.slane %v963, 5
        %v1245 = vsel %vm715, %v1243, %v1244
        %v1246 = vrot.slane %v1204, 5
        %v1247 = vrot.slane %v1246, 4
        %v1248 = vrot.slane %v965, 5
        %v1249 = vsel %vm715, %v1247, %v1248
        %v1250 = vrot.slane %v1205, 5
        %v1251 = vrot.slane %v1250, 4
        %v1252 = vrot.slane %v967, 5
        %v1253 = vsel %vm715, %v1251, %v1252
        %s1254 = scalar_lea.vmem %s532, 192
        %v1255 = vld [vmem:[%s1254] sm:$0xf]
        %v1256 = vld [vmem:[%s1254 + $0x4] sm:$0xf]
        %v1257 = vld [vmem:[%s1254 + $0x8] sm:$0xf]
        %v1258 = vld [vmem:[%s1254 + $0xc] sm:$0xf]
        %v1259 = vld [vmem:[%s1254 + $0x10] sm:$0xf]
        %v1260 = vld [vmem:[%s1254 + $0x14] sm:$0xf]
        %v1261 = vld [vmem:[%s1254 + $0x18] sm:$0xf]
        %v1262 = vld [vmem:[%s1254 + $0x1c] sm:$0xf]
        %v1263 = vld [vmem:[%s1254 + $0x20] sm:$0xf]
        %v1264 = vld [vmem:[%s1254 + $0x24] sm:$0xf]
        %v1265 = vld [vmem:[%s1254 + $0x28] sm:$0xf]
        %v1266 = vld [vmem:[%s1254 + $0x2c] sm:$0xf]
        %v1267 = vld [vmem:[%s1254 + $0x30] sm:$0xf]
        %v1268 = vld [vmem:[%s1254 + $0x34] sm:$0xf]
        %v1269 = vld [vmem:[%s1254 + $0x38] sm:$0xf]
        %v1270 = vld [vmem:[%s1254 + $0x3c] sm:$0xf]
        %v1271 = vunpack.c.l.b16 %v1225
        %v1272 = vunpack.c.l.b16 %v1229
        %v1273 = vunpack.c.l.b16 %v1233
        %v1274 = vunpack.c.l.b16 %v1237
        %v1275 = vunpack.c.l.b16 %v1241
        %v1276 = vunpack.c.l.b16 %v1245
        %v1277 = vunpack.c.l.b16 %v1249
        %v1278 = vunpack.c.l.b16 %v1253
        %v1279 = vpack.c.b16 %v1272, %v1271
        %v1280 = vpack.c.b16 %v1274, %v1273
        %v1281 = vpack.c.b16 %v1276, %v1275
        %v1282 = vpack.c.b16 %v1278, %v1277
        %v1303 = vunpack.c.l.b16 %v1255
        %v1304 = vunpack.c.l.b16 %v1256
        %v1305 = vunpack.c.l.b16 %v1257
        %v1306 = vunpack.c.l.b16 %v1258
        %v1307 = vunpack.c.l.b16 %v1259
        %v1308 = vunpack.c.l.b16 %v1260
        %v1309 = vunpack.c.l.b16 %v1261
        %v1310 = vunpack.c.l.b16 %v1262
        %v1311 = vunpack.c.l.b16 %v1263
        %v1312 = vunpack.c.l.b16 %v1264
        %v1313 = vunpack.c.l.b16 %v1265
        %v1314 = vunpack.c.l.b16 %v1266
        %v1315 = vunpack.c.l.b16 %v1267
        %v1316 = vunpack.c.l.b16 %v1268
        %v1317 = vunpack.c.l.b16 %v1269
        %v1318 = vunpack.c.l.b16 %v1270
        %v1319 = vpack.c.b16 %v1304, %v1303
        %v1320 = vpack.c.b16 %v1306, %v1305
        %v1321 = vpack.c.b16 %v1308, %v1307
        %v1322 = vpack.c.b16 %v1310, %v1309
        %v1323 = vpack.c.b16 %v1312, %v1311
        %v1324 = vpack.c.b16 %v1314, %v1313
        %v1325 = vpack.c.b16 %v1316, %v1315
        %v1326 = vpack.c.b16 %v1318, %v1317
        %1335 = vmatpush.bf16.msra.mxu0 %v1326
        %1336 = vmatpush.bf16.msra.mxu0 %v1325
        %1337 = vmatpush.bf16.msra.mxu0 %v1324
        %1338 = vmatpush.bf16.msra.mxu0 %v1323
        %1339 = vmatpush.bf16.msra.mxu0 %v1322
        %1340 = vmatpush.bf16.msra.mxu0 %v1321
        %1341 = vmatpush.bf16.msra.mxu0 %v1320
        %1342 = vmatpush.bf16.msra.mxu0 %v1319
        %1343 = vmatmul.bf16.gmra.mxu0 %v1279
        %v1344 = vpop.f32.mrf.mxu0
        %v1345 = vadd.f32 0.0, %v1344
        %v1346 = vpop.f32.mrf.mxu0
        %v1347 = vadd.f32 0.0, %v1346
        %1348 = vmatmul.bf16.gmra.mxu0 %v1280
        %v1349 = vpop.f32.mrf.mxu0
        %v1350 = vadd.f32 0.0, %v1349
        %v1351 = vpop.f32.mrf.mxu0
        %v1352 = vadd.f32 0.0, %v1351
        %1353 = vmatmul.bf16.gmra.mxu0 %v1281
        %v1354 = vpop.f32.mrf.mxu0
        %v1355 = vadd.f32 0.0, %v1354
        %v1356 = vpop.f32.mrf.mxu0
        %v1357 = vadd.f32 0.0, %v1356
        %1358 = vmatmul.bf16.gmra.mxu0 %v1282
        %v1359 = vpop.f32.mrf.mxu0
        %v1360 = vadd.f32 0.0, %v1359
        %v1361 = vpop.f32.mrf.mxu0
        %v1362 = vadd.f32 0.0, %v1361
        %1363 = vdwg.mxu0
        %v1364 = vadd.f32 %v1190, %v1345
        %v1365 = vadd.f32 %v1191, %v1347
        %v1366 = vadd.f32 %v1192, %v1350
        %v1367 = vadd.f32 %v1193, %v1352
        %v1368 = vadd.f32 %v1194, %v1355
        %v1369 = vadd.f32 %v1195, %v1357
        %v1370 = vadd.f32 %v1196, %v1360
        %v1371 = vadd.f32 %v1197, %v1362
        %s1372 = scalar_lea.vmem %s503, 88 [#allocation2]
        %v1373 = vld [vmem:[%s1372] sm:$0xf]
        %v1374 = vld [vmem:[%s1372 + $0x8] sm:$0xf]
        %v1375 = vld [vmem:[%s1372 + $0x10] sm:$0xf]
        %v1376 = vld [vmem:[%s1372 + $0x18] sm:$0xf]
        %v1377 = vld [vmem:[%s1372 + $0x20] sm:$0xf]
        %v1378 = vld [vmem:[%s1372 + $0x28] sm:$0xf]
        %v1379 = vld [vmem:[%s1372 + $0x30] sm:$0xf]
        %v1380 = vld [vmem:[%s1372 + $0x38] sm:$0xf]
        %s1381 = scalar_lea.vmem %s532, 256
        %v1382 = vld [vmem:[%s1381] sm:$0xf]
        %v1383 = vld [vmem:[%s1381 + $0x4] sm:$0xf]
        %v1384 = vld [vmem:[%s1381 + $0x8] sm:$0xf]
        %v1385 = vld [vmem:[%s1381 + $0xc] sm:$0xf]
        %v1386 = vld [vmem:[%s1381 + $0x10] sm:$0xf]
        %v1387 = vld [vmem:[%s1381 + $0x14] sm:$0xf]
        %v1388 = vld [vmem:[%s1381 + $0x18] sm:$0xf]
        %v1389 = vld [vmem:[%s1381 + $0x1c] sm:$0xf]
        %v1390 = vld [vmem:[%s1381 + $0x20] sm:$0xf]
        %v1391 = vld [vmem:[%s1381 + $0x24] sm:$0xf]
        %v1392 = vld [vmem:[%s1381 + $0x28] sm:$0xf]
        %v1393 = vld [vmem:[%s1381 + $0x2c] sm:$0xf]
        %v1394 = vld [vmem:[%s1381 + $0x30] sm:$0xf]
        %v1395 = vld [vmem:[%s1381 + $0x34] sm:$0xf]
        %v1396 = vld [vmem:[%s1381 + $0x38] sm:$0xf]
        %v1397 = vld [vmem:[%s1381 + $0x3c] sm:$0xf]
        %v1406 = vunpack.c.l.b16 %v1373
        %v1407 = vunpack.c.l.b16 %v1374
        %v1408 = vunpack.c.l.b16 %v1375
        %v1409 = vunpack.c.l.b16 %v1376
        %v1410 = vunpack.c.l.b16 %v1377
        %v1411 = vunpack.c.l.b16 %v1378
        %v1412 = vunpack.c.l.b16 %v1379
        %v1413 = vunpack.c.l.b16 %v1380
        %v1414 = vpack.c.b16 %v1407, %v1406
        %v1415 = vpack.c.b16 %v1409, %v1408
        %v1416 = vpack.c.b16 %v1411, %v1410
        %v1417 = vpack.c.b16 %v1413, %v1412
        %v1438 = vunpack.c.l.b16 %v1382
        %v1439 = vunpack.c.l.b16 %v1383
        %v1440 = vunpack.c.l.b16 %v1384
        %v1441 = vunpack.c.l.b16 %v1385
        %v1442 = vunpack.c.l.b16 %v1386
        %v1443 = vunpack.c.l.b16 %v1387
        %v1444 = vunpack.c.l.b16 %v1388
        %v1445 = vunpack.c.l.b16 %v1389
        %v1446 = vunpack.c.l.b16 %v1390
        %v1447 = vunpack.c.l.b16 %v1391
        %v1448 = vunpack.c.l.b16 %v1392
        %v1449 = vunpack.c.l.b16 %v1393
        %v1450 = vunpack.c.l.b16 %v1394
        %v1451 = vunpack.c.l.b16 %v1395
        %v1452 = vunpack.c.l.b16 %v1396
        %v1453 = vunpack.c.l.b16 %v1397
        %v1454 = vpack.c.b16 %v1439, %v1438
        %v1455 = vpack.c.b16 %v1441, %v1440
        %v1456 = vpack.c.b16 %v1443, %v1442
        %v1457 = vpack.c.b16 %v1445, %v1444
        %v1458 = vpack.c.b16 %v1447, %v1446
        %v1459 = vpack.c.b16 %v1449, %v1448
        %v1460 = vpack.c.b16 %v1451, %v1450
        %v1461 = vpack.c.b16 %v1453, %v1452
        %1470 = vmatpush.bf16.msra.mxu0 %v1461
        %1471 = vmatpush.bf16.msra.mxu0 %v1460
        %1472 = vmatpush.bf16.msra.mxu0 %v1459
        %1473 = vmatpush.bf16.msra.mxu0 %v1458
        %1474 = vmatpush.bf16.msra.mxu0 %v1457
        %1475 = vmatpush.bf16.msra.mxu0 %v1456
        %1476 = vmatpush.bf16.msra.mxu0 %v1455
        %1477 = vmatpush.bf16.msra.mxu0 %v1454
        %1478 = vmatmul.bf16.gmra.mxu0 %v1414
        %v1479 = vpop.f32.mrf.mxu0
        %v1480 = vadd.f32 0.0, %v1479
        %v1481 = vpop.f32.mrf.mxu0
        %v1482 = vadd.f32 0.0, %v1481
        %1483 = vmatmul.bf16.gmra.mxu0 %v1415
        %v1484 = vpop.f32.mrf.mxu0
        %v1485 = vadd.f32 0.0, %v1484
        %v1486 = vpop.f32.mrf.mxu0
        %v1487 = vadd.f32 0.0, %v1486
        %1488 = vmatmul.bf16.gmra.mxu0 %v1416
        %v1489 = vpop.f32.mrf.mxu0
        %v1490 = vadd.f32 0.0, %v1489
        %v1491 = vpop.f32.mrf.mxu0
        %v1492 = vadd.f32 0.0, %v1491
        %1493 = vmatmul.bf16.gmra.mxu0 %v1417
        %v1494 = vpop.f32.mrf.mxu0
        %v1495 = vadd.f32 0.0, %v1494
        %v1496 = vpop.f32.mrf.mxu0
        %v1497 = vadd.f32 0.0, %v1496
        %1498 = vdwg.mxu0
        %v1499 = vadd.f32 %v1364, %v1480
        %v1500 = vadd.f32 %v1365, %v1482
        %v1501 = vadd.f32 %v1366, %v1485
        %v1502 = vadd.f32 %v1367, %v1487
        %v1503 = vadd.f32 %v1368, %v1490
        %v1504 = vadd.f32 %v1369, %v1492
        %v1505 = vadd.f32 %v1370, %v1495
        %v1506 = vadd.f32 %v1371, %v1497
        %v1507 = vld [vmem:[%s1372] sm:$0xf]
        %v1508 = vld [vmem:[%s1372 + $0x4] sm:$0x1]
        %v1509 = vld [vmem:[%s1372 + $0x8] sm:$0xf]
        %v1510 = vld [vmem:[%s1372 + $0xc] sm:$0x1]
        %v1511 = vld [vmem:[%s1372 + $0x10] sm:$0xf]
        %v1512 = vld [vmem:[%s1372 + $0x14] sm:$0x1]
        %v1513 = vld [vmem:[%s1372 + $0x18] sm:$0xf]
        %v1514 = vld [vmem:[%s1372 + $0x1c] sm:$0x1]
        %v1515 = vld [vmem:[%s1372 + $0x20] sm:$0xf]
        %v1516 = vld [vmem:[%s1372 + $0x24] sm:$0x1]
        %v1517 = vld [vmem:[%s1372 + $0x28] sm:$0xf]
        %v1518 = vld [vmem:[%s1372 + $0x2c] sm:$0x1]
        %v1519 = vld [vmem:[%s1372 + $0x30] sm:$0xf]
        %v1520 = vld [vmem:[%s1372 + $0x34] sm:$0x1]
        %v1521 = vld [vmem:[%s1372 + $0x38] sm:$0xf]
        %v1522 = vld [vmem:[%s1372 + $0x3c] sm:$0x1]
        %v1524 = vshrl.u32 %v1507, 16
        %v1526 = vrot.slane %v1524, 4
        %v1527 = vshll.u32 %v1507, 16
        %v1529 = vrot.slane %v1527, 5
        %v1530 = vor.u32 %v1526, %v1529
        %v1531 = vrot.slane %v1530, 4
        %v1533 = vshll.u32 %v1508, 16
        %v1535 = vrot.slane %v1533, 5
        %v1536 = vsel %vm560, %v1531, %v1535
        %v1538 = vshrl.u32 %v1509, 16
        %v1540 = vrot.slane %v1538, 4
        %v1541 = vshll.u32 %v1509, 16
        %v1543 = vrot.slane %v1541, 5
        %v1544 = vor.u32 %v1540, %v1543
        %v1545 = vrot.slane %v1544, 4
        %v1547 = vshll.u32 %v1510, 16
        %v1549 = vrot.slane %v1547, 5
        %v1550 = vsel %vm560, %v1545, %v1549
        %v1552 = vshrl.u32 %v1511, 16
        %v1554 = vrot.slane %v1552, 4
        %v1555 = vshll.u32 %v1511, 16
        %v1557 = vrot.slane %v1555, 5
        %v1558 = vor.u32 %v1554, %v1557
        %v1559 = vrot.slane %v1558, 4
        %v1561 = vshll.u32 %v1512, 16
        %v1563 = vrot.slane %v1561, 5
        %v1564 = vsel %vm560, %v1559, %v1563
        %v1566 = vshrl.u32 %v1513, 16
        %v1568 = vrot.slane %v1566, 4
        %v1569 = vshll.u32 %v1513, 16
        %v1571 = vrot.slane %v1569, 5
        %v1572 = vor.u32 %v1568, %v1571
        %v1573 = vrot.slane %v1572, 4
        %v1575 = vshll.u32 %v1514, 16
        %v1577 = vrot.slane %v1575, 5
        %v1578 = vsel %vm560, %v1573, %v1577
        %v1580 = vshrl.u32 %v1515, 16
        %v1582 = vrot.slane %v1580, 4
        %v1583 = vshll.u32 %v1515, 16
        %v1585 = vrot.slane %v1583, 5
        %v1586 = vor.u32 %v1582, %v1585
        %v1587 = vrot.slane %v1586, 4
        %v1589 = vshll.u32 %v1516, 16
        %v1591 = vrot.slane %v1589, 5
        %v1592 = vsel %vm560, %v1587, %v1591
        %v1594 = vshrl.u32 %v1517, 16
        %v1596 = vrot.slane %v1594, 4
        %v1597 = vshll.u32 %v1517, 16
        %v1599 = vrot.slane %v1597, 5
        %v1600 = vor.u32 %v1596, %v1599
        %v1601 = vrot.slane %v1600, 4
        %v1603 = vshll.u32 %v1518, 16
        %v1605 = vrot.slane %v1603, 5
        %v1606 = vsel %vm560, %v1601, %v1605
        %v1608 = vshrl.u32 %v1519, 16
        %v1610 = vrot.slane %v1608, 4
        %v1611 = vshll.u32 %v1519, 16
        %v1613 = vrot.slane %v1611, 5
        %v1614 = vor.u32 %v1610, %v1613
        %v1615 = vrot.slane %v1614, 4
        %v1617 = vshll.u32 %v1520, 16
        %v1619 = vrot.slane %v1617, 5
        %v1620 = vsel %vm560, %v1615, %v1619
        %v1622 = vshrl.u32 %v1521, 16
        %v1624 = vrot.slane %v1622, 4
        %v1625 = vshll.u32 %v1521, 16
        %v1627 = vrot.slane %v1625, 5
        %v1628 = vor.u32 %v1624, %v1627
        %v1629 = vrot.slane %v1628, 4
        %v1631 = vshll.u32 %v1522, 16
        %v1633 = vrot.slane %v1631, 5
        %v1634 = vsel %vm560, %v1629, %v1633
        %s1635 = scalar_lea.vmem %s532, 320
        %v1636 = vld [vmem:[%s1635] sm:$0xf]
        %v1637 = vld [vmem:[%s1635 + $0x4] sm:$0xf]
        %v1638 = vld [vmem:[%s1635 + $0x8] sm:$0xf]
        %v1639 = vld [vmem:[%s1635 + $0xc] sm:$0xf]
        %v1640 = vld [vmem:[%s1635 + $0x10] sm:$0xf]
        %v1641 = vld [vmem:[%s1635 + $0x14] sm:$0xf]
        %v1642 = vld [vmem:[%s1635 + $0x18] sm:$0xf]
        %v1643 = vld [vmem:[%s1635 + $0x1c] sm:$0xf]
        %v1644 = vld [vmem:[%s1635 + $0x20] sm:$0xf]
        %v1645 = vld [vmem:[%s1635 + $0x24] sm:$0xf]
        %v1646 = vld [vmem:[%s1635 + $0x28] sm:$0xf]
        %v1647 = vld [vmem:[%s1635 + $0x2c] sm:$0xf]
        %v1648 = vld [vmem:[%s1635 + $0x30] sm:$0xf]
        %v1649 = vld [vmem:[%s1635 + $0x34] sm:$0xf]
        %v1650 = vld [vmem:[%s1635 + $0x38] sm:$0xf]
        %v1651 = vld [vmem:[%s1635 + $0x3c] sm:$0xf]
        %v1652 = vunpack.c.l.b16 %v1536
        %v1653 = vunpack.c.l.b16 %v1550
        %v1654 = vunpack.c.l.b16 %v1564
        %v1655 = vunpack.c.l.b16 %v1578
        %v1656 = vunpack.c.l.b16 %v1592
        %v1657 = vunpack.c.l.b16 %v1606
        %v1658 = vunpack.c.l.b16 %v1620
        %v1659 = vunpack.c.l.b16 %v1634
        %v1660 = vpack.c.b16 %v1653, %v1652
        %v1661 = vpack.c.b16 %v1655, %v1654
        %v1662 = vpack.c.b16 %v1657, %v1656
        %v1663 = vpack.c.b16 %v1659, %v1658
        %v1684 = vunpack.c.l.b16 %v1636
        %v1685 = vunpack.c.l.b16 %v1637
        %v1686 = vunpack.c.l.b16 %v1638
        %v1687 = vunpack.c.l.b16 %v1639
        %v1688 = vunpack.c.l.b16 %v1640
        %v1689 = vunpack.c.l.b16 %v1641
        %v1690 = vunpack.c.l.b16 %v1642
        %v1691 = vunpack.c.l.b16 %v1643
        %v1692 = vunpack.c.l.b16 %v1644
        %v1693 = vunpack.c.l.b16 %v1645
        %v1694 = vunpack.c.l.b16 %v1646
        %v1695 = vunpack.c.l.b16 %v1647
        %v1696 = vunpack.c.l.b16 %v1648
        %v1697 = vunpack.c.l.b16 %v1649
        %v1698 = vunpack.c.l.b16 %v1650
        %v1699 = vunpack.c.l.b16 %v1651
        %v1700 = vpack.c.b16 %v1685, %v1684
        %v1701 = vpack.c.b16 %v1687, %v1686
        %v1702 = vpack.c.b16 %v1689, %v1688
        %v1703 = vpack.c.b16 %v1691, %v1690
        %v1704 = vpack.c.b16 %v1693, %v1692
        %v1705 = vpack.c.b16 %v1695, %v1694
        %v1706 = vpack.c.b16 %v1697, %v1696
        %v1707 = vpack.c.b16 %v1699, %v1698
        %1716 = vmatpush.bf16.msra.mxu0 %v1707
        %1717 = vmatpush.bf16.msra.mxu0 %v1706
        %1718 = vmatpush.bf16.msra.mxu0 %v1705
        %1719 = vmatpush.bf16.msra.mxu0 %v1704
        %1720 = vmatpush.bf16.msra.mxu0 %v1703
        %1721 = vmatpush.bf16.msra.mxu0 %v1702
        %1722 = vmatpush.bf16.msra.mxu0 %v1701
        %1723 = vmatpush.bf16.msra.mxu0 %v1700
        %1724 = vmatmul.bf16.gmra.mxu0 %v1660
        %v1725 = vpop.f32.mrf.mxu0
        %v1726 = vadd.f32 0.0, %v1725
        %v1727 = vpop.f32.mrf.mxu0
        %v1728 = vadd.f32 0.0, %v1727
        %1729 = vmatmul.bf16.gmra.mxu0 %v1661
        %v1730 = vpop.f32.mrf.mxu0
        %v1731 = vadd.f32 0.0, %v1730
        %v1732 = vpop.f32.mrf.mxu0
        %v1733 = vadd.f32 0.0, %v1732
        %1734 = vmatmul.bf16.gmra.mxu0 %v1662
        %v1735 = vpop.f32.mrf.mxu0
        %v1736 = vadd.f32 0.0, %v1735
        %v1737 = vpop.f32.mrf.mxu0
        %v1738 = vadd.f32 0.0, %v1737
        %1739 = vmatmul.bf16.gmra.mxu0 %v1663
        %v1740 = vpop.f32.mrf.mxu0
        %v1741 = vadd.f32 0.0, %v1740
        %v1742 = vpop.f32.mrf.mxu0
        %v1743 = vadd.f32 0.0, %v1742
        %1744 = vdwg.mxu0
        %v1745 = vadd.f32 %v1499, %v1726
        %v1746 = vadd.f32 %v1500, %v1728
        %v1747 = vadd.f32 %v1501, %v1731
        %v1748 = vadd.f32 %v1502, %v1733
        %v1749 = vadd.f32 %v1503, %v1736
        %v1750 = vadd.f32 %v1504, %v1738
        %v1751 = vadd.f32 %v1505, %v1741
        %v1752 = vadd.f32 %v1506, %v1743
        %s1753 = scalar_lea.vmem %s503, 96 [#allocation2]
        %v1754 = vld [vmem:[%s1753] sm:$0xf]
        %v1755 = vld [vmem:[%s1753 + $0x8] sm:$0xf]
        %v1756 = vld [vmem:[%s1753 + $0x10] sm:$0xf]
        %v1757 = vld [vmem:[%s1753 + $0x18] sm:$0xf]
        %v1758 = vld [vmem:[%s1753 + $0x20] sm:$0xf]
        %v1759 = vld [vmem:[%s1753 + $0x28] sm:$0xf]
        %v1760 = vld [vmem:[%s1753 + $0x30] sm:$0xf]
        %v1761 = vld [vmem:[%s1753 + $0x38] sm:$0xf]
        %s1762 = scalar_lea.vmem %s532, 384
        %v1763 = vld [vmem:[%s1762] sm:$0xf]
        %v1764 = vld [vmem:[%s1762 + $0x4] sm:$0xf]
        %v1765 = vld [vmem:[%s1762 + $0x8] sm:$0xf]
        %v1766 = vld [vmem:[%s1762 + $0xc] sm:$0xf]
        %v1767 = vld [vmem:[%s1762 + $0x10] sm:$0xf]
        %v1768 = vld [vmem:[%s1762 + $0x14] sm:$0xf]
        %v1769 = vld [vmem:[%s1762 + $0x18] sm:$0xf]
        %v1770 = vld [vmem:[%s1762 + $0x1c] sm:$0xf]
        %v1771 = vld [vmem:[%s1762 + $0x20] sm:$0xf]
        %v1772 = vld [vmem:[%s1762 + $0x24] sm:$0xf]
        %v1773 = vld [vmem:[%s1762 + $0x28] sm:$0xf]
        %v1774 = vld [vmem:[%s1762 + $0x2c] sm:$0xf]
        %v1775 = vld [vmem:[%s1762 + $0x30] sm:$0xf]
        %v1776 = vld [vmem:[%s1762 + $0x34] sm:$0xf]
        %v1777 = vld [vmem:[%s1762 + $0x38] sm:$0xf]
        %v1778 = vld [vmem:[%s1762 + $0x3c] sm:$0xf]
        %v1787 = vunpack.c.l.b16 %v1754
        %v1788 = vunpack.c.l.b16 %v1755
        %v1789 = vunpack.c.l.b16 %v1756
        %v1790 = vunpack.c.l.b16 %v1757
        %v1791 = vunpack.c.l.b16 %v1758
        %v1792 = vunpack.c.l.b16 %v1759
        %v1793 = vunpack.c.l.b16 %v1760
        %v1794 = vunpack.c.l.b16 %v1761
        %v1795 = vpack.c.b16 %v1788, %v1787
        %v1796 = vpack.c.b16 %v1790, %v1789
        %v1797 = vpack.c.b16 %v1792, %v1791
        %v1798 = vpack.c.b16 %v1794, %v1793
        %v1819 = vunpack.c.l.b16 %v1763
        %v1820 = vunpack.c.l.b16 %v1764
        %v1821 = vunpack.c.l.b16 %v1765
        %v1822 = vunpack.c.l.b16 %v1766
        %v1823 = vunpack.c.l.b16 %v1767
        %v1824 = vunpack.c.l.b16 %v1768
        %v1825 = vunpack.c.l.b16 %v1769
        %v1826 = vunpack.c.l.b16 %v1770
        %v1827 = vunpack.c.l.b16 %v1771
        %v1828 = vunpack.c.l.b16 %v1772
        %v1829 = vunpack.c.l.b16 %v1773
        %v1830 = vunpack.c.l.b16 %v1774
        %v1831 = vunpack.c.l.b16 %v1775
        %v1832 = vunpack.c.l.b16 %v1776
        %v1833 = vunpack.c.l.b16 %v1777
        %v1834 = vunpack.c.l.b16 %v1778
        %v1835 = vpack.c.b16 %v1820, %v1819
        %v1836 = vpack.c.b16 %v1822, %v1821
        %v1837 = vpack.c.b16 %v1824, %v1823
        %v1838 = vpack.c.b16 %v1826, %v1825
        %v1839 = vpack.c.b16 %v1828, %v1827
        %v1840 = vpack.c.b16 %v1830, %v1829
        %v1841 = vpack.c.b16 %v1832, %v1831
        %v1842 = vpack.c.b16 %v1834, %v1833
        %1851 = vmatpush.bf16.msra.mxu0 %v1842
        %1852 = vmatpush.bf16.msra.mxu0 %v1841
        %1853 = vmatpush.bf16.msra.mxu0 %v1840
        %1854 = vmatpush.bf16.msra.mxu0 %v1839
        %1855 = vmatpush.bf16.msra.mxu0 %v1838
        %1856 = vmatpush.bf16.msra.mxu0 %v1837
        %1857 = vmatpush.bf16.msra.mxu0 %v1836
        %1858 = vmatpush.bf16.msra.mxu0 %v1835
        %1859 = vmatmul.bf16.gmra.mxu0 %v1795
        %v1860 = vpop.f32.mrf.mxu0
        %v1861 = vadd.f32 0.0, %v1860
        %v1862 = vpop.f32.mrf.mxu0
        %v1863 = vadd.f32 0.0, %v1862
        %1864 = vmatmul.bf16.gmra.mxu0 %v1796
        %v1865 = vpop.f32.mrf.mxu0
        %v1866 = vadd.f32 0.0, %v1865
        %v1867 = vpop.f32.mrf.mxu0
        %v1868 = vadd.f32 0.0, %v1867
        %1869 = vmatmul.bf16.gmra.mxu0 %v1797
        %v1870 = vpop.f32.mrf.mxu0
        %v1871 = vadd.f32 0.0, %v1870
        %v1872 = vpop.f32.mrf.mxu0
        %v1873 = vadd.f32 0.0, %v1872
        %1874 = vmatmul.bf16.gmra.mxu0 %v1798
        %v1875 = vpop.f32.mrf.mxu0
        %v1876 = vadd.f32 0.0, %v1875
        %v1877 = vpop.f32.mrf.mxu0
        %v1878 = vadd.f32 0.0, %v1877
        %1879 = vdwg.mxu0
        %v1880 = vadd.f32 %v1745, %v1861
        %v1881 = vadd.f32 %v1746, %v1863
        %v1882 = vadd.f32 %v1747, %v1866
        %v1883 = vadd.f32 %v1748, %v1868
        %v1884 = vadd.f32 %v1749, %v1871
        %v1885 = vadd.f32 %v1750, %v1873
        %v1886 = vadd.f32 %v1751, %v1876
        %v1887 = vadd.f32 %v1752, %v1878
        %v1888 = vld [vmem:[%s1753] sm:$0xf]
        %v1889 = vld [vmem:[%s1753 + $0x4] sm:$0x1]
        %v1890 = vld [vmem:[%s1753 + $0x8] sm:$0xf]
        %v1891 = vld [vmem:[%s1753 + $0xc] sm:$0x1]
        %v1892 = vld [vmem:[%s1753 + $0x10] sm:$0xf]
        %v1893 = vld [vmem:[%s1753 + $0x14] sm:$0x1]
        %v1894 = vld [vmem:[%s1753 + $0x18] sm:$0xf]
        %v1895 = vld [vmem:[%s1753 + $0x1c] sm:$0x1]
        %v1896 = vld [vmem:[%s1753 + $0x20] sm:$0xf]
        %v1897 = vld [vmem:[%s1753 + $0x24] sm:$0x1]
        %v1898 = vld [vmem:[%s1753 + $0x28] sm:$0xf]
        %v1899 = vld [vmem:[%s1753 + $0x2c] sm:$0x1]
        %v1900 = vld [vmem:[%s1753 + $0x30] sm:$0xf]
        %v1901 = vld [vmem:[%s1753 + $0x34] sm:$0x1]
        %v1902 = vld [vmem:[%s1753 + $0x38] sm:$0xf]
        %v1903 = vld [vmem:[%s1753 + $0x3c] sm:$0x1]
        %v1905 = vshrl.u32 %v1888, 16
        %v1907 = vrot.slane %v1905, 4
        %v1908 = vshll.u32 %v1888, 16
        %v1910 = vrot.slane %v1908, 5
        %v1911 = vor.u32 %v1907, %v1910
        %v1912 = vrot.slane %v1911, 4
        %v1914 = vshll.u32 %v1889, 16
        %v1916 = vrot.slane %v1914, 5
        %v1917 = vsel %vm560, %v1912, %v1916
        %v1919 = vshrl.u32 %v1890, 16
        %v1921 = vrot.slane %v1919, 4
        %v1922 = vshll.u32 %v1890, 16
        %v1924 = vrot.slane %v1922, 5
        %v1925 = vor.u32 %v1921, %v1924
        %v1926 = vrot.slane %v1925, 4
        %v1928 = vshll.u32 %v1891, 16
        %v1930 = vrot.slane %v1928, 5
        %v1931 = vsel %vm560, %v1926, %v1930
        %v1933 = vshrl.u32 %v1892, 16
        %v1935 = vrot.slane %v1933, 4
        %v1936 = vshll.u32 %v1892, 16
        %v1938 = vrot.slane %v1936, 5
        %v1939 = vor.u32 %v1935, %v1938
        %v1940 = vrot.slane %v1939, 4
        %v1942 = vshll.u32 %v1893, 16
        %v1944 = vrot.slane %v1942, 5
        %v1945 = vsel %vm560, %v1940, %v1944
        %v1947 = vshrl.u32 %v1894, 16
        %v1949 = vrot.slane %v1947, 4
        %v1950 = vshll.u32 %v1894, 16
        %v1952 = vrot.slane %v1950, 5
        %v1953 = vor.u32 %v1949, %v1952
        %v1954 = vrot.slane %v1953, 4
        %v1956 = vshll.u32 %v1895, 16
        %v1958 = vrot.slane %v1956, 5
        %v1959 = vsel %vm560, %v1954, %v1958
        %v1961 = vshrl.u32 %v1896, 16
        %v1963 = vrot.slane %v1961, 4
        %v1964 = vshll.u32 %v1896, 16
        %v1966 = vrot.slane %v1964, 5
        %v1967 = vor.u32 %v1963, %v1966
        %v1968 = vrot.slane %v1967, 4
        %v1970 = vshll.u32 %v1897, 16
        %v1972 = vrot.slane %v1970, 5
        %v1973 = vsel %vm560, %v1968, %v1972
        %v1975 = vshrl.u32 %v1898, 16
        %v1977 = vrot.slane %v1975, 4
        %v1978 = vshll.u32 %v1898, 16
        %v1980 = vrot.slane %v1978, 5
        %v1981 = vor.u32 %v1977, %v1980
        %v1982 = vrot.slane %v1981, 4
        %v1984 = vshll.u32 %v1899, 16
        %v1986 = vrot.slane %v1984, 5
        %v1987 = vsel %vm560, %v1982, %v1986
        %v1989 = vshrl.u32 %v1900, 16
        %v1991 = vrot.slane %v1989, 4
        %v1992 = vshll.u32 %v1900, 16
        %v1994 = vrot.slane %v1992, 5
        %v1995 = vor.u32 %v1991, %v1994
        %v1996 = vrot.slane %v1995, 4
        %v1998 = vshll.u32 %v1901, 16
        %v2000 = vrot.slane %v1998, 5
        %v2001 = vsel %vm560, %v1996, %v2000
        %v2003 = vshrl.u32 %v1902, 16
        %v2005 = vrot.slane %v2003, 4
        %v2006 = vshll.u32 %v1902, 16
        %v2008 = vrot.slane %v2006, 5
        %v2009 = vor.u32 %v2005, %v2008
        %v2010 = vrot.slane %v2009, 4
        %v2012 = vshll.u32 %v1903, 16
        %v2014 = vrot.slane %v2012, 5
        %v2015 = vsel %vm560, %v2010, %v2014
        %s2016 = scalar_lea.vmem %s532, 448
        %v2017 = vld [vmem:[%s2016] sm:$0xf]
        %v2018 = vld [vmem:[%s2016 + $0x4] sm:$0xf]
        %v2019 = vld [vmem:[%s2016 + $0x8] sm:$0xf]
        %v2020 = vld [vmem:[%s2016 + $0xc] sm:$0xf]
        %v2021 = vld [vmem:[%s2016 + $0x10] sm:$0xf]
        %v2022 = vld [vmem:[%s2016 + $0x14] sm:$0xf]
        %v2023 = vld [vmem:[%s2016 + $0x18] sm:$0xf]
        %v2024 = vld [vmem:[%s2016 + $0x1c] sm:$0xf]
        %v2025 = vld [vmem:[%s2016 + $0x20] sm:$0xf]
        %v2026 = vld [vmem:[%s2016 + $0x24] sm:$0xf]
        %v2027 = vld [vmem:[%s2016 + $0x28] sm:$0xf]
        %v2028 = vld [vmem:[%s2016 + $0x2c] sm:$0xf]
        %v2029 = vld [vmem:[%s2016 + $0x30] sm:$0xf]
        %v2030 = vld [vmem:[%s2016 + $0x34] sm:$0xf]
        %v2031 = vld [vmem:[%s2016 + $0x38] sm:$0xf]
        %v2032 = vld [vmem:[%s2016 + $0x3c] sm:$0xf]
        %v2033 = vunpack.c.l.b16 %v1917
        %v2034 = vunpack.c.l.b16 %v1931
        %v2035 = vunpack.c.l.b16 %v1945
        %v2036 = vunpack.c.l.b16 %v1959
        %v2037 = vunpack.c.l.b16 %v1973
        %v2038 = vunpack.c.l.b16 %v1987
        %v2039 = vunpack.c.l.b16 %v2001
        %v2040 = vunpack.c.l.b16 %v2015
        %v2041 = vpack.c.b16 %v2034, %v2033
        %v2042 = vpack.c.b16 %v2036, %v2035
        %v2043 = vpack.c.b16 %v2038, %v2037
        %v2044 = vpack.c.b16 %v2040, %v2039
        %v2065 = vunpack.c.l.b16 %v2017
        %v2066 = vunpack.c.l.b16 %v2018
        %v2067 = vunpack.c.l.b16 %v2019
        %v2068 = vunpack.c.l.b16 %v2020
        %v2069 = vunpack.c.l.b16 %v2021
        %v2070 = vunpack.c.l.b16 %v2022
        %v2071 = vunpack.c.l.b16 %v2023
        %v2072 = vunpack.c.l.b16 %v2024
        %v2073 = vunpack.c.l.b16 %v2025
        %v2074 = vunpack.c.l.b16 %v2026
        %v2075 = vunpack.c.l.b16 %v2027
        %v2076 = vunpack.c.l.b16 %v2028
        %v2077 = vunpack.c.l.b16 %v2029
        %v2078 = vunpack.c.l.b16 %v2030
        %v2079 = vunpack.c.l.b16 %v2031
        %v2080 = vunpack.c.l.b16 %v2032
        %v2081 = vpack.c.b16 %v2066, %v2065
        %v2082 = vpack.c.b16 %v2068, %v2067
        %v2083 = vpack.c.b16 %v2070, %v2069
        %v2084 = vpack.c.b16 %v2072, %v2071
        %v2085 = vpack.c.b16 %v2074, %v2073
        %v2086 = vpack.c.b16 %v2076, %v2075
        %v2087 = vpack.c.b16 %v2078, %v2077
        %v2088 = vpack.c.b16 %v2080, %v2079
        %2097 = vmatpush.bf16.msra.mxu0 %v2088
        %2098 = vmatpush.bf16.msra.mxu0 %v2087
        %2099 = vmatpush.bf16.msra.mxu0 %v2086
        %2100 = vmatpush.bf16.msra.mxu0 %v2085
        %2101 = vmatpush.bf16.msra.mxu0 %v2084
        %2102 = vmatpush.bf16.msra.mxu0 %v2083
        %2103 = vmatpush.bf16.msra.mxu0 %v2082
        %2104 = vmatpush.bf16.msra.mxu0 %v2081
        %2105 = vmatmul.bf16.gmra.mxu0 %v2041
        %v2106 = vpop.f32.mrf.mxu0
        %v2107 = vadd.f32 0.0, %v2106
        %v2108 = vpop.f32.mrf.mxu0
        %v2109 = vadd.f32 0.0, %v2108
        %2110 = vmatmul.bf16.gmra.mxu0 %v2042
        %v2111 = vpop.f32.mrf.mxu0
        %v2112 = vadd.f32 0.0, %v2111
        %v2113 = vpop.f32.mrf.mxu0
        %v2114 = vadd.f32 0.0, %v2113
        %2115 = vmatmul.bf16.gmra.mxu0 %v2043
        %v2116 = vpop.f32.mrf.mxu0
        %v2117 = vadd.f32 0.0, %v2116
        %v2118 = vpop.f32.mrf.mxu0
        %v2119 = vadd.f32 0.0, %v2118
        %2120 = vmatmul.bf16.gmra.mxu0 %v2044
        %v2121 = vpop.f32.mrf.mxu0
        %v2122 = vadd.f32 0.0, %v2121
        %v2123 = vpop.f32.mrf.mxu0
        %v2124 = vadd.f32 0.0, %v2123
        %2125 = vdwg.mxu0
        %v2126 = vadd.f32 %v1880, %v2107
        %v2127 = vadd.f32 %v1881, %v2109
        %v2128 = vadd.f32 %v1882, %v2112
        %v2129 = vadd.f32 %v1883, %v2114
        %v2130 = vadd.f32 %v1884, %v2117
        %v2131 = vadd.f32 %v1885, %v2119
        %v2132 = vadd.f32 %v1886, %v2122
        %v2133 = vadd.f32 %v1887, %v2124
        %s2134 = scalar_lea.vmem %s503, 160 [#allocation2]
        %v2135 = vld [vmem:[%s2134] sm:$0xf]
        %v2136 = vld [vmem:[%s2134 + $0x4] sm:$0x1]
        %v2137 = vld [vmem:[%s2134 + $0x8] sm:$0xf]
        %v2138 = vld [vmem:[%s2134 + $0xc] sm:$0x1]
        %v2139 = vld [vmem:[%s2134 + $0x10] sm:$0xf]
        %v2140 = vld [vmem:[%s2134 + $0x14] sm:$0x1]
        %v2141 = vld [vmem:[%s2134 + $0x18] sm:$0xf]
        %v2142 = vld [vmem:[%s2134 + $0x1c] sm:$0x1]
        %v2143 = vld [vmem:[%s2134 + $0x20] sm:$0xf]
        %v2144 = vld [vmem:[%s2134 + $0x24] sm:$0x1]
        %v2145 = vld [vmem:[%s2134 + $0x28] sm:$0xf]
        %v2146 = vld [vmem:[%s2134 + $0x2c] sm:$0x1]
        %v2147 = vld [vmem:[%s2134 + $0x30] sm:$0xf]
        %v2148 = vld [vmem:[%s2134 + $0x34] sm:$0x1]
        %v2149 = vld [vmem:[%s2134 + $0x38] sm:$0xf]
        %v2150 = vld [vmem:[%s2134 + $0x3c] sm:$0x1]
        %v2152 = vshrl.u32 %v2135, 16
        %v2154 = vrot.slane %v2152, 4
        %v2155 = vshll.u32 %v2135, 16
        %v2157 = vrot.slane %v2155, 5
        %v2158 = vor.u32 %v2154, %v2157
        %v2159 = vrot.slane %v2158, 4
        %v2161 = vshll.u32 %v2136, 16
        %v2163 = vrot.slane %v2161, 5
        %v2164 = vsel %vm560, %v2159, %v2163
        %v2166 = vshrl.u32 %v2137, 16
        %v2168 = vrot.slane %v2166, 4
        %v2169 = vshll.u32 %v2137, 16
        %v2171 = vrot.slane %v2169, 5
        %v2172 = vor.u32 %v2168, %v2171
        %v2173 = vrot.slane %v2172, 4
        %v2175 = vshll.u32 %v2138, 16
        %v2177 = vrot.slane %v2175, 5
        %v2178 = vsel %vm560, %v2173, %v2177
        %v2180 = vshrl.u32 %v2139, 16
        %v2182 = vrot.slane %v2180, 4
        %v2183 = vshll.u32 %v2139, 16
        %v2185 = vrot.slane %v2183, 5
        %v2186 = vor.u32 %v2182, %v2185
        %v2187 = vrot.slane %v2186, 4
        %v2189 = vshll.u32 %v2140, 16
        %v2191 = vrot.slane %v2189, 5
        %v2192 = vsel %vm560, %v2187, %v2191
        %v2194 = vshrl.u32 %v2141, 16
        %v2196 = vrot.slane %v2194, 4
        %v2197 = vshll.u32 %v2141, 16
        %v2199 = vrot.slane %v2197, 5
        %v2200 = vor.u32 %v2196, %v2199
        %v2201 = vrot.slane %v2200, 4
        %v2203 = vshll.u32 %v2142, 16
        %v2205 = vrot.slane %v2203, 5
        %v2206 = vsel %vm560, %v2201, %v2205
        %v2208 = vshrl.u32 %v2143, 16
        %v2210 = vrot.slane %v2208, 4
        %v2211 = vshll.u32 %v2143, 16
        %v2213 = vrot.slane %v2211, 5
        %v2214 = vor.u32 %v2210, %v2213
        %v2215 = vrot.slane %v2214, 4
        %v2217 = vshll.u32 %v2144, 16
        %v2219 = vrot.slane %v2217, 5
        %v2220 = vsel %vm560, %v2215, %v2219
        %v2222 = vshrl.u32 %v2145, 16
        %v2224 = vrot.slane %v2222, 4
        %v2225 = vshll.u32 %v2145, 16
        %v2227 = vrot.slane %v2225, 5
        %v2228 = vor.u32 %v2224, %v2227
        %v2229 = vrot.slane %v2228, 4
        %v2231 = vshll.u32 %v2146, 16
        %v2233 = vrot.slane %v2231, 5
        %v2234 = vsel %vm560, %v2229, %v2233
        %v2236 = vshrl.u32 %v2147, 16
        %v2238 = vrot.slane %v2236, 4
        %v2239 = vshll.u32 %v2147, 16
        %v2241 = vrot.slane %v2239, 5
        %v2242 = vor.u32 %v2238, %v2241
        %v2243 = vrot.slane %v2242, 4
        %v2245 = vshll.u32 %v2148, 16
        %v2247 = vrot.slane %v2245, 5
        %v2248 = vsel %vm560, %v2243, %v2247
        %v2250 = vshrl.u32 %v2149, 16
        %v2252 = vrot.slane %v2250, 4
        %v2253 = vshll.u32 %v2149, 16
        %v2255 = vrot.slane %v2253, 5
        %v2256 = vor.u32 %v2252, %v2255
        %v2257 = vrot.slane %v2256, 4
        %v2259 = vshll.u32 %v2150, 16
        %v2261 = vrot.slane %v2259, 5
        %v2262 = vsel %vm560, %v2257, %v2261
        %s2263 = scalar_lea.vmem %s532, 512
        %v2264 = vld [vmem:[%s2263] sm:$0xf]
        %v2265 = vld [vmem:[%s2263 + $0x4] sm:$0xf]
        %v2266 = vld [vmem:[%s2263 + $0x8] sm:$0xf]
        %v2267 = vld [vmem:[%s2263 + $0xc] sm:$0xf]
        %v2268 = vld [vmem:[%s2263 + $0x10] sm:$0xf]
        %v2269 = vld [vmem:[%s2263 + $0x14] sm:$0xf]
        %v2270 = vld [vmem:[%s2263 + $0x18] sm:$0xf]
        %v2271 = vld [vmem:[%s2263 + $0x1c] sm:$0xf]
        %v2272 = vld [vmem:[%s2263 + $0x20] sm:$0xf]
        %v2273 = vld [vmem:[%s2263 + $0x24] sm:$0xf]
        %v2274 = vld [vmem:[%s2263 + $0x28] sm:$0xf]
        %v2275 = vld [vmem:[%s2263 + $0x2c] sm:$0xf]
        %v2276 = vld [vmem:[%s2263 + $0x30] sm:$0xf]
        %v2277 = vld [vmem:[%s2263 + $0x34] sm:$0xf]
        %v2278 = vld [vmem:[%s2263 + $0x38] sm:$0xf]
        %v2279 = vld [vmem:[%s2263 + $0x3c] sm:$0xf]
        %v2280 = vunpack.c.l.b16 %v2164
        %v2281 = vunpack.c.l.b16 %v2178
        %v2282 = vunpack.c.l.b16 %v2192
        %v2283 = vunpack.c.l.b16 %v2206
        %v2284 = vunpack.c.l.b16 %v2220
        %v2285 = vunpack.c.l.b16 %v2234
        %v2286 = vunpack.c.l.b16 %v2248
        %v2287 = vunpack.c.l.b16 %v2262
        %v2288 = vpack.c.b16 %v2281, %v2280
        %v2289 = vpack.c.b16 %v2283, %v2282
        %v2290 = vpack.c.b16 %v2285, %v2284
        %v2291 = vpack.c.b16 %v2287, %v2286
        %v2312 = vunpack.c.l.b16 %v2264
        %v2313 = vunpack.c.l.b16 %v2265
        %v2314 = vunpack.c.l.b16 %v2266
        %v2315 = vunpack.c.l.b16 %v2267
        %v2316 = vunpack.c.l.b16 %v2268
        %v2317 = vunpack.c.l.b16 %v2269
        %v2318 = vunpack.c.l.b16 %v2270
        %v2319 = vunpack.c.l.b16 %v2271
        %v2320 = vunpack.c.l.b16 %v2272
        %v2321 = vunpack.c.l.b16 %v2273
        %v2322 = vunpack.c.l.b16 %v2274
        %v2323 = vunpack.c.l.b16 %v2275
        %v2324 = vunpack.c.l.b16 %v2276
        %v2325 = vunpack.c.l.b16 %v2277
        %v2326 = vunpack.c.l.b16 %v2278
        %v2327 = vunpack.c.l.b16 %v2279
        %v2328 = vpack.c.b16 %v2313, %v2312
        %v2329 = vpack.c.b16 %v2315, %v2314
        %v2330 = vpack.c.b16 %v2317, %v2316
        %v2331 = vpack.c.b16 %v2319, %v2318
        %v2332 = vpack.c.b16 %v2321, %v2320
        %v2333 = vpack.c.b16 %v2323, %v2322
        %v2334 = vpack.c.b16 %v2325, %v2324
        %v2335 = vpack.c.b16 %v2327, %v2326
        %2344 = vmatpush.bf16.msra.mxu0 %v2335
        %2345 = vmatpush.bf16.msra.mxu0 %v2334
        %2346 = vmatpush.bf16.msra.mxu0 %v2333
        %2347 = vmatpush.bf16.msra.mxu0 %v2332
        %2348 = vmatpush.bf16.msra.mxu0 %v2331
        %2349 = vmatpush.bf16.msra.mxu0 %v2330
        %2350 = vmatpush.bf16.msra.mxu0 %v2329
        %2351 = vmatpush.bf16.msra.mxu0 %v2328
        %2352 = vmatmul.bf16.gmra.mxu0 %v2288
        %v2353 = vpop.f32.mrf.mxu0
        %v2354 = vadd.f32 0.0, %v2353
        %v2355 = vpop.f32.mrf.mxu0
        %v2356 = vadd.f32 0.0, %v2355
        %2357 = vmatmul.bf16.gmra.mxu0 %v2289
        %v2358 = vpop.f32.mrf.mxu0
        %v2359 = vadd.f32 0.0, %v2358
        %v2360 = vpop.f32.mrf.mxu0
        %v2361 = vadd.f32 0.0, %v2360
        %2362 = vmatmul.bf16.gmra.mxu0 %v2290
        %v2363 = vpop.f32.mrf.mxu0
        %v2364 = vadd.f32 0.0, %v2363
        %v2365 = vpop.f32.mrf.mxu0
        %v2366 = vadd.f32 0.0, %v2365
        %2367 = vmatmul.bf16.gmra.mxu0 %v2291
        %v2368 = vpop.f32.mrf.mxu0
        %v2369 = vadd.f32 0.0, %v2368
        %v2370 = vpop.f32.mrf.mxu0
        %v2371 = vadd.f32 0.0, %v2370
        %2372 = vdwg.mxu0
        %v2373 = vadd.f32 %v2126, %v2354
        %v2374 = vadd.f32 %v2127, %v2356
        %v2375 = vadd.f32 %v2128, %v2359
        %v2376 = vadd.f32 %v2129, %v2361
        %v2377 = vadd.f32 %v2130, %v2364
        %v2378 = vadd.f32 %v2131, %v2366
        %v2379 = vadd.f32 %v2132, %v2369
        %v2380 = vadd.f32 %v2133, %v2371
        %v2381 = vld [vmem:[%s2134] sm:$0xe]
        %v2382 = vld [vmem:[%s2134 + $0x8] sm:$0xe]
        %v2383 = vld [vmem:[%s2134 + $0x10] sm:$0xe]
        %v2384 = vld [vmem:[%s2134 + $0x18] sm:$0xe]
        %v2385 = vld [vmem:[%s2134 + $0x20] sm:$0xe]
        %v2386 = vld [vmem:[%s2134 + $0x28] sm:$0xe]
        %v2387 = vld [vmem:[%s2134 + $0x30] sm:$0xe]
        %v2388 = vld [vmem:[%s2134 + $0x38] sm:$0xe]
        %v2405 = vrot.slane %v2381, 5
        %v2406 = vrot.slane %v2405, 4
        %v2407 = vrot.slane %v2136, 5
        %v2408 = vsel %vm715, %v2406, %v2407
        %v2409 = vrot.slane %v2382, 5
        %v2410 = vrot.slane %v2409, 4
        %v2411 = vrot.slane %v2138, 5
        %v2412 = vsel %vm715, %v2410, %v2411
        %v2413 = vrot.slane %v2383, 5
        %v2414 = vrot.slane %v2413, 4
        %v2415 = vrot.slane %v2140, 5
        %v2416 = vsel %vm715, %v2414, %v2415
        %v2417 = vrot.slane %v2384, 5
        %v2418 = vrot.slane %v2417, 4
        %v2419 = vrot.slane %v2142, 5
        %v2420 = vsel %vm715, %v2418, %v2419
        %v2421 = vrot.slane %v2385, 5
        %v2422 = vrot.slane %v2421, 4
        %v2423 = vrot.slane %v2144, 5
        %v2424 = vsel %vm715, %v2422, %v2423
        %v2425 = vrot.slane %v2386, 5
        %v2426 = vrot.slane %v2425, 4
        %v2427 = vrot.slane %v2146, 5
        %v2428 = vsel %vm715, %v2426, %v2427
        %v2429 = vrot.slane %v2387, 5
        %v2430 = vrot.slane %v2429, 4
        %v2431 = vrot.slane %v2148, 5
        %v2432 = vsel %vm715, %v2430, %v2431
        %v2433 = vrot.slane %v2388, 5
        %v2434 = vrot.slane %v2433, 4
        %v2435 = vrot.slane %v2150, 5
        %v2436 = vsel %vm715, %v2434, %v2435
        %s2437 = scalar_lea.vmem %s532, 576
        %v2438 = vld [vmem:[%s2437] sm:$0xf]
        %v2439 = vld [vmem:[%s2437 + $0x4] sm:$0xf]
        %v2440 = vld [vmem:[%s2437 + $0x8] sm:$0xf]
        %v2441 = vld [vmem:[%s2437 + $0xc] sm:$0xf]
        %v2442 = vld [vmem:[%s2437 + $0x10] sm:$0xf]
        %v2443 = vld [vmem:[%s2437 + $0x14] sm:$0xf]
        %v2444 = vld [vmem:[%s2437 + $0x18] sm:$0xf]
        %v2445 = vld [vmem:[%s2437 + $0x1c] sm:$0xf]
        %v2446 = vld [vmem:[%s2437 + $0x20] sm:$0xf]
        %v2447 = vld [vmem:[%s2437 + $0x24] sm:$0xf]
        %v2448 = vld [vmem:[%s2437 + $0x28] sm:$0xf]
        %v2449 = vld [vmem:[%s2437 + $0x2c] sm:$0xf]
        %v2450 = vld [vmem:[%s2437 + $0x30] sm:$0xf]
        %v2451 = vld [vmem:[%s2437 + $0x34] sm:$0xf]
        %v2452 = vld [vmem:[%s2437 + $0x38] sm:$0xf]
        %v2453 = vld [vmem:[%s2437 + $0x3c] sm:$0xf]
        %v2454 = vunpack.c.l.b16 %v2408
        %v2455 = vunpack.c.l.b16 %v2412
        %v2456 = vunpack.c.l.b16 %v2416
        %v2457 = vunpack.c.l.b16 %v2420
        %v2458 = vunpack.c.l.b16 %v2424
        %v2459 = vunpack.c.l.b16 %v2428
        %v2460 = vunpack.c.l.b16 %v2432
        %v2461 = vunpack.c.l.b16 %v2436
        %v2462 = vpack.c.b16 %v2455, %v2454
        %v2463 = vpack.c.b16 %v2457, %v2456
        %v2464 = vpack.c.b16 %v2459, %v2458
        %v2465 = vpack.c.b16 %v2461, %v2460
        %v2486 = vunpack.c.l.b16 %v2438
        %v2487 = vunpack.c.l.b16 %v2439
        %v2488 = vunpack.c.l.b16 %v2440
        %v2489 = vunpack.c.l.b16 %v2441
        %v2490 = vunpack.c.l.b16 %v2442
        %v2491 = vunpack.c.l.b16 %v2443
        %v2492 = vunpack.c.l.b16 %v2444
        %v2493 = vunpack.c.l.b16 %v2445
        %v2494 = vunpack.c.l.b16 %v2446
        %v2495 = vunpack.c.l.b16 %v2447
        %v2496 = vunpack.c.l.b16 %v2448
        %v2497 = vunpack.c.l.b16 %v2449
        %v2498 = vunpack.c.l.b16 %v2450
        %v2499 = vunpack.c.l.b16 %v2451
        %v2500 = vunpack.c.l.b16 %v2452
        %v2501 = vunpack.c.l.b16 %v2453
        %v2502 = vpack.c.b16 %v2487, %v2486
        %v2503 = vpack.c.b16 %v2489, %v2488
        %v2504 = vpack.c.b16 %v2491, %v2490
        %v2505 = vpack.c.b16 %v2493, %v2492
        %v2506 = vpack.c.b16 %v2495, %v2494
        %v2507 = vpack.c.b16 %v2497, %v2496
        %v2508 = vpack.c.b16 %v2499, %v2498
        %v2509 = vpack.c.b16 %v2501, %v2500
        %2518 = vmatpush.bf16.msra.mxu0 %v2509
        %2519 = vmatpush.bf16.msra.mxu0 %v2508
        %2520 = vmatpush.bf16.msra.mxu0 %v2507
        %2521 = vmatpush.bf16.msra.mxu0 %v2506
        %2522 = vmatpush.bf16.msra.mxu0 %v2505
        %2523 = vmatpush.bf16.msra.mxu0 %v2504
        %2524 = vmatpush.bf16.msra.mxu0 %v2503
        %2525 = vmatpush.bf16.msra.mxu0 %v2502
        %2526 = vmatmul.bf16.gmra.mxu0 %v2462
        %v2527 = vpop.f32.mrf.mxu0
        %v2528 = vadd.f32 0.0, %v2527
        %v2529 = vpop.f32.mrf.mxu0
        %v2530 = vadd.f32 0.0, %v2529
        %2531 = vmatmul.bf16.gmra.mxu0 %v2463
        %v2532 = vpop.f32.mrf.mxu0
        %v2533 = vadd.f32 0.0, %v2532
        %v2534 = vpop.f32.mrf.mxu0
        %v2535 = vadd.f32 0.0, %v2534
        %2536 = vmatmul.bf16.gmra.mxu0 %v2464
        %v2537 = vpop.f32.mrf.mxu0
        %v2538 = vadd.f32 0.0, %v2537
        %v2539 = vpop.f32.mrf.mxu0
        %v2540 = vadd.f32 0.0, %v2539
        %2541 = vmatmul.bf16.gmra.mxu0 %v2465
        %v2542 = vpop.f32.mrf.mxu0
        %v2543 = vadd.f32 0.0, %v2542
        %v2544 = vpop.f32.mrf.mxu0
        %v2545 = vadd.f32 0.0, %v2544
        %2546 = vdwg.mxu0
        %v2547 = vadd.f32 %v2373, %v2528
        %v2548 = vadd.f32 %v2374, %v2530
        %v2549 = vadd.f32 %v2375, %v2533
        %v2550 = vadd.f32 %v2376, %v2535
        %v2551 = vadd.f32 %v2377, %v2538
        %v2552 = vadd.f32 %v2378, %v2540
        %v2553 = vadd.f32 %v2379, %v2543
        %v2554 = vadd.f32 %v2380, %v2545
        %s2555 = scalar_lea.vmem %s503, 168 [#allocation2]
        %v2556 = vld [vmem:[%s2555] sm:$0xf]
        %v2557 = vld [vmem:[%s2555 + $0x4] sm:$0x1]
        %v2558 = vld [vmem:[%s2555 + $0x8] sm:$0xf]
        %v2559 = vld [vmem:[%s2555 + $0xc] sm:$0x1]
        %v2560 = vld [vmem:[%s2555 + $0x10] sm:$0xf]
        %v2561 = vld [vmem:[%s2555 + $0x14] sm:$0x1]
        %v2562 = vld [vmem:[%s2555 + $0x18] sm:$0xf]
        %v2563 = vld [vmem:[%s2555 + $0x1c] sm:$0x1]
        %v2564 = vld [vmem:[%s2555 + $0x20] sm:$0xf]
        %v2565 = vld [vmem:[%s2555 + $0x24] sm:$0x1]
        %v2566 = vld [vmem:[%s2555 + $0x28] sm:$0xf]
        %v2567 = vld [vmem:[%s2555 + $0x2c] sm:$0x1]
        %v2568 = vld [vmem:[%s2555 + $0x30] sm:$0xf]
        %v2569 = vld [vmem:[%s2555 + $0x34] sm:$0x1]
        %v2570 = vld [vmem:[%s2555 + $0x38] sm:$0xf]
        %v2571 = vld [vmem:[%s2555 + $0x3c] sm:$0x1]
        %v2573 = vshrl.u32 %v2556, 16
        %v2575 = vrot.slane %v2573, 4
        %v2576 = vshll.u32 %v2556, 16
        %v2578 = vrot.slane %v2576, 5
        %v2579 = vor.u32 %v2575, %v2578
        %v2580 = vrot.slane %v2579, 4
        %v2582 = vshll.u32 %v2557, 16
        %v2584 = vrot.slane %v2582, 5
        %v2585 = vsel %vm560, %v2580, %v2584
        %v2587 = vshrl.u32 %v2558, 16
        %v2589 = vrot.slane %v2587, 4
        %v2590 = vshll.u32 %v2558, 16
        %v2592 = vrot.slane %v2590, 5
        %v2593 = vor.u32 %v2589, %v2592
        %v2594 = vrot.slane %v2593, 4
        %v2596 = vshll.u32 %v2559, 16
        %v2598 = vrot.slane %v2596, 5
        %v2599 = vsel %vm560, %v2594, %v2598
        %v2601 = vshrl.u32 %v2560, 16
        %v2603 = vrot.slane %v2601, 4
        %v2604 = vshll.u32 %v2560, 16
        %v2606 = vrot.slane %v2604, 5
        %v2607 = vor.u32 %v2603, %v2606
        %v2608 = vrot.slane %v2607, 4
        %v2610 = vshll.u32 %v2561, 16
        %v2612 = vrot.slane %v2610, 5
        %v2613 = vsel %vm560, %v2608, %v2612
        %v2615 = vshrl.u32 %v2562, 16
        %v2617 = vrot.slane %v2615, 4
        %v2618 = vshll.u32 %v2562, 16
        %v2620 = vrot.slane %v2618, 5
        %v2621 = vor.u32 %v2617, %v2620
        %v2622 = vrot.slane %v2621, 4
        %v2624 = vshll.u32 %v2563, 16
        %v2626 = vrot.slane %v2624, 5
        %v2627 = vsel %vm560, %v2622, %v2626
        %v2629 = vshrl.u32 %v2564, 16
        %v2631 = vrot.slane %v2629, 4
        %v2632 = vshll.u32 %v2564, 16
        %v2634 = vrot.slane %v2632, 5
        %v2635 = vor.u32 %v2631, %v2634
        %v2636 = vrot.slane %v2635, 4
        %v2638 = vshll.u32 %v2565, 16
        %v2640 = vrot.slane %v2638, 5
        %v2641 = vsel %vm560, %v2636, %v2640
        %v2643 = vshrl.u32 %v2566, 16
        %v2645 = vrot.slane %v2643, 4
        %v2646 = vshll.u32 %v2566, 16
        %v2648 = vrot.slane %v2646, 5
        %v2649 = vor.u32 %v2645, %v2648
        %v2650 = vrot.slane %v2649, 4
        %v2652 = vshll.u32 %v2567, 16
        %v2654 = vrot.slane %v2652, 5
        %v2655 = vsel %vm560, %v2650, %v2654
        %v2657 = vshrl.u32 %v2568, 16
        %v2659 = vrot.slane %v2657, 4
        %v2660 = vshll.u32 %v2568, 16
        %v2662 = vrot.slane %v2660, 5
        %v2663 = vor.u32 %v2659, %v2662
        %v2664 = vrot.slane %v2663, 4
        %v2666 = vshll.u32 %v2569, 16
        %v2668 = vrot.slane %v2666, 5
        %v2669 = vsel %vm560, %v2664, %v2668
        %v2671 = vshrl.u32 %v2570, 16
        %v2673 = vrot.slane %v2671, 4
        %v2674 = vshll.u32 %v2570, 16
        %v2676 = vrot.slane %v2674, 5
        %v2677 = vor.u32 %v2673, %v2676
        %v2678 = vrot.slane %v2677, 4
        %v2680 = vshll.u32 %v2571, 16
        %v2682 = vrot.slane %v2680, 5
        %v2683 = vsel %vm560, %v2678, %v2682
        %s2684 = scalar_lea.vmem %s532, 640
        %v2685 = vld [vmem:[%s2684] sm:$0xf]
        %v2686 = vld [vmem:[%s2684 + $0x4] sm:$0xf]
        %v2687 = vld [vmem:[%s2684 + $0x8] sm:$0xf]
        %v2688 = vld [vmem:[%s2684 + $0xc] sm:$0xf]
        %v2689 = vld [vmem:[%s2684 + $0x10] sm:$0xf]
        %v2690 = vld [vmem:[%s2684 + $0x14] sm:$0xf]
        %v2691 = vld [vmem:[%s2684 + $0x18] sm:$0xf]
        %v2692 = vld [vmem:[%s2684 + $0x1c] sm:$0xf]
        %v2693 = vld [vmem:[%s2684 + $0x20] sm:$0xf]
        %v2694 = vld [vmem:[%s2684 + $0x24] sm:$0xf]
        %v2695 = vld [vmem:[%s2684 + $0x28] sm:$0xf]
        %v2696 = vld [vmem:[%s2684 + $0x2c] sm:$0xf]
        %v2697 = vld [vmem:[%s2684 + $0x30] sm:$0xf]
        %v2698 = vld [vmem:[%s2684 + $0x34] sm:$0xf]
        %v2699 = vld [vmem:[%s2684 + $0x38] sm:$0xf]
        %v2700 = vld [vmem:[%s2684 + $0x3c] sm:$0xf]
        %v2701 = vunpack.c.l.b16 %v2585
        %v2702 = vunpack.c.l.b16 %v2599
        %v2703 = vunpack.c.l.b16 %v2613
        %v2704 = vunpack.c.l.b16 %v2627
        %v2705 = vunpack.c.l.b16 %v2641
        %v2706 = vunpack.c.l.b16 %v2655
        %v2707 = vunpack.c.l.b16 %v2669
        %v2708 = vunpack.c.l.b16 %v2683
        %v2709 = vpack.c.b16 %v2702, %v2701
        %v2710 = vpack.c.b16 %v2704, %v2703
        %v2711 = vpack.c.b16 %v2706, %v2705
        %v2712 = vpack.c.b16 %v2708, %v2707
        %v2733 = vunpack.c.l.b16 %v2685
        %v2734 = vunpack.c.l.b16 %v2686
        %v2735 = vunpack.c.l.b16 %v2687
        %v2736 = vunpack.c.l.b16 %v2688
        %v2737 = vunpack.c.l.b16 %v2689
        %v2738 = vunpack.c.l.b16 %v2690
        %v2739 = vunpack.c.l.b16 %v2691
        %v2740 = vunpack.c.l.b16 %v2692
        %v2741 = vunpack.c.l.b16 %v2693
        %v2742 = vunpack.c.l.b16 %v2694
        %v2743 = vunpack.c.l.b16 %v2695
        %v2744 = vunpack.c.l.b16 %v2696
        %v2745 = vunpack.c.l.b16 %v2697
        %v2746 = vunpack.c.l.b16 %v2698
        %v2747 = vunpack.c.l.b16 %v2699
        %v2748 = vunpack.c.l.b16 %v2700
        %v2749 = vpack.c.b16 %v2734, %v2733
        %v2750 = vpack.c.b16 %v2736, %v2735
        %v2751 = vpack.c.b16 %v2738, %v2737
        %v2752 = vpack.c.b16 %v2740, %v2739
        %v2753 = vpack.c.b16 %v2742, %v2741
        %v2754 = vpack.c.b16 %v2744, %v2743
        %v2755 = vpack.c.b16 %v2746, %v2745
        %v2756 = vpack.c.b16 %v2748, %v2747
        %2765 = vmatpush.bf16.msra.mxu0 %v2756
        %2766 = vmatpush.bf16.msra.mxu0 %v2755
        %2767 = vmatpush.bf16.msra.mxu0 %v2754
        %2768 = vmatpush.bf16.msra.mxu0 %v2753
        %2769 = vmatpush.bf16.msra.mxu0 %v2752
        %2770 = vmatpush.bf16.msra.mxu0 %v2751
        %2771 = vmatpush.bf16.msra.mxu0 %v2750
        %2772 = vmatpush.bf16.msra.mxu0 %v2749
        %2773 = vmatmul.bf16.gmra.mxu0 %v2709
        %v2774 = vpop.f32.mrf.mxu0
        %v2775 = vadd.f32 0.0, %v2774
        %v2776 = vpop.f32.mrf.mxu0
        %v2777 = vadd.f32 0.0, %v2776
        %2778 = vmatmul.bf16.gmra.mxu0 %v2710
        %v2779 = vpop.f32.mrf.mxu0
        %v2780 = vadd.f32 0.0, %v2779
        %v2781 = vpop.f32.mrf.mxu0
        %v2782 = vadd.f32 0.0, %v2781
        %2783 = vmatmul.bf16.gmra.mxu0 %v2711
        %v2784 = vpop.f32.mrf.mxu0
        %v2785 = vadd.f32 0.0, %v2784
        %v2786 = vpop.f32.mrf.mxu0
        %v2787 = vadd.f32 0.0, %v2786
        %2788 = vmatmul.bf16.gmra.mxu0 %v2712
        %v2789 = vpop.f32.mrf.mxu0
        %v2790 = vadd.f32 0.0, %v2789
        %v2791 = vpop.f32.mrf.mxu0
        %v2792 = vadd.f32 0.0, %v2791
        %2793 = vdwg.mxu0
        %v2794 = vadd.f32 %v2547, %v2775
        %v2795 = vadd.f32 %v2548, %v2777
        %v2796 = vadd.f32 %v2549, %v2780
        %v2797 = vadd.f32 %v2550, %v2782
        %v2798 = vadd.f32 %v2551, %v2785
        %v2799 = vadd.f32 %v2552, %v2787
        %v2800 = vadd.f32 %v2553, %v2790
        %v2801 = vadd.f32 %v2554, %v2792
        %v2802 = vld [vmem:[%s2555] sm:$0xe]
        %v2803 = vld [vmem:[%s2555 + $0x8] sm:$0xe]
        %v2804 = vld [vmem:[%s2555 + $0x10] sm:$0xe]
        %v2805 = vld [vmem:[%s2555 + $0x18] sm:$0xe]
        %v2806 = vld [vmem:[%s2555 + $0x20] sm:$0xe]
        %v2807 = vld [vmem:[%s2555 + $0x28] sm:$0xe]
        %v2808 = vld [vmem:[%s2555 + $0x30] sm:$0xe]
        %v2809 = vld [vmem:[%s2555 + $0x38] sm:$0xe]
        %v2826 = vrot.slane %v2802, 5
        %v2827 = vrot.slane %v2826, 4
        %v2828 = vrot.slane %v2557, 5
        %v2829 = vsel %vm715, %v2827, %v2828
        %v2830 = vrot.slane %v2803, 5
        %v2831 = vrot.slane %v2830, 4
        %v2832 = vrot.slane %v2559, 5
        %v2833 = vsel %vm715, %v2831, %v2832
        %v2834 = vrot.slane %v2804, 5
        %v2835 = vrot.slane %v2834, 4
        %v2836 = vrot.slane %v2561, 5
        %v2837 = vsel %vm715, %v2835, %v2836
        %v2838 = vrot.slane %v2805, 5
        %v2839 = vrot.slane %v2838, 4
        %v2840 = vrot.slane %v2563, 5
        %v2841 = vsel %vm715, %v2839, %v2840
        %v2842 = vrot.slane %v2806, 5
        %v2843 = vrot.slane %v2842, 4
        %v2844 = vrot.slane %v2565, 5
        %v2845 = vsel %vm715, %v2843, %v2844
        %v2846 = vrot.slane %v2807, 5
        %v2847 = vrot.slane %v2846, 4
        %v2848 = vrot.slane %v2567, 5
        %v2849 = vsel %vm715, %v2847, %v2848
        %v2850 = vrot.slane %v2808, 5
        %v2851 = vrot.slane %v2850, 4
        %v2852 = vrot.slane %v2569, 5
        %v2853 = vsel %vm715, %v2851, %v2852
        %v2854 = vrot.slane %v2809, 5
        %v2855 = vrot.slane %v2854, 4
        %v2856 = vrot.slane %v2571, 5
        %v2857 = vsel %vm715, %v2855, %v2856
        %s2858 = scalar_lea.vmem %s532, 704
        %v2859 = vld [vmem:[%s2858] sm:$0xf]
        %v2860 = vld [vmem:[%s2858 + $0x4] sm:$0xf]
        %v2861 = vld [vmem:[%s2858 + $0x8] sm:$0xf]
        %v2862 = vld [vmem:[%s2858 + $0xc] sm:$0xf]
        %v2863 = vld [vmem:[%s2858 + $0x10] sm:$0xf]
        %v2864 = vld [vmem:[%s2858 + $0x14] sm:$0xf]
        %v2865 = vld [vmem:[%s2858 + $0x18] sm:$0xf]
        %v2866 = vld [vmem:[%s2858 + $0x1c] sm:$0xf]
        %v2867 = vld [vmem:[%s2858 + $0x20] sm:$0xf]
        %v2868 = vld [vmem:[%s2858 + $0x24] sm:$0xf]
        %v2869 = vld [vmem:[%s2858 + $0x28] sm:$0xf]
        %v2870 = vld [vmem:[%s2858 + $0x2c] sm:$0xf]
        %v2871 = vld [vmem:[%s2858 + $0x30] sm:$0xf]
        %v2872 = vld [vmem:[%s2858 + $0x34] sm:$0xf]
        %v2873 = vld [vmem:[%s2858 + $0x38] sm:$0xf]
        %v2874 = vld [vmem:[%s2858 + $0x3c] sm:$0xf]
        %v2875 = vunpack.c.l.b16 %v2829
        %v2876 = vunpack.c.l.b16 %v2833
        %v2877 = vunpack.c.l.b16 %v2837
        %v2878 = vunpack.c.l.b16 %v2841
        %v2879 = vunpack.c.l.b16 %v2845
        %v2880 = vunpack.c.l.b16 %v2849
        %v2881 = vunpack.c.l.b16 %v2853
        %v2882 = vunpack.c.l.b16 %v2857
        %v2883 = vpack.c.b16 %v2876, %v2875
        %v2884 = vpack.c.b16 %v2878, %v2877
        %v2885 = vpack.c.b16 %v2880, %v2879
        %v2886 = vpack.c.b16 %v2882, %v2881
        %v2907 = vunpack.c.l.b16 %v2859
        %v2908 = vunpack.c.l.b16 %v2860
        %v2909 = vunpack.c.l.b16 %v2861
        %v2910 = vunpack.c.l.b16 %v2862
        %v2911 = vunpack.c.l.b16 %v2863
        %v2912 = vunpack.c.l.b16 %v2864
        %v2913 = vunpack.c.l.b16 %v2865
        %v2914 = vunpack.c.l.b16 %v2866
        %v2915 = vunpack.c.l.b16 %v2867
        %v2916 = vunpack.c.l.b16 %v2868
        %v2917 = vunpack.c.l.b16 %v2869
        %v2918 = vunpack.c.l.b16 %v2870
        %v2919 = vunpack.c.l.b16 %v2871
        %v2920 = vunpack.c.l.b16 %v2872
        %v2921 = vunpack.c.l.b16 %v2873
        %v2922 = vunpack.c.l.b16 %v2874
        %v2923 = vpack.c.b16 %v2908, %v2907
        %v2924 = vpack.c.b16 %v2910, %v2909
        %v2925 = vpack.c.b16 %v2912, %v2911
        %v2926 = vpack.c.b16 %v2914, %v2913
        %v2927 = vpack.c.b16 %v2916, %v2915
        %v2928 = vpack.c.b16 %v2918, %v2917
        %v2929 = vpack.c.b16 %v2920, %v2919
        %v2930 = vpack.c.b16 %v2922, %v2921
        %2939 = vmatpush.bf16.msra.mxu0 %v2930
        %2940 = vmatpush.bf16.msra.mxu0 %v2929
        %2941 = vmatpush.bf16.msra.mxu0 %v2928
        %2942 = vmatpush.bf16.msra.mxu0 %v2927
        %2943 = vmatpush.bf16.msra.mxu0 %v2926
        %2944 = vmatpush.bf16.msra.mxu0 %v2925
        %2945 = vmatpush.bf16.msra.mxu0 %v2924
        %2946 = vmatpush.bf16.msra.mxu0 %v2923
        %2947 = vmatmul.bf16.gmra.mxu0 %v2883
        %v2948 = vpop.f32.mrf.mxu0
        %v2949 = vadd.f32 0.0, %v2948
        %v2950 = vpop.f32.mrf.mxu0
        %v2951 = vadd.f32 0.0, %v2950
        %2952 = vmatmul.bf16.gmra.mxu0 %v2884
        %v2953 = vpop.f32.mrf.mxu0
        %v2954 = vadd.f32 0.0, %v2953
        %v2955 = vpop.f32.mrf.mxu0
        %v2956 = vadd.f32 0.0, %v2955
        %2957 = vmatmul.bf16.gmra.mxu0 %v2885
        %v2958 = vpop.f32.mrf.mxu0
        %v2959 = vadd.f32 0.0, %v2958
        %v2960 = vpop.f32.mrf.mxu0
        %v2961 = vadd.f32 0.0, %v2960
        %2962 = vmatmul.bf16.gmra.mxu0 %v2886
        %v2963 = vpop.f32.mrf.mxu0
        %v2964 = vadd.f32 0.0, %v2963
        %v2965 = vpop.f32.mrf.mxu0
        %v2966 = vadd.f32 0.0, %v2965
        %2967 = vdwg.mxu0
        %v2968 = vadd.f32 %v2794, %v2949
        %v2969 = vadd.f32 %v2795, %v2951
        %v2970 = vadd.f32 %v2796, %v2954
        %v2971 = vadd.f32 %v2797, %v2956
        %v2972 = vadd.f32 %v2798, %v2959
        %v2973 = vadd.f32 %v2799, %v2961
        %v2974 = vadd.f32 %v2800, %v2964
        %v2975 = vadd.f32 %v2801, %v2966
        %s2976 = scalar_lea.vmem %s503, 240 [#allocation2]
        %v2977 = vld [vmem:[%s2976] sm:$0xf]
        %v2978 = vld [vmem:[%s2976 + $0x8] sm:$0xf]
        %v2979 = vld [vmem:[%s2976 + $0x10] sm:$0xf]
        %v2980 = vld [vmem:[%s2976 + $0x18] sm:$0xf]
        %v2981 = vld [vmem:[%s2976 + $0x20] sm:$0xf]
        %v2982 = vld [vmem:[%s2976 + $0x28] sm:$0xf]
        %v2983 = vld [vmem:[%s2976 + $0x30] sm:$0xf]
        %v2984 = vld [vmem:[%s2976 + $0x38] sm:$0xf]
        %s2985 = scalar_lea.vmem %s532, 768
        %v2986 = vld [vmem:[%s2985] sm:$0xf]
        %v2987 = vld [vmem:[%s2985 + $0x4] sm:$0xf]
        %v2988 = vld [vmem:[%s2985 + $0x8] sm:$0xf]
        %v2989 = vld [vmem:[%s2985 + $0xc] sm:$0xf]
        %v2990 = vld [vmem:[%s2985 + $0x10] sm:$0xf]
        %v2991 = vld [vmem:[%s2985 + $0x14] sm:$0xf]
        %v2992 = vld [vmem:[%s2985 + $0x18] sm:$0xf]
        %v2993 = vld [vmem:[%s2985 + $0x1c] sm:$0xf]
        %v2994 = vld [vmem:[%s2985 + $0x20] sm:$0xf]
        %v2995 = vld [vmem:[%s2985 + $0x24] sm:$0xf]
        %v2996 = vld [vmem:[%s2985 + $0x28] sm:$0xf]
        %v2997 = vld [vmem:[%s2985 + $0x2c] sm:$0xf]
        %v2998 = vld [vmem:[%s2985 + $0x30] sm:$0xf]
        %v2999 = vld [vmem:[%s2985 + $0x34] sm:$0xf]
        %v3000 = vld [vmem:[%s2985 + $0x38] sm:$0xf]
        %v3001 = vld [vmem:[%s2985 + $0x3c] sm:$0xf]
        %v3010 = vunpack.c.l.b16 %v2977
        %v3011 = vunpack.c.l.b16 %v2978
        %v3012 = vunpack.c.l.b16 %v2979
        %v3013 = vunpack.c.l.b16 %v2980
        %v3014 = vunpack.c.l.b16 %v2981
        %v3015 = vunpack.c.l.b16 %v2982
        %v3016 = vunpack.c.l.b16 %v2983
        %v3017 = vunpack.c.l.b16 %v2984
        %v3018 = vpack.c.b16 %v3011, %v3010
        %v3019 = vpack.c.b16 %v3013, %v3012
        %v3020 = vpack.c.b16 %v3015, %v3014
        %v3021 = vpack.c.b16 %v3017, %v3016
        %v3042 = vunpack.c.l.b16 %v2986
        %v3043 = vunpack.c.l.b16 %v2987
        %v3044 = vunpack.c.l.b16 %v2988
        %v3045 = vunpack.c.l.b16 %v2989
        %v3046 = vunpack.c.l.b16 %v2990
        %v3047 = vunpack.c.l.b16 %v2991
        %v3048 = vunpack.c.l.b16 %v2992
        %v3049 = vunpack.c.l.b16 %v2993
        %v3050 = vunpack.c.l.b16 %v2994
        %v3051 = vunpack.c.l.b16 %v2995
        %v3052 = vunpack.c.l.b16 %v2996
        %v3053 = vunpack.c.l.b16 %v2997
        %v3054 = vunpack.c.l.b16 %v2998
        %v3055 = vunpack.c.l.b16 %v2999
        %v3056 = vunpack.c.l.b16 %v3000
        %v3057 = vunpack.c.l.b16 %v3001
        %v3058 = vpack.c.b16 %v3043, %v3042
        %v3059 = vpack.c.b16 %v3045, %v3044
        %v3060 = vpack.c.b16 %v3047, %v3046
        %v3061 = vpack.c.b16 %v3049, %v3048
        %v3062 = vpack.c.b16 %v3051, %v3050
        %v3063 = vpack.c.b16 %v3053, %v3052
        %v3064 = vpack.c.b16 %v3055, %v3054
        %v3065 = vpack.c.b16 %v3057, %v3056
        %3074 = vmatpush.bf16.msra.mxu0 %v3065
        %3075 = vmatpush.bf16.msra.mxu0 %v3064
        %3076 = vmatpush.bf16.msra.mxu0 %v3063
        %3077 = vmatpush.bf16.msra.mxu0 %v3062
        %3078 = vmatpush.bf16.msra.mxu0 %v3061
        %3079 = vmatpush.bf16.msra.mxu0 %v3060
        %3080 = vmatpush.bf16.msra.mxu0 %v3059
        %3081 = vmatpush.bf16.msra.mxu0 %v3058
        %3082 = vmatmul.bf16.gmra.mxu0 %v3018
        %v3083 = vpop.f32.mrf.mxu0
        %v3084 = vadd.f32 0.0, %v3083
        %v3085 = vpop.f32.mrf.mxu0
        %v3086 = vadd.f32 0.0, %v3085
        %3087 = vmatmul.bf16.gmra.mxu0 %v3019
        %v3088 = vpop.f32.mrf.mxu0
        %v3089 = vadd.f32 0.0, %v3088
        %v3090 = vpop.f32.mrf.mxu0
        %v3091 = vadd.f32 0.0, %v3090
        %3092 = vmatmul.bf16.gmra.mxu0 %v3020
        %v3093 = vpop.f32.mrf.mxu0
        %v3094 = vadd.f32 0.0, %v3093
        %v3095 = vpop.f32.mrf.mxu0
        %v3096 = vadd.f32 0.0, %v3095
        %3097 = vmatmul.bf16.gmra.mxu0 %v3021
        %v3098 = vpop.f32.mrf.mxu0
        %v3099 = vadd.f32 0.0, %v3098
        %v3100 = vpop.f32.mrf.mxu0
        %v3101 = vadd.f32 0.0, %v3100
        %3102 = vdwg.mxu0
        %v3103 = vadd.f32 %v2968, %v3084
        %v3104 = vadd.f32 %v2969, %v3086
        %v3105 = vadd.f32 %v2970, %v3089
        %v3106 = vadd.f32 %v2971, %v3091
        %v3107 = vadd.f32 %v2972, %v3094
        %v3108 = vadd.f32 %v2973, %v3096
        %v3109 = vadd.f32 %v2974, %v3099
        %v3110 = vadd.f32 %v2975, %v3101
        %v3111 = vld [vmem:[%s2976] sm:$0xf]
        %v3112 = vld [vmem:[%s2976 + $0x4] sm:$0x1]
        %v3113 = vld [vmem:[%s2976 + $0x8] sm:$0xf]
        %v3114 = vld [vmem:[%s2976 + $0xc] sm:$0x1]
        %v3115 = vld [vmem:[%s2976 + $0x10] sm:$0xf]
        %v3116 = vld [vmem:[%s2976 + $0x14] sm:$0x1]
        %v3117 = vld [vmem:[%s2976 + $0x18] sm:$0xf]
        %v3118 = vld [vmem:[%s2976 + $0x1c] sm:$0x1]
        %v3119 = vld [vmem:[%s2976 + $0x20] sm:$0xf]
        %v3120 = vld [vmem:[%s2976 + $0x24] sm:$0x1]
        %v3121 = vld [vmem:[%s2976 + $0x28] sm:$0xf]
        %v3122 = vld [vmem:[%s2976 + $0x2c] sm:$0x1]
        %v3123 = vld [vmem:[%s2976 + $0x30] sm:$0xf]
        %v3124 = vld [vmem:[%s2976 + $0x34] sm:$0x1]
        %v3125 = vld [vmem:[%s2976 + $0x38] sm:$0xf]
        %v3126 = vld [vmem:[%s2976 + $0x3c] sm:$0x1]
        %v3128 = vshrl.u32 %v3111, 16
        %v3130 = vrot.slane %v3128, 4
        %v3131 = vshll.u32 %v3111, 16
        %v3133 = vrot.slane %v3131, 5
        %v3134 = vor.u32 %v3130, %v3133
        %v3135 = vrot.slane %v3134, 4
        %v3137 = vshll.u32 %v3112, 16
        %v3139 = vrot.slane %v3137, 5
        %v3140 = vsel %vm560, %v3135, %v3139
        %v3142 = vshrl.u32 %v3113, 16
        %v3144 = vrot.slane %v3142, 4
        %v3145 = vshll.u32 %v3113, 16
        %v3147 = vrot.slane %v3145, 5
        %v3148 = vor.u32 %v3144, %v3147
        %v3149 = vrot.slane %v3148, 4
        %v3151 = vshll.u32 %v3114, 16
        %v3153 = vrot.slane %v3151, 5
        %v3154 = vsel %vm560, %v3149, %v3153
        %v3156 = vshrl.u32 %v3115, 16
        %v3158 = vrot.slane %v3156, 4
        %v3159 = vshll.u32 %v3115, 16
        %v3161 = vrot.slane %v3159, 5
        %v3162 = vor.u32 %v3158, %v3161
        %v3163 = vrot.slane %v3162, 4
        %v3165 = vshll.u32 %v3116, 16
        %v3167 = vrot.slane %v3165, 5
        %v3168 = vsel %vm560, %v3163, %v3167
        %v3170 = vshrl.u32 %v3117, 16
        %v3172 = vrot.slane %v3170, 4
        %v3173 = vshll.u32 %v3117, 16
        %v3175 = vrot.slane %v3173, 5
        %v3176 = vor.u32 %v3172, %v3175
        %v3177 = vrot.slane %v3176, 4
        %v3179 = vshll.u32 %v3118, 16
        %v3181 = vrot.slane %v3179, 5
        %v3182 = vsel %vm560, %v3177, %v3181
        %v3184 = vshrl.u32 %v3119, 16
        %v3186 = vrot.slane %v3184, 4
        %v3187 = vshll.u32 %v3119, 16
        %v3189 = vrot.slane %v3187, 5
        %v3190 = vor.u32 %v3186, %v3189
        %v3191 = vrot.slane %v3190, 4
        %v3193 = vshll.u32 %v3120, 16
        %v3195 = vrot.slane %v3193, 5
        %v3196 = vsel %vm560, %v3191, %v3195
        %v3198 = vshrl.u32 %v3121, 16
        %v3200 = vrot.slane %v3198, 4
        %v3201 = vshll.u32 %v3121, 16
        %v3203 = vrot.slane %v3201, 5
        %v3204 = vor.u32 %v3200, %v3203
        %v3205 = vrot.slane %v3204, 4
        %v3207 = vshll.u32 %v3122, 16
        %v3209 = vrot.slane %v3207, 5
        %v3210 = vsel %vm560, %v3205, %v3209
        %v3212 = vshrl.u32 %v3123, 16
        %v3214 = vrot.slane %v3212, 4
        %v3215 = vshll.u32 %v3123, 16
        %v3217 = vrot.slane %v3215, 5
        %v3218 = vor.u32 %v3214, %v3217
        %v3219 = vrot.slane %v3218, 4
        %v3221 = vshll.u32 %v3124, 16
        %v3223 = vrot.slane %v3221, 5
        %v3224 = vsel %vm560, %v3219, %v3223
        %v3226 = vshrl.u32 %v3125, 16
        %v3228 = vrot.slane %v3226, 4
        %v3229 = vshll.u32 %v3125, 16
        %v3231 = vrot.slane %v3229, 5
        %v3232 = vor.u32 %v3228, %v3231
        %v3233 = vrot.slane %v3232, 4
        %v3235 = vshll.u32 %v3126, 16
        %v3237 = vrot.slane %v3235, 5
        %v3238 = vsel %vm560, %v3233, %v3237
        %s3239 = scalar_lea.vmem %s532, 832
        %v3240 = vld [vmem:[%s3239] sm:$0xf]
        %v3241 = vld [vmem:[%s3239 + $0x4] sm:$0xf]
        %v3242 = vld [vmem:[%s3239 + $0x8] sm:$0xf]
        %v3243 = vld [vmem:[%s3239 + $0xc] sm:$0xf]
        %v3244 = vld [vmem:[%s3239 + $0x10] sm:$0xf]
        %v3245 = vld [vmem:[%s3239 + $0x14] sm:$0xf]
        %v3246 = vld [vmem:[%s3239 + $0x18] sm:$0xf]
        %v3247 = vld [vmem:[%s3239 + $0x1c] sm:$0xf]
        %v3248 = vld [vmem:[%s3239 + $0x20] sm:$0xf]
        %v3249 = vld [vmem:[%s3239 + $0x24] sm:$0xf]
        %v3250 = vld [vmem:[%s3239 + $0x28] sm:$0xf]
        %v3251 = vld [vmem:[%s3239 + $0x2c] sm:$0xf]
        %v3252 = vld [vmem:[%s3239 + $0x30] sm:$0xf]
        %v3253 = vld [vmem:[%s3239 + $0x34] sm:$0xf]
        %v3254 = vld [vmem:[%s3239 + $0x38] sm:$0xf]
        %v3255 = vld [vmem:[%s3239 + $0x3c] sm:$0xf]
        %v3256 = vunpack.c.l.b16 %v3140
        %v3257 = vunpack.c.l.b16 %v3154
        %v3258 = vunpack.c.l.b16 %v3168
        %v3259 = vunpack.c.l.b16 %v3182
        %v3260 = vunpack.c.l.b16 %v3196
        %v3261 = vunpack.c.l.b16 %v3210
        %v3262 = vunpack.c.l.b16 %v3224
        %v3263 = vunpack.c.l.b16 %v3238
        %v3264 = vpack.c.b16 %v3257, %v3256
        %v3265 = vpack.c.b16 %v3259, %v3258
        %v3266 = vpack.c.b16 %v3261, %v3260
        %v3267 = vpack.c.b16 %v3263, %v3262
        %v3288 = vunpack.c.l.b16 %v3240
        %v3289 = vunpack.c.l.b16 %v3241
        %v3290 = vunpack.c.l.b16 %v3242
        %v3291 = vunpack.c.l.b16 %v3243
        %v3292 = vunpack.c.l.b16 %v3244
        %v3293 = vunpack.c.l.b16 %v3245
        %v3294 = vunpack.c.l.b16 %v3246
        %v3295 = vunpack.c.l.b16 %v3247
        %v3296 = vunpack.c.l.b16 %v3248
        %v3297 = vunpack.c.l.b16 %v3249
        %v3298 = vunpack.c.l.b16 %v3250
        %v3299 = vunpack.c.l.b16 %v3251
        %v3300 = vunpack.c.l.b16 %v3252
        %v3301 = vunpack.c.l.b16 %v3253
        %v3302 = vunpack.c.l.b16 %v3254
        %v3303 = vunpack.c.l.b16 %v3255
        %v3304 = vpack.c.b16 %v3289, %v3288
        %v3305 = vpack.c.b16 %v3291, %v3290
        %v3306 = vpack.c.b16 %v3293, %v3292
        %v3307 = vpack.c.b16 %v3295, %v3294
        %v3308 = vpack.c.b16 %v3297, %v3296
        %v3309 = vpack.c.b16 %v3299, %v3298
        %v3310 = vpack.c.b16 %v3301, %v3300
        %v3311 = vpack.c.b16 %v3303, %v3302
        %3320 = vmatpush.bf16.msra.mxu0 %v3311
        %3321 = vmatpush.bf16.msra.mxu0 %v3310
        %3322 = vmatpush.bf16.msra.mxu0 %v3309
        %3323 = vmatpush.bf16.msra.mxu0 %v3308
        %3324 = vmatpush.bf16.msra.mxu0 %v3307
        %3325 = vmatpush.bf16.msra.mxu0 %v3306
        %3326 = vmatpush.bf16.msra.mxu0 %v3305
        %3327 = vmatpush.bf16.msra.mxu0 %v3304
        %3328 = vmatmul.bf16.gmra.mxu0 %v3264
        %v3329 = vpop.f32.mrf.mxu0
        %v3330 = vadd.f32 0.0, %v3329
        %v3331 = vpop.f32.mrf.mxu0
        %v3332 = vadd.f32 0.0, %v3331
        %3333 = vmatmul.bf16.gmra.mxu0 %v3265
        %v3334 = vpop.f32.mrf.mxu0
        %v3335 = vadd.f32 0.0, %v3334
        %v3336 = vpop.f32.mrf.mxu0
        %v3337 = vadd.f32 0.0, %v3336
        %3338 = vmatmul.bf16.gmra.mxu0 %v3266
        %v3339 = vpop.f32.mrf.mxu0
        %v3340 = vadd.f32 0.0, %v3339
        %v3341 = vpop.f32.mrf.mxu0
        %v3342 = vadd.f32 0.0, %v3341
        %3343 = vmatmul.bf16.gmra.mxu0 %v3267
        %v3344 = vpop.f32.mrf.mxu0
        %v3345 = vadd.f32 0.0, %v3344
        %v3346 = vpop.f32.mrf.mxu0
        %v3347 = vadd.f32 0.0, %v3346
        %3348 = vdwg.mxu0
        %v3349 = vadd.f32 %v3103, %v3330
        %v3350 = vadd.f32 %v3104, %v3332
        %v3351 = vadd.f32 %v3105, %v3335
        %v3352 = vadd.f32 %v3106, %v3337
        %v3353 = vadd.f32 %v3107, %v3340
        %v3354 = vadd.f32 %v3108, %v3342
        %v3355 = vadd.f32 %v3109, %v3345
        %v3356 = vadd.f32 %v3110, %v3347
        %s3357 = scalar_lea.vmem %s503, 248 [#allocation2]
        %v3358 = vld [vmem:[%s3357] sm:$0xf]
        %v3359 = vld [vmem:[%s3357 + $0x8] sm:$0xf]
        %v3360 = vld [vmem:[%s3357 + $0x10] sm:$0xf]
        %v3361 = vld [vmem:[%s3357 + $0x18] sm:$0xf]
        %v3362 = vld [vmem:[%s3357 + $0x20] sm:$0xf]
        %v3363 = vld [vmem:[%s3357 + $0x28] sm:$0xf]
        %v3364 = vld [vmem:[%s3357 + $0x30] sm:$0xf]
        %v3365 = vld [vmem:[%s3357 + $0x38] sm:$0xf]
        %s3366 = scalar_lea.vmem %s532, 896
        %v3367 = vld [vmem:[%s3366] sm:$0xf]
        %v3368 = vld [vmem:[%s3366 + $0x4] sm:$0xf]
        %v3369 = vld [vmem:[%s3366 + $0x8] sm:$0xf]
        %v3370 = vld [vmem:[%s3366 + $0xc] sm:$0xf]
        %v3371 = vld [vmem:[%s3366 + $0x10] sm:$0xf]
        %v3372 = vld [vmem:[%s3366 + $0x14] sm:$0xf]
        %v3373 = vld [vmem:[%s3366 + $0x18] sm:$0xf]
        %v3374 = vld [vmem:[%s3366 + $0x1c] sm:$0xf]
        %v3375 = vld [vmem:[%s3366 + $0x20] sm:$0xf]
        %v3376 = vld [vmem:[%s3366 + $0x24] sm:$0xf]
        %v3377 = vld [vmem:[%s3366 + $0x28] sm:$0xf]
        %v3378 = vld [vmem:[%s3366 + $0x2c] sm:$0xf]
        %v3379 = vld [vmem:[%s3366 + $0x30] sm:$0xf]
        %v3380 = vld [vmem:[%s3366 + $0x34] sm:$0xf]
        %v3381 = vld [vmem:[%s3366 + $0x38] sm:$0xf]
        %v3382 = vld [vmem:[%s3366 + $0x3c] sm:$0xf]
        %v3391 = vunpack.c.l.b16 %v3358
        %v3392 = vunpack.c.l.b16 %v3359
        %v3393 = vunpack.c.l.b16 %v3360
        %v3394 = vunpack.c.l.b16 %v3361
        %v3395 = vunpack.c.l.b16 %v3362
        %v3396 = vunpack.c.l.b16 %v3363
        %v3397 = vunpack.c.l.b16 %v3364
        %v3398 = vunpack.c.l.b16 %v3365
        %v3399 = vpack.c.b16 %v3392, %v3391
        %v3400 = vpack.c.b16 %v3394, %v3393
        %v3401 = vpack.c.b16 %v3396, %v3395
        %v3402 = vpack.c.b16 %v3398, %v3397
        %v3423 = vunpack.c.l.b16 %v3367
        %v3424 = vunpack.c.l.b16 %v3368
        %v3425 = vunpack.c.l.b16 %v3369
        %v3426 = vunpack.c.l.b16 %v3370
        %v3427 = vunpack.c.l.b16 %v3371
        %v3428 = vunpack.c.l.b16 %v3372
        %v3429 = vunpack.c.l.b16 %v3373
        %v3430 = vunpack.c.l.b16 %v3374
        %v3431 = vunpack.c.l.b16 %v3375
        %v3432 = vunpack.c.l.b16 %v3376
        %v3433 = vunpack.c.l.b16 %v3377
        %v3434 = vunpack.c.l.b16 %v3378
        %v3435 = vunpack.c.l.b16 %v3379
        %v3436 = vunpack.c.l.b16 %v3380
        %v3437 = vunpack.c.l.b16 %v3381
        %v3438 = vunpack.c.l.b16 %v3382
        %v3439 = vpack.c.b16 %v3424, %v3423
        %v3440 = vpack.c.b16 %v3426, %v3425
        %v3441 = vpack.c.b16 %v3428, %v3427
        %v3442 = vpack.c.b16 %v3430, %v3429
        %v3443 = vpack.c.b16 %v3432, %v3431
        %v3444 = vpack.c.b16 %v3434, %v3433
        %v3445 = vpack.c.b16 %v3436, %v3435
        %v3446 = vpack.c.b16 %v3438, %v3437
        %3455 = vmatpush.bf16.msra.mxu0 %v3446
        %3456 = vmatpush.bf16.msra.mxu0 %v3445
        %3457 = vmatpush.bf16.msra.mxu0 %v3444
        %3458 = vmatpush.bf16.msra.mxu0 %v3443
        %3459 = vmatpush.bf16.msra.mxu0 %v3442
        %3460 = vmatpush.bf16.msra.mxu0 %v3441
        %3461 = vmatpush.bf16.msra.mxu0 %v3440
        %3462 = vmatpush.bf16.msra.mxu0 %v3439
        %3463 = vmatmul.bf16.gmra.mxu0 %v3399
        %v3464 = vpop.f32.mrf.mxu0
        %v3465 = vadd.f32 0.0, %v3464
        %v3466 = vpop.f32.mrf.mxu0
        %v3467 = vadd.f32 0.0, %v3466
        %3468 = vmatmul.bf16.gmra.mxu0 %v3400
        %v3469 = vpop.f32.mrf.mxu0
        %v3470 = vadd.f32 0.0, %v3469
        %v3471 = vpop.f32.mrf.mxu0
        %v3472 = vadd.f32 0.0, %v3471
        %3473 = vmatmul.bf16.gmra.mxu0 %v3401
        %v3474 = vpop.f32.mrf.mxu0
        %v3475 = vadd.f32 0.0, %v3474
        %v3476 = vpop.f32.mrf.mxu0
        %v3477 = vadd.f32 0.0, %v3476
        %3478 = vmatmul.bf16.gmra.mxu0 %v3402
        %v3479 = vpop.f32.mrf.mxu0
        %v3480 = vadd.f32 0.0, %v3479
        %v3481 = vpop.f32.mrf.mxu0
        %v3482 = vadd.f32 0.0, %v3481
        %3483 = vdwg.mxu0
        %v3484 = vadd.f32 %v3349, %v3465
        %v3485 = vadd.f32 %v3350, %v3467
        %v3486 = vadd.f32 %v3351, %v3470
        %v3487 = vadd.f32 %v3352, %v3472
        %v3488 = vadd.f32 %v3353, %v3475
        %v3489 = vadd.f32 %v3354, %v3477
        %v3490 = vadd.f32 %v3355, %v3480
        %v3491 = vadd.f32 %v3356, %v3482
        %v3492 = vld [vmem:[%s3357] sm:$0xf]
        %v3493 = vld [vmem:[%s3357 + $0x4] sm:$0x1]
        %v3494 = vld [vmem:[%s3357 + $0x8] sm:$0xf]
        %v3495 = vld [vmem:[%s3357 + $0xc] sm:$0x1]
        %v3496 = vld [vmem:[%s3357 + $0x10] sm:$0xf]
        %v3497 = vld [vmem:[%s3357 + $0x14] sm:$0x1]
        %v3498 = vld [vmem:[%s3357 + $0x18] sm:$0xf]
        %v3499 = vld [vmem:[%s3357 + $0x1c] sm:$0x1]
        %v3500 = vld [vmem:[%s3357 + $0x20] sm:$0xf]
        %v3501 = vld [vmem:[%s3357 + $0x24] sm:$0x1]
        %v3502 = vld [vmem:[%s3357 + $0x28] sm:$0xf]
        %v3503 = vld [vmem:[%s3357 + $0x2c] sm:$0x1]
        %v3504 = vld [vmem:[%s3357 + $0x30] sm:$0xf]
        %v3505 = vld [vmem:[%s3357 + $0x34] sm:$0x1]
        %v3506 = vld [vmem:[%s3357 + $0x38] sm:$0xf]
        %v3507 = vld [vmem:[%s3357 + $0x3c] sm:$0x1]
        %v3509 = vshrl.u32 %v3492, 16
        %v3511 = vrot.slane %v3509, 4
        %v3512 = vshll.u32 %v3492, 16
        %v3514 = vrot.slane %v3512, 5
        %v3515 = vor.u32 %v3511, %v3514
        %v3516 = vrot.slane %v3515, 4
        %v3518 = vshll.u32 %v3493, 16
        %v3520 = vrot.slane %v3518, 5
        %v3521 = vsel %vm560, %v3516, %v3520
        %v3523 = vshrl.u32 %v3494, 16
        %v3525 = vrot.slane %v3523, 4
        %v3526 = vshll.u32 %v3494, 16
        %v3528 = vrot.slane %v3526, 5
        %v3529 = vor.u32 %v3525, %v3528
        %v3530 = vrot.slane %v3529, 4
        %v3532 = vshll.u32 %v3495, 16
        %v3534 = vrot.slane %v3532, 5
        %v3535 = vsel %vm560, %v3530, %v3534
        %v3537 = vshrl.u32 %v3496, 16
        %v3539 = vrot.slane %v3537, 4
        %v3540 = vshll.u32 %v3496, 16
        %v3542 = vrot.slane %v3540, 5
        %v3543 = vor.u32 %v3539, %v3542
        %v3544 = vrot.slane %v3543, 4
        %v3546 = vshll.u32 %v3497, 16
        %v3548 = vrot.slane %v3546, 5
        %v3549 = vsel %vm560, %v3544, %v3548
        %v3551 = vshrl.u32 %v3498, 16
        %v3553 = vrot.slane %v3551, 4
        %v3554 = vshll.u32 %v3498, 16
        %v3556 = vrot.slane %v3554, 5
        %v3557 = vor.u32 %v3553, %v3556
        %v3558 = vrot.slane %v3557, 4
        %v3560 = vshll.u32 %v3499, 16
        %v3562 = vrot.slane %v3560, 5
        %v3563 = vsel %vm560, %v3558, %v3562
        %v3565 = vshrl.u32 %v3500, 16
        %v3567 = vrot.slane %v3565, 4
        %v3568 = vshll.u32 %v3500, 16
        %v3570 = vrot.slane %v3568, 5
        %v3571 = vor.u32 %v3567, %v3570
        %v3572 = vrot.slane %v3571, 4
        %v3574 = vshll.u32 %v3501, 16
        %v3576 = vrot.slane %v3574, 5
        %v3577 = vsel %vm560, %v3572, %v3576
        %v3579 = vshrl.u32 %v3502, 16
        %v3581 = vrot.slane %v3579, 4
        %v3582 = vshll.u32 %v3502, 16
        %v3584 = vrot.slane %v3582, 5
        %v3585 = vor.u32 %v3581, %v3584
        %v3586 = vrot.slane %v3585, 4
        %v3588 = vshll.u32 %v3503, 16
        %v3590 = vrot.slane %v3588, 5
        %v3591 = vsel %vm560, %v3586, %v3590
        %v3593 = vshrl.u32 %v3504, 16
        %v3595 = vrot.slane %v3593, 4
        %v3596 = vshll.u32 %v3504, 16
        %v3598 = vrot.slane %v3596, 5
        %v3599 = vor.u32 %v3595, %v3598
        %v3600 = vrot.slane %v3599, 4
        %v3602 = vshll.u32 %v3505, 16
        %v3604 = vrot.slane %v3602, 5
        %v3605 = vsel %vm560, %v3600, %v3604
        %v3607 = vshrl.u32 %v3506, 16
        %v3609 = vrot.slane %v3607, 4
        %v3610 = vshll.u32 %v3506, 16
        %v3612 = vrot.slane %v3610, 5
        %v3613 = vor.u32 %v3609, %v3612
        %v3614 = vrot.slane %v3613, 4
        %v3616 = vshll.u32 %v3507, 16
        %v3618 = vrot.slane %v3616, 5
        %v3619 = vsel %vm560, %v3614, %v3618
        %s3620 = scalar_lea.vmem %s532, 960
        %v3621 = vld [vmem:[%s3620] sm:$0xf]
        %v3622 = vld [vmem:[%s3620 + $0x4] sm:$0xf]
        %v3623 = vld [vmem:[%s3620 + $0x8] sm:$0xf]
        %v3624 = vld [vmem:[%s3620 + $0xc] sm:$0xf]
        %v3625 = vld [vmem:[%s3620 + $0x10] sm:$0xf]
        %v3626 = vld [vmem:[%s3620 + $0x14] sm:$0xf]
        %v3627 = vld [vmem:[%s3620 + $0x18] sm:$0xf]
        %v3628 = vld [vmem:[%s3620 + $0x1c] sm:$0xf]
        %v3629 = vld [vmem:[%s3620 + $0x20] sm:$0xf]
        %v3630 = vld [vmem:[%s3620 + $0x24] sm:$0xf]
        %v3631 = vld [vmem:[%s3620 + $0x28] sm:$0xf]
        %v3632 = vld [vmem:[%s3620 + $0x2c] sm:$0xf]
        %v3633 = vld [vmem:[%s3620 + $0x30] sm:$0xf]
        %v3634 = vld [vmem:[%s3620 + $0x34] sm:$0xf]
        %v3635 = vld [vmem:[%s3620 + $0x38] sm:$0xf]
        %v3636 = vld [vmem:[%s3620 + $0x3c] sm:$0xf]
        %v3637 = vunpack.c.l.b16 %v3521
        %v3638 = vunpack.c.l.b16 %v3535
        %v3639 = vunpack.c.l.b16 %v3549
        %v3640 = vunpack.c.l.b16 %v3563
        %v3641 = vunpack.c.l.b16 %v3577
        %v3642 = vunpack.c.l.b16 %v3591
        %v3643 = vunpack.c.l.b16 %v3605
        %v3644 = vunpack.c.l.b16 %v3619
        %v3645 = vpack.c.b16 %v3638, %v3637
        %v3646 = vpack.c.b16 %v3640, %v3639
        %v3647 = vpack.c.b16 %v3642, %v3641
        %v3648 = vpack.c.b16 %v3644, %v3643
        %v3669 = vunpack.c.l.b16 %v3621
        %v3670 = vunpack.c.l.b16 %v3622
        %v3671 = vunpack.c.l.b16 %v3623
        %v3672 = vunpack.c.l.b16 %v3624
        %v3673 = vunpack.c.l.b16 %v3625
        %v3674 = vunpack.c.l.b16 %v3626
        %v3675 = vunpack.c.l.b16 %v3627
        %v3676 = vunpack.c.l.b16 %v3628
        %v3677 = vunpack.c.l.b16 %v3629
        %v3678 = vunpack.c.l.b16 %v3630
        %v3679 = vunpack.c.l.b16 %v3631
        %v3680 = vunpack.c.l.b16 %v3632
        %v3681 = vunpack.c.l.b16 %v3633
        %v3682 = vunpack.c.l.b16 %v3634
        %v3683 = vunpack.c.l.b16 %v3635
        %v3684 = vunpack.c.l.b16 %v3636
        %v3685 = vpack.c.b16 %v3670, %v3669
        %v3686 = vpack.c.b16 %v3672, %v3671
        %v3687 = vpack.c.b16 %v3674, %v3673
        %v3688 = vpack.c.b16 %v3676, %v3675
        %v3689 = vpack.c.b16 %v3678, %v3677
        %v3690 = vpack.c.b16 %v3680, %v3679
        %v3691 = vpack.c.b16 %v3682, %v3681
        %v3692 = vpack.c.b16 %v3684, %v3683
        %3701 = vmatpush.bf16.msra.mxu0 %v3692
        %3702 = vmatpush.bf16.msra.mxu0 %v3691
        %3703 = vmatpush.bf16.msra.mxu0 %v3690
        %3704 = vmatpush.bf16.msra.mxu0 %v3689
        %3705 = vmatpush.bf16.msra.mxu0 %v3688
        %3706 = vmatpush.bf16.msra.mxu0 %v3687
        %3707 = vmatpush.bf16.msra.mxu0 %v3686
        %3708 = vmatpush.bf16.msra.mxu0 %v3685
        %3709 = vmatmul.bf16.gmra.mxu0 %v3645
        %v3710 = vpop.f32.mrf.mxu0
        %v3711 = vadd.f32 0.0, %v3710
        %v3712 = vpop.f32.mrf.mxu0
        %v3713 = vadd.f32 0.0, %v3712
        %3714 = vmatmul.bf16.gmra.mxu0 %v3646
        %v3715 = vpop.f32.mrf.mxu0
        %v3716 = vadd.f32 0.0, %v3715
        %v3717 = vpop.f32.mrf.mxu0
        %v3718 = vadd.f32 0.0, %v3717
        %3719 = vmatmul.bf16.gmra.mxu0 %v3647
        %v3720 = vpop.f32.mrf.mxu0
        %v3721 = vadd.f32 0.0, %v3720
        %v3722 = vpop.f32.mrf.mxu0
        %v3723 = vadd.f32 0.0, %v3722
        %3724 = vmatmul.bf16.gmra.mxu0 %v3648
        %v3725 = vpop.f32.mrf.mxu0
        %v3726 = vadd.f32 0.0, %v3725
        %v3727 = vpop.f32.mrf.mxu0
        %v3728 = vadd.f32 0.0, %v3727
        %3729 = vdwg.mxu0
        %v3730 = vadd.f32 %v3484, %v3711
        %v3731 = vadd.f32 %v3485, %v3713
        %v3732 = vadd.f32 %v3486, %v3716
        %v3733 = vadd.f32 %v3487, %v3718
        %v3734 = vadd.f32 %v3488, %v3721
        %v3735 = vadd.f32 %v3489, %v3723
        %v3736 = vadd.f32 %v3490, %v3726
        %v3737 = vadd.f32 %v3491, %v3728
        %v3738 = vmax.f32 %v3730, 0.0
        %v3739 = vmax.f32 %v3731, 0.0
        %v3740 = vmax.f32 %v3732, 0.0
        %v3741 = vmax.f32 %v3733, 0.0
        %v3742 = vmax.f32 %v3734, 0.0
        %v3743 = vmax.f32 %v3735, 0.0
        %v3744 = vmax.f32 %v3736, 0.0
        %v3745 = vmax.f32 %v3737, 0.0
        %v3746 = vpack.c.bf16 %v3738, %v3738
        %v3747 = vpack.c.bf16 %v3739, %v3739
        %v3748 = vpack.c.bf16 %v3740, %v3740
        %v3749 = vpack.c.bf16 %v3741, %v3741
        %v3750 = vpack.c.bf16 %v3742, %v3742
        %v3751 = vpack.c.bf16 %v3743, %v3743
        %v3752 = vpack.c.bf16 %v3744, %v3744
        %v3753 = vpack.c.bf16 %v3745, %v3745
        %3754 = vst [vmem:[%s540] sm:$0xf] %v3746
        %3755 = vst [vmem:[%s540 + $0x4] sm:$0xf] %v3747
        %3756 = vst [vmem:[%s540 + $0x8] sm:$0xf] %v3748
        %3757 = vst [vmem:[%s540 + $0xc] sm:$0xf] %v3749
        %3758 = vst [vmem:[%s540 + $0x10] sm:$0xf] %v3750
        %3759 = vst [vmem:[%s540 + $0x14] sm:$0xf] %v3751
        %3760 = vst [vmem:[%s540 + $0x18] sm:$0xf] %v3752
        %3761 = vst [vmem:[%s540 + $0x1c] sm:$0xf] %v3753
        %p3762 = scmp.lt.s32.totalorder %s18, 1
        %s3763 = scalar_select %p3762, %s18, 1
        %p3764 = scmp.lt.s32.totalorder %s17, 0
        %s3765 = scalar_select %p3764, %s17, 0
        %s3766 = smul.addr %s3763, 8
        %s3767 = sadd.s32 %s3765, %s3766
        %s3768 = smul.addr %s3767, 4
        %s3769 = scalar_lea.vmem %s2, %s3768
        // Predicated region
        $region70: #{unet_innermost_forward.3} parent=64 // pred_check
          %p3770 = pneg %p97
        $region71: #{unet_innermost_forward.3} parent=64 // pred_check_branch
          %3772 = sbr.rel (%p3770) target = $region73
        $region72: #{unet_innermost_forward.3} parent=64 // pred_region
          _
        $region73: #{unet_innermost_forward.3} parent=64 // pred_fallthru
          _
      $region65: #{unet_innermost_forward.3} parent=5 // pred_fallthru
        _
      %p3773 = scmp.le.s32.totalorder 2, %s8
      // Predicated region
      $region74: #{unet_innermost_forward.3} parent=5 // pred_check
        %p3774 = pneg %p3773
      $region75: #{unet_innermost_forward.3} parent=5 // pred_check_branch
        %3776 = sbr.rel (%p3774) target = $region77
      $region76: #{unet_innermost_forward.3} parent=5 // pred_region
        %s3777 = ssub.s32 %s8, 2
        // Predicated region
        $region78: #{unet_innermost_forward.3} parent=76 // pred_check
          %p3778 = pneg %p103
        $region79: #{unet_innermost_forward.3} parent=76 // pred_check_branch
          %3780 = sbr.rel (%p3778) target = $region81
        $region80: #{unet_innermost_forward.3} parent=76 // pred_region
          %p3781 = scmp.lt.s32.totalorder %s20, 1
          %s3782 = scalar_select %p3781, %s20, 1
          %p3783 = scmp.lt.s32.totalorder %s19, 0
          %s3784 = scalar_select %p3783, %s19, 0
          %s3785 = smul.addr %s3782, 8
          %s3786 = sadd.s32 %s3784, %s3785
          %s3787 = smul.addr %s3786, 4
          %s3788 = scalar_lea.vmem %s2, %s3787
        $region81: #{unet_innermost_forward.3} parent=76 // pred_fallthru
          _
      $region77: #{unet_innermost_forward.3} parent=5 // pred_fallthru
        _
    $region6: #{unet_innermost_forward.3} parent=1 // loop_footer
      %s12 = sadd.s32 1, %s8
    $region7: #{unet_innermost_forward.3} parent=1 // loop_footer_branch
      %7 = sbr.rel target = $region3
    $region8: #{unet_innermost_forward.3} parent=1 // loop_exit
      _

// kernel: unet_innermost_forward.4
$region0: #{unet_innermost_forward.4}
  #allocation0 [shape = 'u32[]', space=smem, size = 0x4, offset = 0x4, fixed_abs, tag = 'smem constant byte address 0x4 - core index']
  #allocation1 [shape = 'u32[72,128]{1,0:T(1,128)}', space=vmem, size = 0x9000, scoped, tag = 'internal scratch']
  %s0 = inlined_call_operand.vmem [shape: bf16[2,10,10,128], index: 0, kind: input, shape index: {}]
  %s1 = inlined_call_operand.vmem [shape: bf16[4,4,128,128], index: 1, kind: input, shape index: {}]
  %s2 = inlined_call_operand.vmem [shape: bf16[4,2,64,128], index: 2, kind: output, shape index: {0}]
  %s3 = inlined_call_operand.vmem [shape: f32[2,2,128], index: 3, kind: output, shape index: {1}]
  %4 = xla_tuple %s2, %s3
  %s5 = sld [smem:[#allocation0]]
  $region86: #{unet_innermost_forward.4} parent=0
    _
  %s7 = ssub.s32 1, %s5
  %s8 = scalar_select 0, %s7, %s5
  $region1: #{unet_innermost_forward.4} parent=0
    #allocation2 [shape = 'u8[131072]{0}', space=vmem, size = 0x20000, scoped, tag = 'output window, operand 0']
    loop: start=0, step=1, limit=4
    $region2: #{unet_innermost_forward.4} parent=1 // loop_pre_header
      _
    $region3: #{unet_innermost_forward.4} parent=1 // loop_header
      %s10 = sphi 0, %s14
      %p11 = scmp.ge.s32.totalorder %s10, 4
      %s17 = sphi 0, %s29
      %s18 = sphi 0, %s25
      %s19 = sphi 0, %s17
      %s20 = sphi 0, %s18
      %s21 = sphi 0, %s19
      %s22 = sphi 0, %s20
      %s32 = sphi 0, %s34
      %s35 = sphi 0, %s32
      %s36 = sphi 0, %s35
      %s52 = sphi 0, %s36
      %s58 = sphi 0, %s60
      %s61 = sphi 0, %s58
      %s62 = sphi 0, %s61
      %s78 = sphi 0, %s62
      %s86 = sphi 0, %s88
      %s89 = sphi 0, %s86
      %s90 = sphi 0, %s89
      %s106 = sphi 0, %s90
      %s114 = sphi 0, %s116
      %s117 = sphi 0, %s114
      %s118 = sphi 0, %s117
      %s134 = sphi 0, %s118
    $region4: #{unet_innermost_forward.4} parent=1 // loop_header_branch
      %13 = sbr.rel (%p11) target = $region8
    $region5: #{unet_innermost_forward.4} parent=1 // loop_body
      %s15 = ssub.s32 %s10, 1
      %s16 = ssub.s32 %s10, 2
      %s23 = sadd.s32 1, %s18
      %p24 = scmp.ge.s32.totalorder %s23, 2
      %s25 = scalar_select %p24, 0, %s23
      %s26 = sadd.s32 1, %s17
      %s27 = scalar_select %p24, %s26, %s17
      %p28 = scmp.ge.s32.totalorder %s27, 1
      %s29 = scalar_select %p28, 0, %s27
      %s30 = ssub.s32 %s18, %s25
      %p31 = scmp.eq.s32.totalorder %s30, 0
      %s33 = sadd.s32 %s32, 1
      %s34 = scalar_select %p31, %s32, %s33
      %p37 = pneg %p31
      %p38 = scmp.eq.s32.totalorder %s10, 1
      %p39 = por %p37, %p38
      %p40 = scmp.ne.s32.totalorder %s32, %s35
      %p41 = scmp.eq.s32.totalorder %s10, 0
      %p42 = por %p40, %p41
      %p43 = scmp.ne.s32.totalorder %s32, %s35
      %p44 = scmp.eq.s32.totalorder %s15, 1
      %p45 = por %p43, %p44
      %p46 = scmp.ne.s32.totalorder %s35, %s36
      %p47 = scmp.eq.s32.totalorder %s15, 0
      %p48 = por %p46, %p47
      %p49 = scmp.ne.s32.totalorder %s35, %s36
      %p50 = scmp.eq.s32.totalorder %s16, 1
      %p51 = por %p49, %p50
      %p53 = scmp.ne.s32.totalorder %s36, %s52
      %p54 = scmp.eq.s32.totalorder %s16, 0
      %p55 = por %p53, %p54
      %s56 = ssub.s32 %s17, %s29
      %p57 = scmp.eq.s32.totalorder %s56, 0
      %s59 = sadd.s32 %s58, 1
      %s60 = scalar_select %p57, %s58, %s59
      %p63 = pneg %p57
      %p64 = scmp.eq.s32.totalorder %s10, 1
      %p65 = por %p63, %p64
      %p66 = scmp.ne.s32.totalorder %s58, %s61
      %p67 = scmp.eq.s32.totalorder %s10, 0
      %p68 = por %p66, %p67
      %p69 = scmp.ne.s32.totalorder %s58, %s61
      %p70 = scmp.eq.s32.totalorder %s15, 1
      %p71 = por %p69, %p70
      %p72 = scmp.ne.s32.totalorder %s61, %s62
      %p73 = scmp.eq.s32.totalorder %s15, 0
      %p74 = por %p72, %p73
      %p75 = scmp.ne.s32.totalorder %s61, %s62
      %p76 = scmp.eq.s32.totalorder %s16, 1
      %p77 = por %p75, %p76
      %p79 = scmp.ne.s32.totalorder %s62, %s78
      %p80 = scmp.eq.s32.totalorder %s16, 0
      %p81 = por %p79, %p80
      %s82 = ssub.s32 %s18, %s25
      %s83 = ssub.s32 %s17, %s29
      %s84 = sor.u32 %s82, %s83
      %p85 = scmp.eq.s32.totalorder %s84, 0
      %s87 = sadd.s32 %s86, 1
      %s88 = scalar_select %p85, %s86, %s87
      %p91 = pneg %p85
      %p92 = scmp.eq.s32.totalorder %s10, 1
      %p93 = por %p91, %p92
      %p94 = scmp.ne.s32.totalorder %s86, %s89
      %p95 = scmp.eq.s32.totalorder %s10, 0
      %p96 = por %p94, %p95
      %p97 = scmp.ne.s32.totalorder %s86, %s89
      %p98 = scmp.eq.s32.totalorder %s15, 1
      %p99 = por %p97, %p98
      %p100 = scmp.ne.s32.totalorder %s89, %s90
      %p101 = scmp.eq.s32.totalorder %s15, 0
      %p102 = por %p100, %p101
      %p103 = scmp.ne.s32.totalorder %s89, %s90
      %p104 = scmp.eq.s32.totalorder %s16, 1
      %p105 = por %p103, %p104
      %p107 = scmp.ne.s32.totalorder %s90, %s106
      %p108 = scmp.eq.s32.totalorder %s16, 0
      %p109 = por %p107, %p108
      %s110 = ssub.s32 %s18, %s25
      %s111 = ssub.s32 %s17, %s29
      %s112 = sor.u32 %s110, %s111
      %p113 = scmp.eq.s32.totalorder %s112, 0
      %s115 = sadd.s32 %s114, 1
      %s116 = scalar_select %p113, %s114, %s115
      %p119 = pneg %p113
      %p120 = scmp.eq.s32.totalorder %s10, 1
      %p121 = por %p119, %p120
      %p122 = scmp.ne.s32.totalorder %s114, %s117
      %p123 = scmp.eq.s32.totalorder %s10, 0
      %p124 = por %p122, %p123
      %p125 = scmp.ne.s32.totalorder %s114, %s117
      %p126 = scmp.eq.s32.totalorder %s15, 1
      %p127 = por %p125, %p126
      %p128 = scmp.ne.s32.totalorder %s117, %s118
      %p129 = scmp.eq.s32.totalorder %s15, 0
      %p130 = por %p128, %p129
      %p131 = scmp.ne.s32.totalorder %s117, %s118
      %p132 = scmp.eq.s32.totalorder %s16, 1
      %p133 = por %p131, %p132
      %p135 = scmp.ne.s32.totalorder %s118, %s134
      %p136 = scmp.eq.s32.totalorder %s16, 0
      %p137 = por %p135, %p136
      %p138 = scmp.le.s32.totalorder 1, %s10
      %p139 = scmp.lt.s32.totalorder %s10, 3
      %p140 = pnand %p138, %p139
      %p141 = pneg %p140
      // Predicated region
      $region9: #{unet_innermost_forward.4} parent=5 // pred_check
        _
      $region10: #{unet_innermost_forward.4} parent=5 // pred_check_branch
        %143 = sbr.rel (%p140) target = $region12
      $region11: #{unet_innermost_forward.4} parent=5 // pred_region
        %s144 = ssub.s32 %s10, 1
        // Predicated region
        $region13: #{unet_innermost_forward.4} parent=11 // pred_check
          %p145 = pneg %p74
        $region14: #{unet_innermost_forward.4} parent=11 // pred_check_branch
          %147 = sbr.rel (%p145) target = $region16
        $region15: #{unet_innermost_forward.4} parent=11 // pred_region
          %p148 = scmp.lt.s32.totalorder %s19, 0
          %s149 = scalar_select %p148, %s19, 0
          %s150 = smul.addr %s149, 4
          %s151 = scalar_lea.vmem %s1, %s150
        $region16: #{unet_innermost_forward.4} parent=11 // pred_fallthru
          _
      $region12: #{unet_innermost_forward.4} parent=5 // pred_fallthru
        _
      %p152 = scmp.lt.s32.totalorder %s10, 2
      // Predicated region
      $region17: #{unet_innermost_forward.4} parent=5 // pred_check
        %p153 = pneg %p152
      $region18: #{unet_innermost_forward.4} parent=5 // pred_check_branch
        %155 = sbr.rel (%p153) target = $region20
      $region19: #{unet_innermost_forward.4} parent=5 // pred_region
        // Predicated region
        $region21: #{unet_innermost_forward.4} parent=19 // pred_check
          %p156 = pneg %p42
        $region22: #{unet_innermost_forward.4} parent=19 // pred_check_branch
          %158 = sbr.rel (%p156) target = $region24
        $region23: #{unet_innermost_forward.4} parent=19 // pred_region
          %p159 = scmp.lt.s32.totalorder %s18, 1
          %s160 = scalar_select %p159, %s18, 1
          %s161 = smul.addr %s160, 20
          %s162 = smul.addr %s161, 4
          %s163 = scalar_lea.vmem %s0, %s162
        $region24: #{unet_innermost_forward.4} parent=19 // pred_fallthru
          _
      $region20: #{unet_innermost_forward.4} parent=5 // pred_fallthru
        _
      %p164 = scmp.le.s32.totalorder 1, %s10
      %p165 = scmp.lt.s32.totalorder %s10, 3
      %p166 = pnand %p164, %p165
      %p167 = pneg %p166
      // Predicated region
      $region25: #{unet_innermost_forward.4} parent=5 // pred_check
        _
      $region26: #{unet_innermost_forward.4} parent=5 // pred_check_branch
        %169 = sbr.rel (%p166) target = $region28
      $region27: #{unet_innermost_forward.4} parent=5 // pred_region
        %s170 = ssub.s32 %s10, 1
        %p171 = scmp.lt.s32.totalorder %s20, 1
        %s172 = scalar_select %p171, %s20, 1
        %s173 = smul.addr %s172, 20
        %s174 = smul.addr %s173, 4
        %s175 = scalar_lea.vmem %s0, %s174
        %p176 = pneg %p48
        %p177 = pneg %p45
        %p178 = scmp.lt.s32.totalorder %s19, 0
        %s179 = scalar_select %p178, %s19, 0
        %s180 = smul.addr %s179, 4
        %s181 = scalar_lea.vmem %s1, %s180
        %p182 = pneg %p74
        %p183 = pneg %p71
        %p184 = pneg %p102
        %p185 = pneg %p99
        %s186 = sand.u32 %s89, 1
        %s187 = sand.u32 %s89, 1
        %s188 = smul.addr %s187, 128
        %s189 = scalar_lea.vmem [#allocation2], %s188
        %p190 = pneg %p130
        %p191 = pneg %p127
        %p192 = scmp.lt.s32.totalorder %s20, 1
        %s193 = scalar_select %p192, %s20, 1
        %p194 = scmp.lt.s32.totalorder %s19, 0
        %s195 = scalar_select %p194, %s19, 0
        %s196 = sadd.s32 %s195, %s193
        %s197 = smul.addr %s196, 2
        %s198 = scalar_lea.vmem %s3, %s197
        %p199 = scmp.lt.s32.totalorder %s20, 1
        %s200 = scalar_select %p199, %s20, 1
        %s201 = smul.addr %s200, 20
        %s202 = smul.addr %s201, 4
        %s203 = scalar_lea.vmem %s0, %s202
        %p204 = scmp.lt.s32.totalorder %s19, 0
        %s205 = scalar_select %p204, %s19, 0
        %s206 = smul.addr %s205, 4
        %s207 = scalar_lea.vmem %s1, %s206
        %p208 = scmp.lt.s32.totalorder %s20, 1
        %s209 = scalar_select %p208, %s20, 1
        %p210 = scmp.lt.s32.totalorder %s19, 0
        %s211 = scalar_select %p210, %s19, 0
        %s212 = sadd.s32 %s211, %s209
        %s213 = smul.addr %s212, 2
        %s214 = scalar_lea.vmem %s3, %s213
        %v215 = vld [vmem:[%s203] sm:$0xf]
        %v216 = vld [vmem:[%s203 + $0x8] sm:$0xf]
        %v217 = vld [vmem:[%s203 + $0x10] sm:$0xf]
        %v218 = vld [vmem:[%s203 + $0x18] sm:$0xf]
        %v219 = vld [vmem:[%s203 + $0x20] sm:$0xf]
        %v220 = vld [vmem:[%s203 + $0x28] sm:$0xf]
        %v221 = vld [vmem:[%s203 + $0x30] sm:$0xf]
        %v222 = vld [vmem:[%s203 + $0x38] sm:$0xf]
        %v223 = vld [vmem:[%s207] sm:$0xf]
        %v224 = vld [vmem:[%s207 + $0x4] sm:$0xf]
        %v225 = vld [vmem:[%s207 + $0x8] sm:$0xf]
        %v226 = vld [vmem:[%s207 + $0xc] sm:$0xf]
        %v227 = vld [vmem:[%s207 + $0x10] sm:$0xf]
        %v228 = vld [vmem:[%s207 + $0x14] sm:$0xf]
        %v229 = vld [vmem:[%s207 + $0x18] sm:$0xf]
        %v230 = vld [vmem:[%s207 + $0x1c] sm:$0xf]
        %v231 = vld [vmem:[%s207 + $0x20] sm:$0xf]
        %v232 = vld [vmem:[%s207 + $0x24] sm:$0xf]
        %v233 = vld [vmem:[%s207 + $0x28] sm:$0xf]
        %v234 = vld [vmem:[%s207 + $0x2c] sm:$0xf]
        %v235 = vld [vmem:[%s207 + $0x30] sm:$0xf]
        %v236 = vld [vmem:[%s207 + $0x34] sm:$0xf]
        %v237 = vld [vmem:[%s207 + $0x38] sm:$0xf]
        %v238 = vld [vmem:[%s207 + $0x3c] sm:$0xf]
        %v239 = vld [vmem:[%s203 + $0x4] sm:$0x1]
        %v240 = vld [vmem:[%s203 + $0xc] sm:$0x1]
        %v241 = vld [vmem:[%s203 + $0x14] sm:$0x1]
        %v242 = vld [vmem:[%s203 + $0x1c] sm:$0x1]
        %v243 = vld [vmem:[%s203 + $0x24] sm:$0x1]
        %v244 = vld [vmem:[%s203 + $0x2c] sm:$0x1]
        %v245 = vld [vmem:[%s203 + $0x34] sm:$0x1]
        %v246 = vld [vmem:[%s203 + $0x3c] sm:$0x1]
        %vm247 = vsmask.f32 3328
        %vm248 = vsmask.f32 7440
        %vm249 = vmor %vm247, %vm248
        %v251 = vshrl.u32 %v215, 16
        %v253 = vrot.slane %v251, 4
        %v254 = vshll.u32 %v215, 16
        %v256 = vrot.slane %v254, 5
        %v257 = vor.u32 %v253, %v256
        %v258 = vrot.slane %v257, 4
        %v260 = vshll.u32 %v239, 16
        %v262 = vrot.slane %v260, 5
        %v263 = vsel %vm249, %v258, %v262
        %v265 = vshrl.u32 %v216, 16
        %v267 = vrot.slane %v265, 4
        %v268 = vshll.u32 %v216, 16
        %v270 = vrot.slane %v268, 5
        %v271 = vor.u32 %v267, %v270
        %v272 = vrot.slane %v271, 4
        %v274 = vshll.u32 %v240, 16
        %v276 = vrot.slane %v274, 5
        %v277 = vsel %vm249, %v272, %v276
        %v279 = vshrl.u32 %v217, 16
        %v281 = vrot.slane %v279, 4
        %v282 = vshll.u32 %v217, 16
        %v284 = vrot.slane %v282, 5
        %v285 = vor.u32 %v281, %v284
        %v286 = vrot.slane %v285, 4
        %v288 = vshll.u32 %v241, 16
        %v290 = vrot.slane %v288, 5
        %v291 = vsel %vm249, %v286, %v290
        %v293 = vshrl.u32 %v218, 16
        %v295 = vrot.slane %v293, 4
        %v296 = vshll.u32 %v218, 16
        %v298 = vrot.slane %v296, 5
        %v299 = vor.u32 %v295, %v298
        %v300 = vrot.slane %v299, 4
        %v302 = vshll.u32 %v242, 16
        %v304 = vrot.slane %v302, 5
        %v305 = vsel %vm249, %v300, %v304
        %v307 = vshrl.u32 %v219, 16
        %v309 = vrot.slane %v307, 4
        %v310 = vshll.u32 %v219, 16
        %v312 = vrot.slane %v310, 5
        %v313 = vor.u32 %v309, %v312
        %v314 = vrot.slane %v313, 4
        %v316 = vshll.u32 %v243, 16
        %v318 = vrot.slane %v316, 5
        %v319 = vsel %vm249, %v314, %v318
        %v321 = vshrl.u32 %v220, 16
        %v323 = vrot.slane %v321, 4
        %v324 = vshll.u32 %v220, 16
        %v326 = vrot.slane %v324, 5
        %v327 = vor.u32 %v323, %v326
        %v328 = vrot.slane %v327, 4
        %v330 = vshll.u32 %v244, 16
        %v332 = vrot.slane %v330, 5
        %v333 = vsel %vm249, %v328, %v332
        %v335 = vshrl.u32 %v221, 16
        %v337 = vrot.slane %v335, 4
        %v338 = vshll.u32 %v221, 16
        %v340 = vrot.slane %v338, 5
        %v341 = vor.u32 %v337, %v340
        %v342 = vrot.slane %v341, 4
        %v344 = vshll.u32 %v245, 16
        %v346 = vrot.slane %v344, 5
        %v347 = vsel %vm249, %v342, %v346
        %v349 = vshrl.u32 %v222, 16
        %v351 = vrot.slane %v349, 4
        %v352 = vshll.u32 %v222, 16
        %v354 = vrot.slane %v352, 5
        %v355 = vor.u32 %v351, %v354
        %v356 = vrot.slane %v355, 4
        %v358 = vshll.u32 %v246, 16
        %v360 = vrot.slane %v358, 5
        %v361 = vsel %vm249, %v356, %v360
        %s362 = scalar_lea.vmem %s207, 64
        %v363 = vld [vmem:[%s362] sm:$0xf]
        %v364 = vld [vmem:[%s362 + $0x4] sm:$0xf]
        %v365 = vld [vmem:[%s362 + $0x8] sm:$0xf]
        %v366 = vld [vmem:[%s362 + $0xc] sm:$0xf]
        %v367 = vld [vmem:[%s362 + $0x10] sm:$0xf]
        %v368 = vld [vmem:[%s362 + $0x14] sm:$0xf]
        %v369 = vld [vmem:[%s362 + $0x18] sm:$0xf]
        %v370 = vld [vmem:[%s362 + $0x1c] sm:$0xf]
        %v371 = vld [vmem:[%s362 + $0x20] sm:$0xf]
        %v372 = vld [vmem:[%s362 + $0x24] sm:$0xf]
        %v373 = vld [vmem:[%s362 + $0x28] sm:$0xf]
        %v374 = vld [vmem:[%s362 + $0x2c] sm:$0xf]
        %v375 = vld [vmem:[%s362 + $0x30] sm:$0xf]
        %v376 = vld [vmem:[%s362 + $0x34] sm:$0xf]
        %v377 = vld [vmem:[%s362 + $0x38] sm:$0xf]
        %v378 = vld [vmem:[%s362 + $0x3c] sm:$0xf]
        %v379 = vunpack.c.l.b16 %v263
        %v380 = vunpack.c.l.b16 %v277
        %v381 = vunpack.c.l.b16 %v291
        %v382 = vunpack.c.l.b16 %v305
        %v383 = vunpack.c.l.b16 %v319
        %v384 = vunpack.c.l.b16 %v333
        %v385 = vunpack.c.l.b16 %v347
        %v386 = vunpack.c.l.b16 %v361
        %v387 = vpack.c.b16 %v380, %v379
        %v388 = vpack.c.b16 %v382, %v381
        %v389 = vpack.c.b16 %v384, %v383
        %v390 = vpack.c.b16 %v386, %v385
        %v411 = vunpack.c.l.b16 %v363
        %v412 = vunpack.c.l.b16 %v364
        %v413 = vunpack.c.l.b16 %v365
        %v414 = vunpack.c.l.b16 %v366
        %v415 = vunpack.c.l.b16 %v367
        %v416 = vunpack.c.l.b16 %v368
        %v417 = vunpack.c.l.b16 %v369
        %v418 = vunpack.c.l.b16 %v370
        %v419 = vunpack.c.l.b16 %v371
        %v420 = vunpack.c.l.b16 %v372
        %v421 = vunpack.c.l.b16 %v373
        %v422 = vunpack.c.l.b16 %v374
        %v423 = vunpack.c.l.b16 %v375
        %v424 = vunpack.c.l.b16 %v376
        %v425 = vunpack.c.l.b16 %v377
        %v426 = vunpack.c.l.b16 %v378
        %v427 = vpack.c.b16 %v412, %v411
        %v428 = vpack.c.b16 %v414, %v413
        %v429 = vpack.c.b16 %v416, %v415
        %v430 = vpack.c.b16 %v418, %v417
        %v431 = vpack.c.b16 %v420, %v419
        %v432 = vpack.c.b16 %v422, %v421
        %v433 = vpack.c.b16 %v424, %v423
        %v434 = vpack.c.b16 %v426, %v425
        %443 = vmatpush.bf16.msra.mxu0 %v434
        %444 = vmatpush.bf16.msra.mxu0 %v433
        %445 = vmatpush.bf16.msra.mxu0 %v432
        %446 = vmatpush.bf16.msra.mxu0 %v431
        %447 = vmatpush.bf16.msra.mxu0 %v430
        %448 = vmatpush.bf16.msra.mxu0 %v429
        %449 = vmatpush.bf16.msra.mxu0 %v428
        %450 = vmatpush.bf16.msra.mxu0 %v427
        %451 = vmatmul.bf16.gmra.mxu0 %v387
        %v452 = vpop.f32.mrf.mxu0
        %v453 = vadd.f32 0.0, %v452
        %v454 = vpop.f32.mrf.mxu0
        %v455 = vadd.f32 0.0, %v454
        %456 = vmatmul.bf16.gmra.mxu0 %v388
        %v457 = vpop.f32.mrf.mxu0
        %v458 = vadd.f32 0.0, %v457
        %v459 = vpop.f32.mrf.mxu0
        %v460 = vadd.f32 0.0, %v459
        %461 = vmatmul.bf16.gmra.mxu0 %v389
        %v462 = vpop.f32.mrf.mxu0
        %v463 = vadd.f32 0.0, %v462
        %v464 = vpop.f32.mrf.mxu0
        %v465 = vadd.f32 0.0, %v464
        %466 = vmatmul.bf16.gmra.mxu0 %v390
        %v467 = vpop.f32.mrf.mxu0
        %v468 = vadd.f32 0.0, %v467
        %v469 = vpop.f32.mrf.mxu0
        %v470 = vadd.f32 0.0, %v469
        %471 = vdwg.mxu0
        %v480 = vunpack.c.l.b16 %v215
        %v481 = vunpack.c.l.b16 %v216
        %v482 = vunpack.c.l.b16 %v217
        %v483 = vunpack.c.l.b16 %v218
        %v484 = vunpack.c.l.b16 %v219
        %v485 = vunpack.c.l.b16 %v220
        %v486 = vunpack.c.l.b16 %v221
        %v487 = vunpack.c.l.b16 %v222
        %v488 = vpack.c.b16 %v481, %v480
        %v489 = vpack.c.b16 %v483, %v482
        %v490 = vpack.c.b16 %v485, %v484
        %v491 = vpack.c.b16 %v487, %v486
        %v512 = vunpack.c.l.b16 %v223
        %v513 = vunpack.c.l.b16 %v224
        %v514 = vunpack.c.l.b16 %v225
        %v515 = vunpack.c.l.b16 %v226
        %v516 = vunpack.c.l.b16 %v227
        %v517 = vunpack.c.l.b16 %v228
        %v518 = vunpack.c.l.b16 %v229
        %v519 = vunpack.c.l.b16 %v230
        %v520 = vunpack.c.l.b16 %v231
        %v521 = vunpack.c.l.b16 %v232
        %v522 = vunpack.c.l.b16 %v233
        %v523 = vunpack.c.l.b16 %v234
        %v524 = vunpack.c.l.b16 %v235
        %v525 = vunpack.c.l.b16 %v236
        %v526 = vunpack.c.l.b16 %v237
        %v527 = vunpack.c.l.b16 %v238
        %v528 = vpack.c.b16 %v513, %v512
        %v529 = vpack.c.b16 %v515, %v514
        %v530 = vpack.c.b16 %v517, %v516
        %v531 = vpack.c.b16 %v519, %v518
        %v532 = vpack.c.b16 %v521, %v520
        %v533 = vpack.c.b16 %v523, %v522
        %v534 = vpack.c.b16 %v525, %v524
        %v535 = vpack.c.b16 %v527, %v526
        %544 = vmatpush.bf16.msra.mxu0 %v535
        %545 = vmatpush.bf16.msra.mxu0 %v534
        %546 = vmatpush.bf16.msra.mxu0 %v533
        %547 = vmatpush.bf16.msra.mxu0 %v532
        %548 = vmatpush.bf16.msra.mxu0 %v531
        %549 = vmatpush.bf16.msra.mxu0 %v530
        %550 = vmatpush.bf16.msra.mxu0 %v529
        %551 = vmatpush.bf16.msra.mxu0 %v528
        %552 = vmatmul.bf16.gmra.mxu0 %v488
        %v553 = vpop.f32.mrf.mxu0
        %v554 = vadd.f32 %v453, %v553
        %v555 = vpop.f32.mrf.mxu0
        %v556 = vadd.f32 %v455, %v555
        %557 = vmatmul.bf16.gmra.mxu0 %v489
        %v558 = vpop.f32.mrf.mxu0
        %v559 = vadd.f32 %v458, %v558
        %v560 = vpop.f32.mrf.mxu0
        %v561 = vadd.f32 %v460, %v560
        %562 = vmatmul.bf16.gmra.mxu0 %v490
        %v563 = vpop.f32.mrf.mxu0
        %v564 = vadd.f32 %v463, %v563
        %v565 = vpop.f32.mrf.mxu0
        %v566 = vadd.f32 %v465, %v565
        %567 = vmatmul.bf16.gmra.mxu0 %v491
        %v568 = vpop.f32.mrf.mxu0
        %v569 = vadd.f32 %v468, %v568
        %v570 = vpop.f32.mrf.mxu0
        %v571 = vadd.f32 %v470, %v570
        %572 = vdwg.mxu0
        %s573 = scalar_lea.vmem %s203, 8
        %v574 = vld [vmem:[%s573] sm:$0xf]
        %v575 = vld [vmem:[%s573 + $0x8] sm:$0xf]
        %v576 = vld [vmem:[%s573 + $0x10] sm:$0xf]
        %v577 = vld [vmem:[%s573 + $0x18] sm:$0xf]
        %v578 = vld [vmem:[%s573 + $0x20] sm:$0xf]
        %v579 = vld [vmem:[%s573 + $0x28] sm:$0xf]
        %v580 = vld [vmem:[%s573 + $0x30] sm:$0xf]
        %v581 = vld [vmem:[%s573 + $0x38] sm:$0xf]
        %s582 = scalar_lea.vmem %s207, 128
        %v583 = vld [vmem:[%s582] sm:$0xf]
        %v584 = vld [vmem:[%s582 + $0x4] sm:$0xf]
        %v585 = vld [vmem:[%s582 + $0x8] sm:$0xf]
        %v586 = vld [vmem:[%s582 + $0xc] sm:$0xf]
        %v587 = vld [vmem:[%s582 + $0x10] sm:$0xf]
        %v588 = vld [vmem:[%s582 + $0x14] sm:$0xf]
        %v589 = vld [vmem:[%s582 + $0x18] sm:$0xf]
        %v590 = vld [vmem:[%s582 + $0x1c] sm:$0xf]
        %v591 = vld [vmem:[%s582 + $0x20] sm:$0xf]
        %v592 = vld [vmem:[%s582 + $0x24] sm:$0xf]
        %v593 = vld [vmem:[%s582 + $0x28] sm:$0xf]
        %v594 = vld [vmem:[%s582 + $0x2c] sm:$0xf]
        %v595 = vld [vmem:[%s582 + $0x30] sm:$0xf]
        %v596 = vld [vmem:[%s582 + $0x34] sm:$0xf]
        %v597 = vld [vmem:[%s582 + $0x38] sm:$0xf]
        %v598 = vld [vmem:[%s582 + $0x3c] sm:$0xf]
        %v607 = vunpack.c.l.b16 %v574
        %v608 = vunpack.c.l.b16 %v575
        %v609 = vunpack.c.l.b16 %v576
        %v610 = vunpack.c.l.b16 %v577
        %v611 = vunpack.c.l.b16 %v578
        %v612 = vunpack.c.l.b16 %v579
        %v613 = vunpack.c.l.b16 %v580
        %v614 = vunpack.c.l.b16 %v581
        %v615 = vpack.c.b16 %v608, %v607
        %v616 = vpack.c.b16 %v610, %v609
        %v617 = vpack.c.b16 %v612, %v611
        %v618 = vpack.c.b16 %v614, %v613
        %v639 = vunpack.c.l.b16 %v583
        %v640 = vunpack.c.l.b16 %v584
        %v641 = vunpack.c.l.b16 %v585
        %v642 = vunpack.c.l.b16 %v586
        %v643 = vunpack.c.l.b16 %v587
        %v644 = vunpack.c.l.b16 %v588
        %v645 = vunpack.c.l.b16 %v589
        %v646 = vunpack.c.l.b16 %v590
        %v647 = vunpack.c.l.b16 %v591
        %v648 = vunpack.c.l.b16 %v592
        %v649 = vunpack.c.l.b16 %v593
        %v650 = vunpack.c.l.b16 %v594
        %v651 = vunpack.c.l.b16 %v595
        %v652 = vunpack.c.l.b16 %v596
        %v653 = vunpack.c.l.b16 %v597
        %v654 = vunpack.c.l.b16 %v598
        %v655 = vpack.c.b16 %v640, %v639
        %v656 = vpack.c.b16 %v642, %v641
        %v657 = vpack.c.b16 %v644, %v643
        %v658 = vpack.c.b16 %v646, %v645
        %v659 = vpack.c.b16 %v648, %v647
        %v660 = vpack.c.b16 %v650, %v649
        %v661 = vpack.c.b16 %v652, %v651
        %v662 = vpack.c.b16 %v654, %v653
        %671 = vmatpush.bf16.msra.mxu0 %v662
        %672 = vmatpush.bf16.msra.mxu0 %v661
        %673 = vmatpush.bf16.msra.mxu0 %v660
        %674 = vmatpush.bf16.msra.mxu0 %v659
        %675 = vmatpush.bf16.msra.mxu0 %v658
        %676 = vmatpush.bf16.msra.mxu0 %v657
        %677 = vmatpush.bf16.msra.mxu0 %v656
        %678 = vmatpush.bf16.msra.mxu0 %v655
        %679 = vmatmul.bf16.gmra.mxu0 %v615
        %v680 = vpop.f32.mrf.mxu0
        %v681 = vadd.f32 0.0, %v680
        %v682 = vpop.f32.mrf.mxu0
        %v683 = vadd.f32 0.0, %v682
        %684 = vmatmul.bf16.gmra.mxu0 %v616
        %v685 = vpop.f32.mrf.mxu0
        %v686 = vadd.f32 0.0, %v685
        %v687 = vpop.f32.mrf.mxu0
        %v688 = vadd.f32 0.0, %v687
        %689 = vmatmul.bf16.gmra.mxu0 %v617
        %v690 = vpop.f32.mrf.mxu0
        %v691 = vadd.f32 0.0, %v690
        %v692 = vpop.f32.mrf.mxu0
        %v693 = vadd.f32 0.0, %v692
        %694 = vmatmul.bf16.gmra.mxu0 %v618
        %v695 = vpop.f32.mrf.mxu0
        %v696 = vadd.f32 0.0, %v695
        %v697 = vpop.f32.mrf.mxu0
        %v698 = vadd.f32 0.0, %v697
        %699 = vdwg.mxu0
        %v700 = vadd.f32 %v554, %v681
        %v701 = vadd.f32 %v556, %v683
        %v702 = vadd.f32 %v559, %v686
        %v703 = vadd.f32 %v561, %v688
        %v704 = vadd.f32 %v564, %v691
        %v705 = vadd.f32 %v566, %v693
        %v706 = vadd.f32 %v569, %v696
        %v707 = vadd.f32 %v571, %v698
        %v708 = vld [vmem:[%s573] sm:$0xf]
        %v709 = vld [vmem:[%s573 + $0x4] sm:$0x1]
        %v710 = vld [vmem:[%s573 + $0x8] sm:$0xf]
        %v711 = vld [vmem:[%s573 + $0xc] sm:$0x1]
        %v712 = vld [vmem:[%s573 + $0x10] sm:$0xf]
        %v713 = vld [vmem:[%s573 + $0x14] sm:$0x1]
        %v714 = vld [vmem:[%s573 + $0x18] sm:$0xf]
        %v715 = vld [vmem:[%s573 + $0x1c] sm:$0x1]
        %v716 = vld [vmem:[%s573 + $0x20] sm:$0xf]
        %v717 = vld [vmem:[%s573 + $0x24] sm:$0x1]
        %v718 = vld [vmem:[%s573 + $0x28] sm:$0xf]
        %v719 = vld [vmem:[%s573 + $0x2c] sm:$0x1]
        %v720 = vld [vmem:[%s573 + $0x30] sm:$0xf]
        %v721 = vld [vmem:[%s573 + $0x34] sm:$0x1]
        %v722 = vld [vmem:[%s573 + $0x38] sm:$0xf]
        %v723 = vld [vmem:[%s573 + $0x3c] sm:$0x1]
        %v725 = vshrl.u32 %v708, 16
        %v727 = vrot.slane %v725, 4
        %v728 = vshll.u32 %v708, 16
        %v730 = vrot.slane %v728, 5
        %v731 = vor.u32 %v727, %v730
        %v732 = vrot.slane %v731, 4
        %v734 = vshll.u32 %v709, 16
        %v736 = vrot.slane %v734, 5
        %v737 = vsel %vm249, %v732, %v736
        %v739 = vshrl.u32 %v710, 16
        %v741 = vrot.slane %v739, 4
        %v742 = vshll.u32 %v710, 16
        %v744 = vrot.slane %v742, 5
        %v745 = vor.u32 %v741, %v744
        %v746 = vrot.slane %v745, 4
        %v748 = vshll.u32 %v711, 16
        %v750 = vrot.slane %v748, 5
        %v751 = vsel %vm249, %v746, %v750
        %v753 = vshrl.u32 %v712, 16
        %v755 = vrot.slane %v753, 4
        %v756 = vshll.u32 %v712, 16
        %v758 = vrot.slane %v756, 5
        %v759 = vor.u32 %v755, %v758
        %v760 = vrot.slane %v759, 4
        %v762 = vshll.u32 %v713, 16
        %v764 = vrot.slane %v762, 5
        %v765 = vsel %vm249, %v760, %v764
        %v767 = vshrl.u32 %v714, 16
        %v769 = vrot.slane %v767, 4
        %v770 = vshll.u32 %v714, 16
        %v772 = vrot.slane %v770, 5
        %v773 = vor.u32 %v769, %v772
        %v774 = vrot.slane %v773, 4
        %v776 = vshll.u32 %v715, 16
        %v778 = vrot.slane %v776, 5
        %v779 = vsel %vm249, %v774, %v778
        %v781 = vshrl.u32 %v716, 16
        %v783 = vrot.slane %v781, 4
        %v784 = vshll.u32 %v716, 16
        %v786 = vrot.slane %v784, 5
        %v787 = vor.u32 %v783, %v786
        %v788 = vrot.slane %v787, 4
        %v790 = vshll.u32 %v717, 16
        %v792 = vrot.slane %v790, 5
        %v793 = vsel %vm249, %v788, %v792
        %v795 = vshrl.u32 %v718, 16
        %v797 = vrot.slane %v795, 4
        %v798 = vshll.u32 %v718, 16
        %v800 = vrot.slane %v798, 5
        %v801 = vor.u32 %v797, %v800
        %v802 = vrot.slane %v801, 4
        %v804 = vshll.u32 %v719, 16
        %v806 = vrot.slane %v804, 5
        %v807 = vsel %vm249, %v802, %v806
        %v809 = vshrl.u32 %v720, 16
        %v811 = vrot.slane %v809, 4
        %v812 = vshll.u32 %v720, 16
        %v814 = vrot.slane %v812, 5
        %v815 = vor.u32 %v811, %v814
        %v816 = vrot.slane %v815, 4
        %v818 = vshll.u32 %v721, 16
        %v820 = vrot.slane %v818, 5
        %v821 = vsel %vm249, %v816, %v820
        %v823 = vshrl.u32 %v722, 16
        %v825 = vrot.slane %v823, 4
        %v826 = vshll.u32 %v722, 16
        %v828 = vrot.slane %v826, 5
        %v829 = vor.u32 %v825, %v828
        %v830 = vrot.slane %v829, 4
        %v832 = vshll.u32 %v723, 16
        %v834 = vrot.slane %v832, 5
        %v835 = vsel %vm249, %v830, %v834
        %s836 = scalar_lea.vmem %s207, 192
        %v837 = vld [vmem:[%s836] sm:$0xf]
        %v838 = vld [vmem:[%s836 + $0x4] sm:$0xf]
        %v839 = vld [vmem:[%s836 + $0x8] sm:$0xf]
        %v840 = vld [vmem:[%s836 + $0xc] sm:$0xf]
        %v841 = vld [vmem:[%s836 + $0x10] sm:$0xf]
        %v842 = vld [vmem:[%s836 + $0x14] sm:$0xf]
        %v843 = vld [vmem:[%s836 + $0x18] sm:$0xf]
        %v844 = vld [vmem:[%s836 + $0x1c] sm:$0xf]
        %v845 = vld [vmem:[%s836 + $0x20] sm:$0xf]
        %v846 = vld [vmem:[%s836 + $0x24] sm:$0xf]
        %v847 = vld [vmem:[%s836 + $0x28] sm:$0xf]
        %v848 = vld [vmem:[%s836 + $0x2c] sm:$0xf]
        %v849 = vld [vmem:[%s836 + $0x30] sm:$0xf]
        %v850 = vld [vmem:[%s836 + $0x34] sm:$0xf]
        %v851 = vld [vmem:[%s836 + $0x38] sm:$0xf]
        %v852 = vld [vmem:[%s836 + $0x3c] sm:$0xf]
        %v853 = vunpack.c.l.b16 %v737
        %v854 = vunpack.c.l.b16 %v751
        %v855 = vunpack.c.l.b16 %v765
        %v856 = vunpack.c.l.b16 %v779
        %v857 = vunpack.c.l.b16 %v793
        %v858 = vunpack.c.l.b16 %v807
        %v859 = vunpack.c.l.b16 %v821
        %v860 = vunpack.c.l.b16 %v835
        %v861 = vpack.c.b16 %v854, %v853
        %v862 = vpack.c.b16 %v856, %v855
        %v863 = vpack.c.b16 %v858, %v857
        %v864 = vpack.c.b16 %v860, %v859
        %v885 = vunpack.c.l.b16 %v837
        %v886 = vunpack.c.l.b16 %v838
        %v887 = vunpack.c.l.b16 %v839
        %v888 = vunpack.c.l.b16 %v840
        %v889 = vunpack.c.l.b16 %v841
        %v890 = vunpack.c.l.b16 %v842
        %v891 = vunpack.c.l.b16 %v843
        %v892 = vunpack.c.l.b16 %v844
        %v893 = vunpack.c.l.b16 %v845
        %v894 = vunpack.c.l.b16 %v846
        %v895 = vunpack.c.l.b16 %v847
        %v896 = vunpack.c.l.b16 %v848
        %v897 = vunpack.c.l.b16 %v849
        %v898 = vunpack.c.l.b16 %v850
        %v899 = vunpack.c.l.b16 %v851
        %v900 = vunpack.c.l.b16 %v852
        %v901 = vpack.c.b16 %v886, %v885
        %v902 = vpack.c.b16 %v888, %v887
        %v903 = vpack.c.b16 %v890, %v889
        %v904 = vpack.c.b16 %v892, %v891
        %v905 = vpack.c.b16 %v894, %v893
        %v906 = vpack.c.b16 %v896, %v895
        %v907 = vpack.c.b16 %v898, %v897
        %v908 = vpack.c.b16 %v900, %v899
        %917 = vmatpush.bf16.msra.mxu0 %v908
        %918 = vmatpush.bf16.msra.mxu0 %v907
        %919 = vmatpush.bf16.msra.mxu0 %v906
        %920 = vmatpush.bf16.msra.mxu0 %v905
        %921 = vmatpush.bf16.msra.mxu0 %v904
        %922 = vmatpush.bf16.msra.mxu0 %v903
        %923 = vmatpush.bf16.msra.mxu0 %v902
        %924 = vmatpush.bf16.msra.mxu0 %v901
        %925 = vmatmul.bf16.gmra.mxu0 %v861
        %v926 = vpop.f32.mrf.mxu0
        %v927 = vadd.f32 0.0, %v926
        %v928 = vpop.f32.mrf.mxu0
        %v929 = vadd.f32 0.0, %v928
        %930 = vmatmul.bf16.gmra.mxu0 %v862
        %v931 = vpop.f32.mrf.mxu0
        %v932 = vadd.f32 0.0, %v931
        %v933 = vpop.f32.mrf.mxu0
        %v934 = vadd.f32 0.0, %v933
        %935 = vmatmul.bf16.gmra.mxu0 %v863
        %v936 = vpop.f32.mrf.mxu0
        %v937 = vadd.f32 0.0, %v936
        %v938 = vpop.f32.mrf.mxu0
        %v939 = vadd.f32 0.0, %v938
        %940 = vmatmul.bf16.gmra.mxu0 %v864
        %v941 = vpop.f32.mrf.mxu0
        %v942 = vadd.f32 0.0, %v941
        %v943 = vpop.f32.mrf.mxu0
        %v944 = vadd.f32 0.0, %v943
        %945 = vdwg.mxu0
        %v946 = vadd.f32 %v700, %v927
        %v947 = vadd.f32 %v701, %v929
        %v948 = vadd.f32 %v702, %v932
        %v949 = vadd.f32 %v703, %v934
        %v950 = vadd.f32 %v704, %v937
        %v951 = vadd.f32 %v705, %v939
        %v952 = vadd.f32 %v706, %v942
        %v953 = vadd.f32 %v707, %v944
        %v954 = vpack.c.bf16 %v946, %v946
        %v955 = vpack.c.bf16 %v947, %v947
        %v956 = vpack.c.bf16 %v948, %v948
        %v957 = vpack.c.bf16 %v949, %v949
        %v958 = vpack.c.bf16 %v950, %v950
        %v959 = vpack.c.bf16 %v951, %v951
        %v960 = vpack.c.bf16 %v952, %v952
        %v961 = vpack.c.bf16 %v953, %v953
        %962 = vst [vmem:[%s189] sm:$0xf] %v954
        %963 = vst [vmem:[%s189 + $0x4] sm:$0xf] %v955
        %964 = vst [vmem:[%s189 + $0x8] sm:$0xf] %v956
        %965 = vst [vmem:[%s189 + $0xc] sm:$0xf] %v957
        %966 = vst [vmem:[%s189 + $0x10] sm:$0xf] %v958
        %967 = vst [vmem:[%s189 + $0x14] sm:$0xf] %v959
        %968 = vst [vmem:[%s189 + $0x18] sm:$0xf] %v960
        %969 = vst [vmem:[%s189 + $0x1c] sm:$0xf] %v961
        %v970 = vadd.f32 %v946, %v947
        %v971 = vadd.f32 %v970, %v948
        %v972 = vadd.f32 %v971, %v949
        %v973 = vadd.f32 %v972, %v950
        %v974 = vadd.f32 %v973, %v951
        %v975 = vadd.f32 %v974, %v952
        %v976 = vadd.f32 %v975, %v953
        %v977 = vrot.slane %v976, 4
        %v978 = vadd.f32 %v976, %v977
        %v979 = vrot.slane %v978, 2
        %v980 = vadd.f32 %v978, %v979
        %v981 = vrot.slane %v980, 1
        %v982 = vadd.f32 %v980, %v981
        %v983 = vadd.f32 %v982, 0.0
        %v984 = vmul.f32 %v946, %v946
        %v985 = vmul.f32 %v947, %v947
        %v986 = vmul.f32 %v948, %v948
        %v987 = vmul.f32 %v949, %v949
        %v988 = vmul.f32 %v950, %v950
        %v989 = vmul.f32 %v951, %v951
        %v990 = vmul.f32 %v952, %v952
        %v991 = vmul.f32 %v953, %v953
        %v992 = vadd.f32 %v984, %v985
        %v993 = vadd.f32 %v992, %v986
        %v994 = vadd.f32 %v993, %v987
        %v995 = vadd.f32 %v994, %v988
        %v996 = vadd.f32 %v995, %v989
        %v997 = vadd.f32 %v996, %v990
        %v998 = vadd.f32 %v997, %v991
        %v999 = vrot.slane %v998, 4
        %v1000 = vadd.f32 %v998, %v999
        %v1001 = vrot.slane %v1000, 2
        %v1002 = vadd.f32 %v1000, %v1001
        %v1003 = vrot.slane %v1002, 1
        %v1004 = vadd.f32 %v1002, %v1003
        %v1005 = vadd.f32 %v1004, 0.0
        %v1006 = vld [vmem:[%s203] sm:$0xf]
        %v1007 = vld [vmem:[%s203 + $0x4] sm:$0x1]
        %v1008 = vld [vmem:[%s203 + $0x8] sm:$0xf]
        %v1009 = vld [vmem:[%s203 + $0xc] sm:$0x1]
        %v1010 = vld [vmem:[%s203 + $0x10] sm:$0xf]
        %v1011 = vld [vmem:[%s203 + $0x14] sm:$0x1]
        %v1012 = vld [vmem:[%s203 + $0x18] sm:$0xf]
        %v1013 = vld [vmem:[%s203 + $0x1c] sm:$0x1]
        %v1014 = vld [vmem:[%s203 + $0x20] sm:$0xf]
        %v1015 = vld [vmem:[%s203 + $0x24] sm:$0x1]
        %v1016 = vld [vmem:[%s203 + $0x28] sm:$0xf]
        %v1017 = vld [vmem:[%s203 + $0x2c] sm:$0x1]
        %v1018 = vld [vmem:[%s203 + $0x30] sm:$0xf]
        %v1019 = vld [vmem:[%s203 + $0x34] sm:$0x1]
        %v1020 = vld [vmem:[%s203 + $0x38] sm:$0xf]
        %v1021 = vld [vmem:[%s203 + $0x3c] sm:$0x1]
        %v1023 = vshrl.u32 %v1006, 16
        %v1025 = vrot.slane %v1023, 4
        %v1026 = vshll.u32 %v1006, 16
        %v1028 = vrot.slane %v1026, 5
        %v1029 = vor.u32 %v1025, %v1028
        %v1030 = vrot.slane %v1029, 4
        %v1032 = vshll.u32 %v1007, 16
        %v1034 = vrot.slane %v1032, 5
        %v1035 = vsel %vm249, %v1030, %v1034
        %v1037 = vshrl.u32 %v1008, 16
        %v1039 = vrot.slane %v1037, 4
        %v1040 = vshll.u32 %v1008, 16
        %v1042 = vrot.slane %v1040, 5
        %v1043 = vor.u32 %v1039, %v1042
        %v1044 = vrot.slane %v1043, 4
        %v1046 = vshll.u32 %v1009, 16
        %v1048 = vrot.slane %v1046, 5
        %v1049 = vsel %vm249, %v1044, %v1048
        %v1051 = vshrl.u32 %v1010, 16
        %v1053 = vrot.slane %v1051, 4
        %v1054 = vshll.u32 %v1010, 16
        %v1056 = vrot.slane %v1054, 5
        %v1057 = vor.u32 %v1053, %v1056
        %v1058 = vrot.slane %v1057, 4
        %v1060 = vshll.u32 %v1011, 16
        %v1062 = vrot.slane %v1060, 5
        %v1063 = vsel %vm249, %v1058, %v1062
        %v1065 = vshrl.u32 %v1012, 16
        %v1067 = vrot.slane %v1065, 4
        %v1068 = vshll.u32 %v1012, 16
        %v1070 = vrot.slane %v1068, 5
        %v1071 = vor.u32 %v1067, %v1070
        %v1072 = vrot.slane %v1071, 4
        %v1074 = vshll.u32 %v1013, 16
        %v1076 = vrot.slane %v1074, 5
        %v1077 = vsel %vm249, %v1072, %v1076
        %v1079 = vshrl.u32 %v1014, 16
        %v1081 = vrot.slane %v1079, 4
        %v1082 = vshll.u32 %v1014, 16
        %v1084 = vrot.slane %v1082, 5
        %v1085 = vor.u32 %v1081, %v1084
        %v1086 = vrot.slane %v1085, 4
        %v1088 = vshll.u32 %v1015, 16
        %v1090 = vrot.slane %v1088, 5
        %v1091 = vsel %vm249, %v1086, %v1090
        %v1093 = vshrl.u32 %v1016, 16
        %v1095 = vrot.slane %v1093, 4
        %v1096 = vshll.u32 %v1016, 16
        %v1098 = vrot.slane %v1096, 5
        %v1099 = vor.u32 %v1095, %v1098
        %v1100 = vrot.slane %v1099, 4
        %v1102 = vshll.u32 %v1017, 16
        %v1104 = vrot.slane %v1102, 5
        %v1105 = vsel %vm249, %v1100, %v1104
        %v1107 = vshrl.u32 %v1018, 16
        %v1109 = vrot.slane %v1107, 4
        %v1110 = vshll.u32 %v1018, 16
        %v1112 = vrot.slane %v1110, 5
        %v1113 = vor.u32 %v1109, %v1112
        %v1114 = vrot.slane %v1113, 4
        %v1116 = vshll.u32 %v1019, 16
        %v1118 = vrot.slane %v1116, 5
        %v1119 = vsel %vm249, %v1114, %v1118
        %v1121 = vshrl.u32 %v1020, 16
        %v1123 = vrot.slane %v1121, 4
        %v1124 = vshll.u32 %v1020, 16
        %v1126 = vrot.slane %v1124, 5
        %v1127 = vor.u32 %v1123, %v1126
        %v1128 = vrot.slane %v1127, 4
        %v1130 = vshll.u32 %v1021, 16
        %v1132 = vrot.slane %v1130, 5
        %v1133 = vsel %vm249, %v1128, %v1132
        %s1134 = scalar_lea.vmem %s207, 256
        %v1135 = vld [vmem:[%s1134] sm:$0xf]
        %v1136 = vld [vmem:[%s1134 + $0x4] sm:$0xf]
        %v1137 = vld [vmem:[%s1134 + $0x8] sm:$0xf]
        %v1138 = vld [vmem:[%s1134 + $0xc] sm:$0xf]
        %v1139 = vld [vmem:[%s1134 + $0x10] sm:$0xf]
        %v1140 = vld [vmem:[%s1134 + $0x14] sm:$0xf]
        %v1141 = vld [vmem:[%s1134 + $0x18] sm:$0xf]
        %v1142 = vld [vmem:[%s1134 + $0x1c] sm:$0xf]
        %v1143 = vld [vmem:[%s1134 + $0x20] sm:$0xf]
        %v1144 = vld [vmem:[%s1134 + $0x24] sm:$0xf]
        %v1145 = vld [vmem:[%s1134 + $0x28] sm:$0xf]
        %v1146 = vld [vmem:[%s1134 + $0x2c] sm:$0xf]
        %v1147 = vld [vmem:[%s1134 + $0x30] sm:$0xf]
        %v1148 = vld [vmem:[%s1134 + $0x34] sm:$0xf]
        %v1149 = vld [vmem:[%s1134 + $0x38] sm:$0xf]
        %v1150 = vld [vmem:[%s1134 + $0x3c] sm:$0xf]
        %v1151 = vld [vmem:[%s203] sm:$0xe]
        %v1152 = vld [vmem:[%s203 + $0x8] sm:$0xe]
        %v1153 = vld [vmem:[%s203 + $0x10] sm:$0xe]
        %v1154 = vld [vmem:[%s203 + $0x18] sm:$0xe]
        %v1155 = vld [vmem:[%s203 + $0x20] sm:$0xe]
        %v1156 = vld [vmem:[%s203 + $0x28] sm:$0xe]
        %v1157 = vld [vmem:[%s203 + $0x30] sm:$0xe]
        %v1158 = vld [vmem:[%s203 + $0x38] sm:$0xe]
        %vm1175 = vcmask 1042432
        %vm1176 = vcmask 1046532
        %vm1177 = vmor %vm1175, %vm1176
        %v1178 = vrot.slane %v1151, 5
        %v1179 = vrot.slane %v1178, 4
        %v1180 = vrot.slane %v1007, 5
        %v1181 = vsel %vm1177, %v1179, %v1180
        %v1182 = vrot.slane %v1152, 5
        %v1183 = vrot.slane %v1182, 4
        %v1184 = vrot.slane %v1009, 5
        %v1185 = vsel %vm1177, %v1183, %v1184
        %v1186 = vrot.slane %v1153, 5
        %v1187 = vrot.slane %v1186, 4
        %v1188 = vrot.slane %v1011, 5
        %v1189 = vsel %vm1177, %v1187, %v1188
        %v1190 = vrot.slane %v1154, 5
        %v1191 = vrot.slane %v1190, 4
        %v1192 = vrot.slane %v1013, 5
        %v1193 = vsel %vm1177, %v1191, %v1192
        %v1194 = vrot.slane %v1155, 5
        %v1195 = vrot.slane %v1194, 4
        %v1196 = vrot.slane %v1015, 5
        %v1197 = vsel %vm1177, %v1195, %v1196
        %v1198 = vrot.slane %v1156, 5
        %v1199 = vrot.slane %v1198, 4
        %v1200 = vrot.slane %v1017, 5
        %v1201 = vsel %vm1177, %v1199, %v1200
        %v1202 = vrot.slane %v1157, 5
        %v1203 = vrot.slane %v1202, 4
        %v1204 = vrot.slane %v1019, 5
        %v1205 = vsel %vm1177, %v1203, %v1204
        %v1206 = vrot.slane %v1158, 5
        %v1207 = vrot.slane %v1206, 4
        %v1208 = vrot.slane %v1021, 5
        %v1209 = vsel %vm1177, %v1207, %v1208
        %s1210 = scalar_lea.vmem %s207, 320
        %v1211 = vld [vmem:[%s1210] sm:$0xf]
        %v1212 = vld [vmem:[%s1210 + $0x4] sm:$0xf]
        %v1213 = vld [vmem:[%s1210 + $0x8] sm:$0xf]
        %v1214 = vld [vmem:[%s1210 + $0xc] sm:$0xf]
        %v1215 = vld [vmem:[%s1210 + $0x10] sm:$0xf]
        %v1216 = vld [vmem:[%s1210 + $0x14] sm:$0xf]
        %v1217 = vld [vmem:[%s1210 + $0x18] sm:$0xf]
        %v1218 = vld [vmem:[%s1210 + $0x1c] sm:$0xf]
        %v1219 = vld [vmem:[%s1210 + $0x20] sm:$0xf]
        %v1220 = vld [vmem:[%s1210 + $0x24] sm:$0xf]
        %v1221 = vld [vmem:[%s1210 + $0x28] sm:$0xf]
        %v1222 = vld [vmem:[%s1210 + $0x2c] sm:$0xf]
        %v1223 = vld [vmem:[%s1210 + $0x30] sm:$0xf]
        %v1224 = vld [vmem:[%s1210 + $0x34] sm:$0xf]
        %v1225 = vld [vmem:[%s1210 + $0x38] sm:$0xf]
        %v1226 = vld [vmem:[%s1210 + $0x3c] sm:$0xf]
        %v1227 = vunpack.c.l.b16 %v1181
        %v1228 = vunpack.c.l.b16 %v1185
        %v1229 = vunpack.c.l.b16 %v1189
        %v1230 = vunpack.c.l.b16 %v1193
        %v1231 = vunpack.c.l.b16 %v1197
        %v1232 = vunpack.c.l.b16 %v1201
        %v1233 = vunpack.c.l.b16 %v1205
        %v1234 = vunpack.c.l.b16 %v1209
        %v1235 = vpack.c.b16 %v1228, %v1227
        %v1236 = vpack.c.b16 %v1230, %v1229
        %v1237 = vpack.c.b16 %v1232, %v1231
        %v1238 = vpack.c.b16 %v1234, %v1233
        %v1259 = vunpack.c.l.b16 %v1211
        %v1260 = vunpack.c.l.b16 %v1212
        %v1261 = vunpack.c.l.b16 %v1213
        %v1262 = vunpack.c.l.b16 %v1214
        %v1263 = vunpack.c.l.b16 %v1215
        %v1264 = vunpack.c.l.b16 %v1216
        %v1265 = vunpack.c.l.b16 %v1217
        %v1266 = vunpack.c.l.b16 %v1218
        %v1267 = vunpack.c.l.b16 %v1219
        %v1268 = vunpack.c.l.b16 %v1220
        %v1269 = vunpack.c.l.b16 %v1221
        %v1270 = vunpack.c.l.b16 %v1222
        %v1271 = vunpack.c.l.b16 %v1223
        %v1272 = vunpack.c.l.b16 %v1224
        %v1273 = vunpack.c.l.b16 %v1225
        %v1274 = vunpack.c.l.b16 %v1226
        %v1275 = vpack.c.b16 %v1260, %v1259
        %v1276 = vpack.c.b16 %v1262, %v1261
        %v1277 = vpack.c.b16 %v1264, %v1263
        %v1278 = vpack.c.b16 %v1266, %v1265
        %v1279 = vpack.c.b16 %v1268, %v1267
        %v1280 = vpack.c.b16 %v1270, %v1269
        %v1281 = vpack.c.b16 %v1272, %v1271
        %v1282 = vpack.c.b16 %v1274, %v1273
        %1291 = vmatpush.bf16.msra.mxu0 %v1282
        %1292 = vmatpush.bf16.msra.mxu0 %v1281
        %1293 = vmatpush.bf16.msra.mxu0 %v1280
        %1294 = vmatpush.bf16.msra.mxu0 %v1279
        %1295 = vmatpush.bf16.msra.mxu0 %v1278
        %1296 = vmatpush.bf16.msra.mxu0 %v1277
        %1297 = vmatpush.bf16.msra.mxu0 %v1276
        %1298 = vmatpush.bf16.msra.mxu0 %v1275
        %1299 = vmatmul.bf16.gmra.mxu0 %v1235
        %v1300 = vpop.f32.mrf.mxu0
        %v1301 = vadd.f32 0.0, %v1300
        %v1302 = vpop.f32.mrf.mxu0
        %v1303 = vadd.f32 0.0, %v1302
        %1304 = vmatmul.bf16.gmra.mxu0 %v1236
        %v1305 = vpop.f32.mrf.mxu0
        %v1306 = vadd.f32 0.0, %v1305
        %v1307 = vpop.f32.mrf.mxu0
        %v1308 = vadd.f32 0.0, %v1307
        %1309 = vmatmul.bf16.gmra.mxu0 %v1237
        %v1310 = vpop.f32.mrf.mxu0
        %v1311 = vadd.f32 0.0, %v1310
        %v1312 = vpop.f32.mrf.mxu0
        %v1313 = vadd.f32 0.0, %v1312
        %1314 = vmatmul.bf16.gmra.mxu0 %v1238
        %v1315 = vpop.f32.mrf.mxu0
        %v1316 = vadd.f32 0.0, %v1315
        %v1317 = vpop.f32.mrf.mxu0
        %v1318 = vadd.f32 0.0, %v1317
        %1319 = vdwg.mxu0
        %v1320 = vunpack.c.l.b16 %v1035
        %v1321 = vunpack.c.l.b16 %v1049
        %v1322 = vunpack.c.l.b16 %v1063
        %v1323 = vunpack.c.l.b16 %v1077
        %v1324 = vunpack.c.l.b16 %v1091
        %v1325 = vunpack.c.l.b16 %v1105
        %v1326 = vunpack.c.l.b16 %v1119
        %v1327 = vunpack.c.l.b16 %v1133
        %v1328 = vpack.c.b16 %v1321, %v1320
        %v1329 = vpack.c.b16 %v1323, %v1322
        %v1330 = vpack.c.b16 %v1325, %v1324
        %v1331 = vpack.c.b16 %v1327, %v1326
        %v1352 = vunpack.c.l.b16 %v1135
        %v1353 = vunpack.c.l.b16 %v1136
        %v1354 = vunpack.c.l.b16 %v1137
        %v1355 = vunpack.c.l.b16 %v1138
        %v1356 = vunpack.c.l.b16 %v1139
        %v1357 = vunpack.c.l.b16 %v1140
        %v1358 = vunpack.c.l.b16 %v1141
        %v1359 = vunpack.c.l.b16 %v1142
        %v1360 = vunpack.c.l.b16 %v1143
        %v1361 = vunpack.c.l.b16 %v1144
        %v1362 = vunpack.c.l.b16 %v1145
        %v1363 = vunpack.c.l.b16 %v1146
        %v1364 = vunpack.c.l.b16 %v1147
        %v1365 = vunpack.c.l.b16 %v1148
        %v1366 = vunpack.c.l.b16 %v1149
        %v1367 = vunpack.c.l.b16 %v1150
        %v1368 = vpack.c.b16 %v1353, %v1352
        %v1369 = vpack.c.b16 %v1355, %v1354
        %v1370 = vpack.c.b16 %v1357, %v1356
        %v1371 = vpack.c.b16 %v1359, %v1358
        %v1372 = vpack.c.b16 %v1361, %v1360
        %v1373 = vpack.c.b16 %v1363, %v1362
        %v1374 = vpack.c.b16 %v1365, %v1364
        %v1375 = vpack.c.b16 %v1367, %v1366
        %1384 = vmatpush.bf16.msra.mxu0 %v1375
        %1385 = vmatpush.bf16.msra.mxu0 %v1374
        %1386 = vmatpush.bf16.msra.mxu0 %v1373
        %1387 = vmatpush.bf16.msra.mxu0 %v1372
        %1388 = vmatpush.bf16.msra.mxu0 %v1371
        %1389 = vmatpush.bf16.msra.mxu0 %v1370
        %1390 = vmatpush.bf16.msra.mxu0 %v1369
        %1391 = vmatpush.bf16.msra.mxu0 %v1368
        %1392 = vmatmul.bf16.gmra.mxu0 %v1328
        %v1393 = vpop.f32.mrf.mxu0
        %v1394 = vadd.f32 %v1301, %v1393
        %v1395 = vpop.f32.mrf.mxu0
        %v1396 = vadd.f32 %v1303, %v1395
        %1397 = vmatmul.bf16.gmra.mxu0 %v1329
        %v1398 = vpop.f32.mrf.mxu0
        %v1399 = vadd.f32 %v1306, %v1398
        %v1400 = vpop.f32.mrf.mxu0
        %v1401 = vadd.f32 %v1308, %v1400
        %1402 = vmatmul.bf16.gmra.mxu0 %v1330
        %v1403 = vpop.f32.mrf.mxu0
        %v1404 = vadd.f32 %v1311, %v1403
        %v1405 = vpop.f32.mrf.mxu0
        %v1406 = vadd.f32 %v1313, %v1405
        %1407 = vmatmul.bf16.gmra.mxu0 %v1331
        %v1408 = vpop.f32.mrf.mxu0
        %v1409 = vadd.f32 %v1316, %v1408
        %v1410 = vpop.f32.mrf.mxu0
        %v1411 = vadd.f32 %v1318, %v1410
        %1412 = vdwg.mxu0
        %v1413 = vld [vmem:[%s573] sm:$0xf]
        %v1414 = vld [vmem:[%s573 + $0x4] sm:$0x1]
        %v1415 = vld [vmem:[%s573 + $0x8] sm:$0xf]
        %v1416 = vld [vmem:[%s573 + $0xc] sm:$0x1]
        %v1417 = vld [vmem:[%s573 + $0x10] sm:$0xf]
        %v1418 = vld [vmem:[%s573 + $0x14] sm:$0x1]
        %v1419 = vld [vmem:[%s573 + $0x18] sm:$0xf]
        %v1420 = vld [vmem:[%s573 + $0x1c] sm:$0x1]
        %v1421 = vld [vmem:[%s573 + $0x20] sm:$0xf]
        %v1422 = vld [vmem:[%s573 + $0x24] sm:$0x1]
        %v1423 = vld [vmem:[%s573 + $0x28] sm:$0xf]
        %v1424 = vld [vmem:[%s573 + $0x2c] sm:$0x1]
        %v1425 = vld [vmem:[%s573 + $0x30] sm:$0xf]
        %v1426 = vld [vmem:[%s573 + $0x34] sm:$0x1]
        %v1427 = vld [vmem:[%s573 + $0x38] sm:$0xf]
        %v1428 = vld [vmem:[%s573 + $0x3c] sm:$0x1]
        %v1430 = vshrl.u32 %v1413, 16
        %v1432 = vrot.slane %v1430, 4
        %v1433 = vshll.u32 %v1413, 16
        %v1435 = vrot.slane %v1433, 5
        %v1436 = vor.u32 %v1432, %v1435
        %v1437 = vrot.slane %v1436, 4
        %v1439 = vshll.u32 %v1414, 16
        %v1441 = vrot.slane %v1439, 5
        %v1442 = vsel %vm249, %v1437, %v1441
        %v1444 = vshrl.u32 %v1415, 16
        %v1446 = vrot.slane %v1444, 4
        %v1447 = vshll.u32 %v1415, 16
        %v1449 = vrot.slane %v1447, 5
        %v1450 = vor.u32 %v1446, %v1449
        %v1451 = vrot.slane %v1450, 4
        %v1453 = vshll.u32 %v1416, 16
        %v1455 = vrot.slane %v1453, 5
        %v1456 = vsel %vm249, %v1451, %v1455
        %v1458 = vshrl.u32 %v1417, 16
        %v1460 = vrot.slane %v1458, 4
        %v1461 = vshll.u32 %v1417, 16
        %v1463 = vrot.slane %v1461, 5
        %v1464 = vor.u32 %v1460, %v1463
        %v1465 = vrot.slane %v1464, 4
        %v1467 = vshll.u32 %v1418, 16
        %v1469 = vrot.slane %v1467, 5
        %v1470 = vsel %vm249, %v1465, %v1469
        %v1472 = vshrl.u32 %v1419, 16
        %v1474 = vrot.slane %v1472, 4
        %v1475 = vshll.u32 %v1419, 16
        %v1477 = vrot.slane %v1475, 5
        %v1478 = vor.u32 %v1474, %v1477
        %v1479 = vrot.slane %v1478, 4
        %v1481 = vshll.u32 %v1420, 16
        %v1483 = vrot.slane %v1481, 5
        %v1484 = vsel %vm249, %v1479, %v1483
        %v1486 = vshrl.u32 %v1421, 16
        %v1488 = vrot.slane %v1486, 4
        %v1489 = vshll.u32 %v1421, 16
        %v1491 = vrot.slane %v1489, 5
        %v1492 = vor.u32 %v1488, %v1491
        %v1493 = vrot.slane %v1492, 4
        %v1495 = vshll.u32 %v1422, 16
        %v1497 = vrot.slane %v1495, 5
        %v1498 = vsel %vm249, %v1493, %v1497
        %v1500 = vshrl.u32 %v1423, 16
        %v1502 = vrot.slane %v1500, 4
        %v1503 = vshll.u32 %v1423, 16
        %v1505 = vrot.slane %v1503, 5
        %v1506 = vor.u32 %v1502, %v1505
        %v1507 = vrot.slane %v1506, 4
        %v1509 = vshll.u32 %v1424, 16
        %v1511 = vrot.slane %v1509, 5
        %v1512 = vsel %vm249, %v1507, %v1511
        %v1514 = vshrl.u32 %v1425, 16
        %v1516 = vrot.slane %v1514, 4
        %v1517 = vshll.u32 %v1425, 16
        %v1519 = vrot.slane %v1517, 5
        %v1520 = vor.u32 %v1516, %v1519
        %v1521 = vrot.slane %v1520, 4
        %v1523 = vshll.u32 %v1426, 16
        %v1525 = vrot.slane %v1523, 5
        %v1526 = vsel %vm249, %v1521, %v1525
        %v1528 = vshrl.u32 %v1427, 16
        %v1530 = vrot.slane %v1528, 4
        %v1531 = vshll.u32 %v1427, 16
        %v1533 = vrot.slane %v1531, 5
        %v1534 = vor.u32 %v1530, %v1533
        %v1535 = vrot.slane %v1534, 4
        %v1537 = vshll.u32 %v1428, 16
        %v1539 = vrot.slane %v1537, 5
        %v1540 = vsel %vm249, %v1535, %v1539
        %s1541 = scalar_lea.vmem %s207, 384
        %v1542 = vld [vmem:[%s1541] sm:$0xf]
        %v1543 = vld [vmem:[%s1541 + $0x4] sm:$0xf]
        %v1544 = vld [vmem:[%s1541 + $0x8] sm:$0xf]
        %v1545 = vld [vmem:[%s1541 + $0xc] sm:$0xf]
        %v1546 = vld [vmem:[%s1541 + $0x10] sm:$0xf]
        %v1547 = vld [vmem:[%s1541 + $0x14] sm:$0xf]
        %v1548 = vld [vmem:[%s1541 + $0x18] sm:$0xf]
        %v1549 = vld [vmem:[%s1541 + $0x1c] sm:$0xf]
        %v1550 = vld [vmem:[%s1541 + $0x20] sm:$0xf]
        %v1551 = vld [vmem:[%s1541 + $0x24] sm:$0xf]
        %v1552 = vld [vmem:[%s1541 + $0x28] sm:$0xf]
        %v1553 = vld [vmem:[%s1541 + $0x2c] sm:$0xf]
        %v1554 = vld [vmem:[%s1541 + $0x30] sm:$0xf]
        %v1555 = vld [vmem:[%s1541 + $0x34] sm:$0xf]
        %v1556 = vld [vmem:[%s1541 + $0x38] sm:$0xf]
        %v1557 = vld [vmem:[%s1541 + $0x3c] sm:$0xf]
        %v1558 = vunpack.c.l.b16 %v1442
        %v1559 = vunpack.c.l.b16 %v1456
        %v1560 = vunpack.c.l.b16 %v1470
        %v1561 = vunpack.c.l.b16 %v1484
        %v1562 = vunpack.c.l.b16 %v1498
        %v1563 = vunpack.c.l.b16 %v1512
        %v1564 = vunpack.c.l.b16 %v1526
        %v1565 = vunpack.c.l.b16 %v1540
        %v1566 = vpack.c.b16 %v1559, %v1558
        %v1567 = vpack.c.b16 %v1561, %v1560
        %v1568 = vpack.c.b16 %v1563, %v1562
        %v1569 = vpack.c.b16 %v1565, %v1564
        %v1590 = vunpack.c.l.b16 %v1542
        %v1591 = vunpack.c.l.b16 %v1543
        %v1592 = vunpack.c.l.b16 %v1544
        %v1593 = vunpack.c.l.b16 %v1545
        %v1594 = vunpack.c.l.b16 %v1546
        %v1595 = vunpack.c.l.b16 %v1547
        %v1596 = vunpack.c.l.b16 %v1548
        %v1597 = vunpack.c.l.b16 %v1549
        %v1598 = vunpack.c.l.b16 %v1550
        %v1599 = vunpack.c.l.b16 %v1551
        %v1600 = vunpack.c.l.b16 %v1552
        %v1601 = vunpack.c.l.b16 %v1553
        %v1602 = vunpack.c.l.b16 %v1554
        %v1603 = vunpack.c.l.b16 %v1555
        %v1604 = vunpack.c.l.b16 %v1556
        %v1605 = vunpack.c.l.b16 %v1557
        %v1606 = vpack.c.b16 %v1591, %v1590
        %v1607 = vpack.c.b16 %v1593, %v1592
        %v1608 = vpack.c.b16 %v1595, %v1594
        %v1609 = vpack.c.b16 %v1597, %v1596
        %v1610 = vpack.c.b16 %v1599, %v1598
        %v1611 = vpack.c.b16 %v1601, %v1600
        %v1612 = vpack.c.b16 %v1603, %v1602
        %v1613 = vpack.c.b16 %v1605, %v1604
        %1622 = vmatpush.bf16.msra.mxu0 %v1613
        %1623 = vmatpush.bf16.msra.mxu0 %v1612
        %1624 = vmatpush.bf16.msra.mxu0 %v1611
        %1625 = vmatpush.bf16.msra.mxu0 %v1610
        %1626 = vmatpush.bf16.msra.mxu0 %v1609
        %1627 = vmatpush.bf16.msra.mxu0 %v1608
        %1628 = vmatpush.bf16.msra.mxu0 %v1607
        %1629 = vmatpush.bf16.msra.mxu0 %v1606
        %1630 = vmatmul.bf16.gmra.mxu0 %v1566
        %v1631 = vpop.f32.mrf.mxu0
        %v1632 = vadd.f32 0.0, %v1631
        %v1633 = vpop.f32.mrf.mxu0
        %v1634 = vadd.f32 0.0, %v1633
        %1635 = vmatmul.bf16.gmra.mxu0 %v1567
        %v1636 = vpop.f32.mrf.mxu0
        %v1637 = vadd.f32 0.0, %v1636
        %v1638 = vpop.f32.mrf.mxu0
        %v1639 = vadd.f32 0.0, %v1638
        %1640 = vmatmul.bf16.gmra.mxu0 %v1568
        %v1641 = vpop.f32.mrf.mxu0
        %v1642 = vadd.f32 0.0, %v1641
        %v1643 = vpop.f32.mrf.mxu0
        %v1644 = vadd.f32 0.0, %v1643
        %1645 = vmatmul.bf16.gmra.mxu0 %v1569
        %v1646 = vpop.f32.mrf.mxu0
        %v1647 = vadd.f32 0.0, %v1646
        %v1648 = vpop.f32.mrf.mxu0
        %v1649 = vadd.f32 0.0, %v1648
        %1650 = vdwg.mxu0
        %v1651 = vadd.f32 %v1394, %v1632
        %v1652 = vadd.f32 %v1396, %v1634
        %v1653 = vadd.f32 %v1399, %v1637
        %v1654 = vadd.f32 %v1401, %v1639
        %v1655 = vadd.f32 %v1404, %v1642
        %v1656 = vadd.f32 %v1406, %v1644
        %v1657 = vadd.f32 %v1409, %v1647
        %v1658 = vadd.f32 %v1411, %v1649
        %v1659 = vld [vmem:[%s573] sm:$0xe]
        %v1660 = vld [vmem:[%s573 + $0x8] sm:$0xe]
        %v1661 = vld [vmem:[%s573 + $0x10] sm:$0xe]
        %v1662 = vld [vmem:[%s573 + $0x18] sm:$0xe]
        %v1663 = vld [vmem:[%s573 + $0x20] sm:$0xe]
        %v1664 = vld [vmem:[%s573 + $0x28] sm:$0xe]
        %v1665 = vld [vmem:[%s573 + $0x30] sm:$0xe]
        %v1666 = vld [vmem:[%s573 + $0x38] sm:$0xe]
        %v1683 = vrot.slane %v1659, 5
        %v1684 = vrot.slane %v1683, 4
        %v1685 = vrot.slane %v1414, 5
        %v1686 = vsel %vm1177, %v1684, %v1685
        %v1687 = vrot.slane %v1660, 5
        %v1688 = vrot.slane %v1687, 4
        %v1689 = vrot.slane %v1416, 5
        %v1690 = vsel %vm1177, %v1688, %v1689
        %v1691 = vrot.slane %v1661, 5
        %v1692 = vrot.slane %v1691, 4
        %v1693 = vrot.slane %v1418, 5
        %v1694 = vsel %vm1177, %v1692, %v1693
        %v1695 = vrot.slane %v1662, 5
        %v1696 = vrot.slane %v1695, 4
        %v1697 = vrot.slane %v1420, 5
        %v1698 = vsel %vm1177, %v1696, %v1697
        %v1699 = vrot.slane %v1663, 5
        %v1700 = vrot.slane %v1699, 4
        %v1701 = vrot.slane %v1422, 5
        %v1702 = vsel %vm1177, %v1700, %v1701
        %v1703 = vrot.slane %v1664, 5
        %v1704 = vrot.slane %v1703, 4
        %v1705 = vrot.slane %v1424, 5
        %v1706 = vsel %vm1177, %v1704, %v1705
        %v1707 = vrot.slane %v1665, 5
        %v1708 = vrot.slane %v1707, 4
        %v1709 = vrot.slane %v1426, 5
        %v1710 = vsel %vm1177, %v1708, %v1709
        %v1711 = vrot.slane %v1666, 5
        %v1712 = vrot.slane %v1711, 4
        %v1713 = vrot.slane %v1428, 5
        %v1714 = vsel %vm1177, %v1712, %v1713
        %s1715 = scalar_lea.vmem %s207, 448
        %v1716 = vld [vmem:[%s1715] sm:$0xf]
        %v1717 = vld [vmem:[%s1715 + $0x4] sm:$0xf]
        %v1718 = vld [vmem:[%s1715 + $0x8] sm:$0xf]
        %v1719 = vld [vmem:[%s1715 + $0xc] sm:$0xf]
        %v1720 = vld [vmem:[%s1715 + $0x10] sm:$0xf]
        %v1721 = vld [vmem:[%s1715 + $0x14] sm:$0xf]
        %v1722 = vld [vmem:[%s1715 + $0x18] sm:$0xf]
        %v1723 = vld [vmem:[%s1715 + $0x1c] sm:$0xf]
        %v1724 = vld [vmem:[%s1715 + $0x20] sm:$0xf]
        %v1725 = vld [vmem:[%s1715 + $0x24] sm:$0xf]
        %v1726 = vld [vmem:[%s1715 + $0x28] sm:$0xf]
        %v1727 = vld [vmem:[%s1715 + $0x2c] sm:$0xf]
        %v1728 = vld [vmem:[%s1715 + $0x30] sm:$0xf]
        %v1729 = vld [vmem:[%s1715 + $0x34] sm:$0xf]
        %v1730 = vld [vmem:[%s1715 + $0x38] sm:$0xf]
        %v1731 = vld [vmem:[%s1715 + $0x3c] sm:$0xf]
        %v1732 = vunpack.c.l.b16 %v1686
        %v1733 = vunpack.c.l.b16 %v1690
        %v1734 = vunpack.c.l.b16 %v1694
        %v1735 = vunpack.c.l.b16 %v1698
        %v1736 = vunpack.c.l.b16 %v1702
        %v1737 = vunpack.c.l.b16 %v1706
        %v1738 = vunpack.c.l.b16 %v1710
        %v1739 = vunpack.c.l.b16 %v1714
        %v1740 = vpack.c.b16 %v1733, %v1732
        %v1741 = vpack.c.b16 %v1735, %v1734
        %v1742 = vpack.c.b16 %v1737, %v1736
        %v1743 = vpack.c.b16 %v1739, %v1738
        %v1764 = vunpack.c.l.b16 %v1716
        %v1765 = vunpack.c.l.b16 %v1717
        %v1766 = vunpack.c.l.b16 %v1718
        %v1767 = vunpack.c.l.b16 %v1719
        %v1768 = vunpack.c.l.b16 %v1720
        %v1769 = vunpack.c.l.b16 %v1721
        %v1770 = vunpack.c.l.b16 %v1722
        %v1771 = vunpack.c.l.b16 %v1723
        %v1772 = vunpack.c.l.b16 %v1724
        %v1773 = vunpack.c.l.b16 %v1725
        %v1774 = vunpack.c.l.b16 %v1726
        %v1775 = vunpack.c.l.b16 %v1727
        %v1776 = vunpack.c.l.b16 %v1728
        %v1777 = vunpack.c.l.b16 %v1729
        %v1778 = vunpack.c.l.b16 %v1730
        %v1779 = vunpack.c.l.b16 %v1731
        %v1780 = vpack.c.b16 %v1765, %v1764
        %v1781 = vpack.c.b16 %v1767, %v1766
        %v1782 = vpack.c.b16 %v1769, %v1768
        %v1783 = vpack.c.b16 %v1771, %v1770
        %v1784 = vpack.c.b16 %v1773, %v1772
        %v1785 = vpack.c.b16 %v1775, %v1774
        %v1786 = vpack.c.b16 %v1777, %v1776
        %v1787 = vpack.c.b16 %v1779, %v1778
        %1796 = vmatpush.bf16.msra.mxu0 %v1787
        %1797 = vmatpush.bf16.msra.mxu0 %v1786
        %1798 = vmatpush.bf16.msra.mxu0 %v1785
        %1799 = vmatpush.bf16.msra.mxu0 %v1784
        %1800 = vmatpush.bf16.msra.mxu0 %v1783
        %1801 = vmatpush.bf16.msra.mxu0 %v1782
        %1802 = vmatpush.bf16.msra.mxu0 %v1781
        %1803 = vmatpush.bf16.msra.mxu0 %v1780
        %1804 = vmatmul.bf16.gmra.mxu0 %v1740
        %v1805 = vpop.f32.mrf.mxu0
        %v1806 = vadd.f32 0.0, %v1805
        %v1807 = vpop.f32.mrf.mxu0
        %v1808 = vadd.f32 0.0, %v1807
        %1809 = vmatmul.bf16.gmra.mxu0 %v1741
        %v1810 = vpop.f32.mrf.mxu0
        %v1811 = vadd.f32 0.0, %v1810
        %v1812 = vpop.f32.mrf.mxu0
        %v1813 = vadd.f32 0.0, %v1812
        %1814 = vmatmul.bf16.gmra.mxu0 %v1742
        %v1815 = vpop.f32.mrf.mxu0
        %v1816 = vadd.f32 0.0, %v1815
        %v1817 = vpop.f32.mrf.mxu0
        %v1818 = vadd.f32 0.0, %v1817
        %1819 = vmatmul.bf16.gmra.mxu0 %v1743
        %v1820 = vpop.f32.mrf.mxu0
        %v1821 = vadd.f32 0.0, %v1820
        %v1822 = vpop.f32.mrf.mxu0
        %v1823 = vadd.f32 0.0, %v1822
        %1824 = vdwg.mxu0
        %v1825 = vadd.f32 %v1651, %v1806
        %v1826 = vadd.f32 %v1652, %v1808
        %v1827 = vadd.f32 %v1653, %v1811
        %v1828 = vadd.f32 %v1654, %v1813
        %v1829 = vadd.f32 %v1655, %v1816
        %v1830 = vadd.f32 %v1656, %v1818
        %v1831 = vadd.f32 %v1657, %v1821
        %v1832 = vadd.f32 %v1658, %v1823
        %v1833 = vpack.c.bf16 %v1825, %v1825
        %v1834 = vpack.c.bf16 %v1826, %v1826
        %v1835 = vpack.c.bf16 %v1827, %v1827
        %v1836 = vpack.c.bf16 %v1828, %v1828
        %v1837 = vpack.c.bf16 %v1829, %v1829
        %v1838 = vpack.c.bf16 %v1830, %v1830
        %v1839 = vpack.c.bf16 %v1831, %v1831
        %v1840 = vpack.c.bf16 %v1832, %v1832
        %s1841 = scalar_lea.vmem %s189, 32 [#allocation2]
        %1842 = vst [vmem:[%s1841] sm:$0xf] %v1833
        %1843 = vst [vmem:[%s1841 + $0x4] sm:$0xf] %v1834
        %1844 = vst [vmem:[%s1841 + $0x8] sm:$0xf] %v1835
        %1845 = vst [vmem:[%s1841 + $0xc] sm:$0xf] %v1836
        %1846 = vst [vmem:[%s1841 + $0x10] sm:$0xf] %v1837
        %1847 = vst [vmem:[%s1841 + $0x14] sm:$0xf] %v1838
        %1848 = vst [vmem:[%s1841 + $0x18] sm:$0xf] %v1839
        %1849 = vst [vmem:[%s1841 + $0x1c] sm:$0xf] %v1840
        %v1850 = vadd.f32 %v1825, %v1826
        %v1851 = vadd.f32 %v1850, %v1827
        %v1852 = vadd.f32 %v1851, %v1828
        %v1853 = vadd.f32 %v1852, %v1829
        %v1854 = vadd.f32 %v1853, %v1830
        %v1855 = vadd.f32 %v1854, %v1831
        %v1856 = vadd.f32 %v1855, %v1832
        %v1857 = vrot.slane %v1856, 4
        %v1858 = vadd.f32 %v1856, %v1857
        %v1859 = vrot.slane %v1858, 2
        %v1860 = vadd.f32 %v1858, %v1859
        %v1861 = vrot.slane %v1860, 1
        %v1862 = vadd.f32 %v1860, %v1861
        %v1863 = vadd.f32 %v983, %v1862
        %v1864 = vmul.f32 %v1825, %v1825
        %v1865 = vmul.f32 %v1826, %v1826
        %v1866 = vmul.f32 %v1827, %v1827
        %v1867 = vmul.f32 %v1828, %v1828
        %v1868 = vmul.f32 %v1829, %v1829
        %v1869 = vmul.f32 %v1830, %v1830
        %v1870 = vmul.f32 %v1831, %v1831
        %v1871 = vmul.f32 %v1832, %v1832
        %v1872 = vadd.f32 %v1864, %v1865
        %v1873 = vadd.f32 %v1872, %v1866
        %v1874 = vadd.f32 %v1873, %v1867
        %v1875 = vadd.f32 %v1874, %v1868
        %v1876 = vadd.f32 %v1875, %v1869
        %v1877 = vadd.f32 %v1876, %v1870
        %v1878 = vadd.f32 %v1877, %v1871
        %v1879 = vrot.slane %v1878, 4
        %v1880 = vadd.f32 %v1878, %v1879
        %v1881 = vrot.slane %v1880, 2
        %v1882 = vadd.f32 %v1880, %v1881
        %v1883 = vrot.slane %v1882, 1
        %v1884 = vadd.f32 %v1882, %v1883
        %v1885 = vadd.f32 %v1005, %v1884
        %v1886 = vld [vmem:[%s573] sm:$0xf]
        %v1887 = vld [vmem:[%s573 + $0x8] sm:$0xf]
        %v1888 = vld [vmem:[%s573 + $0x10] sm:$0xf]
        %v1889 = vld [vmem:[%s573 + $0x18] sm:$0xf]
        %v1890 = vld [vmem:[%s573 + $0x20] sm:$0xf]
        %v1891 = vld [vmem:[%s573 + $0x28] sm:$0xf]
        %v1892 = vld [vmem:[%s573 + $0x30] sm:$0xf]
        %v1893 = vld [vmem:[%s573 + $0x38] sm:$0xf]
        %s1894 = scalar_lea.vmem %s207, 512
        %v1895 = vld [vmem:[%s1894] sm:$0xf]
        %v1896 = vld [vmem:[%s1894 + $0x4] sm:$0xf]
        %v1897 = vld [vmem:[%s1894 + $0x8] sm:$0xf]
        %v1898 = vld [vmem:[%s1894 + $0xc] sm:$0xf]
        %v1899 = vld [vmem:[%s1894 + $0x10] sm:$0xf]
        %v1900 = vld [vmem:[%s1894 + $0x14] sm:$0xf]
        %v1901 = vld [vmem:[%s1894 + $0x18] sm:$0xf]
        %v1902 = vld [vmem:[%s1894 + $0x1c] sm:$0xf]
        %v1903 = vld [vmem:[%s1894 + $0x20] sm:$0xf]
        %v1904 = vld [vmem:[%s1894 + $0x24] sm:$0xf]
        %v1905 = vld [vmem:[%s1894 + $0x28] sm:$0xf]
        %v1906 = vld [vmem:[%s1894 + $0x2c] sm:$0xf]
        %v1907 = vld [vmem:[%s1894 + $0x30] sm:$0xf]
        %v1908 = vld [vmem:[%s1894 + $0x34] sm:$0xf]
        %v1909 = vld [vmem:[%s1894 + $0x38] sm:$0xf]
        %v1910 = vld [vmem:[%s1894 + $0x3c] sm:$0xf]
        %v1911 = vld [vmem:[%s573 + $0x4] sm:$0x1]
        %v1912 = vld [vmem:[%s573 + $0xc] sm:$0x1]
        %v1913 = vld [vmem:[%s573 + $0x14] sm:$0x1]
        %v1914 = vld [vmem:[%s573 + $0x1c] sm:$0x1]
        %v1915 = vld [vmem:[%s573 + $0x24] sm:$0x1]
        %v1916 = vld [vmem:[%s573 + $0x2c] sm:$0x1]
        %v1917 = vld [vmem:[%s573 + $0x34] sm:$0x1]
        %v1918 = vld [vmem:[%s573 + $0x3c] sm:$0x1]
        %v1920 = vshrl.u32 %v1886, 16
        %v1922 = vrot.slane %v1920, 4
        %v1923 = vshll.u32 %v1886, 16
        %v1925 = vrot.slane %v1923, 5
        %v1926 = vor.u32 %v1922, %v1925
        %v1927 = vrot.slane %v1926, 4
        %v1929 = vshll.u32 %v1911, 16
        %v1931 = vrot.slane %v1929, 5
        %v1932 = vsel %vm249, %v1927, %v1931
        %v1934 = vshrl.u32 %v1887, 16
        %v1936 = vrot.slane %v1934, 4
        %v1937 = vshll.u32 %v1887, 16
        %v1939 = vrot.slane %v1937, 5
        %v1940 = vor.u32 %v1936, %v1939
        %v1941 = vrot.slane %v1940, 4
        %v1943 = vshll.u32 %v1912, 16
        %v1945 = vrot.slane %v1943, 5
        %v1946 = vsel %vm249, %v1941, %v1945
        %v1948 = vshrl.u32 %v1888, 16
        %v1950 = vrot.slane %v1948, 4
        %v1951 = vshll.u32 %v1888, 16
        %v1953 = vrot.slane %v1951, 5
        %v1954 = vor.u32 %v1950, %v1953
        %v1955 = vrot.slane %v1954, 4
        %v1957 = vshll.u32 %v1913, 16
        %v1959 = vrot.slane %v1957, 5
        %v1960 = vsel %vm249, %v1955, %v1959
        %v1962 = vshrl.u32 %v1889, 16
        %v1964 = vrot.slane %v1962, 4
        %v1965 = vshll.u32 %v1889, 16
        %v1967 = vrot.slane %v1965, 5
        %v1968 = vor.u32 %v1964, %v1967
        %v1969 = vrot.slane %v1968, 4
        %v1971 = vshll.u32 %v1914, 16
        %v1973 = vrot.slane %v1971, 5
        %v1974 = vsel %vm249, %v1969, %v1973
        %v1976 = vshrl.u32 %v1890, 16
        %v1978 = vrot.slane %v1976, 4
        %v1979 = vshll.u32 %v1890, 16
        %v1981 = vrot.slane %v1979, 5
        %v1982 = vor.u32 %v1978, %v1981
        %v1983 = vrot.slane %v1982, 4
        %v1985 = vshll.u32 %v1915, 16
        %v1987 = vrot.slane %v1985, 5
        %v1988 = vsel %vm249, %v1983, %v1987
        %v1990 = vshrl.u32 %v1891, 16
        %v1992 = vrot.slane %v1990, 4
        %v1993 = vshll.u32 %v1891, 16
        %v1995 = vrot.slane %v1993, 5
        %v1996 = vor.u32 %v1992, %v1995
        %v1997 = vrot.slane %v1996, 4
        %v1999 = vshll.u32 %v1916, 16
        %v2001 = vrot.slane %v1999, 5
        %v2002 = vsel %vm249, %v1997, %v2001
        %v2004 = vshrl.u32 %v1892, 16
        %v2006 = vrot.slane %v2004, 4
        %v2007 = vshll.u32 %v1892, 16
        %v2009 = vrot.slane %v2007, 5
        %v2010 = vor.u32 %v2006, %v2009
        %v2011 = vrot.slane %v2010, 4
        %v2013 = vshll.u32 %v1917, 16
        %v2015 = vrot.slane %v2013, 5
        %v2016 = vsel %vm249, %v2011, %v2015
        %v2018 = vshrl.u32 %v1893, 16
        %v2020 = vrot.slane %v2018, 4
        %v2021 = vshll.u32 %v1893, 16
        %v2023 = vrot.slane %v2021, 5
        %v2024 = vor.u32 %v2020, %v2023
        %v2025 = vrot.slane %v2024, 4
        %v2027 = vshll.u32 %v1918, 16
        %v2029 = vrot.slane %v2027, 5
        %v2030 = vsel %vm249, %v2025, %v2029
        %s2031 = scalar_lea.vmem %s207, 576
        %v2032 = vld [vmem:[%s2031] sm:$0xf]
        %v2033 = vld [vmem:[%s2031 + $0x4] sm:$0xf]
        %v2034 = vld [vmem:[%s2031 + $0x8] sm:$0xf]
        %v2035 = vld [vmem:[%s2031 + $0xc] sm:$0xf]
        %v2036 = vld [vmem:[%s2031 + $0x10] sm:$0xf]
        %v2037 = vld [vmem:[%s2031 + $0x14] sm:$0xf]
        %v2038 = vld [vmem:[%s2031 + $0x18] sm:$0xf]
        %v2039 = vld [vmem:[%s2031 + $0x1c] sm:$0xf]
        %v2040 = vld [vmem:[%s2031 + $0x20] sm:$0xf]
        %v2041 = vld [vmem:[%s2031 + $0x24] sm:$0xf]
        %v2042 = vld [vmem:[%s2031 + $0x28] sm:$0xf]
        %v2043 = vld [vmem:[%s2031 + $0x2c] sm:$0xf]
        %v2044 = vld [vmem:[%s2031 + $0x30] sm:$0xf]
        %v2045 = vld [vmem:[%s2031 + $0x34] sm:$0xf]
        %v2046 = vld [vmem:[%s2031 + $0x38] sm:$0xf]
        %v2047 = vld [vmem:[%s2031 + $0x3c] sm:$0xf]
        %v2048 = vunpack.c.l.b16 %v1932
        %v2049 = vunpack.c.l.b16 %v1946
        %v2050 = vunpack.c.l.b16 %v1960
        %v2051 = vunpack.c.l.b16 %v1974
        %v2052 = vunpack.c.l.b16 %v1988
        %v2053 = vunpack.c.l.b16 %v2002
        %v2054 = vunpack.c.l.b16 %v2016
        %v2055 = vunpack.c.l.b16 %v2030
        %v2056 = vpack.c.b16 %v2049, %v2048
        %v2057 = vpack.c.b16 %v2051, %v2050
        %v2058 = vpack.c.b16 %v2053, %v2052
        %v2059 = vpack.c.b16 %v2055, %v2054
        %v2080 = vunpack.c.l.b16 %v2032
        %v2081 = vunpack.c.l.b16 %v2033
        %v2082 = vunpack.c.l.b16 %v2034
        %v2083 = vunpack.c.l.b16 %v2035
        %v2084 = vunpack.c.l.b16 %v2036
        %v2085 = vunpack.c.l.b16 %v2037
        %v2086 = vunpack.c.l.b16 %v2038
        %v2087 = vunpack.c.l.b16 %v2039
        %v2088 = vunpack.c.l.b16 %v2040
        %v2089 = vunpack.c.l.b16 %v2041
        %v2090 = vunpack.c.l.b16 %v2042
        %v2091 = vunpack.c.l.b16 %v2043
        %v2092 = vunpack.c.l.b16 %v2044
        %v2093 = vunpack.c.l.b16 %v2045
        %v2094 = vunpack.c.l.b16 %v2046
        %v2095 = vunpack.c.l.b16 %v2047
        %v2096 = vpack.c.b16 %v2081, %v2080
        %v2097 = vpack.c.b16 %v2083, %v2082
        %v2098 = vpack.c.b16 %v2085, %v2084
        %v2099 = vpack.c.b16 %v2087, %v2086
        %v2100 = vpack.c.b16 %v2089, %v2088
        %v2101 = vpack.c.b16 %v2091, %v2090
        %v2102 = vpack.c.b16 %v2093, %v2092
        %v2103 = vpack.c.b16 %v2095, %v2094
        %2112 = vmatpush.bf16.msra.mxu0 %v2103
        %2113 = vmatpush.bf16.msra.mxu0 %v2102
        %2114 = vmatpush.bf16.msra.mxu0 %v2101
        %2115 = vmatpush.bf16.msra.mxu0 %v2100
        %2116 = vmatpush.bf16.msra.mxu0 %v2099
        %2117 = vmatpush.bf16.msra.mxu0 %v2098
        %2118 = vmatpush.bf16.msra.mxu0 %v2097
        %2119 = vmatpush.bf16.msra.mxu0 %v2096
        %2120 = vmatmul.bf16.gmra.mxu0 %v2056
        %v2121 = vpop.f32.mrf.mxu0
        %v2122 = vadd.f32 0.0, %v2121
        %v2123 = vpop.f32.mrf.mxu0
        %v2124 = vadd.f32 0.0, %v2123
        %2125 = vmatmul.bf16.gmra.mxu0 %v2057
        %v2126 = vpop.f32.mrf.mxu0
        %v2127 = vadd.f32 0.0, %v2126
        %v2128 = vpop.f32.mrf.mxu0
        %v2129 = vadd.f32 0.0, %v2128
        %2130 = vmatmul.bf16.gmra.mxu0 %v2058
        %v2131 = vpop.f32.mrf.mxu0
        %v2132 = vadd.f32 0.0, %v2131
        %v2133 = vpop.f32.mrf.mxu0
        %v2134 = vadd.f32 0.0, %v2133
        %2135 = vmatmul.bf16.gmra.mxu0 %v2059
        %v2136 = vpop.f32.mrf.mxu0
        %v2137 = vadd.f32 0.0, %v2136
        %v2138 = vpop.f32.mrf.mxu0
        %v2139 = vadd.f32 0.0, %v2138
        %2140 = vdwg.mxu0
        %v2149 = vunpack.c.l.b16 %v1886
        %v2150 = vunpack.c.l.b16 %v1887
        %v2151 = vunpack.c.l.b16 %v1888
        %v2152 = vunpack.c.l.b16 %v1889
        %v2153 = vunpack.c.l.b16 %v1890
        %v2154 = vunpack.c.l.b16 %v1891
        %v2155 = vunpack.c.l.b16 %v1892
        %v2156 = vunpack.c.l.b16 %v1893
        %v2157 = vpack.c.b16 %v2150, %v2149
        %v2158 = vpack.c.b16 %v2152, %v2151
        %v2159 = vpack.c.b16 %v2154, %v2153
        %v2160 = vpack.c.b16 %v2156, %v2155
        %v2181 = vunpack.c.l.b16 %v1895
        %v2182 = vunpack.c.l.b16 %v1896
        %v2183 = vunpack.c.l.b16 %v1897
        %v2184 = vunpack.c.l.b16 %v1898
        %v2185 = vunpack.c.l.b16 %v1899
        %v2186 = vunpack.c.l.b16 %v1900
        %v2187 = vunpack.c.l.b16 %v1901
        %v2188 = vunpack.c.l.b16 %v1902
        %v2189 = vunpack.c.l.b16 %v1903
        %v2190 = vunpack.c.l.b16 %v1904
        %v2191 = vunpack.c.l.b16 %v1905
        %v2192 = vunpack.c.l.b16 %v1906
        %v2193 = vunpack.c.l.b16 %v1907
        %v2194 = vunpack.c.l.b16 %v1908
        %v2195 = vunpack.c.l.b16 %v1909
        %v2196 = vunpack.c.l.b16 %v1910
        %v2197 = vpack.c.b16 %v2182, %v2181
        %v2198 = vpack.c.b16 %v2184, %v2183
        %v2199 = vpack.c.b16 %v2186, %v2185
        %v2200 = vpack.c.b16 %v2188, %v2187
        %v2201 = vpack.c.b16 %v2190, %v2189
        %v2202 = vpack.c.b16 %v2192, %v2191
        %v2203 = vpack.c.b16 %v2194, %v2193
        %v2204 = vpack.c.b16 %v2196, %v2195
        %2213 = vmatpush.bf16.msra.mxu0 %v2204
        %2214 = vmatpush.bf16.msra.mxu0 %v2203
        %2215 = vmatpush.bf16.msra.mxu0 %v2202
        %2216 = vmatpush.bf16.msra.mxu0 %v2201
        %2217 = vmatpush.bf16.msra.mxu0 %v2200
        %2218 = vmatpush.bf16.msra.mxu0 %v2199
        %2219 = vmatpush.bf16.msra.mxu0 %v2198
        %2220 = vmatpush.bf16.msra.mxu0 %v2197
        %2221 = vmatmul.bf16.gmra.mxu0 %v2157
        %v2222 = vpop.f32.mrf.mxu0
        %v2223 = vadd.f32 %v2122, %v2222
        %v2224 = vpop.f32.mrf.mxu0
        %v2225 = vadd.f32 %v2124, %v2224
        %2226 = vmatmul.bf16.gmra.mxu0 %v2158
        %v2227 = vpop.f32.mrf.mxu0
        %v2228 = vadd.f32 %v2127, %v2227
        %v2229 = vpop.f32.mrf.mxu0
        %v2230 = vadd.f32 %v2129, %v2229
        %2231 = vmatmul.bf16.gmra.mxu0 %v2159
        %v2232 = vpop.f32.mrf.mxu0
        %v2233 = vadd.f32 %v2132, %v2232
        %v2234 = vpop.f32.mrf.mxu0
        %v2235 = vadd.f32 %v2134, %v2234
        %2236 = vmatmul.bf16.gmra.mxu0 %v2160
        %v2237 = vpop.f32.mrf.mxu0
        %v2238 = vadd.f32 %v2137, %v2237
        %v2239 = vpop.f32.mrf.mxu0
        %v2240 = vadd.f32 %v2139, %v2239
        %2241 = vdwg.mxu0
        %s2242 = scalar_lea.vmem %s203, 16
        %v2243 = vld [vmem:[%s2242] sm:$0xf]
        %v2244 = vld [vmem:[%s2242 + $0x8] sm:$0xf]
        %v2245 = vld [vmem:[%s2242 + $0x10] sm:$0xf]
        %v2246 = vld [vmem:[%s2242 + $0x18] sm:$0xf]
        %v2247 = vld [vmem:[%s2242 + $0x20] sm:$0xf]
        %v2248 = vld [vmem:[%s2242 + $0x28] sm:$0xf]
        %v2249 = vld [vmem:[%s2242 + $0x30] sm:$0xf]
        %v2250 = vld [vmem:[%s2242 + $0x38] sm:$0xf]
        %s2251 = scalar_lea.vmem %s207, 640
        %v2252 = vld [vmem:[%s2251] sm:$0xf]
        %v2253 = vld [vmem:[%s2251 + $0x4] sm:$0xf]
        %v2254 = vld [vmem:[%s2251 + $0x8] sm:$0xf]
        %v2255 = vld [vmem:[%s2251 + $0xc] sm:$0xf]
        %v2256 = vld [vmem:[%s2251 + $0x10] sm:$0xf]
        %v2257 = vld [vmem:[%s2251 + $0x14] sm:$0xf]
        %v2258 = vld [vmem:[%s2251 + $0x18] sm:$0xf]
        %v2259 = vld [vmem:[%s2251 + $0x1c] sm:$0xf]
        %v2260 = vld [vmem:[%s2251 + $0x20] sm:$0xf]
        %v2261 = vld [vmem:[%s2251 + $0x24] sm:$0xf]
        %v2262 = vld [vmem:[%s2251 + $0x28] sm:$0xf]
        %v2263 = vld [vmem:[%s2251 + $0x2c] sm:$0xf]
        %v2264 = vld [vmem:[%s2251 + $0x30] sm:$0xf]
        %v2265 = vld [vmem:[%s2251 + $0x34] sm:$0xf]
        %v2266 = vld [vmem:[%s2251 + $0x38] sm:$0xf]
        %v2267 = vld [vmem:[%s2251 + $0x3c] sm:$0xf]
        %v2276 = vunpack.c.l.b16 %v2243
        %v2277 = vunpack.c.l.b16 %v2244
        %v2278 = vunpack.c.l.b16 %v2245
        %v2279 = vunpack.c.l.b16 %v2246
        %v2280 = vunpack.c.l.b16 %v2247
        %v2281 = vunpack.c.l.b16 %v2248
        %v2282 = vunpack.c.l.b16 %v2249
        %v2283 = vunpack.c.l.b16 %v2250
        %v2284 = vpack.c.b16 %v2277, %v2276
        %v2285 = vpack.c.b16 %v2279, %v2278
        %v2286 = vpack.c.b16 %v2281, %v2280
        %v2287 = vpack.c.b16 %v2283, %v2282
        %v2308 = vunpack.c.l.b16 %v2252
        %v2309 = vunpack.c.l.b16 %v2253
        %v2310 = vunpack.c.l.b16 %v2254
        %v2311 = vunpack.c.l.b16 %v2255
        %v2312 = vunpack.c.l.b16 %v2256
        %v2313 = vunpack.c.l.b16 %v2257
        %v2314 = vunpack.c.l.b16 %v2258
        %v2315 = vunpack.c.l.b16 %v2259
        %v2316 = vunpack.c.l.b16 %v2260
        %v2317 = vunpack.c.l.b16 %v2261
        %v2318 = vunpack.c.l.b16 %v2262
        %v2319 = vunpack.c.l.b16 %v2263
        %v2320 = vunpack.c.l.b16 %v2264
        %v2321 = vunpack.c.l.b16 %v2265
        %v2322 = vunpack.c.l.b16 %v2266
        %v2323 = vunpack.c.l.b16 %v2267
        %v2324 = vpack.c.b16 %v2309, %v2308
        %v2325 = vpack.c.b16 %v2311, %v2310
        %v2326 = vpack.c.b16 %v2313, %v2312
        %v2327 = vpack.c.b16 %v2315, %v2314
        %v2328 = vpack.c.b16 %v2317, %v2316
        %v2329 = vpack.c.b16 %v2319, %v2318
        %v2330 = vpack.c.b16 %v2321, %v2320
        %v2331 = vpack.c.b16 %v2323, %v2322
        %2340 = vmatpush.bf16.msra.mxu0 %v2331
        %2341 = vmatpush.bf16.msra.mxu0 %v2330
        %2342 = vmatpush.bf16.msra.mxu0 %v2329
        %2343 = vmatpush.bf16.msra.mxu0 %v2328
        %2344 = vmatpush.bf16.msra.mxu0 %v2327
        %2345 = vmatpush.bf16.msra.mxu0 %v2326
        %2346 = vmatpush.bf16.msra.mxu0 %v2325
        %2347 = vmatpush.bf16.msra.mxu0 %v2324
        %2348 = vmatmul.bf16.gmra.mxu0 %v2284
        %v2349 = vpop.f32.mrf.mxu0
        %v2350 = vadd.f32 0.0, %v2349
        %v2351 = vpop.f32.mrf.mxu0
        %v2352 = vadd.f32 0.0, %v2351
        %2353 = vmatmul.bf16.gmra.mxu0 %v2285
        %v2354 = vpop.f32.mrf.mxu0
        %v2355 = vadd.f32 0.0, %v2354
        %v2356 = vpop.f32.mrf.mxu0
        %v2357 = vadd.f32 0.0, %v2356
        %2358 = vmatmul.bf16.gmra.mxu0 %v2286
        %v2359 = vpop.f32.mrf.mxu0
        %v2360 = vadd.f32 0.0, %v2359
        %v2361 = vpop.f32.mrf.mxu0
        %v2362 = vadd.f32 0.0, %v2361
        %2363 = vmatmul.bf16.gmra.mxu0 %v2287
        %v2364 = vpop.f32.mrf.mxu0
        %v2365 = vadd.f32 0.0, %v2364
        %v2366 = vpop.f32.mrf.mxu0
        %v2367 = vadd.f32 0.0, %v2366
        %2368 = vdwg.mxu0
        %v2369 = vadd.f32 %v2223, %v2350
        %v2370 = vadd.f32 %v2225, %v2352
        %v2371 = vadd.f32 %v2228, %v2355
        %v2372 = vadd.f32 %v2230, %v2357
        %v2373 = vadd.f32 %v2233, %v2360
        %v2374 = vadd.f32 %v2235, %v2362
        %v2375 = vadd.f32 %v2238, %v2365
        %v2376 = vadd.f32 %v2240, %v2367
        %v2377 = vld [vmem:[%s2242] sm:$0xf]
        %v2378 = vld [vmem:[%s2242 + $0x4] sm:$0x1]
        %v2379 = vld [vmem:[%s2242 + $0x8] sm:$0xf]
        %v2380 = vld [vmem:[%s2242 + $0xc] sm:$0x1]
        %v2381 = vld [vmem:[%s2242 + $0x10] sm:$0xf]
        %v2382 = vld [vmem:[%s2242 + $0x14] sm:$0x1]
        %v2383 = vld [vmem:[%s2242 + $0x18] sm:$0xf]
        %v2384 = vld [vmem:[%s2242 + $0x1c] sm:$0x1]
        %v2385 = vld [vmem:[%s2242 + $0x20] sm:$0xf]
        %v2386 = vld [vmem:[%s2242 + $0x24] sm:$0x1]
        %v2387 = vld [vmem:[%s2242 + $0x28] sm:$0xf]
        %v2388 = vld [vmem:[%s2242 + $0x2c] sm:$0x1]
        %v2389 = vld [vmem:[%s2242 + $0x30] sm:$0xf]
        %v2390 = vld [vmem:[%s2242 + $0x34] sm:$0x1]
        %v2391 = vld [vmem:[%s2242 + $0x38] sm:$0xf]
        %v2392 = vld [vmem:[%s2242 + $0x3c] sm:$0x1]
        %v2394 = vshrl.u32 %v2377, 16
        %v2396 = vrot.slane %v2394, 4
        %v2397 = vshll.u32 %v2377, 16
        %v2399 = vrot.slane %v2397, 5
        %v2400 = vor.u32 %v2396, %v2399
        %v2401 = vrot.slane %v2400, 4
        %v2403 = vshll.u32 %v2378, 16
        %v2405 = vrot.slane %v2403, 5
        %v2406 = vsel %vm249, %v2401, %v2405
        %v2408 = vshrl.u32 %v2379, 16
        %v2410 = vrot.slane %v2408, 4
        %v2411 = vshll.u32 %v2379, 16
        %v2413 = vrot.slane %v2411, 5
        %v2414 = vor.u32 %v2410, %v2413
        %v2415 = vrot.slane %v2414, 4
        %v2417 = vshll.u32 %v2380, 16
        %v2419 = vrot.slane %v2417, 5
        %v2420 = vsel %vm249, %v2415, %v2419
        %v2422 = vshrl.u32 %v2381, 16
        %v2424 = vrot.slane %v2422, 4
        %v2425 = vshll.u32 %v2381, 16
        %v2427 = vrot.slane %v2425, 5
        %v2428 = vor.u32 %v2424, %v2427
        %v2429 = vrot.slane %v2428, 4
        %v2431 = vshll.u32 %v2382, 16
        %v2433 = vrot.slane %v2431, 5
        %v2434 = vsel %vm249, %v2429, %v2433
        %v2436 = vshrl.u32 %v2383, 16
        %v2438 = vrot.slane %v2436, 4
        %v2439 = vshll.u32 %v2383, 16
        %v2441 = vrot.slane %v2439, 5
        %v2442 = vor.u32 %v2438, %v2441
        %v2443 = vrot.slane %v2442, 4
        %v2445 = vshll.u32 %v2384, 16
        %v2447 = vrot.slane %v2445, 5
        %v2448 = vsel %vm249, %v2443, %v2447
        %v2450 = vshrl.u32 %v2385, 16
        %v2452 = vrot.slane %v2450, 4
        %v2453 = vshll.u32 %v2385, 16
        %v2455 = vrot.slane %v2453, 5
        %v2456 = vor.u32 %v2452, %v2455
        %v2457 = vrot.slane %v2456, 4
        %v2459 = vshll.u32 %v2386, 16
        %v2461 = vrot.slane %v2459, 5
        %v2462 = vsel %vm249, %v2457, %v2461
        %v2464 = vshrl.u32 %v2387, 16
        %v2466 = vrot.slane %v2464, 4
        %v2467 = vshll.u32 %v2387, 16
        %v2469 = vrot.slane %v2467, 5
        %v2470 = vor.u32 %v2466, %v2469
        %v2471 = vrot.slane %v2470, 4
        %v2473 = vshll.u32 %v2388, 16
        %v2475 = vrot.slane %v2473, 5
        %v2476 = vsel %vm249, %v2471, %v2475
        %v2478 = vshrl.u32 %v2389, 16
        %v2480 = vrot.slane %v2478, 4
        %v2481 = vshll.u32 %v2389, 16
        %v2483 = vrot.slane %v2481, 5
        %v2484 = vor.u32 %v2480, %v2483
        %v2485 = vrot.slane %v2484, 4
        %v2487 = vshll.u32 %v2390, 16
        %v2489 = vrot.slane %v2487, 5
        %v2490 = vsel %vm249, %v2485, %v2489
        %v2492 = vshrl.u32 %v2391, 16
        %v2494 = vrot.slane %v2492, 4
        %v2495 = vshll.u32 %v2391, 16
        %v2497 = vrot.slane %v2495, 5
        %v2498 = vor.u32 %v2494, %v2497
        %v2499 = vrot.slane %v2498, 4
        %v2501 = vshll.u32 %v2392, 16
        %v2503 = vrot.slane %v2501, 5
        %v2504 = vsel %vm249, %v2499, %v2503
        %s2505 = scalar_lea.vmem %s207, 704
        %v2506 = vld [vmem:[%s2505] sm:$0xf]
        %v2507 = vld [vmem:[%s2505 + $0x4] sm:$0xf]
        %v2508 = vld [vmem:[%s2505 + $0x8] sm:$0xf]
        %v2509 = vld [vmem:[%s2505 + $0xc] sm:$0xf]
        %v2510 = vld [vmem:[%s2505 + $0x10] sm:$0xf]
        %v2511 = vld [vmem:[%s2505 + $0x14] sm:$0xf]
        %v2512 = vld [vmem:[%s2505 + $0x18] sm:$0xf]
        %v2513 = vld [vmem:[%s2505 + $0x1c] sm:$0xf]
        %v2514 = vld [vmem:[%s2505 + $0x20] sm:$0xf]
        %v2515 = vld [vmem:[%s2505 + $0x24] sm:$0xf]
        %v2516 = vld [vmem:[%s2505 + $0x28] sm:$0xf]
        %v2517 = vld [vmem:[%s2505 + $0x2c] sm:$0xf]
        %v2518 = vld [vmem:[%s2505 + $0x30] sm:$0xf]
        %v2519 = vld [vmem:[%s2505 + $0x34] sm:$0xf]
        %v2520 = vld [vmem:[%s2505 + $0x38] sm:$0xf]
        %v2521 = vld [vmem:[%s2505 + $0x3c] sm:$0xf]
        %v2522 = vunpack.c.l.b16 %v2406
        %v2523 = vunpack.c.l.b16 %v2420
        %v2524 = vunpack.c.l.b16 %v2434
        %v2525 = vunpack.c.l.b16 %v2448
        %v2526 = vunpack.c.l.b16 %v2462
        %v2527 = vunpack.c.l.b16 %v2476
        %v2528 = vunpack.c.l.b16 %v2490
        %v2529 = vunpack.c.l.b16 %v2504
        %v2530 = vpack.c.b16 %v2523, %v2522
        %v2531 = vpack.c.b16 %v2525, %v2524
        %v2532 = vpack.c.b16 %v2527, %v2526
        %v2533 = vpack.c.b16 %v2529, %v2528
        %v2554 = vunpack.c.l.b16 %v2506
        %v2555 = vunpack.c.l.b16 %v2507
        %v2556 = vunpack.c.l.b16 %v2508
        %v2557 = vunpack.c.l.b16 %v2509
        %v2558 = vunpack.c.l.b16 %v2510
        %v2559 = vunpack.c.l.b16 %v2511
        %v2560 = vunpack.c.l.b16 %v2512
        %v2561 = vunpack.c.l.b16 %v2513
        %v2562 = vunpack.c.l.b16 %v2514
        %v2563 = vunpack.c.l.b16 %v2515
        %v2564 = vunpack.c.l.b16 %v2516
        %v2565 = vunpack.c.l.b16 %v2517
        %v2566 = vunpack.c.l.b16 %v2518
        %v2567 = vunpack.c.l.b16 %v2519
        %v2568 = vunpack.c.l.b16 %v2520
        %v2569 = vunpack.c.l.b16 %v2521
        %v2570 = vpack.c.b16 %v2555, %v2554
        %v2571 = vpack.c.b16 %v2557, %v2556
        %v2572 = vpack.c.b16 %v2559, %v2558
        %v2573 = vpack.c.b16 %v2561, %v2560
        %v2574 = vpack.c.b16 %v2563, %v2562
        %v2575 = vpack.c.b16 %v2565, %v2564
        %v2576 = vpack.c.b16 %v2567, %v2566
        %v2577 = vpack.c.b16 %v2569, %v2568
        %2586 = vmatpush.bf16.msra.mxu0 %v2577
        %2587 = vmatpush.bf16.msra.mxu0 %v2576
        %2588 = vmatpush.bf16.msra.mxu0 %v2575
        %2589 = vmatpush.bf16.msra.mxu0 %v2574
        %2590 = vmatpush.bf16.msra.mxu0 %v2573
        %2591 = vmatpush.bf16.msra.mxu0 %v2572
        %2592 = vmatpush.bf16.msra.mxu0 %v2571
        %2593 = vmatpush.bf16.msra.mxu0 %v2570
        %2594 = vmatmul.bf16.gmra.mxu0 %v2530
        %v2595 = vpop.f32.mrf.mxu0
        %v2596 = vadd.f32 0.0, %v2595
        %v2597 = vpop.f32.mrf.mxu0
        %v2598 = vadd.f32 0.0, %v2597
        %2599 = vmatmul.bf16.gmra.mxu0 %v2531
        %v2600 = vpop.f32.mrf.mxu0
        %v2601 = vadd.f32 0.0, %v2600
        %v2602 = vpop.f32.mrf.mxu0
        %v2603 = vadd.f32 0.0, %v2602
        %2604 = vmatmul.bf16.gmra.mxu0 %v2532
        %v2605 = vpop.f32.mrf.mxu0
        %v2606 = vadd.f32 0.0, %v2605
        %v2607 = vpop.f32.mrf.mxu0
        %v2608 = vadd.f32 0.0, %v2607
        %2609 = vmatmul.bf16.gmra.mxu0 %v2533
        %v2610 = vpop.f32.mrf.mxu0
        %v2611 = vadd.f32 0.0, %v2610
        %v2612 = vpop.f32.mrf.mxu0
        %v2613 = vadd.f32 0.0, %v2612
        %2614 = vdwg.mxu0
        %v2615 = vadd.f32 %v2369, %v2596
        %v2616 = vadd.f32 %v2370, %v2598
        %v2617 = vadd.f32 %v2371, %v2601
        %v2618 = vadd.f32 %v2372, %v2603
        %v2619 = vadd.f32 %v2373, %v2606
        %v2620 = vadd.f32 %v2374, %v2608
        %v2621 = vadd.f32 %v2375, %v2611
        %v2622 = vadd.f32 %v2376, %v2613
        %v2623 = vpack.c.bf16 %v2615, %v2615
        %v2624 = vpack.c.bf16 %v2616, %v2616
        %v2625 = vpack.c.bf16 %v2617, %v2617
        %v2626 = vpack.c.bf16 %v2618, %v2618
        %v2627 = vpack.c.bf16 %v2619, %v2619
        %v2628 = vpack.c.bf16 %v2620, %v2620
        %v2629 = vpack.c.bf16 %v2621, %v2621
        %v2630 = vpack.c.bf16 %v2622, %v2622
        %s2631 = scalar_lea.vmem %s189, 64 [#allocation2]
        %2632 = vst [vmem:[%s2631] sm:$0xf] %v2623
        %2633 = vst [vmem:[%s2631 + $0x4] sm:$0xf] %v2624
        %2634 = vst [vmem:[%s2631 + $0x8] sm:$0xf] %v2625
        %2635 = vst [vmem:[%s2631 + $0xc] sm:$0xf] %v2626
        %2636 = vst [vmem:[%s2631 + $0x10] sm:$0xf] %v2627
        %2637 = vst [vmem:[%s2631 + $0x14] sm:$0xf] %v2628
        %2638 = vst [vmem:[%s2631 + $0x18] sm:$0xf] %v2629
        %2639 = vst [vmem:[%s2631 + $0x1c] sm:$0xf] %v2630
        %v2640 = vadd.f32 %v2615, %v2616
        %v2641 = vadd.f32 %v2640, %v2617
        %v2642 = vadd.f32 %v2641, %v2618
        %v2643 = vadd.f32 %v2642, %v2619
        %v2644 = vadd.f32 %v2643, %v2620
        %v2645 = vadd.f32 %v2644, %v2621
        %v2646 = vadd.f32 %v2645, %v2622
        %v2647 = vrot.slane %v2646, 4
        %v2648 = vadd.f32 %v2646, %v2647
        %v2649 = vrot.slane %v2648, 2
        %v2650 = vadd.f32 %v2648, %v2649
        %v2651 = vrot.slane %v2650, 1
        %v2652 = vadd.f32 %v2650, %v2651
        %v2653 = vadd.f32 %v1863, %v2652
        %v2654 = vmul.f32 %v2615, %v2615
        %v2655 = vmul.f32 %v2616, %v2616
        %v2656 = vmul.f32 %v2617, %v2617
        %v2657 = vmul.f32 %v2618, %v2618
        %v2658 = vmul.f32 %v2619, %v2619
        %v2659 = vmul.f32 %v2620, %v2620
        %v2660 = vmul.f32 %v2621, %v2621
        %v2661 = vmul.f32 %v2622, %v2622
        %v2662 = vadd.f32 %v2654, %v2655
        %v2663 = vadd.f32 %v2662, %v2656
        %v2664 = vadd.f32 %v2663, %v2657
        %v2665 = vadd.f32 %v2664, %v2658
        %v2666 = vadd.f32 %v2665, %v2659
        %v2667 = vadd.f32 %v2666, %v2660
        %v2668 = vadd.f32 %v2667, %v2661
        %v2669 = vrot.slane %v2668, 4
        %v2670 = vadd.f32 %v2668, %v2669
        %v2671 = vrot.slane %v2670, 2
        %v2672 = vadd.f32 %v2670, %v2671
        %v2673 = vrot.slane %v2672, 1
        %v2674 = vadd.f32 %v2672, %v2673
        %v2675 = vadd.f32 %v1885, %v2674
        %v2676 = vld [vmem:[%s573] sm:$0xf]
        %v2677 = vld [vmem:[%s573 + $0x4] sm:$0x1]
        %v2678 = vld [vmem:[%s573 + $0x8] sm:$0xf]
        %v2679 = vld [vmem:[%s573 + $0xc] sm:$0x1]
        %v2680 = vld [vmem:[%s573 + $0x10] sm:$0xf]
        %v2681 = vld [vmem:[%s573 + $0x14] sm:$0x1]
        %v2682 = vld [vmem:[%s573 + $0x18] sm:$0xf]
        %v2683 = vld [vmem:[%s573 + $0x1c] sm:$0x1]
        %v2684 = vld [vmem:[%s573 + $0x20] sm:$0xf]
        %v2685 = vld [vmem:[%s573 + $0x24] sm:$0x1]
        %v2686 = vld [vmem:[%s573 + $0x28] sm:$0xf]
        %v2687 = vld [vmem:[%s573 + $0x2c] sm:$0x1]
        %v2688 = vld [vmem:[%s573 + $0x30] sm:$0xf]
        %v2689 = vld [vmem:[%s573 + $0x34] sm:$0x1]
        %v2690 = vld [vmem:[%s573 + $0x38] sm:$0xf]
        %v2691 = vld [vmem:[%s573 + $0x3c] sm:$0x1]
        %v2693 = vshrl.u32 %v2676, 16
        %v2695 = vrot.slane %v2693, 4
        %v2696 = vshll.u32 %v2676, 16
        %v2698 = vrot.slane %v2696, 5
        %v2699 = vor.u32 %v2695, %v2698
        %v2700 = vrot.slane %v2699, 4
        %v2702 = vshll.u32 %v2677, 16
        %v2704 = vrot.slane %v2702, 5
        %v2705 = vsel %vm249, %v2700, %v2704
        %v2707 = vshrl.u32 %v2678, 16
        %v2709 = vrot.slane %v2707, 4
        %v2710 = vshll.u32 %v2678, 16
        %v2712 = vrot.slane %v2710, 5
        %v2713 = vor.u32 %v2709, %v2712
        %v2714 = vrot.slane %v2713, 4
        %v2716 = vshll.u32 %v2679, 16
        %v2718 = vrot.slane %v2716, 5
        %v2719 = vsel %vm249, %v2714, %v2718
        %v2721 = vshrl.u32 %v2680, 16
        %v2723 = vrot.slane %v2721, 4
        %v2724 = vshll.u32 %v2680, 16
        %v2726 = vrot.slane %v2724, 5
        %v2727 = vor.u32 %v2723, %v2726
        %v2728 = vrot.slane %v2727, 4
        %v2730 = vshll.u32 %v2681, 16
        %v2732 = vrot.slane %v2730, 5
        %v2733 = vsel %vm249, %v2728, %v2732
        %v2735 = vshrl.u32 %v2682, 16
        %v2737 = vrot.slane %v2735, 4
        %v2738 = vshll.u32 %v2682, 16
        %v2740 = vrot.slane %v2738, 5
        %v2741 = vor.u32 %v2737, %v2740
        %v2742 = vrot.slane %v2741, 4
        %v2744 = vshll.u32 %v2683, 16
        %v2746 = vrot.slane %v2744, 5
        %v2747 = vsel %vm249, %v2742, %v2746
        %v2749 = vshrl.u32 %v2684, 16
        %v2751 = vrot.slane %v2749, 4
        %v2752 = vshll.u32 %v2684, 16
        %v2754 = vrot.slane %v2752, 5
        %v2755 = vor.u32 %v2751, %v2754
        %v2756 = vrot.slane %v2755, 4
        %v2758 = vshll.u32 %v2685, 16
        %v2760 = vrot.slane %v2758, 5
        %v2761 = vsel %vm249, %v2756, %v2760
        %v2763 = vshrl.u32 %v2686, 16
        %v2765 = vrot.slane %v2763, 4
        %v2766 = vshll.u32 %v2686, 16
        %v2768 = vrot.slane %v2766, 5
        %v2769 = vor.u32 %v2765, %v2768
        %v2770 = vrot.slane %v2769, 4
        %v2772 = vshll.u32 %v2687, 16
        %v2774 = vrot.slane %v2772, 5
        %v2775 = vsel %vm249, %v2770, %v2774
        %v2777 = vshrl.u32 %v2688, 16
        %v2779 = vrot.slane %v2777, 4
        %v2780 = vshll.u32 %v2688, 16
        %v2782 = vrot.slane %v2780, 5
        %v2783 = vor.u32 %v2779, %v2782
        %v2784 = vrot.slane %v2783, 4
        %v2786 = vshll.u32 %v2689, 16
        %v2788 = vrot.slane %v2786, 5
        %v2789 = vsel %vm249, %v2784, %v2788
        %v2791 = vshrl.u32 %v2690, 16
        %v2793 = vrot.slane %v2791, 4
        %v2794 = vshll.u32 %v2690, 16
        %v2796 = vrot.slane %v2794, 5
        %v2797 = vor.u32 %v2793, %v2796
        %v2798 = vrot.slane %v2797, 4
        %v2800 = vshll.u32 %v2691, 16
        %v2802 = vrot.slane %v2800, 5
        %v2803 = vsel %vm249, %v2798, %v2802
        %s2804 = scalar_lea.vmem %s207, 768
        %v2805 = vld [vmem:[%s2804] sm:$0xf]
        %v2806 = vld [vmem:[%s2804 + $0x4] sm:$0xf]
        %v2807 = vld [vmem:[%s2804 + $0x8] sm:$0xf]
        %v2808 = vld [vmem:[%s2804 + $0xc] sm:$0xf]
        %v2809 = vld [vmem:[%s2804 + $0x10] sm:$0xf]
        %v2810 = vld [vmem:[%s2804 + $0x14] sm:$0xf]
        %v2811 = vld [vmem:[%s2804 + $0x18] sm:$0xf]
        %v2812 = vld [vmem:[%s2804 + $0x1c] sm:$0xf]
        %v2813 = vld [vmem:[%s2804 + $0x20] sm:$0xf]
        %v2814 = vld [vmem:[%s2804 + $0x24] sm:$0xf]
        %v2815 = vld [vmem:[%s2804 + $0x28] sm:$0xf]
        %v2816 = vld [vmem:[%s2804 + $0x2c] sm:$0xf]
        %v2817 = vld [vmem:[%s2804 + $0x30] sm:$0xf]
        %v2818 = vld [vmem:[%s2804 + $0x34] sm:$0xf]
        %v2819 = vld [vmem:[%s2804 + $0x38] sm:$0xf]
        %v2820 = vld [vmem:[%s2804 + $0x3c] sm:$0xf]
        %v2821 = vld [vmem:[%s573] sm:$0xe]
        %v2822 = vld [vmem:[%s573 + $0x8] sm:$0xe]
        %v2823 = vld [vmem:[%s573 + $0x10] sm:$0xe]
        %v2824 = vld [vmem:[%s573 + $0x18] sm:$0xe]
        %v2825 = vld [vmem:[%s573 + $0x20] sm:$0xe]
        %v2826 = vld [vmem:[%s573 + $0x28] sm:$0xe]
        %v2827 = vld [vmem:[%s573 + $0x30] sm:$0xe]
        %v2828 = vld [vmem:[%s573 + $0x38] sm:$0xe]
        %v2845 = vrot.slane %v2821, 5
        %v2846 = vrot.slane %v2845, 4
        %v2847 = vrot.slane %v2677, 5
        %v2848 = vsel %vm1177, %v2846, %v2847
        %v2849 = vrot.slane %v2822, 5
        %v2850 = vrot.slane %v2849, 4
        %v2851 = vrot.slane %v2679, 5
        %v2852 = vsel %vm1177, %v2850, %v2851
        %v2853 = vrot.slane %v2823, 5
        %v2854 = vrot.slane %v2853, 4
        %v2855 = vrot.slane %v2681, 5
        %v2856 = vsel %vm1177, %v2854, %v2855
        %v2857 = vrot.slane %v2824, 5
        %v2858 = vrot.slane %v2857, 4
        %v2859 = vrot.slane %v2683, 5
        %v2860 = vsel %vm1177, %v2858, %v2859
        %v2861 = vrot.slane %v2825, 5
        %v2862 = vrot.slane %v2861, 4
        %v2863 = vrot.slane %v2685, 5
        %v2864 = vsel %vm1177, %v2862, %v2863
        %v2865 = vrot.slane %v2826, 5
        %v2866 = vrot.slane %v2865, 4
        %v2867 = vrot.slane %v2687, 5
        %v2868 = vsel %vm1177, %v2866, %v2867
        %v2869 = vrot.slane %v2827, 5
        %v2870 = vrot.slane %v2869, 4
        %v2871 = vrot.slane %v2689, 5
        %v2872 = vsel %vm1177, %v2870, %v2871
        %v2873 = vrot.slane %v2828, 5
        %v2874 = vrot.slane %v2873, 4
        %v2875 = vrot.slane %v2691, 5
        %v2876 = vsel %vm1177, %v2874, %v2875
        %s2877 = scalar_lea.vmem %s207, 832
        %v2878 = vld [vmem:[%s2877] sm:$0xf]
        %v2879 = vld [vmem:[%s2877 + $0x4] sm:$0xf]
        %v2880 = vld [vmem:[%s2877 + $0x8] sm:$0xf]
        %v2881 = vld [vmem:[%s2877 + $0xc] sm:$0xf]
        %v2882 = vld [vmem:[%s2877 + $0x10] sm:$0xf]
        %v2883 = vld [vmem:[%s2877 + $0x14] sm:$0xf]
        %v2884 = vld [vmem:[%s2877 + $0x18] sm:$0xf]
        %v2885 = vld [vmem:[%s2877 + $0x1c] sm:$0xf]
        %v2886 = vld [vmem:[%s2877 + $0x20] sm:$0xf]
        %v2887 = vld [vmem:[%s2877 + $0x24] sm:$0xf]
        %v2888 = vld [vmem:[%s2877 + $0x28] sm:$0xf]
        %v2889 = vld [vmem:[%s2877 + $0x2c] sm:$0xf]
        %v2890 = vld [vmem:[%s2877 + $0x30] sm:$0xf]
        %v2891 = vld [vmem:[%s2877 + $0x34] sm:$0xf]
        %v2892 = vld [vmem:[%s2877 + $0x38] sm:$0xf]
        %v2893 = vld [vmem:[%s2877 + $0x3c] sm:$0xf]
        %v2894 = vunpack.c.l.b16 %v2848
        %v2895 = vunpack.c.l.b16 %v2852
        %v2896 = vunpack.c.l.b16 %v2856
        %v2897 = vunpack.c.l.b16 %v2860
        %v2898 = vunpack.c.l.b16 %v2864
        %v2899 = vunpack.c.l.b16 %v2868
        %v2900 = vunpack.c.l.b16 %v2872
        %v2901 = vunpack.c.l.b16 %v2876
        %v2902 = vpack.c.b16 %v2895, %v2894
        %v2903 = vpack.c.b16 %v2897, %v2896
        %v2904 = vpack.c.b16 %v2899, %v2898
        %v2905 = vpack.c.b16 %v2901, %v2900
        %v2926 = vunpack.c.l.b16 %v2878
        %v2927 = vunpack.c.l.b16 %v2879
        %v2928 = vunpack.c.l.b16 %v2880
        %v2929 = vunpack.c.l.b16 %v2881
        %v2930 = vunpack.c.l.b16 %v2882
        %v2931 = vunpack.c.l.b16 %v2883
        %v2932 = vunpack.c.l.b16 %v2884
        %v2933 = vunpack.c.l.b16 %v2885
        %v2934 = vunpack.c.l.b16 %v2886
        %v2935 = vunpack.c.l.b16 %v2887
        %v2936 = vunpack.c.l.b16 %v2888
        %v2937 = vunpack.c.l.b16 %v2889
        %v2938 = vunpack.c.l.b16 %v2890
        %v2939 = vunpack.c.l.b16 %v2891
        %v2940 = vunpack.c.l.b16 %v2892
        %v2941 = vunpack.c.l.b16 %v2893
        %v2942 = vpack.c.b16 %v2927, %v2926
        %v2943 = vpack.c.b16 %v2929, %v2928
        %v2944 = vpack.c.b16 %v2931, %v2930
        %v2945 = vpack.c.b16 %v2933, %v2932
        %v2946 = vpack.c.b16 %v2935, %v2934
        %v2947 = vpack.c.b16 %v2937, %v2936
        %v2948 = vpack.c.b16 %v2939, %v2938
        %v2949 = vpack.c.b16 %v2941, %v2940
        %2958 = vmatpush.bf16.msra.mxu0 %v2949
        %2959 = vmatpush.bf16.msra.mxu0 %v2948
        %2960 = vmatpush.bf16.msra.mxu0 %v2947
        %2961 = vmatpush.bf16.msra.mxu0 %v2946
        %2962 = vmatpush.bf16.msra.mxu0 %v2945
        %2963 = vmatpush.bf16.msra.mxu0 %v2944
        %2964 = vmatpush.bf16.msra.mxu0 %v2943
        %2965 = vmatpush.bf16.msra.mxu0 %v2942
        %2966 = vmatmul.bf16.gmra.mxu0 %v2902
        %v2967 = vpop.f32.mrf.mxu0
        %v2968 = vadd.f32 0.0, %v2967
        %v2969 = vpop.f32.mrf.mxu0
        %v2970 = vadd.f32 0.0, %v2969
        %2971 = vmatmul.bf16.gmra.mxu0 %v2903
        %v2972 = vpop.f32.mrf.mxu0
        %v2973 = vadd.f32 0.0, %v2972
        %v2974 = vpop.f32.mrf.mxu0
        %v2975 = vadd.f32 0.0, %v2974
        %2976 = vmatmul.bf16.gmra.mxu0 %v2904
        %v2977 = vpop.f32.mrf.mxu0
        %v2978 = vadd.f32 0.0, %v2977
        %v2979 = vpop.f32.mrf.mxu0
        %v2980 = vadd.f32 0.0, %v2979
        %2981 = vmatmul.bf16.gmra.mxu0 %v2905
        %v2982 = vpop.f32.mrf.mxu0
        %v2983 = vadd.f32 0.0, %v2982
        %v2984 = vpop.f32.mrf.mxu0
        %v2985 = vadd.f32 0.0, %v2984
        %2986 = vdwg.mxu0
        %v2987 = vunpack.c.l.b16 %v2705
        %v2988 = vunpack.c.l.b16 %v2719
        %v2989 = vunpack.c.l.b16 %v2733
        %v2990 = vunpack.c.l.b16 %v2747
        %v2991 = vunpack.c.l.b16 %v2761
        %v2992 = vunpack.c.l.b16 %v2775
        %v2993 = vunpack.c.l.b16 %v2789
        %v2994 = vunpack.c.l.b16 %v2803
        %v2995 = vpack.c.b16 %v2988, %v2987
        %v2996 = vpack.c.b16 %v2990, %v2989
        %v2997 = vpack.c.b16 %v2992, %v2991
        %v2998 = vpack.c.b16 %v2994, %v2993
        %v3019 = vunpack.c.l.b16 %v2805
        %v3020 = vunpack.c.l.b16 %v2806
        %v3021 = vunpack.c.l.b16 %v2807
        %v3022 = vunpack.c.l.b16 %v2808
        %v3023 = vunpack.c.l.b16 %v2809
        %v3024 = vunpack.c.l.b16 %v2810
        %v3025 = vunpack.c.l.b16 %v2811
        %v3026 = vunpack.c.l.b16 %v2812
        %v3027 = vunpack.c.l.b16 %v2813
        %v3028 = vunpack.c.l.b16 %v2814
        %v3029 = vunpack.c.l.b16 %v2815
        %v3030 = vunpack.c.l.b16 %v2816
        %v3031 = vunpack.c.l.b16 %v2817
        %v3032 = vunpack.c.l.b16 %v2818
        %v3033 = vunpack.c.l.b16 %v2819
        %v3034 = vunpack.c.l.b16 %v2820
        %v3035 = vpack.c.b16 %v3020, %v3019
        %v3036 = vpack.c.b16 %v3022, %v3021
        %v3037 = vpack.c.b16 %v3024, %v3023
        %v3038 = vpack.c.b16 %v3026, %v3025
        %v3039 = vpack.c.b16 %v3028, %v3027
        %v3040 = vpack.c.b16 %v3030, %v3029
        %v3041 = vpack.c.b16 %v3032, %v3031
        %v3042 = vpack.c.b16 %v3034, %v3033
        %3051 = vmatpush.bf16.msra.mxu0 %v3042
        %3052 = vmatpush.bf16.msra.mxu0 %v3041
        %3053 = vmatpush.bf16.msra.mxu0 %v3040
        %3054 = vmatpush.bf16.msra.mxu0 %v3039
        %3055 = vmatpush.bf16.msra.mxu0 %v3038
        %3056 = vmatpush.bf16.msra.mxu0 %v3037
        %3057 = vmatpush.bf16.msra.mxu0 %v3036
        %3058 = vmatpush.bf16.msra.mxu0 %v3035
        %3059 = vmatmul.bf16.gmra.mxu0 %v2995
        %v3060 = vpop.f32.mrf.mxu0
        %v3061 = vadd.f32 %v2968, %v3060
        %v3062 = vpop.f32.mrf.mxu0
        %v3063 = vadd.f32 %v2970, %v3062
        %3064 = vmatmul.bf16.gmra.mxu0 %v2996
        %v3065 = vpop.f32.mrf.mxu0
        %v3066 = vadd.f32 %v2973, %v3065
        %v3067 = vpop.f32.mrf.mxu0
        %v3068 = vadd.f32 %v2975, %v3067
        %3069 = vmatmul.bf16.gmra.mxu0 %v2997
        %v3070 = vpop.f32.mrf.mxu0
        %v3071 = vadd.f32 %v2978, %v3070
        %v3072 = vpop.f32.mrf.mxu0
        %v3073 = vadd.f32 %v2980, %v3072
        %3074 = vmatmul.bf16.gmra.mxu0 %v2998
        %v3075 = vpop.f32.mrf.mxu0
        %v3076 = vadd.f32 %v2983, %v3075
        %v3077 = vpop.f32.mrf.mxu0
        %v3078 = vadd.f32 %v2985, %v3077
        %3079 = vdwg.mxu0
        %v3080 = vld [vmem:[%s2242] sm:$0xf]
        %v3081 = vld [vmem:[%s2242 + $0x4] sm:$0x1]
        %v3082 = vld [vmem:[%s2242 + $0x8] sm:$0xf]
        %v3083 = vld [vmem:[%s2242 + $0xc] sm:$0x1]
        %v3084 = vld [vmem:[%s2242 + $0x10] sm:$0xf]
        %v3085 = vld [vmem:[%s2242 + $0x14] sm:$0x1]
        %v3086 = vld [vmem:[%s2242 + $0x18] sm:$0xf]
        %v3087 = vld [vmem:[%s2242 + $0x1c] sm:$0x1]
        %v3088 = vld [vmem:[%s2242 + $0x20] sm:$0xf]
        %v3089 = vld [vmem:[%s2242 + $0x24] sm:$0x1]
        %v3090 = vld [vmem:[%s2242 + $0x28] sm:$0xf]
        %v3091 = vld [vmem:[%s2242 + $0x2c] sm:$0x1]
        %v3092 = vld [vmem:[%s2242 + $0x30] sm:$0xf]
        %v3093 = vld [vmem:[%s2242 + $0x34] sm:$0x1]
        %v3094 = vld [vmem:[%s2242 + $0x38] sm:$0xf]
        %v3095 = vld [vmem:[%s2242 + $0x3c] sm:$0x1]
        %v3097 = vshrl.u32 %v3080, 16
        %v3099 = vrot.slane %v3097, 4
        %v3100 = vshll.u32 %v3080, 16
        %v3102 = vrot.slane %v3100, 5
        %v3103 = vor.u32 %v3099, %v3102
        %v3104 = vrot.slane %v3103, 4
        %v3106 = vshll.u32 %v3081, 16
        %v3108 = vrot.slane %v3106, 5
        %v3109 = vsel %vm249, %v3104, %v3108
        %v3111 = vshrl.u32 %v3082, 16
        %v3113 = vrot.slane %v3111, 4
        %v3114 = vshll.u32 %v3082, 16
        %v3116 = vrot.slane %v3114, 5
        %v3117 = vor.u32 %v3113, %v3116
        %v3118 = vrot.slane %v3117, 4
        %v3120 = vshll.u32 %v3083, 16
        %v3122 = vrot.slane %v3120, 5
        %v3123 = vsel %vm249, %v3118, %v3122
        %v3125 = vshrl.u32 %v3084, 16
        %v3127 = vrot.slane %v3125, 4
        %v3128 = vshll.u32 %v3084, 16
        %v3130 = vrot.slane %v3128, 5
        %v3131 = vor.u32 %v3127, %v3130
        %v3132 = vrot.slane %v3131, 4
        %v3134 = vshll.u32 %v3085, 16
        %v3136 = vrot.slane %v3134, 5
        %v3137 = vsel %vm249, %v3132, %v3136
        %v3139 = vshrl.u32 %v3086, 16
        %v3141 = vrot.slane %v3139, 4
        %v3142 = vshll.u32 %v3086, 16
        %v3144 = vrot.slane %v3142, 5
        %v3145 = vor.u32 %v3141, %v3144
        %v3146 = vrot.slane %v3145, 4
        %v3148 = vshll.u32 %v3087, 16
        %v3150 = vrot.slane %v3148, 5
        %v3151 = vsel %vm249, %v3146, %v3150
        %v3153 = vshrl.u32 %v3088, 16
        %v3155 = vrot.slane %v3153, 4
        %v3156 = vshll.u32 %v3088, 16
        %v3158 = vrot.slane %v3156, 5
        %v3159 = vor.u32 %v3155, %v3158
        %v3160 = vrot.slane %v3159, 4
        %v3162 = vshll.u32 %v3089, 16
        %v3164 = vrot.slane %v3162, 5
        %v3165 = vsel %vm249, %v3160, %v3164
        %v3167 = vshrl.u32 %v3090, 16
        %v3169 = vrot.slane %v3167, 4
        %v3170 = vshll.u32 %v3090, 16
        %v3172 = vrot.slane %v3170, 5
        %v3173 = vor.u32 %v3169, %v3172
        %v3174 = vrot.slane %v3173, 4
        %v3176 = vshll.u32 %v3091, 16
        %v3178 = vrot.slane %v3176, 5
        %v3179 = vsel %vm249, %v3174, %v3178
        %v3181 = vshrl.u32 %v3092, 16
        %v3183 = vrot.slane %v3181, 4
        %v3184 = vshll.u32 %v3092, 16
        %v3186 = vrot.slane %v3184, 5
        %v3187 = vor.u32 %v3183, %v3186
        %v3188 = vrot.slane %v3187, 4
        %v3190 = vshll.u32 %v3093, 16
        %v3192 = vrot.slane %v3190, 5
        %v3193 = vsel %vm249, %v3188, %v3192
        %v3195 = vshrl.u32 %v3094, 16
        %v3197 = vrot.slane %v3195, 4
        %v3198 = vshll.u32 %v3094, 16
        %v3200 = vrot.slane %v3198, 5
        %v3201 = vor.u32 %v3197, %v3200
        %v3202 = vrot.slane %v3201, 4
        %v3204 = vshll.u32 %v3095, 16
        %v3206 = vrot.slane %v3204, 5
        %v3207 = vsel %vm249, %v3202, %v3206
        %s3208 = scalar_lea.vmem %s207, 896
        %v3209 = vld [vmem:[%s3208] sm:$0xf]
        %v3210 = vld [vmem:[%s3208 + $0x4] sm:$0xf]
        %v3211 = vld [vmem:[%s3208 + $0x8] sm:$0xf]
        %v3212 = vld [vmem:[%s3208 + $0xc] sm:$0xf]
        %v3213 = vld [vmem:[%s3208 + $0x10] sm:$0xf]
        %v3214 = vld [vmem:[%s3208 + $0x14] sm:$0xf]
        %v3215 = vld [vmem:[%s3208 + $0x18] sm:$0xf]
        %v3216 = vld [vmem:[%s3208 + $0x1c] sm:$0xf]
        %v3217 = vld [vmem:[%s3208 + $0x20] sm:$0xf]
        %v3218 = vld [vmem:[%s3208 + $0x24] sm:$0xf]
        %v3219 = vld [vmem:[%s3208 + $0x28] sm:$0xf]
        %v3220 = vld [vmem:[%s3208 + $0x2c] sm:$0xf]
        %v3221 = vld [vmem:[%s3208 + $0x30] sm:$0xf]
        %v3222 = vld [vmem:[%s3208 + $0x34] sm:$0xf]
        %v3223 = vld [vmem:[%s3208 + $0x38] sm:$0xf]
        %v3224 = vld [vmem:[%s3208 + $0x3c] sm:$0xf]
        %v3225 = vunpack.c.l.b16 %v3109
        %v3226 = vunpack.c.l.b16 %v3123
        %v3227 = vunpack.c.l.b16 %v3137
        %v3228 = vunpack.c.l.b16 %v3151
        %v3229 = vunpack.c.l.b16 %v3165
        %v3230 = vunpack.c.l.b16 %v3179
        %v3231 = vunpack.c.l.b16 %v3193
        %v3232 = vunpack.c.l.b16 %v3207
        %v3233 = vpack.c.b16 %v3226, %v3225
        %v3234 = vpack.c.b16 %v3228, %v3227
        %v3235 = vpack.c.b16 %v3230, %v3229
        %v3236 = vpack.c.b16 %v3232, %v3231
        %v3257 = vunpack.c.l.b16 %v3209
        %v3258 = vunpack.c.l.b16 %v3210
        %v3259 = vunpack.c.l.b16 %v3211
        %v3260 = vunpack.c.l.b16 %v3212
        %v3261 = vunpack.c.l.b16 %v3213
        %v3262 = vunpack.c.l.b16 %v3214
        %v3263 = vunpack.c.l.b16 %v3215
        %v3264 = vunpack.c.l.b16 %v3216
        %v3265 = vunpack.c.l.b16 %v3217
        %v3266 = vunpack.c.l.b16 %v3218
        %v3267 = vunpack.c.l.b16 %v3219
        %v3268 = vunpack.c.l.b16 %v3220
        %v3269 = vunpack.c.l.b16 %v3221
        %v3270 = vunpack.c.l.b16 %v3222
        %v3271 = vunpack.c.l.b16 %v3223
        %v3272 = vunpack.c.l.b16 %v3224
        %v3273 = vpack.c.b16 %v3258, %v3257
        %v3274 = vpack.c.b16 %v3260, %v3259
        %v3275 = vpack.c.b16 %v3262, %v3261
        %v3276 = vpack.c.b16 %v3264, %v3263
        %v3277 = vpack.c.b16 %v3266, %v3265
        %v3278 = vpack.c.b16 %v3268, %v3267
        %v3279 = vpack.c.b16 %v3270, %v3269
        %v3280 = vpack.c.b16 %v3272, %v3271
        %3289 = vmatpush.bf16.msra.mxu0 %v3280
        %3290 = vmatpush.bf16.msra.mxu0 %v3279
        %3291 = vmatpush.bf16.msra.mxu0 %v3278
        %3292 = vmatpush.bf16.msra.mxu0 %v3277
        %3293 = vmatpush.bf16.msra.mxu0 %v3276
        %3294 = vmatpush.bf16.msra.mxu0 %v3275
        %3295 = vmatpush.bf16.msra.mxu0 %v3274
        %3296 = vmatpush.bf16.msra.mxu0 %v3273
        %3297 = vmatmul.bf16.gmra.mxu0 %v3233
        %v3298 = vpop.f32.mrf.mxu0
        %v3299 = vadd.f32 0.0, %v3298
        %v3300 = vpop.f32.mrf.mxu0
        %v3301 = vadd.f32 0.0, %v3300
        %3302 = vmatmul.bf16.gmra.mxu0 %v3234
        %v3303 = vpop.f32.mrf.mxu0
        %v3304 = vadd.f32 0.0, %v3303
        %v3305 = vpop.f32.mrf.mxu0
        %v3306 = vadd.f32 0.0, %v3305
        %3307 = vmatmul.bf16.gmra.mxu0 %v3235
        %v3308 = vpop.f32.mrf.mxu0
        %v3309 = vadd.f32 0.0, %v3308
        %v3310 = vpop.f32.mrf.mxu0
        %v3311 = vadd.f32 0.0, %v3310
        %3312 = vmatmul.bf16.gmra.mxu0 %v3236
        %v3313 = vpop.f32.mrf.mxu0
        %v3314 = vadd.f32 0.0, %v3313
        %v3315 = vpop.f32.mrf.mxu0
        %v3316 = vadd.f32 0.0, %v3315
        %3317 = vdwg.mxu0
        %v3318 = vadd.f32 %v3061, %v3299
        %v3319 = vadd.f32 %v3063, %v3301
        %v3320 = vadd.f32 %v3066, %v3304
        %v3321 = vadd.f32 %v3068, %v3306
        %v3322 = vadd.f32 %v3071, %v3309
        %v3323 = vadd.f32 %v3073, %v3311
        %v3324 = vadd.f32 %v3076, %v3314
        %v3325 = vadd.f32 %v3078, %v3316
        %v3326 = vld [vmem:[%s2242] sm:$0xe]
        %v3327 = vld [vmem:[%s2242 + $0x8] sm:$0xe]
        %v3328 = vld [vmem:[%s2242 + $0x10] sm:$0xe]
        %v3329 = vld [vmem:[%s2242 + $0x18] sm:$0xe]
        %v3330 = vld [vmem:[%s2242 + $0x20] sm:$0xe]
        %v3331 = vld [vmem:[%s2242 + $0x28] sm:$0xe]
        %v3332 = vld [vmem:[%s2242 + $0x30] sm:$0xe]
        %v3333 = vld [vmem:[%s2242 + $0x38] sm:$0xe]
        %v3350 = vrot.slane %v3326, 5
        %v3351 = vrot.slane %v3350, 4
        %v3352 = vrot.slane %v3081, 5
        %v3353 = vsel %vm1177, %v3351, %v3352
        %v3354 = vrot.slane %v3327, 5
        %v3355 = vrot.slane %v3354, 4
        %v3356 = vrot.slane %v3083, 5
        %v3357 = vsel %vm1177, %v3355, %v3356
        %v3358 = vrot.slane %v3328, 5
        %v3359 = vrot.slane %v3358, 4
        %v3360 = vrot.slane %v3085, 5
        %v3361 = vsel %vm1177, %v3359, %v3360
        %v3362 = vrot.slane %v3329, 5
        %v3363 = vrot.slane %v3362, 4
        %v3364 = vrot.slane %v3087, 5
        %v3365 = vsel %vm1177, %v3363, %v3364
        %v3366 = vrot.slane %v3330, 5
        %v3367 = vrot.slane %v3366, 4
        %v3368 = vrot.slane %v3089, 5
        %v3369 = vsel %vm1177, %v3367, %v3368
        %v3370 = vrot.slane %v3331, 5
        %v3371 = vrot.slane %v3370, 4
        %v3372 = vrot.slane %v3091, 5
        %v3373 = vsel %vm1177, %v3371, %v3372
        %v3374 = vrot.slane %v3332, 5
        %v3375 = vrot.slane %v3374, 4
        %v3376 = vrot.slane %v3093, 5
        %v3377 = vsel %vm1177, %v3375, %v3376
        %v3378 = vrot.slane %v3333, 5
        %v3379 = vrot.slane %v3378, 4
        %v3380 = vrot.slane %v3095, 5
        %v3381 = vsel %vm1177, %v3379, %v3380
        %s3382 = scalar_lea.vmem %s207, 960
        %v3383 = vld [vmem:[%s3382] sm:$0xf]
        %v3384 = vld [vmem:[%s3382 + $0x4] sm:$0xf]
        %v3385 = vld [vmem:[%s3382 + $0x8] sm:$0xf]
        %v3386 = vld [vmem:[%s3382 + $0xc] sm:$0xf]
        %v3387 = vld [vmem:[%s3382 + $0x10] sm:$0xf]
        %v3388 = vld [vmem:[%s3382 + $0x14] sm:$0xf]
        %v3389 = vld [vmem:[%s3382 + $0x18] sm:$0xf]
        %v3390 = vld [vmem:[%s3382 + $0x1c] sm:$0xf]
        %v3391 = vld [vmem:[%s3382 + $0x20] sm:$0xf]
        %v3392 = vld [vmem:[%s3382 + $0x24] sm:$0xf]
        %v3393 = vld [vmem:[%s3382 + $0x28] sm:$0xf]
        %v3394 = vld [vmem:[%s3382 + $0x2c] sm:$0xf]
        %v3395 = vld [vmem:[%s3382 + $0x30] sm:$0xf]
        %v3396 = vld [vmem:[%s3382 + $0x34] sm:$0xf]
        %v3397 = vld [vmem:[%s3382 + $0x38] sm:$0xf]
        %v3398 = vld [vmem:[%s3382 + $0x3c] sm:$0xf]
        %v3399 = vunpack.c.l.b16 %v3353
        %v3400 = vunpack.c.l.b16 %v3357
        %v3401 = vunpack.c.l.b16 %v3361
        %v3402 = vunpack.c.l.b16 %v3365
        %v3403 = vunpack.c.l.b16 %v3369
        %v3404 = vunpack.c.l.b16 %v3373
        %v3405 = vunpack.c.l.b16 %v3377
        %v3406 = vunpack.c.l.b16 %v3381
        %v3407 = vpack.c.b16 %v3400, %v3399
        %v3408 = vpack.c.b16 %v3402, %v3401
        %v3409 = vpack.c.b16 %v3404, %v3403
        %v3410 = vpack.c.b16 %v3406, %v3405
        %v3431 = vunpack.c.l.b16 %v3383
        %v3432 = vunpack.c.l.b16 %v3384
        %v3433 = vunpack.c.l.b16 %v3385
        %v3434 = vunpack.c.l.b16 %v3386
        %v3435 = vunpack.c.l.b16 %v3387
        %v3436 = vunpack.c.l.b16 %v3388
        %v3437 = vunpack.c.l.b16 %v3389
        %v3438 = vunpack.c.l.b16 %v3390
        %v3439 = vunpack.c.l.b16 %v3391
        %v3440 = vunpack.c.l.b16 %v3392
        %v3441 = vunpack.c.l.b16 %v3393
        %v3442 = vunpack.c.l.b16 %v3394
        %v3443 = vunpack.c.l.b16 %v3395
        %v3444 = vunpack.c.l.b16 %v3396
        %v3445 = vunpack.c.l.b16 %v3397
        %v3446 = vunpack.c.l.b16 %v3398
        %v3447 = vpack.c.b16 %v3432, %v3431
        %v3448 = vpack.c.b16 %v3434, %v3433
        %v3449 = vpack.c.b16 %v3436, %v3435
        %v3450 = vpack.c.b16 %v3438, %v3437
        %v3451 = vpack.c.b16 %v3440, %v3439
        %v3452 = vpack.c.b16 %v3442, %v3441
        %v3453 = vpack.c.b16 %v3444, %v3443
        %v3454 = vpack.c.b16 %v3446, %v3445
        %3463 = vmatpush.bf16.msra.mxu0 %v3454
        %3464 = vmatpush.bf16.msra.mxu0 %v3453
        %3465 = vmatpush.bf16.msra.mxu0 %v3452
        %3466 = vmatpush.bf16.msra.mxu0 %v3451
        %3467 = vmatpush.bf16.msra.mxu0 %v3450
        %3468 = vmatpush.bf16.msra.mxu0 %v3449
        %3469 = vmatpush.bf16.msra.mxu0 %v3448
        %3470 = vmatpush.bf16.msra.mxu0 %v3447
        %3471 = vmatmul.bf16.gmra.mxu0 %v3407
        %v3472 = vpop.f32.mrf.mxu0
        %v3473 = vadd.f32 0.0, %v3472
        %v3474 = vpop.f32.mrf.mxu0
        %v3475 = vadd.f32 0.0, %v3474
        %3476 = vmatmul.bf16.gmra.mxu0 %v3408
        %v3477 = vpop.f32.mrf.mxu0
        %v3478 = vadd.f32 0.0, %v3477
        %v3479 = vpop.f32.mrf.mxu0
        %v3480 = vadd.f32 0.0, %v3479
        %3481 = vmatmul.bf16.gmra.mxu0 %v3409
        %v3482 = vpop.f32.mrf.mxu0
        %v3483 = vadd.f32 0.0, %v3482
        %v3484 = vpop.f32.mrf.mxu0
        %v3485 = vadd.f32 0.0, %v3484
        %3486 = vmatmul.bf16.gmra.mxu0 %v3410
        %v3487 = vpop.f32.mrf.mxu0
        %v3488 = vadd.f32 0.0, %v3487
        %v3489 = vpop.f32.mrf.mxu0
        %v3490 = vadd.f32 0.0, %v3489
        %3491 = vdwg.mxu0
        %v3492 = vadd.f32 %v3318, %v3473
        %v3493 = vadd.f32 %v3319, %v3475
        %v3494 = vadd.f32 %v3320, %v3478
        %v3495 = vadd.f32 %v3321, %v3480
        %v3496 = vadd.f32 %v3322, %v3483
        %v3497 = vadd.f32 %v3323, %v3485
        %v3498 = vadd.f32 %v3324, %v3488
        %v3499 = vadd.f32 %v3325, %v3490
        %v3500 = vpack.c.bf16 %v3492, %v3492
        %v3501 = vpack.c.bf16 %v3493, %v3493
        %v3502 = vpack.c.bf16 %v3494, %v3494
        %v3503 = vpack.c.bf16 %v3495, %v3495
        %v3504 = vpack.c.bf16 %v3496, %v3496
        %v3505 = vpack.c.bf16 %v3497, %v3497
        %v3506 = vpack.c.bf16 %v3498, %v3498
        %v3507 = vpack.c.bf16 %v3499, %v3499
        %s3508 = scalar_lea.vmem %s189, 96 [#allocation2]
        %3509 = vst [vmem:[%s3508] sm:$0xf] %v3500
        %3510 = vst [vmem:[%s3508 + $0x4] sm:$0xf] %v3501
        %3511 = vst [vmem:[%s3508 + $0x8] sm:$0xf] %v3502
        %3512 = vst [vmem:[%s3508 + $0xc] sm:$0xf] %v3503
        %3513 = vst [vmem:[%s3508 + $0x10] sm:$0xf] %v3504
        %3514 = vst [vmem:[%s3508 + $0x14] sm:$0xf] %v3505
        %3515 = vst [vmem:[%s3508 + $0x18] sm:$0xf] %v3506
        %3516 = vst [vmem:[%s3508 + $0x1c] sm:$0xf] %v3507
        %v3517 = vadd.f32 %v3492, %v3493
        %v3518 = vadd.f32 %v3517, %v3494
        %v3519 = vadd.f32 %v3518, %v3495
        %v3520 = vadd.f32 %v3519, %v3496
        %v3521 = vadd.f32 %v3520, %v3497
        %v3522 = vadd.f32 %v3521, %v3498
        %v3523 = vadd.f32 %v3522, %v3499
        %v3524 = vrot.slane %v3523, 4
        %v3525 = vadd.f32 %v3523, %v3524
        %v3526 = vrot.slane %v3525, 2
        %v3527 = vadd.f32 %v3525, %v3526
        %v3528 = vrot.slane %v3527, 1
        %v3529 = vadd.f32 %v3527, %v3528
        %v3530 = vadd.f32 %v2653, %v3529
        %v3531 = vmul.f32 %v3492, %v3492
        %v3532 = vmul.f32 %v3493, %v3493
        %v3533 = vmul.f32 %v3494, %v3494
        %v3534 = vmul.f32 %v3495, %v3495
        %v3535 = vmul.f32 %v3496, %v3496
        %v3536 = vmul.f32 %v3497, %v3497
        %v3537 = vmul.f32 %v3498, %v3498
        %v3538 = vmul.f32 %v3499, %v3499
        %v3539 = vadd.f32 %v3531, %v3532
        %v3540 = vadd.f32 %v3539, %v3533
        %v3541 = vadd.f32 %v3540, %v3534
        %v3542 = vadd.f32 %v3541, %v3535
        %v3543 = vadd.f32 %v3542, %v3536
        %v3544 = vadd.f32 %v3543, %v3537
        %v3545 = vadd.f32 %v3544, %v3538
        %v3546 = vrot.slane %v3545, 4
        %v3547 = vadd.f32 %v3545, %v3546
        %v3548 = vrot.slane %v3547, 2
        %v3549 = vadd.f32 %v3547, %v3548
        %v3550 = vrot.slane %v3549, 1
        %v3551 = vadd.f32 %v3549, %v3550
        %v3552 = vadd.f32 %v2675, %v3551
        %vm3553 = vcmask 1040384
        %v3554 = vsel %vm3553, %v3530, %v3552
        %3555 = vst [vmem:[%s214] sm:$0x3] %v3554
        %s3556 = sand.u32 %s89, 1
        %s3557 = sand.u32 %s89, 1
        %s3558 = smul.addr %s3557, 128
        %s3559 = scalar_lea.vmem [#allocation2], %s3558
        %p3560 = scmp.lt.s32.totalorder %s20, 1
        %s3561 = scalar_select %p3560, %s20, 1
        %p3562 = scmp.lt.s32.totalorder %s19, 0
        %s3563 = scalar_select %p3562, %s19, 0
        %s3564 = sadd.s32 %s3563, %s3561
        %s3565 = smul.addr %s3564, 2
        %s3566 = scalar_lea.vmem %s3, %s3565
        // Predicated region
        $region29: #{unet_innermost_forward.4} parent=27 // pred_check
          %p3567 = pneg %p99
        $region30: #{unet_innermost_forward.4} parent=27 // pred_check_branch
          %3569 = sbr.rel (%p3567) target = $region32
        $region31: #{unet_innermost_forward.4} parent=27 // pred_region
          %s3570 = smul.addr %s20, 8
          %s3571 = sadd.s32 %s19, %s3570
          %s3572 = smul.addr %s3571, 4
          %s3573 = scalar_lea.vmem %s2, %s3572
          // Predicated region
          $region33: #{unet_innermost_forward.4} parent=31 // pred_check
            _
          $region34: #{unet_innermost_forward.4} parent=31 // pred_check_branch
            %3575 = sbr.rel (0) target = $region36
          $region35: #{unet_innermost_forward.4} parent=31 // pred_region
            // Predicated region
            $region37: #{unet_innermost_forward.4} parent=35 // pred_check
              _
            $region38: #{unet_innermost_forward.4} parent=35 // pred_check_branch
              %3577 = sbr.rel target = $region40
            $region39: #{unet_innermost_forward.4} parent=35 // pred_region
              // Predicated region
              $region52: #{unet_innermost_forward.4} parent=39 // pred_check
                _
              $region53: #{unet_innermost_forward.4} parent=39 // pred_check_branch
                %3655 = sbr.rel (0) target = $region55
              $region54: #{unet_innermost_forward.4} parent=39 // pred_region
                loop: start=0, step=1, limit=1
                $region56: #{unet_innermost_forward.4} parent=54 // loop_pre_header
                  _
                $region57: #{unet_innermost_forward.4} parent=54 // loop_header
                  %s3657 = sphi 0, %s3661
                  %p3658 = scmp.ge.s32.totalorder %s3657, 1
                  %s3662 = sphi %s3559, %s3559
                  %s3663 = sphi %s3573, %s3573
                $region58: #{unet_innermost_forward.4} parent=54 // loop_header_branch
                  %3660 = sbr.rel (%p3658) target = $region62
                $region59: #{unet_innermost_forward.4} parent=54 // loop_body
                  _
                $region60: #{unet_innermost_forward.4} parent=54 // loop_footer
                  %s3661 = sadd.s32 1, %s3657
                $region61: #{unet_innermost_forward.4} parent=54 // loop_footer_branch
                  %3656 = sbr.rel target = $region57
                $region62: #{unet_innermost_forward.4} parent=54 // loop_exit
                  _
                %s3665 = ssub.s32 16, 1
                loop: start=0, step=1, limit=1
                $region63: #{unet_innermost_forward.4} parent=54 // loop_pre_header
                  _
                $region64: #{unet_innermost_forward.4} parent=54 // loop_header
                  %s3667 = sphi 0, %s3671
                  %p3668 = scmp.ge.s32.totalorder %s3667, 1
                  %s3672 = sphi %s3559, %s3559
                  %s3673 = sphi %s3573, %s3573
                $region65: #{unet_innermost_forward.4} parent=54 // loop_header_branch
                  %3670 = sbr.rel (%p3668) target = $region69
                $region66: #{unet_innermost_forward.4} parent=54 // loop_body
                  %v3674 = vld [vmem:[%s3672] sm:%s3665]
                  %3675 = vst [vmem:[%s3673] sm:%s3665] %v3674
                  %v3676 = vld [vmem:[%s3672 + $0x4] sm:%s3665]
                  %3677 = vst [vmem:[%s3673 + $0x4] sm:%s3665] %v3676
                  %v3678 = vld [vmem:[%s3672 + $0x8] sm:%s3665]
                  %3679 = vst [vmem:[%s3673 + $0x8] sm:%s3665] %v3678
                  %v3680 = vld [vmem:[%s3672 + $0xc] sm:%s3665]
                  %3681 = vst [vmem:[%s3673 + $0xc] sm:%s3665] %v3680
                  %v3682 = vld [vmem:[%s3672 + $0x10] sm:%s3665]
                  %3683 = vst [vmem:[%s3673 + $0x10] sm:%s3665] %v3682
                  %v3684 = vld [vmem:[%s3672 + $0x14] sm:%s3665]
                  %3685 = vst [vmem:[%s3673 + $0x14] sm:%s3665] %v3684
                  %v3686 = vld [vmem:[%s3672 + $0x18] sm:%s3665]
                  %3687 = vst [vmem:[%s3673 + $0x18] sm:%s3665] %v3686
                  %v3688 = vld [vmem:[%s3672 + $0x1c] sm:%s3665]
                  %3689 = vst [vmem:[%s3673 + $0x1c] sm:%s3665] %v3688
                  %v3690 = vld [vmem:[%s3672 + $0x20] sm:%s3665]
                  %3691 = vst [vmem:[%s3673 + $0x40] sm:%s3665] %v3690
                  %v3692 = vld [vmem:[%s3672 + $0x24] sm:%s3665]
                  %3693 = vst [vmem:[%s3673 + $0x44] sm:%s3665] %v3692
                  %v3694 = vld [vmem:[%s3672 + $0x28] sm:%s3665]
                  %3695 = vst [vmem:[%s3673 + $0x48] sm:%s3665] %v3694
                  %v3696 = vld [vmem:[%s3672 + $0x2c] sm:%s3665]
                  %3697 = vst [vmem:[%s3673 + $0x4c] sm:%s3665] %v3696
                  %v3698 = vld [vmem:[%s3672 + $0x30] sm:%s3665]
                  %3699 = vst [vmem:[%s3673 + $0x50] sm:%s3665] %v3698
                  %v3700 = vld [vmem:[%s3672 + $0x34] sm:%s3665]
                  %3701 = vst [vmem:[%s3673 + $0x54] sm:%s3665] %v3700
                  %v3702 = vld [vmem:[%s3672 + $0x38] sm:%s3665]
                  %3703 = vst [vmem:[%s3673 + $0x58] sm:%s3665] %v3702
                  %v3704 = vld [vmem:[%s3672 + $0x3c] sm:%s3665]
                  %3705 = vst [vmem:[%s3673 + $0x5c] sm:%s3665] %v3704
                  %v3706 = vld [vmem:[%s3672 + $0x40] sm:%s3665]
                  %3707 = vst [vmem:[%s3673 + $0x80] sm:%s3665] %v3706
                  %v3708 = vld [vmem:[%s3672 + $0x44] sm:%s3665]
                  %3709 = vst [vmem:[%s3673 + $0x84] sm:%s3665] %v3708
                  %v3710 = vld [vmem:[%s3672 + $0x48] sm:%s3665]
                  %3711 = vst [vmem:[%s3673 + $0x88] sm:%s3665] %v3710
                  %v3712 = vld [vmem:[%s3672 + $0x4c] sm:%s3665]
                  %3713 = vst [vmem:[%s3673 + $0x8c] sm:%s3665] %v3712
                  %v3714 = vld [vmem:[%s3672 + $0x50] sm:%s3665]
                  %3715 = vst [vmem:[%s3673 + $0x90] sm:%s3665] %v3714
                  %v3716 = vld [vmem:[%s3672 + $0x54] sm:%s3665]
                  %3717 = vst [vmem:[%s3673 + $0x94] sm:%s3665] %v3716
                  %v3718 = vld [vmem:[%s3672 + $0x58] sm:%s3665]
                  %3719 = vst [vmem:[%s3673 + $0x98] sm:%s3665] %v3718
                  %v3720 = vld [vmem:[%s3672 + $0x5c] sm:%s3665]
                  %3721 = vst [vmem:[%s3673 + $0x9c] sm:%s3665] %v3720
                  %v3722 = vld [vmem:[%s3672 + $0x60] sm:%s3665]
                  %3723 = vst [vmem:[%s3673 + $0xc0] sm:%s3665] %v3722
                  %v3724 = vld [vmem:[%s3672 + $0x64] sm:%s3665]
                  %3725 = vst [vmem:[%s3673 + $0xc4] sm:%s3665] %v3724
                  %v3726 = vld [vmem:[%s3672 + $0x68] sm:%s3665]
                  %3727 = vst [vmem:[%s3673 + $0xc8] sm:%s3665] %v3726
                  %v3728 = vld [vmem:[%s3672 + $0x6c] sm:%s3665]
                  %3729 = vst [vmem:[%s3673 + $0xcc] sm:%s3665] %v3728
                  %v3730 = vld [vmem:[%s3672 + $0x70] sm:%s3665]
                  %3731 = vst [vmem:[%s3673 + $0xd0] sm:%s3665] %v3730
                  %v3732 = vld [vmem:[%s3672 + $0x74] sm:%s3665]
                  %3733 = vst [vmem:[%s3673 + $0xd4] sm:%s3665] %v3732
                  %v3734 = vld [vmem:[%s3672 + $0x78] sm:%s3665]
                  %3735 = vst [vmem:[%s3673 + $0xd8] sm:%s3665] %v3734
                  %v3736 = vld [vmem:[%s3672 + $0x7c] sm:%s3665]
                  %3737 = vst [vmem:[%s3673 + $0xdc] sm:%s3665] %v3736
                $region67: #{unet_innermost_forward.4} parent=54 // loop_footer
                  %s3671 = sadd.s32 1, %s3667
                $region68: #{unet_innermost_forward.4} parent=54 // loop_footer_branch
                  %3666 = sbr.rel target = $region64
                $region69: #{unet_innermost_forward.4} parent=54 // loop_exit
                  _
              $region55: #{unet_innermost_forward.4} parent=39 // pred_fallthru
                _
            $region40: #{unet_innermost_forward.4} parent=35 // pred_fallthru
              _
            // Predicated region
            $region41: #{unet_innermost_forward.4} parent=35 // pred_check
              _
            $region42: #{unet_innermost_forward.4} parent=35 // pred_check_branch
              %3579 = sbr.rel (0) target = $region44
            $region43: #{unet_innermost_forward.4} parent=35 // pred_region
              %s3581 = ssub.s32 16, 1
              loop: start=0, step=1, limit=1
              $region45: #{unet_innermost_forward.4} parent=43 // loop_pre_header
                _
              $region46: #{unet_innermost_forward.4} parent=43 // loop_header
                %s3583 = sphi 0, %s3587
                %p3584 = scmp.ge.s32.totalorder %s3583, 1
                %s3588 = sphi %s3559, %s3559
                %s3589 = sphi %s3573, %s3573
              $region47: #{unet_innermost_forward.4} parent=43 // loop_header_branch
                %3586 = sbr.rel (%p3584) target = $region51
              $region48: #{unet_innermost_forward.4} parent=43 // loop_body
                %v3590 = vld [vmem:[%s3588] sm:%s3581]
                %3591 = vst [vmem:[%s3589] sm:%s3581] %v3590
                %v3592 = vld [vmem:[%s3588 + $0x4] sm:%s3581]
                %3593 = vst [vmem:[%s3589 + $0x4] sm:%s3581] %v3592
                %v3594 = vld [vmem:[%s3588 + $0x8] sm:%s3581]
                %3595 = vst [vmem:[%s3589 + $0x8] sm:%s3581] %v3594
                %v3596 = vld [vmem:[%s3588 + $0xc] sm:%s3581]
                %3597 = vst [vmem:[%s3589 + $0xc] sm:%s3581] %v3596
                %v3598 = vld [vmem:[%s3588 + $0x10] sm:%s3581]
                %3599 = vst [vmem:[%s3589 + $0x10] sm:%s3581] %v3598
                %v3600 = vld [vmem:[%s3588 + $0x14] sm:%s3581]
                %3601 = vst [vmem:[%s3589 + $0x14] sm:%s3581] %v3600
                %v3602 = vld [vmem:[%s3588 + $0x18] sm:%s3581]
                %3603 = vst [vmem:[%s3589 + $0x18] sm:%s3581] %v3602
                %v3604 = vld [vmem:[%s3588 + $0x1c] sm:%s3581]
                %3605 = vst [vmem:[%s3589 + $0x1c] sm:%s3581] %v3604
                %v3606 = vld [vmem:[%s3588 + $0x20] sm:%s3581]
                %3607 = vst [vmem:[%s3589 + $0x40] sm:%s3581] %v3606
                %v3608 = vld [vmem:[%s3588 + $0x24] sm:%s3581]
                %3609 = vst [vmem:[%s3589 + $0x44] sm:%s3581] %v3608
                %v3610 = vld [vmem:[%s3588 + $0x28] sm:%s3581]
                %3611 = vst [vmem:[%s3589 + $0x48] sm:%s3581] %v3610
                %v3612 = vld [vmem:[%s3588 + $0x2c] sm:%s3581]
                %3613 = vst [vmem:[%s3589 + $0x4c] sm:%s3581] %v3612
                %v3614 = vld [vmem:[%s3588 + $0x30] sm:%s3581]
                %3615 = vst [vmem:[%s3589 + $0x50] sm:%s3581] %v3614
                %v3616 = vld [vmem:[%s3588 + $0x34] sm:%s3581]
                %3617 = vst [vmem:[%s3589 + $0x54] sm:%s3581] %v3616
                %v3618 = vld [vmem:[%s3588 + $0x38] sm:%s3581]
                %3619 = vst [vmem:[%s3589 + $0x58] sm:%s3581] %v3618
                %v3620 = vld [vmem:[%s3588 + $0x3c] sm:%s3581]
                %3621 = vst [vmem:[%s3589 + $0x5c] sm:%s3581] %v3620
                %v3622 = vld [vmem:[%s3588 + $0x40] sm:%s3581]
                %3623 = vst [vmem:[%s3589 + $0x80] sm:%s3581] %v3622
                %v3624 = vld [vmem:[%s3588 + $0x44] sm:%s3581]
                %3625 = vst [vmem:[%s3589 + $0x84] sm:%s3581] %v3624
                %v3626 = vld [vmem:[%s3588 + $0x48] sm:%s3581]
                %3627 = vst [vmem:[%s3589 + $0x88] sm:%s3581] %v3626
                %v3628 = vld [vmem:[%s3588 + $0x4c] sm:%s3581]
                %3629 = vst [vmem:[%s3589 + $0x8c] sm:%s3581] %v3628
                %v3630 = vld [vmem:[%s3588 + $0x50] sm:%s3581]
                %3631 = vst [vmem:[%s3589 + $0x90] sm:%s3581] %v3630
                %v3632 = vld [vmem:[%s3588 + $0x54] sm:%s3581]
                %3633 = vst [vmem:[%s3589 + $0x94] sm:%s3581] %v3632
                %v3634 = vld [vmem:[%s3588 + $0x58] sm:%s3581]
                %3635 = vst [vmem:[%s3589 + $0x98] sm:%s3581] %v3634
                %v3636 = vld [vmem:[%s3588 + $0x5c] sm:%s3581]
                %3637 = vst [vmem:[%s3589 + $0x9c] sm:%s3581] %v3636
                %v3638 = vld [vmem:[%s3588 + $0x60] sm:%s3581]
                %3639 = vst [vmem:[%s3589 + $0xc0] sm:%s3581] %v3638
                %v3640 = vld [vmem:[%s3588 + $0x64] sm:%s3581]
                %3641 = vst [vmem:[%s3589 + $0xc4] sm:%s3581] %v3640
                %v3642 = vld [vmem:[%s3588 + $0x68] sm:%s3581]
                %3643 = vst [vmem:[%s3589 + $0xc8] sm:%s3581] %v3642
                %v3644 = vld [vmem:[%s3588 + $0x6c] sm:%s3581]
                %3645 = vst [vmem:[%s3589 + $0xcc] sm:%s3581] %v3644
                %v3646 = vld [vmem:[%s3588 + $0x70] sm:%s3581]
                %3647 = vst [vmem:[%s3589 + $0xd0] sm:%s3581] %v3646
                %v3648 = vld [vmem:[%s3588 + $0x74] sm:%s3581]
                %3649 = vst [vmem:[%s3589 + $0xd4] sm:%s3581] %v3648
                %v3650 = vld [vmem:[%s3588 + $0x78] sm:%s3581]
                %3651 = vst [vmem:[%s3589 + $0xd8] sm:%s3581] %v3650
                %v3652 = vld [vmem:[%s3588 + $0x7c] sm:%s3581]
                %3653 = vst [vmem:[%s3589 + $0xdc] sm:%s3581] %v3652
              $region49: #{unet_innermost_forward.4} parent=43 // loop_footer
                %s3587 = sadd.s32 1, %s3583
              $region50: #{unet_innermost_forward.4} parent=43 // loop_footer_branch
                %3582 = sbr.rel target = $region46
              $region51: #{unet_innermost_forward.4} parent=43 // loop_exit
                _
            $region44: #{unet_innermost_forward.4} parent=35 // pred_fallthru
              _
          $region36: #{unet_innermost_forward.4} parent=31 // pred_fallthru
            _
          %3738 = vnop
        $region32: #{unet_innermost_forward.4} parent=27 // pred_fallthru
          _
        // Predicated region
        $region70: #{unet_innermost_forward.4} parent=27 // pred_check
          %p3739 = pneg %p127
        $region71: #{unet_innermost_forward.4} parent=27 // pred_check_branch
          %3741 = sbr.rel (%p3739) target = $region73
        $region72: #{unet_innermost_forward.4} parent=27 // pred_region
          _
        $region73: #{unet_innermost_forward.4} parent=27 // pred_fallthru
          _
      $region28: #{unet_innermost_forward.4} parent=5 // pred_fallthru
        _
      %p3742 = scmp.le.s32.totalorder 2, %s10
      // Predicated region
      $region74: #{unet_innermost_forward.4} parent=5 // pred_check
        %p3743 = pneg %p3742
      $region75: #{unet_innermost_forward.4} parent=5 // pred_check_branch
        %3745 = sbr.rel (%p3743) target = $region77
      $region76: #{unet_innermost_forward.4} parent=5 // pred_region
        %s3746 = ssub.s32 %s10, 2
        // Predicated region
        $region78: #{unet_innermost_forward.4} parent=76 // pred_check
          %p3747 = pneg %p105
        $region79: #{unet_innermost_forward.4} parent=76 // pred_check_branch
          %3749 = sbr.rel (%p3747) target = $region81
        $region80: #{unet_innermost_forward.4} parent=76 // pred_region
          %s3750 = sand.u32 %s90, 1
          %s3751 = sand.u32 %s90, 1
          %s3752 = smul.addr %s3751, 128
          %s3753 = scalar_lea.vmem [#allocation2], %s3752
        $region81: #{unet_innermost_forward.4} parent=76 // pred_fallthru
          _
        // Predicated region
        $region82: #{unet_innermost_forward.4} parent=76 // pred_check
          %p3754 = pneg %p133
        $region83: #{unet_innermost_forward.4} parent=76 // pred_check_branch
          %3756 = sbr.rel (%p3754) target = $region85
        $region84: #{unet_innermost_forward.4} parent=76 // pred_region
          %p3757 = scmp.lt.s32.totalorder %s22, 1
          %s3758 = scalar_select %p3757, %s22, 1
          %p3759 = scmp.lt.s32.totalorder %s21, 0
          %s3760 = scalar_select %p3759, %s21, 0
          %s3761 = sadd.s32 %s3760, %s3758
          %s3762 = smul.addr %s3761, 2
          %s3763 = scalar_lea.vmem %s3, %s3762
        $region85: #{unet_innermost_forward.4} parent=76 // pred_fallthru
          _
      $region77: #{unet_innermost_forward.4} parent=5 // pred_fallthru
        _
    $region6: #{unet_innermost_forward.4} parent=1 // loop_footer
      %s14 = sadd.s32 1, %s10
    $region7: #{unet_innermost_forward.4} parent=1 // loop_footer_branch
      %9 = sbr.rel target = $region3
    $region8: #{unet_innermost_forward.4} parent=1 // loop_exit
      _

</llo_original>
